<compile_context>
chip_gen: v7x
topology: tpu7x:2x2x1
jax: 0.10.0
libtpu: 0.0.40
codegen_flags: <defaults>
</compile_context>

<pallas_src>
import functools

import numpy as np

import jax
import jax.numpy as jnp
from jax import lax
from jax.experimental import pallas as pl
from jax.experimental.pallas import tpu as pltpu


# --------------------------------------------------------------------------
# Pallas kernel 1: fused matmul + bias (+ ReLU) with an M-parallel grid.
# Used for layers 0..3 (im2col patches x packed weight).  Operands bf16,
# accumulate f32.
# --------------------------------------------------------------------------
def _mm_bias_act_kernel(a_ref, w_ref, b_ref, o_ref, *, relu):
    acc = jnp.dot(a_ref[...], w_ref[...], preferred_element_type=jnp.float32)
    acc = acc + b_ref[...]                 # (1, N) bias broadcasts over rows
    if relu:
        acc = jnp.maximum(acc, 0.0)
    o_ref[...] = acc.astype(o_ref.dtype)


def matmul_bias_relu(a, w, bias2d, relu=True, tm=512):
    """out = relu(a @ w + bias).  a:(M,K) bf16, w:(K,N) bf16, bias:(1,N) f32."""
    M, K = a.shape
    K2, N = w.shape
    assert K == K2
    tm = tm if (M % tm == 0) else M        # M here is always 8-aligned
    grid = (M // tm,)
    return pl.pallas_call(
        functools.partial(_mm_bias_act_kernel, relu=relu),
        out_shape=jax.ShapeDtypeStruct((M, N), jnp.float32),
        grid=grid,
        in_specs=[pl.BlockSpec((tm, K), lambda i: (i, 0)),
                  pl.BlockSpec((K, N), lambda i: (0, 0)),
                  pl.BlockSpec((1, N), lambda i: (0, 0))],
        out_specs=pl.BlockSpec((tm, N), lambda i: (i, 0)),
        compiler_params=pltpu.CompilerParams(
            dimension_semantics=("parallel",)),
    )(a, w, bias2d)


def conv_layer(x_nhwc, w_mat_bf16, bias2d, stride):
    """3x3 pad-1 conv + ReLU in NHWC via im2col (XLA glue) + Pallas matmul."""
    B, H, W, Cin = x_nhwc.shape
    patches = lax.conv_general_dilated_patches(
        x_nhwc, (3, 3), (stride, stride), [(1, 1), (1, 1)],
        dimension_numbers=("NHWC", "HWIO", "NHWC"))
    _, Ho, Wo, Feat = patches.shape        # feature order = (Cin, kh, kw)
    a = patches.reshape(B * Ho * Wo, Feat).astype(jnp.bfloat16)
    out = matmul_bias_relu(a, w_mat_bf16, bias2d, relu=True)
    Cout = w_mat_bf16.shape[1]
    return out.reshape(B, Ho, Wo, Cout)    # pure reshape: stays NHWC, no transpose


# --------------------------------------------------------------------------
# Pallas kernel 2: fused tail = layer4 conv (from patches) + layers 5..8
# + side maps + L2 normalize + fusion + attention multiply + avg pool
# + classifier.  Everything fits in a few vregs; one launch, no HBM trips.
# --------------------------------------------------------------------------
def _tail_kernel(p4_ref, sel_ref, gsum_ref, bpool_ref,
                 w4_ref, b4_ref, w58_ref, b58_ref, wc_ref, bc_ref,
                 cls_ref, s2_ref, s3_ref, s4_ref, pooled_ref, *, eps):
    f32 = jnp.float32

    # layer4: matmul on pre-extracted stride-2 im2col patches.
    x4 = jnp.dot(p4_ref[...], w4_ref[...], preferred_element_type=f32) + b4_ref[...]
    x4 = jnp.maximum(x4, 0.0)                                   # (P, C)

    def conv3x3(x, l):
        # stride-1 / pad-1 3x3 conv as 9 tap matmuls with precomputed 0/1
        # selection matrices (block-diagonal per batch) -> pure MXU work.
        acc = None
        for t in range(9):
            xw = jnp.dot(x, w58_ref[l * 9 + t], preferred_element_type=f32)
            tap = jnp.dot(sel_ref[t], xw, preferred_element_type=f32)
            acc = tap if acc is None else acc + tap
        return jnp.maximum(acc + b58_ref[l], 0.0)

    x5 = conv3x3(x4, 0)
    x6 = conv3x3(x5, 1)
    x7 = conv3x3(x6, 2)
    x8 = conv3x3(x7, 3)

    def side(x):
        # mean_c(x^2), L2-normalized per batch row (F.normalize semantics:
        # clamp the norm at eps).  Kept broadcast over the channel lanes so
        # every op stays a dense (P, C) tile; rsqrt runs on the EUP.
        m = jnp.broadcast_to(jnp.mean(x * x, axis=1, keepdims=True), x.shape)
        d = jnp.dot(gsum_ref[...], m * m, preferred_element_type=f32)
        return m * lax.rsqrt(jnp.maximum(d, eps * eps))

    s2 = side(x4)
    s3 = side(x7)
    s4 = side(x8)
    ll = s2 + s3 + s4                                           # (P, C), cols equal
    attn = (x4 + x7 + x8) * ll                                  # attention-like map
    pooled = jnp.dot(bpool_ref[...], attn, preferred_element_type=f32)   # (B, C)
    cls = jnp.dot(pooled, wc_ref[...], preferred_element_type=f32) + bc_ref[...]

    cls_ref[...] = cls
    s2_ref[...] = s2[:, 0:1]
    s3_ref[...] = s3[:, 0:1]
    s4_ref[...] = s4[:, 0:1]
    pooled_ref[...] = pooled


def build_tail_constants(B, H, W):
    """Selection matrices for the 3x3/s1/p1 taps + batch sum / pool matrices."""
    P = B * H * W
    sel = np.zeros((9, P, P), np.float32)
    for dy in range(3):
        for dx in range(3):
            t = dy * 3 + dx
            for b in range(B):
                for i in range(H):
                    for j in range(W):
                        ii, jj = i + dy - 1, j + dx - 1
                        if 0 <= ii < H and 0 <= jj < W:
                            sel[t, (b * H + i) * W + j, (b * H + ii) * W + jj] = 1.0
    gsum = np.kron(np.eye(B, dtype=np.float32),
                   np.ones((H * W, H * W), np.float32))           # (P, P)
    bpool = np.kron(np.eye(B, dtype=np.float32),
                    np.full((1, H * W), 1.0 / (H * W), np.float32))  # (B, P)
    return jnp.asarray(sel), jnp.asarray(gsum), jnp.asarray(bpool)


def fused_tail(patches4, packed, B, H, W, eps=1e-12):
    P = B * H * W
    C = packed["w4"].shape[1]
    NC = packed["wc"].shape[1]
    sel, gsum, bpool = build_tail_constants(B, H, W)
    vmem = pl.BlockSpec(memory_space=pltpu.MemorySpace.VMEM)
    outs = pl.pallas_call(
        functools.partial(_tail_kernel, eps=eps),
        out_shape=(jax.ShapeDtypeStruct((B, NC), jnp.float32),
                   jax.ShapeDtypeStruct((P, 1), jnp.float32),
                   jax.ShapeDtypeStruct((P, 1), jnp.float32),
                   jax.ShapeDtypeStruct((P, 1), jnp.float32),
                   jax.ShapeDtypeStruct((B, C), jnp.float32)),
        in_specs=[vmem] * 10,
        out_specs=(vmem,) * 5,
    )(patches4.astype(jnp.float32), sel, gsum, bpool,
      packed["w4"], packed["b4"], packed["w58"], packed["b58"],
      packed["wc"], packed["bc"])
    cls, s2, s3, s4, pooled = outs
    side = lambda s: s.reshape(B, 1, H, W)      # metadata reshape, no transpose
    return cls, side(s2), side(s3), side(s4), pooled


# --------------------------------------------------------------------------
# Parameter construction (deterministic, weights pre-packed once).
# --------------------------------------------------------------------------
LAYER_NAMES = ["layer0", "layer1", "layer2", "layer3", "layer4",
               "layer5", "layer6", "layer7", "layer8"]
LAYER_STRIDES = [1, 1, 2, 2, 2, 1, 1, 1, 1]   # net stride 8 at layer4..layer8
EARLY_STRIDES = (1, 1, 2, 2)                  # layers handled by conv_layer


def kaiming_fan_out(key, shape):
    cout, cin, kh, kw = shape
    std = (2.0 / (cout * kh * kw)) ** 0.5
    return std * jax.random.normal(key, shape, jnp.float32)


def build_params(key, in_ch=3, width=8, num_classes=16):
    convs = []
    cin = in_ch
    for _ in LAYER_NAMES:
        key, kw_, _ = jax.random.split(key, 3)
        w = kaiming_fan_out(kw_, (width, cin, 3, 3))
        b = jnp.zeros((width,), jnp.float32)
        convs.append((w, b))
        cin = width
    key, kc = jax.random.split(key)
    cls_w = 0.001 * jax.random.normal(kc, (num_classes, width), jnp.float32)
    cls_b = jnp.zeros((num_classes,), jnp.float32)

    # Pre-packed, ready-to-use kernel operands (hoisted out of the hot path).
    packed = {
        "early": [(w.reshape(width, -1).T.astype(jnp.bfloat16),     # (Feat, Cout) bf16
                   b.reshape(1, -1).astype(jnp.float32))            # (1, Cout) f32
                  for (w, b) in convs[:4]],
        "w4": convs[4][0].reshape(width, -1).T.astype(jnp.float32),  # (Feat, Cout)
        "b4": convs[4][1].reshape(1, -1).astype(jnp.float32),
        "w58": jnp.stack([convs[5 + l][0][:, :, dy, dx].T            # (36, Cin, Cout)
                          for l in range(4)
                          for dy in range(3)
                          for dx in range(3)]).astype(jnp.float32),
        "b58": jnp.stack([convs[5 + l][1].reshape(1, -1)
                          for l in range(4)]).astype(jnp.float32),   # (4, 1, Cout)
        "wc": cls_w.T.astype(jnp.float32),                           # (Cout, num_classes)
        "bc": cls_b.reshape(1, -1).astype(jnp.float32),
    }
    return {"convs": convs, "classifier": (cls_w, cls_b), "packed": packed}


# --------------------------------------------------------------------------
# DRN_1 forward (num_features=0, norm=False, dropout=0, num_classes>0).
# --------------------------------------------------------------------------
def drn1_forward(x_nchw, params):
    packed = params["packed"]
    x = jnp.transpose(x_nchw, (0, 2, 3, 1))           # NCHW -> NHWC, once
    for (w_mat, b2d), stride in zip(packed["early"], EARLY_STRIDES):
        x = conv_layer(x, w_mat, b2d, stride)         # layers 0..3
    # layer4 (stride-2) im2col patches; its matmul + layers5..8 + head +
    # classifier all run inside the single fused tail kernel.
    patches4 = lax.conv_general_dilated_patches(
        x, (3, 3), (2, 2), [(1, 1), (1, 1)],
        dimension_numbers=("NHWC", "HWIO", "NHWC"))
    B, Ho, Wo, Feat = patches4.shape
    p4 = patches4.reshape(B * Ho * Wo, Feat)
    return fused_tail(p4, packed, B, Ho, Wo)


# --------------------------------------------------------------------------
# Pure-JAX f32 reference for verification.
# --------------------------------------------------------------------------
def drn1_reference(x, params):
    def conv_ref(x, w, b, stride):
        y = lax.conv_general_dilated(
            x, w, (stride, stride), [(1, 1), (1, 1)],
            dimension_numbers=("NCHW", "OIHW", "NCHW"))
        return jnp.maximum(y + b[None, :, None, None], 0.0)

    side = {}
    feats = x
    for name, stride, (w, b) in zip(LAYER_NAMES, LAYER_STRIDES, params["convs"]):
        feats = conv_ref(feats, w, b, stride)
        if name in ("layer4", "layer7", "layer8"):
            side[name] = feats

    def side_map(t):
        B, C, H, W = t.shape
        m = jnp.mean(t ** 2, axis=1).reshape(B, -1)
        m = m / jnp.maximum(jnp.linalg.norm(m, axis=1, keepdims=True), 1e-12)
        return m.reshape(B, 1, H, W)

    l2, l3, l4 = side["layer4"], side["layer7"], side["layer8"]
    s2, s3, s4 = side_map(l2), side_map(l3), side_map(l4)
    ll = s2 + s3 + s4
    attn = (l2 + l3 + l4) * ll
    pooled = jnp.mean(attn, axis=(2, 3))
    cls_w, cls_b = params["classifier"]
    cls_out = pooled @ cls_w.T + cls_b
    return cls_out, s2, s3, s4, pooled


if __name__ == "__main__":
    key = jax.random.PRNGKey(0)
    key, kx, kp = jax.random.split(key, 3)

    # small image input, NCHW (PyTorch convention)
    x = jax.random.normal(kx, (2, 3, 32, 32), jnp.float32)
    params = build_params(kp, in_ch=3, width=8, num_classes=16)

    fwd = jax.jit(drn1_forward)
    outs = jax.block_until_ready(fwd(x, params))
    cls_out, l2_side, l3_side, l4_side, feat = outs

    # sanity: shapes + numerical check vs pure-JAX f32 reference
    assert cls_out.shape == (2, 16)
    assert l2_side.shape == (2, 1, 4, 4)
    assert l3_side.shape == (2, 1, 4, 4)
    assert l4_side.shape == (2, 1, 4, 4)
    assert feat.shape == (2, 8)

    refs = drn1_reference(x, params)
    for got, ref in zip(outs, refs):
        assert jnp.all(jnp.isfinite(got))
        assert jnp.allclose(got, ref, rtol=5e-2, atol=2e-3), (
            float(jnp.max(jnp.abs(got - ref))))

    print("KERNEL_OK")
</pallas_src>

<mosaic_0001>
module attributes {stable_mosaic.version = 11 : i64} {
  func.func @_mm_bias_act_kernel(%arg0: i32, %arg1: memref<512x27xbf16, #tpu.memory_space<vmem>>, %arg2: memref<27x8xbf16, #tpu.memory_space<vmem>>, %arg3: memref<1x8xf32, #tpu.memory_space<vmem>>, %arg4: memref<512x8xf32, #tpu.memory_space<vmem>>) attributes {dimension_semantics = [#tpu.dimension_semantics<parallel>], iteration_bounds = array<i64: 4>, scalar_prefetch = 0 : i64, scratch_operands = 0 : i64, tpu.core_type = #tpu.core_type<tc>, window_params = [{transform_indices = @transform_0, window_bounds = array<i64: 512, 27>}, {pipeline_mode = #tpu.pipeline_mode<synchronous>, transform_indices = @transform_1, window_bounds = array<i64: 27, 8>}, {pipeline_mode = #tpu.pipeline_mode<synchronous>, transform_indices = @transform_2, window_bounds = array<i64: 1, 8>}, {transform_indices = @transform_3, window_bounds = array<i64: 512, 8>}]} {
    %c0 = arith.constant 0 : index
    %c0_0 = arith.constant 0 : index
    %0 = vector.load %arg1[%c0, %c0_0] : memref<512x27xbf16, #tpu.memory_space<vmem>>, vector<512x27xbf16>
    %c0_1 = arith.constant 0 : index
    %c0_2 = arith.constant 0 : index
    %1 = vector.load %arg2[%c0_1, %c0_2] : memref<27x8xbf16, #tpu.memory_space<vmem>>, vector<27x8xbf16>
    %cst = arith.constant dense<0.000000e+00> : vector<512x8xf32>
    %2 = tpu.matmul %0, %1, %cst {dimension_numbers = #tpu.dot_dimension_numbers<[1], [0], [0], [1], [0, 0, 1, 1], [], []>} : vector<512x27xbf16>, vector<27x8xbf16>, vector<512x8xf32> -> vector<512x8xf32>
    %c0_3 = arith.constant 0 : index
    %c0_4 = arith.constant 0 : index
    %3 = vector.load %arg3[%c0_3, %c0_4] : memref<1x8xf32, #tpu.memory_space<vmem>>, vector<1x8xf32>
    %4 = vector.broadcast %3 : vector<1x8xf32> to vector<512x8xf32>
    %5 = arith.addf %2, %4 : vector<512x8xf32>
    %cst_5 = arith.constant 0.000000e+00 : f32
    %6 = vector.broadcast %cst_5 : f32 to vector<512x8xf32>
    %7 = arith.maximumf %5, %6 : vector<512x8xf32>
    %c0_6 = arith.constant 0 : index
    %c0_7 = arith.constant 0 : index
    %8 = vector.load %arg4[%c0_6, %c0_7] : memref<512x8xf32, #tpu.memory_space<vmem>>, vector<512x8xf32>
    tpu.vector_store %arg4[%c0_6, %c0_7], %7 {strides = array<i32>} : memref<512x8xf32, #tpu.memory_space<vmem>>, vector<512x8xf32>,
    return
  }
  func.func @transform_0(%arg0: i32) -> (i32, i32) {
    %c0_i32 = arith.constant 0 : i32
    %c0_i32_0 = arith.constant 0 : i32
    return %arg0, %c0_i32 : i32, i32
  }
  func.func @transform_1(%arg0: i32) -> (i32, i32) {
    %c0_i32 = arith.constant 0 : i32
    %c0_i32_0 = arith.constant 0 : i32
    %c0_i32_1 = arith.constant 0 : i32
    return %c0_i32, %c0_i32_0 : i32, i32
  }
  func.func @transform_2(%arg0: i32) -> (i32, i32) {
    %c0_i32 = arith.constant 0 : i32
    %c0_i32_0 = arith.constant 0 : i32
    %c0_i32_1 = arith.constant 0 : i32
    return %c0_i32, %c0_i32_0 : i32, i32
  }
  func.func @transform_3(%arg0: i32) -> (i32, i32) {
    %c0_i32 = arith.constant 0 : i32
    %c0_i32_0 = arith.constant 0 : i32
    return %arg0, %c0_i32 : i32, i32
  }
}

module attributes {stable_mosaic.version = 11 : i64} {
  func.func @_mm_bias_act_kernel(%arg0: i32, %arg1: memref<512x72xbf16, #tpu.memory_space<vmem>>, %arg2: memref<72x8xbf16, #tpu.memory_space<vmem>>, %arg3: memref<1x8xf32, #tpu.memory_space<vmem>>, %arg4: memref<512x8xf32, #tpu.memory_space<vmem>>) attributes {dimension_semantics = [#tpu.dimension_semantics<parallel>], iteration_bounds = array<i64: 4>, scalar_prefetch = 0 : i64, scratch_operands = 0 : i64, tpu.core_type = #tpu.core_type<tc>, window_params = [{transform_indices = @transform_0, window_bounds = array<i64: 512, 72>}, {pipeline_mode = #tpu.pipeline_mode<synchronous>, transform_indices = @transform_1, window_bounds = array<i64: 72, 8>}, {pipeline_mode = #tpu.pipeline_mode<synchronous>, transform_indices = @transform_2, window_bounds = array<i64: 1, 8>}, {transform_indices = @transform_3, window_bounds = array<i64: 512, 8>}]} {
    %c0 = arith.constant 0 : index
    %c0_0 = arith.constant 0 : index
    %0 = vector.load %arg1[%c0, %c0_0] : memref<512x72xbf16, #tpu.memory_space<vmem>>, vector<512x72xbf16>
    %c0_1 = arith.constant 0 : index
    %c0_2 = arith.constant 0 : index
    %1 = vector.load %arg2[%c0_1, %c0_2] : memref<72x8xbf16, #tpu.memory_space<vmem>>, vector<72x8xbf16>
    %cst = arith.constant dense<0.000000e+00> : vector<512x8xf32>
    %2 = tpu.matmul %0, %1, %cst {dimension_numbers = #tpu.dot_dimension_numbers<[1], [0], [0], [1], [0, 0, 1, 1], [], []>} : vector<512x72xbf16>, vector<72x8xbf16>, vector<512x8xf32> -> vector<512x8xf32>
    %c0_3 = arith.constant 0 : index
    %c0_4 = arith.constant 0 : index
    %3 = vector.load %arg3[%c0_3, %c0_4] : memref<1x8xf32, #tpu.memory_space<vmem>>, vector<1x8xf32>
    %4 = vector.broadcast %3 : vector<1x8xf32> to vector<512x8xf32>
    %5 = arith.addf %2, %4 : vector<512x8xf32>
    %cst_5 = arith.constant 0.000000e+00 : f32
    %6 = vector.broadcast %cst_5 : f32 to vector<512x8xf32>
    %7 = arith.maximumf %5, %6 : vector<512x8xf32>
    %c0_6 = arith.constant 0 : index
    %c0_7 = arith.constant 0 : index
    %8 = vector.load %arg4[%c0_6, %c0_7] : memref<512x8xf32, #tpu.memory_space<vmem>>, vector<512x8xf32>
    tpu.vector_store %arg4[%c0_6, %c0_7], %7 {strides = array<i32>} : memref<512x8xf32, #tpu.memory_space<vmem>>, vector<512x8xf32>,
    return
  }
  func.func @transform_0(%arg0: i32) -> (i32, i32) {
    %c0_i32 = arith.constant 0 : i32
    %c0_i32_0 = arith.constant 0 : i32
    return %arg0, %c0_i32 : i32, i32
  }
  func.func @transform_1(%arg0: i32) -> (i32, i32) {
    %c0_i32 = arith.constant 0 : i32
    %c0_i32_0 = arith.constant 0 : i32
    %c0_i32_1 = arith.constant 0 : i32
    return %c0_i32, %c0_i32_0 : i32, i32
  }
  func.func @transform_2(%arg0: i32) -> (i32, i32) {
    %c0_i32 = arith.constant 0 : i32
    %c0_i32_0 = arith.constant 0 : i32
    %c0_i32_1 = arith.constant 0 : i32
    return %c0_i32, %c0_i32_0 : i32, i32
  }
  func.func @transform_3(%arg0: i32) -> (i32, i32) {
    %c0_i32 = arith.constant 0 : i32
    %c0_i32_0 = arith.constant 0 : i32
    return %arg0, %c0_i32 : i32, i32
  }
}

module attributes {stable_mosaic.version = 11 : i64} {
  func.func @_mm_bias_act_kernel(%arg0: i32, %arg1: memref<512x72xbf16, #tpu.memory_space<vmem>>, %arg2: memref<72x8xbf16, #tpu.memory_space<vmem>>, %arg3: memref<1x8xf32, #tpu.memory_space<vmem>>, %arg4: memref<512x8xf32, #tpu.memory_space<vmem>>) attributes {dimension_semantics = [#tpu.dimension_semantics<parallel>], iteration_bounds = array<i64: 1>, scalar_prefetch = 0 : i64, scratch_operands = 0 : i64, tpu.core_type = #tpu.core_type<tc>, window_params = [{transform_indices = @transform_0, window_bounds = array<i64: 512, 72>}, {pipeline_mode = #tpu.pipeline_mode<synchronous>, transform_indices = @transform_1, window_bounds = array<i64: 72, 8>}, {pipeline_mode = #tpu.pipeline_mode<synchronous>, transform_indices = @transform_2, window_bounds = array<i64: 1, 8>}, {transform_indices = @transform_3, window_bounds = array<i64: 512, 8>}]} {
    %c0 = arith.constant 0 : index
    %c0_0 = arith.constant 0 : index
    %0 = vector.load %arg1[%c0, %c0_0] : memref<512x72xbf16, #tpu.memory_space<vmem>>, vector<512x72xbf16>
    %c0_1 = arith.constant 0 : index
    %c0_2 = arith.constant 0 : index
    %1 = vector.load %arg2[%c0_1, %c0_2] : memref<72x8xbf16, #tpu.memory_space<vmem>>, vector<72x8xbf16>
    %cst = arith.constant dense<0.000000e+00> : vector<512x8xf32>
    %2 = tpu.matmul %0, %1, %cst {dimension_numbers = #tpu.dot_dimension_numbers<[1], [0], [0], [1], [0, 0, 1, 1], [], []>} : vector<512x72xbf16>, vector<72x8xbf16>, vector<512x8xf32> -> vector<512x8xf32>
    %c0_3 = arith.constant 0 : index
    %c0_4 = arith.constant 0 : index
    %3 = vector.load %arg3[%c0_3, %c0_4] : memref<1x8xf32, #tpu.memory_space<vmem>>, vector<1x8xf32>
    %4 = vector.broadcast %3 : vector<1x8xf32> to vector<512x8xf32>
    %5 = arith.addf %2, %4 : vector<512x8xf32>
    %cst_5 = arith.constant 0.000000e+00 : f32
    %6 = vector.broadcast %cst_5 : f32 to vector<512x8xf32>
    %7 = arith.maximumf %5, %6 : vector<512x8xf32>
    %c0_6 = arith.constant 0 : index
    %c0_7 = arith.constant 0 : index
    %8 = vector.load %arg4[%c0_6, %c0_7] : memref<512x8xf32, #tpu.memory_space<vmem>>, vector<512x8xf32>
    tpu.vector_store %arg4[%c0_6, %c0_7], %7 {strides = array<i32>} : memref<512x8xf32, #tpu.memory_space<vmem>>, vector<512x8xf32>,
    return
  }
  func.func @transform_0(%arg0: i32) -> (i32, i32) {
    %c0_i32 = arith.constant 0 : i32
    %c0_i32_0 = arith.constant 0 : i32
    return %arg0, %c0_i32 : i32, i32
  }
  func.func @transform_1(%arg0: i32) -> (i32, i32) {
    %c0_i32 = arith.constant 0 : i32
    %c0_i32_0 = arith.constant 0 : i32
    %c0_i32_1 = arith.constant 0 : i32
    return %c0_i32, %c0_i32_0 : i32, i32
  }
  func.func @transform_2(%arg0: i32) -> (i32, i32) {
    %c0_i32 = arith.constant 0 : i32
    %c0_i32_0 = arith.constant 0 : i32
    %c0_i32_1 = arith.constant 0 : i32
    return %c0_i32, %c0_i32_0 : i32, i32
  }
  func.func @transform_3(%arg0: i32) -> (i32, i32) {
    %c0_i32 = arith.constant 0 : i32
    %c0_i32_0 = arith.constant 0 : i32
    return %arg0, %c0_i32 : i32, i32
  }
}

module attributes {stable_mosaic.version = 11 : i64} {
  func.func @_mm_bias_act_kernel(%arg0: i32, %arg1: memref<128x72xbf16, #tpu.memory_space<vmem>>, %arg2: memref<72x8xbf16, #tpu.memory_space<vmem>>, %arg3: memref<1x8xf32, #tpu.memory_space<vmem>>, %arg4: memref<128x8xf32, #tpu.memory_space<vmem>>) attributes {dimension_semantics = [#tpu.dimension_semantics<parallel>], iteration_bounds = array<i64: 1>, scalar_prefetch = 0 : i64, scratch_operands = 0 : i64, tpu.core_type = #tpu.core_type<tc>, window_params = [{transform_indices = @transform_0, window_bounds = array<i64: 128, 72>}, {pipeline_mode = #tpu.pipeline_mode<synchronous>, transform_indices = @transform_1, window_bounds = array<i64: 72, 8>}, {pipeline_mode = #tpu.pipeline_mode<synchronous>, transform_indices = @transform_2, window_bounds = array<i64: 1, 8>}, {transform_indices = @transform_3, window_bounds = array<i64: 128, 8>}]} {
    %c0 = arith.constant 0 : index
    %c0_0 = arith.constant 0 : index
    %0 = vector.load %arg1[%c0, %c0_0] : memref<128x72xbf16, #tpu.memory_space<vmem>>, vector<128x72xbf16>
    %c0_1 = arith.constant 0 : index
    %c0_2 = arith.constant 0 : index
    %1 = vector.load %arg2[%c0_1, %c0_2] : memref<72x8xbf16, #tpu.memory_space<vmem>>, vector<72x8xbf16>
    %cst = arith.constant dense<0.000000e+00> : vector<128x8xf32>
    %2 = tpu.matmul %0, %1, %cst {dimension_numbers = #tpu.dot_dimension_numbers<[1], [0], [0], [1], [0, 0, 1, 1], [], []>} : vector<128x72xbf16>, vector<72x8xbf16>, vector<128x8xf32> -> vector<128x8xf32>
    %c0_3 = arith.constant 0 : index
    %c0_4 = arith.constant 0 : index
    %3 = vector.load %arg3[%c0_3, %c0_4] : memref<1x8xf32, #tpu.memory_space<vmem>>, vector<1x8xf32>
    %4 = vector.broadcast %3 : vector<1x8xf32> to vector<128x8xf32>
    %5 = arith.addf %2, %4 : vector<128x8xf32>
    %cst_5 = arith.constant 0.000000e+00 : f32
    %6 = vector.broadcast %cst_5 : f32 to vector<128x8xf32>
    %7 = arith.maximumf %5, %6 : vector<128x8xf32>
    %c0_6 = arith.constant 0 : index
    %c0_7 = arith.constant 0 : index
    %8 = vector.load %arg4[%c0_6, %c0_7] : memref<128x8xf32, #tpu.memory_space<vmem>>, vector<128x8xf32>
    tpu.vector_store %arg4[%c0_6, %c0_7], %7 {strides = array<i32>} : memref<128x8xf32, #tpu.memory_space<vmem>>, vector<128x8xf32>,
    return
  }
  func.func @transform_0(%arg0: i32) -> (i32, i32) {
    %c0_i32 = arith.constant 0 : i32
    %c0_i32_0 = arith.constant 0 : i32
    return %arg0, %c0_i32 : i32, i32
  }
  func.func @transform_1(%arg0: i32) -> (i32, i32) {
    %c0_i32 = arith.constant 0 : i32
    %c0_i32_0 = arith.constant 0 : i32
    %c0_i32_1 = arith.constant 0 : i32
    return %c0_i32, %c0_i32_0 : i32, i32
  }
  func.func @transform_2(%arg0: i32) -> (i32, i32) {
    %c0_i32 = arith.constant 0 : i32
    %c0_i32_0 = arith.constant 0 : i32
    %c0_i32_1 = arith.constant 0 : i32
    return %c0_i32, %c0_i32_0 : i32, i32
  }
  func.func @transform_3(%arg0: i32) -> (i32, i32) {
    %c0_i32 = arith.constant 0 : i32
    %c0_i32_0 = arith.constant 0 : i32
    return %arg0, %c0_i32 : i32, i32
  }
}

module attributes {stable_mosaic.version = 11 : i64} {
  func.func @_tail_kernel(%arg0: memref<32x72xf32, #tpu.memory_space<vmem>>, %arg1: memref<9x32x32xf32, #tpu.memory_space<vmem>>, %arg2: memref<32x32xf32, #tpu.memory_space<vmem>>, %arg3: memref<2x32xf32, #tpu.memory_space<vmem>>, %arg4: memref<72x8xf32, #tpu.memory_space<vmem>>, %arg5: memref<1x8xf32, #tpu.memory_space<vmem>>, %arg6: memref<36x8x8xf32, #tpu.memory_space<vmem>>, %arg7: memref<4x1x8xf32, #tpu.memory_space<vmem>>, %arg8: memref<8x16xf32, #tpu.memory_space<vmem>>, %arg9: memref<1x16xf32, #tpu.memory_space<vmem>>, %arg10: memref<2x16xf32, #tpu.memory_space<vmem>>, %arg11: memref<32x1xf32, #tpu.memory_space<vmem>>, %arg12: memref<32x1xf32, #tpu.memory_space<vmem>>, %arg13: memref<32x1xf32, #tpu.memory_space<vmem>>, %arg14: memref<2x8xf32, #tpu.memory_space<vmem>>) attributes {dimension_semantics = [], scalar_prefetch = 0 : i64, scratch_operands = 0 : i64, tpu.core_type = #tpu.core_type<tc>} {
    %c0 = arith.constant 0 : index
    %c0_0 = arith.constant 0 : index
    %0 = vector.load %arg0[%c0, %c0_0] : memref<32x72xf32, #tpu.memory_space<vmem>>, vector<32x72xf32>
    %c0_1 = arith.constant 0 : index
    %c0_2 = arith.constant 0 : index
    %1 = vector.load %arg4[%c0_1, %c0_2] : memref<72x8xf32, #tpu.memory_space<vmem>>, vector<72x8xf32>
    %cst = arith.constant dense<0.000000e+00> : vector<32x8xf32>
    %2 = tpu.matmul %0, %1, %cst {dimension_numbers = #tpu.dot_dimension_numbers<[1], [0], [0], [1], [0, 0, 1, 1], [], []>} : vector<32x72xf32>, vector<72x8xf32>, vector<32x8xf32> -> vector<32x8xf32>
    %c0_3 = arith.constant 0 : index
    %c0_4 = arith.constant 0 : index
    %3 = vector.load %arg5[%c0_3, %c0_4] : memref<1x8xf32, #tpu.memory_space<vmem>>, vector<1x8xf32>
    %4 = vector.broadcast %3 : vector<1x8xf32> to vector<32x8xf32>
    %5 = arith.addf %2, %4 : vector<32x8xf32>
    %cst_5 = arith.constant 0.000000e+00 : f32
    %6 = vector.broadcast %cst_5 : f32 to vector<32x8xf32>
    %7 = arith.maximumf %5, %6 : vector<32x8xf32>
    %c0_6 = arith.constant 0 : index
    %c0_7 = arith.constant 0 : index
    %c0_8 = arith.constant 0 : index
    %8 = vector.load %arg6[%c0_6, %c0_7, %c0_8] : memref<36x8x8xf32, #tpu.memory_space<vmem>>, vector<1x8x8xf32>
    %9 = vector.shape_cast %8 : vector<1x8x8xf32> to vector<8x8xf32>
    %cst_9 = arith.constant dense<0.000000e+00> : vector<32x8xf32>
    %10 = tpu.matmul %7, %9, %cst_9 {dimension_numbers = #tpu.dot_dimension_numbers<[1], [0], [0], [1], [0, 0, 1, 1], [], []>} : vector<32x8xf32>, vector<8x8xf32>, vector<32x8xf32> -> vector<32x8xf32>
    %c0_10 = arith.constant 0 : index
    %c0_11 = arith.constant 0 : index
    %c0_12 = arith.constant 0 : index
    %11 = vector.load %arg1[%c0_10, %c0_11, %c0_12] : memref<9x32x32xf32, #tpu.memory_space<vmem>>, vector<1x32x32xf32>
    %12 = vector.shape_cast %11 : vector<1x32x32xf32> to vector<32x32xf32>
    %cst_13 = arith.constant dense<0.000000e+00> : vector<32x8xf32>
    %13 = tpu.matmul %12, %10, %cst_13 {dimension_numbers = #tpu.dot_dimension_numbers<[1], [0], [0], [1], [0, 0, 1, 1], [], []>} : vector<32x32xf32>, vector<32x8xf32>, vector<32x8xf32> -> vector<32x8xf32>
    %c1 = arith.constant 1 : index
    %c0_14 = arith.constant 0 : index
    %c0_15 = arith.constant 0 : index
    %14 = vector.load %arg6[%c1, %c0_14, %c0_15] : memref<36x8x8xf32, #tpu.memory_space<vmem>>, vector<1x8x8xf32>
    %15 = vector.shape_cast %14 : vector<1x8x8xf32> to vector<8x8xf32>
    %cst_16 = arith.constant dense<0.000000e+00> : vector<32x8xf32>
    %16 = tpu.matmul %7, %15, %cst_16 {dimension_numbers = #tpu.dot_dimension_numbers<[1], [0], [0], [1], [0, 0, 1, 1], [], []>} : vector<32x8xf32>, vector<8x8xf32>, vector<32x8xf32> -> vector<32x8xf32>
    %c1_17 = arith.constant 1 : index
    %c0_18 = arith.constant 0 : index
    %c0_19 = arith.constant 0 : index
    %17 = vector.load %arg1[%c1_17, %c0_18, %c0_19] : memref<9x32x32xf32, #tpu.memory_space<vmem>>, vector<1x32x32xf32>
    %18 = vector.shape_cast %17 : vector<1x32x32xf32> to vector<32x32xf32>
    %cst_20 = arith.constant dense<0.000000e+00> : vector<32x8xf32>
    %19 = tpu.matmul %18, %16, %cst_20 {dimension_numbers = #tpu.dot_dimension_numbers<[1], [0], [0], [1], [0, 0, 1, 1], [], []>} : vector<32x32xf32>, vector<32x8xf32>, vector<32x8xf32> -> vector<32x8xf32>
    %20 = arith.addf %13, %19 : vector<32x8xf32>
    %c2 = arith.constant 2 : index
    %c0_21 = arith.constant 0 : index
    %c0_22 = arith.constant 0 : index
    %21 = vector.load %arg6[%c2, %c0_21, %c0_22] : memref<36x8x8xf32, #tpu.memory_space<vmem>>, vector<1x8x8xf32>
    %22 = vector.shape_cast %21 : vector<1x8x8xf32> to vector<8x8xf32>
    %cst_23 = arith.constant dense<0.000000e+00> : vector<32x8xf32>
    %23 = tpu.matmul %7, %22, %cst_23 {dimension_numbers = #tpu.dot_dimension_numbers<[1], [0], [0], [1], [0, 0, 1, 1], [], []>} : vector<32x8xf32>, vector<8x8xf32>, vector<32x8xf32> -> vector<32x8xf32>
    %c2_24 = arith.constant 2 : index
    %c0_25 = arith.constant 0 : index
    %c0_26 = arith.constant 0 : index
    %24 = vector.load %arg1[%c2_24, %c0_25, %c0_26] : memref<9x32x32xf32, #tpu.memory_space<vmem>>, vector<1x32x32xf32>
    %25 = vector.shape_cast %24 : vector<1x32x32xf32> to vector<32x32xf32>
    %cst_27 = arith.constant dense<0.000000e+00> : vector<32x8xf32>
    %26 = tpu.matmul %25, %23, %cst_27 {dimension_numbers = #tpu.dot_dimension_numbers<[1], [0], [0], [1], [0, 0, 1, 1], [], []>} : vector<32x32xf32>, vector<32x8xf32>, vector<32x8xf32> -> vector<32x8xf32>
    %27 = arith.addf %20, %26 : vector<32x8xf32>
    %c3 = arith.constant 3 : index
    %c0_28 = arith.constant 0 : index
    %c0_29 = arith.constant 0 : index
    %28 = vector.load %arg6[%c3, %c0_28, %c0_29] : memref<36x8x8xf32, #tpu.memory_space<vmem>>, vector<1x8x8xf32>
    %29 = vector.shape_cast %28 : vector<1x8x8xf32> to vector<8x8xf32>
    %cst_30 = arith.constant dense<0.000000e+00> : vector<32x8xf32>
    %30 = tpu.matmul %7, %29, %cst_30 {dimension_numbers = #tpu.dot_dimension_numbers<[1], [0], [0], [1], [0, 0, 1, 1], [], []>} : vector<32x8xf32>, vector<8x8xf32>, vector<32x8xf32> -> vector<32x8xf32>
    %c3_31 = arith.constant 3 : index
    %c0_32 = arith.constant 0 : index
    %c0_33 = arith.constant 0 : index
    %31 = vector.load %arg1[%c3_31, %c0_32, %c0_33] : memref<9x32x32xf32, #tpu.memory_space<vmem>>, vector<1x32x32xf32>
    %32 = vector.shape_cast %31 : vector<1x32x32xf32> to vector<32x32xf32>
    %cst_34 = arith.constant dense<0.000000e+00> : vector<32x8xf32>
    %33 = tpu.matmul %32, %30, %cst_34 {dimension_numbers = #tpu.dot_dimension_numbers<[1], [0], [0], [1], [0, 0, 1, 1], [], []>} : vector<32x32xf32>, vector<32x8xf32>, vector<32x8xf32> -> vector<32x8xf32>
    %34 = arith.addf %27, %33 : vector<32x8xf32>
    %c4 = arith.constant 4 : index
    %c0_35 = arith.constant 0 : index
    %c0_36 = arith.constant 0 : index
    %35 = vector.load %arg6[%c4, %c0_35, %c0_36] : memref<36x8x8xf32, #tpu.memory_space<vmem>>, vector<1x8x8xf32>
    %36 = vector.shape_cast %35 : vector<1x8x8xf32> to vector<8x8xf32>
    %cst_37 = arith.constant dense<0.000000e+00> : vector<32x8xf32>
    %37 = tpu.matmul %7, %36, %cst_37 {dimension_numbers = #tpu.dot_dimension_numbers<[1], [0], [0], [1], [0, 0, 1, 1], [], []>} : vector<32x8xf32>, vector<8x8xf32>, vector<32x8xf32> -> vector<32x8xf32>
    %c4_38 = arith.constant 4 : index
    %c0_39 = arith.constant 0 : index
    %c0_40 = arith.constant 0 : index
    %38 = vector.load %arg1[%c4_38, %c0_39, %c0_40] : memref<9x32x32xf32, #tpu.memory_space<vmem>>, vector<1x32x32xf32>
    %39 = vector.shape_cast %38 : vector<1x32x32xf32> to vector<32x32xf32>
    %cst_41 = arith.constant dense<0.000000e+00> : vector<32x8xf32>
    %40 = tpu.matmul %39, %37, %cst_41 {dimension_numbers = #tpu.dot_dimension_numbers<[1], [0], [0], [1], [0, 0, 1, 1], [], []>} : vector<32x32xf32>, vector<32x8xf32>, vector<32x8xf32> -> vector<32x8xf32>
    %41 = arith.addf %34, %40 : vector<32x8xf32>
    %c5 = arith.constant 5 : index
    %c0_42 = arith.constant 0 : index
    %c0_43 = arith.constant 0 : index
    %42 = vector.load %arg6[%c5, %c0_42, %c0_43] : memref<36x8x8xf32, #tpu.memory_space<vmem>>, vector<1x8x8xf32>
    %43 = vector.shape_cast %42 : vector<1x8x8xf32> to vector<8x8xf32>
    %cst_44 = arith.constant dense<0.000000e+00> : vector<32x8xf32>
    %44 = tpu.matmul %7, %43, %cst_44 {dimension_numbers = #tpu.dot_dimension_numbers<[1], [0], [0], [1], [0, 0, 1, 1], [], []>} : vector<32x8xf32>, vector<8x8xf32>, vector<32x8xf32> -> vector<32x8xf32>
    %c5_45 = arith.constant 5 : index
    %c0_46 = arith.constant 0 : index
    %c0_47 = arith.constant 0 : index
    %45 = vector.load %arg1[%c5_45, %c0_46, %c0_47] : memref<9x32x32xf32, #tpu.memory_space<vmem>>, vector<1x32x32xf32>
    %46 = vector.shape_cast %45 : vector<1x32x32xf32> to vector<32x32xf32>
    %cst_48 = arith.constant dense<0.000000e+00> : vector<32x8xf32>
    %47 = tpu.matmul %46, %44, %cst_48 {dimension_numbers = #tpu.dot_dimension_numbers<[1], [0], [0], [1], [0, 0, 1, 1], [], []>} : vector<32x32xf32>, vector<32x8xf32>, vector<32x8xf32> -> vector<32x8xf32>
    %48 = arith.addf %41, %47 : vector<32x8xf32>
    %c6 = arith.constant 6 : index
    %c0_49 = arith.constant 0 : index
    %c0_50 = arith.constant 0 : index
    %49 = vector.load %arg6[%c6, %c0_49, %c0_50] : memref<36x8x8xf32, #tpu.memory_space<vmem>>, vector<1x8x8xf32>
    %50 = vector.shape_cast %49 : vector<1x8x8xf32> to vector<8x8xf32>
    %cst_51 = arith.constant dense<0.000000e+00> : vector<32x8xf32>
    %51 = tpu.matmul %7, %50, %cst_51 {dimension_numbers = #tpu.dot_dimension_numbers<[1], [0], [0], [1], [0, 0, 1, 1], [], []>} : vector<32x8xf32>, vector<8x8xf32>, vector<32x8xf32> -> vector<32x8xf32>
    %c6_52 = arith.constant 6 : index
    %c0_53 = arith.constant 0 : index
    %c0_54 = arith.constant 0 : index
    %52 = vector.load %arg1[%c6_52, %c0_53, %c0_54] : memref<9x32x32xf32, #tpu.memory_space<vmem>>, vector<1x32x32xf32>
    %53 = vector.shape_cast %52 : vector<1x32x32xf32> to vector<32x32xf32>
    %cst_55 = arith.constant dense<0.000000e+00> : vector<32x8xf32>
    %54 = tpu.matmul %53, %51, %cst_55 {dimension_numbers = #tpu.dot_dimension_numbers<[1], [0], [0], [1], [0, 0, 1, 1], [], []>} : vector<32x32xf32>, vector<32x8xf32>, vector<32x8xf32> -> vector<32x8xf32>
    %55 = arith.addf %48, %54 : vector<32x8xf32>
    %c7 = arith.constant 7 : index
    %c0_56 = arith.constant 0 : index
    %c0_57 = arith.constant 0 : index
    %56 = vector.load %arg6[%c7, %c0_56, %c0_57] : memref<36x8x8xf32, #tpu.memory_space<vmem>>, vector<1x8x8xf32>
    %57 = vector.shape_cast %56 : vector<1x8x8xf32> to vector<8x8xf32>
    %cst_58 = arith.constant dense<0.000000e+00> : vector<32x8xf32>
    %58 = tpu.matmul %7, %57, %cst_58 {dimension_numbers = #tpu.dot_dimension_numbers<[1], [0], [0], [1], [0, 0, 1, 1], [], []>} : vector<32x8xf32>, vector<8x8xf32>, vector<32x8xf32> -> vector<32x8xf32>
    %c7_59 = arith.constant 7 : index
    %c0_60 = arith.constant 0 : index
    %c0_61 = arith.constant 0 : index
    %59 = vector.load %arg1[%c7_59, %c0_60, %c0_61] : memref<9x32x32xf32, #tpu.memory_space<vmem>>, vector<1x32x32xf32>
    %60 = vector.shape_cast %59 : vector<1x32x32xf32> to vector<32x32xf32>
    %cst_62 = arith.constant dense<0.000000e+00> : vector<32x8xf32>
    %61 = tpu.matmul %60, %58, %cst_62 {dimension_numbers = #tpu.dot_dimension_numbers<[1], [0], [0], [1], [0, 0, 1, 1], [], []>} : vector<32x32xf32>, vector<32x8xf32>, vector<32x8xf32> -> vector<32x8xf32>
    %62 = arith.addf %55, %61 : vector<32x8xf32>
    %c8 = arith.constant 8 : index
    %c0_63 = arith.constant 0 : index
    %c0_64 = arith.constant 0 : index
    %63 = vector.load %arg6[%c8, %c0_63, %c0_64] : memref<36x8x8xf32, #tpu.memory_space<vmem>>, vector<1x8x8xf32>
    %64 = vector.shape_cast %63 : vector<1x8x8xf32> to vector<8x8xf32>
    %cst_65 = arith.constant dense<0.000000e+00> : vector<32x8xf32>
    %65 = tpu.matmul %7, %64, %cst_65 {dimension_numbers = #tpu.dot_dimension_numbers<[1], [0], [0], [1], [0, 0, 1, 1], [], []>} : vector<32x8xf32>, vector<8x8xf32>, vector<32x8xf32> -> vector<32x8xf32>
    %c8_66 = arith.constant 8 : index
    %c0_67 = arith.constant 0 : index
    %c0_68 = arith.constant 0 : index
    %66 = vector.load %arg1[%c8_66, %c0_67, %c0_68] : memref<9x32x32xf32, #tpu.memory_space<vmem>>, vector<1x32x32xf32>
    %67 = vector.shape_cast %66 : vector<1x32x32xf32> to vector<32x32xf32>
    %cst_69 = arith.constant dense<0.000000e+00> : vector<32x8xf32>
    %68 = tpu.matmul %67, %65, %cst_69 {dimension_numbers = #tpu.dot_dimension_numbers<[1], [0], [0], [1], [0, 0, 1, 1], [], []>} : vector<32x32xf32>, vector<32x8xf32>, vector<32x8xf32> -> vector<32x8xf32>
    %69 = arith.addf %62, %68 : vector<32x8xf32>
    %c0_70 = arith.constant 0 : index
    %c0_71 = arith.constant 0 : index
    %c0_72 = arith.constant 0 : index
    %70 = vector.load %arg7[%c0_70, %c0_71, %c0_72] : memref<4x1x8xf32, #tpu.memory_space<vmem>>, vector<1x1x8xf32>
    %71 = vector.shape_cast %70 : vector<1x1x8xf32> to vector<1x8xf32>
    %72 = vector.broadcast %71 : vector<1x8xf32> to vector<32x8xf32>
    %73 = arith.addf %69, %72 : vector<32x8xf32>
    %cst_73 = arith.constant 0.000000e+00 : f32
    %74 = vector.broadcast %cst_73 : f32 to vector<32x8xf32>
    %75 = arith.maximumf %73, %74 : vector<32x8xf32>
    %c9 = arith.constant 9 : index
    %c0_74 = arith.constant 0 : index
    %c0_75 = arith.constant 0 : index
    %76 = vector.load %arg6[%c9, %c0_74, %c0_75] : memref<36x8x8xf32, #tpu.memory_space<vmem>>, vector<1x8x8xf32>
    %77 = vector.shape_cast %76 : vector<1x8x8xf32> to vector<8x8xf32>
    %cst_76 = arith.constant dense<0.000000e+00> : vector<32x8xf32>
    %78 = tpu.matmul %75, %77, %cst_76 {dimension_numbers = #tpu.dot_dimension_numbers<[1], [0], [0], [1], [0, 0, 1, 1], [], []>} : vector<32x8xf32>, vector<8x8xf32>, vector<32x8xf32> -> vector<32x8xf32>
    %c0_77 = arith.constant 0 : index
    %c0_78 = arith.constant 0 : index
    %c0_79 = arith.constant 0 : index
    %79 = vector.load %arg1[%c0_77, %c0_78, %c0_79] : memref<9x32x32xf32, #tpu.memory_space<vmem>>, vector<1x32x32xf32>
    %80 = vector.shape_cast %79 : vector<1x32x32xf32> to vector<32x32xf32>
    %cst_80 = arith.constant dense<0.000000e+00> : vector<32x8xf32>
    %81 = tpu.matmul %80, %78, %cst_80 {dimension_numbers = #tpu.dot_dimension_numbers<[1], [0], [0], [1], [0, 0, 1, 1], [], []>} : vector<32x32xf32>, vector<32x8xf32>, vector<32x8xf32> -> vector<32x8xf32>
    %c10 = arith.constant 10 : index
    %c0_81 = arith.constant 0 : index
    %c0_82 = arith.constant 0 : index
    %82 = vector.load %arg6[%c10, %c0_81, %c0_82] : memref<36x8x8xf32, #tpu.memory_space<vmem>>, vector<1x8x8xf32>
    %83 = vector.shape_cast %82 : vector<1x8x8xf32> to vector<8x8xf32>
    %cst_83 = arith.constant dense<0.000000e+00> : vector<32x8xf32>
    %84 = tpu.matmul %75, %83, %cst_83 {dimension_numbers = #tpu.dot_dimension_numbers<[1], [0], [0], [1], [0, 0, 1, 1], [], []>} : vector<32x8xf32>, vector<8x8xf32>, vector<32x8xf32> -> vector<32x8xf32>
    %c1_84 = arith.constant 1 : index
    %c0_85 = arith.constant 0 : index
    %c0_86 = arith.constant 0 : index
    %85 = vector.load %arg1[%c1_84, %c0_85, %c0_86] : memref<9x32x32xf32, #tpu.memory_space<vmem>>, vector<1x32x32xf32>
    %86 = vector.shape_cast %85 : vector<1x32x32xf32> to vector<32x32xf32>
    %cst_87 = arith.constant dense<0.000000e+00> : vector<32x8xf32>
    %87 = tpu.matmul %86, %84, %cst_87 {dimension_numbers = #tpu.dot_dimension_numbers<[1], [0], [0], [1], [0, 0, 1, 1], [], []>} : vector<32x32xf32>, vector<32x8xf32>, vector<32x8xf32> -> vector<32x8xf32>
    %88 = arith.addf %81, %87 : vector<32x8xf32>
    %c11 = arith.constant 11 : index
    %c0_88 = arith.constant 0 : index
    %c0_89 = arith.constant 0 : index
    %89 = vector.load %arg6[%c11, %c0_88, %c0_89] : memref<36x8x8xf32, #tpu.memory_space<vmem>>, vector<1x8x8xf32>
    %90 = vector.shape_cast %89 : vector<1x8x8xf32> to vector<8x8xf32>
    %cst_90 = arith.constant dense<0.000000e+00> : vector<32x8xf32>
    %91 = tpu.matmul %75, %90, %cst_90 {dimension_numbers = #tpu.dot_dimension_numbers<[1], [0], [0], [1], [0, 0, 1, 1], [], []>} : vector<32x8xf32>, vector<8x8xf32>, vector<32x8xf32> -> vector<32x8xf32>
    %c2_91 = arith.constant 2 : index
    %c0_92 = arith.constant 0 : index
    %c0_93 = arith.constant 0 : index
    %92 = vector.load %arg1[%c2_91, %c0_92, %c0_93] : memref<9x32x32xf32, #tpu.memory_space<vmem>>, vector<1x32x32xf32>
    %93 = vector.shape_cast %92 : vector<1x32x32xf32> to vector<32x32xf32>
    %cst_94 = arith.constant dense<0.000000e+00> : vector<32x8xf32>
    %94 = tpu.matmul %93, %91, %cst_94 {dimension_numbers = #tpu.dot_dimension_numbers<[1], [0], [0], [1], [0, 0, 1, 1], [], []>} : vector<32x32xf32>, vector<32x8xf32>, vector<32x8xf32> -> vector<32x8xf32>
    %95 = arith.addf %88, %94 : vector<32x8xf32>
    %c12 = arith.constant 12 : index
    %c0_95 = arith.constant 0 : index
    %c0_96 = arith.constant 0 : index
    %96 = vector.load %arg6[%c12, %c0_95, %c0_96] : memref<36x8x8xf32, #tpu.memory_space<vmem>>, vector<1x8x8xf32>
    %97 = vector.shape_cast %96 : vector<1x8x8xf32> to vector<8x8xf32>
    %cst_97 = arith.constant dense<0.000000e+00> : vector<32x8xf32>
    %98 = tpu.matmul %75, %97, %cst_97 {dimension_numbers = #tpu.dot_dimension_numbers<[1], [0], [0], [1], [0, 0, 1, 1], [], []>} : vector<32x8xf32>, vector<8x8xf32>, vector<32x8xf32> -> vector<32x8xf32>
    %c3_98 = arith.constant 3 : index
    %c0_99 = arith.constant 0 : index
    %c0_100 = arith.constant 0 : index
    %99 = vector.load %arg1[%c3_98, %c0_99, %c0_100] : memref<9x32x32xf32, #tpu.memory_space<vmem>>, vector<1x32x32xf32>
    %100 = vector.shape_cast %99 : vector<1x32x32xf32> to vector<32x32xf32>
    %cst_101 = arith.constant dense<0.000000e+00> : vector<32x8xf32>
    %101 = tpu.matmul %100, %98, %cst_101 {dimension_numbers = #tpu.dot_dimension_numbers<[1], [0], [0], [1], [0, 0, 1, 1], [], []>} : vector<32x32xf32>, vector<32x8xf32>, vector<32x8xf32> -> vector<32x8xf32>
    %102 = arith.addf %95, %101 : vector<32x8xf32>
    %c13 = arith.constant 13 : index
    %c0_102 = arith.constant 0 : index
    %c0_103 = arith.constant 0 : index
    %103 = vector.load %arg6[%c13, %c0_102, %c0_103] : memref<36x8x8xf32, #tpu.memory_space<vmem>>, vector<1x8x8xf32>
    %104 = vector.shape_cast %103 : vector<1x8x8xf32> to vector<8x8xf32>
    %cst_104 = arith.constant dense<0.000000e+00> : vector<32x8xf32>
    %105 = tpu.matmul %75, %104, %cst_104 {dimension_numbers = #tpu.dot_dimension_numbers<[1], [0], [0], [1], [0, 0, 1, 1], [], []>} : vector<32x8xf32>, vector<8x8xf32>, vector<32x8xf32> -> vector<32x8xf32>
    %c4_105 = arith.constant 4 : index
    %c0_106 = arith.constant 0 : index
    %c0_107 = arith.constant 0 : index
    %106 = vector.load %arg1[%c4_105, %c0_106, %c0_107] : memref<9x32x32xf32, #tpu.memory_space<vmem>>, vector<1x32x32xf32>
    %107 = vector.shape_cast %106 : vector<1x32x32xf32> to vector<32x32xf32>
    %cst_108 = arith.constant dense<0.000000e+00> : vector<32x8xf32>
    %108 = tpu.matmul %107, %105, %cst_108 {dimension_numbers = #tpu.dot_dimension_numbers<[1], [0], [0], [1], [0, 0, 1, 1], [], []>} : vector<32x32xf32>, vector<32x8xf32>, vector<32x8xf32> -> vector<32x8xf32>
    %109 = arith.addf %102, %108 : vector<32x8xf32>
    %c14 = arith.constant 14 : index
    %c0_109 = arith.constant 0 : index
    %c0_110 = arith.constant 0 : index
    %110 = vector.load %arg6[%c14, %c0_109, %c0_110] : memref<36x8x8xf32, #tpu.memory_space<vmem>>, vector<1x8x8xf32>
    %111 = vector.shape_cast %110 : vector<1x8x8xf32> to vector<8x8xf32>
    %cst_111 = arith.constant dense<0.000000e+00> : vector<32x8xf32>
    %112 = tpu.matmul %75, %111, %cst_111 {dimension_numbers = #tpu.dot_dimension_numbers<[1], [0], [0], [1], [0, 0, 1, 1], [], []>} : vector<32x8xf32>, vector<8x8xf32>, vector<32x8xf32> -> vector<32x8xf32>
    %c5_112 = arith.constant 5 : index
    %c0_113 = arith.constant 0 : index
    %c0_114 = arith.constant 0 : index
    %113 = vector.load %arg1[%c5_112, %c0_113, %c0_114] : memref<9x32x32xf32, #tpu.memory_space<vmem>>, vector<1x32x32xf32>
    %114 = vector.shape_cast %113 : vector<1x32x32xf32> to vector<32x32xf32>
    %cst_115 = arith.constant dense<0.000000e+00> : vector<32x8xf32>
    %115 = tpu.matmul %114, %112, %cst_115 {dimension_numbers = #tpu.dot_dimension_numbers<[1], [0], [0], [1], [0, 0, 1, 1], [], []>} : vector<32x32xf32>, vector<32x8xf32>, vector<32x8xf32> -> vector<32x8xf32>
    %116 = arith.addf %109, %115 : vector<32x8xf32>
    %c15 = arith.constant 15 : index
    %c0_116 = arith.constant 0 : index
    %c0_117 = arith.constant 0 : index
    %117 = vector.load %arg6[%c15, %c0_116, %c0_117] : memref<36x8x8xf32, #tpu.memory_space<vmem>>, vector<1x8x8xf32>
    %118 = vector.shape_cast %117 : vector<1x8x8xf32> to vector<8x8xf32>
    %cst_118 = arith.constant dense<0.000000e+00> : vector<32x8xf32>
    %119 = tpu.matmul %75, %118, %cst_118 {dimension_numbers = #tpu.dot_dimension_numbers<[1], [0], [0], [1], [0, 0, 1, 1], [], []>} : vector<32x8xf32>, vector<8x8xf32>, vector<32x8xf32> -> vector<32x8xf32>
    %c6_119 = arith.constant 6 : index
    %c0_120 = arith.constant 0 : index
    %c0_121 = arith.constant 0 : index
    %120 = vector.load %arg1[%c6_119, %c0_120, %c0_121] : memref<9x32x32xf32, #tpu.memory_space<vmem>>, vector<1x32x32xf32>
    %121 = vector.shape_cast %120 : vector<1x32x32xf32> to vector<32x32xf32>
    %cst_122 = arith.constant dense<0.000000e+00> : vector<32x8xf32>
    %122 = tpu.matmul %121, %119, %cst_122 {dimension_numbers = #tpu.dot_dimension_numbers<[1], [0], [0], [1], [0, 0, 1, 1], [], []>} : vector<32x32xf32>, vector<32x8xf32>, vector<32x8xf32> -> vector<32x8xf32>
    %123 = arith.addf %116, %122 : vector<32x8xf32>
    %c16 = arith.constant 16 : index
    %c0_123 = arith.constant 0 : index
    %c0_124 = arith.constant 0 : index
    %124 = vector.load %arg6[%c16, %c0_123, %c0_124] : memref<36x8x8xf32, #tpu.memory_space<vmem>>, vector<1x8x8xf32>
    %125 = vector.shape_cast %124 : vector<1x8x8xf32> to vector<8x8xf32>
    %cst_125 = arith.constant dense<0.000000e+00> : vector<32x8xf32>
    %126 = tpu.matmul %75, %125, %cst_125 {dimension_numbers = #tpu.dot_dimension_numbers<[1], [0], [0], [1], [0, 0, 1, 1], [], []>} : vector<32x8xf32>, vector<8x8xf32>, vector<32x8xf32> -> vector<32x8xf32>
    %c7_126 = arith.constant 7 : index
    %c0_127 = arith.constant 0 : index
    %c0_128 = arith.constant 0 : index
    %127 = vector.load %arg1[%c7_126, %c0_127, %c0_128] : memref<9x32x32xf32, #tpu.memory_space<vmem>>, vector<1x32x32xf32>
    %128 = vector.shape_cast %127 : vector<1x32x32xf32> to vector<32x32xf32>
    %cst_129 = arith.constant dense<0.000000e+00> : vector<32x8xf32>
    %129 = tpu.matmul %128, %126, %cst_129 {dimension_numbers = #tpu.dot_dimension_numbers<[1], [0], [0], [1], [0, 0, 1, 1], [], []>} : vector<32x32xf32>, vector<32x8xf32>, vector<32x8xf32> -> vector<32x8xf32>
    %130 = arith.addf %123, %129 : vector<32x8xf32>
    %c17 = arith.constant 17 : index
    %c0_130 = arith.constant 0 : index
    %c0_131 = arith.constant 0 : index
    %131 = vector.load %arg6[%c17, %c0_130, %c0_131] : memref<36x8x8xf32, #tpu.memory_space<vmem>>, vector<1x8x8xf32>
    %132 = vector.shape_cast %131 : vector<1x8x8xf32> to vector<8x8xf32>
    %cst_132 = arith.constant dense<0.000000e+00> : vector<32x8xf32>
    %133 = tpu.matmul %75, %132, %cst_132 {dimension_numbers = #tpu.dot_dimension_numbers<[1], [0], [0], [1], [0, 0, 1, 1], [], []>} : vector<32x8xf32>, vector<8x8xf32>, vector<32x8xf32> -> vector<32x8xf32>
    %c8_133 = arith.constant 8 : index
    %c0_134 = arith.constant 0 : index
    %c0_135 = arith.constant 0 : index
    %134 = vector.load %arg1[%c8_133, %c0_134, %c0_135] : memref<9x32x32xf32, #tpu.memory_space<vmem>>, vector<1x32x32xf32>
    %135 = vector.shape_cast %134 : vector<1x32x32xf32> to vector<32x32xf32>
    %cst_136 = arith.constant dense<0.000000e+00> : vector<32x8xf32>
    %136 = tpu.matmul %135, %133, %cst_136 {dimension_numbers = #tpu.dot_dimension_numbers<[1], [0], [0], [1], [0, 0, 1, 1], [], []>} : vector<32x32xf32>, vector<32x8xf32>, vector<32x8xf32> -> vector<32x8xf32>
    %137 = arith.addf %130, %136 : vector<32x8xf32>
    %c1_137 = arith.constant 1 : index
    %c0_138 = arith.constant 0 : index
    %c0_139 = arith.constant 0 : index
    %138 = vector.load %arg7[%c1_137, %c0_138, %c0_139] : memref<4x1x8xf32, #tpu.memory_space<vmem>>, vector<1x1x8xf32>
    %139 = vector.shape_cast %138 : vector<1x1x8xf32> to vector<1x8xf32>
    %140 = vector.broadcast %139 : vector<1x8xf32> to vector<32x8xf32>
    %141 = arith.addf %137, %140 : vector<32x8xf32>
    %cst_140 = arith.constant 0.000000e+00 : f32
    %142 = vector.broadcast %cst_140 : f32 to vector<32x8xf32>
    %143 = arith.maximumf %141, %142 : vector<32x8xf32>
    %c18 = arith.constant 18 : index
    %c0_141 = arith.constant 0 : index
    %c0_142 = arith.constant 0 : index
    %144 = vector.load %arg6[%c18, %c0_141, %c0_142] : memref<36x8x8xf32, #tpu.memory_space<vmem>>, vector<1x8x8xf32>
    %145 = vector.shape_cast %144 : vector<1x8x8xf32> to vector<8x8xf32>
    %cst_143 = arith.constant dense<0.000000e+00> : vector<32x8xf32>
    %146 = tpu.matmul %143, %145, %cst_143 {dimension_numbers = #tpu.dot_dimension_numbers<[1], [0], [0], [1], [0, 0, 1, 1], [], []>} : vector<32x8xf32>, vector<8x8xf32>, vector<32x8xf32> -> vector<32x8xf32>
    %c0_144 = arith.constant 0 : index
    %c0_145 = arith.constant 0 : index
    %c0_146 = arith.constant 0 : index
    %147 = vector.load %arg1[%c0_144, %c0_145, %c0_146] : memref<9x32x32xf32, #tpu.memory_space<vmem>>, vector<1x32x32xf32>
    %148 = vector.shape_cast %147 : vector<1x32x32xf32> to vector<32x32xf32>
    %cst_147 = arith.constant dense<0.000000e+00> : vector<32x8xf32>
    %149 = tpu.matmul %148, %146, %cst_147 {dimension_numbers = #tpu.dot_dimension_numbers<[1], [0], [0], [1], [0, 0, 1, 1], [], []>} : vector<32x32xf32>, vector<32x8xf32>, vector<32x8xf32> -> vector<32x8xf32>
    %c19 = arith.constant 19 : index
    %c0_148 = arith.constant 0 : index
    %c0_149 = arith.constant 0 : index
    %150 = vector.load %arg6[%c19, %c0_148, %c0_149] : memref<36x8x8xf32, #tpu.memory_space<vmem>>, vector<1x8x8xf32>
    %151 = vector.shape_cast %150 : vector<1x8x8xf32> to vector<8x8xf32>
    %cst_150 = arith.constant dense<0.000000e+00> : vector<32x8xf32>
    %152 = tpu.matmul %143, %151, %cst_150 {dimension_numbers = #tpu.dot_dimension_numbers<[1], [0], [0], [1], [0, 0, 1, 1], [], []>} : vector<32x8xf32>, vector<8x8xf32>, vector<32x8xf32> -> vector<32x8xf32>
    %c1_151 = arith.constant 1 : index
    %c0_152 = arith.constant 0 : index
    %c0_153 = arith.constant 0 : index
    %153 = vector.load %arg1[%c1_151, %c0_152, %c0_153] : memref<9x32x32xf32, #tpu.memory_space<vmem>>, vector<1x32x32xf32>
    %154 = vector.shape_cast %153 : vector<1x32x32xf32> to vector<32x32xf32>
    %cst_154 = arith.constant dense<0.000000e+00> : vector<32x8xf32>
    %155 = tpu.matmul %154, %152, %cst_154 {dimension_numbers = #tpu.dot_dimension_numbers<[1], [0], [0], [1], [0, 0, 1, 1], [], []>} : vector<32x32xf32>, vector<32x8xf32>, vector<32x8xf32> -> vector<32x8xf32>
    %156 = arith.addf %149, %155 : vector<32x8xf32>
    %c20 = arith.constant 20 : index
    %c0_155 = arith.constant 0 : index
    %c0_156 = arith.constant 0 : index
    %157 = vector.load %arg6[%c20, %c0_155, %c0_156] : memref<36x8x8xf32, #tpu.memory_space<vmem>>, vector<1x8x8xf32>
    %158 = vector.shape_cast %157 : vector<1x8x8xf32> to vector<8x8xf32>
    %cst_157 = arith.constant dense<0.000000e+00> : vector<32x8xf32>
    %159 = tpu.matmul %143, %158, %cst_157 {dimension_numbers = #tpu.dot_dimension_numbers<[1], [0], [0], [1], [0, 0, 1, 1], [], []>} : vector<32x8xf32>, vector<8x8xf32>, vector<32x8xf32> -> vector<32x8xf32>
    %c2_158 = arith.constant 2 : index
    %c0_159 = arith.constant 0 : index
    %c0_160 = arith.constant 0 : index
    %160 = vector.load %arg1[%c2_158, %c0_159, %c0_160] : memref<9x32x32xf32, #tpu.memory_space<vmem>>, vector<1x32x32xf32>
    %161 = vector.shape_cast %160 : vector<1x32x32xf32> to vector<32x32xf32>
    %cst_161 = arith.constant dense<0.000000e+00> : vector<32x8xf32>
    %162 = tpu.matmul %161, %159, %cst_161 {dimension_numbers = #tpu.dot_dimension_numbers<[1], [0], [0], [1], [0, 0, 1, 1], [], []>} : vector<32x32xf32>, vector<32x8xf32>, vector<32x8xf32> -> vector<32x8xf32>
    %163 = arith.addf %156, %162 : vector<32x8xf32>
    %c21 = arith.constant 21 : index
    %c0_162 = arith.constant 0 : index
    %c0_163 = arith.constant 0 : index
    %164 = vector.load %arg6[%c21, %c0_162, %c0_163] : memref<36x8x8xf32, #tpu.memory_space<vmem>>, vector<1x8x8xf32>
    %165 = vector.shape_cast %164 : vector<1x8x8xf32> to vector<8x8xf32>
    %cst_164 = arith.constant dense<0.000000e+00> : vector<32x8xf32>
    %166 = tpu.matmul %143, %165, %cst_164 {dimension_numbers = #tpu.dot_dimension_numbers<[1], [0], [0], [1], [0, 0, 1, 1], [], []>} : vector<32x8xf32>, vector<8x8xf32>, vector<32x8xf32> -> vector<32x8xf32>
    %c3_165 = arith.constant 3 : index
    %c0_166 = arith.constant 0 : index
    %c0_167 = arith.constant 0 : index
    %167 = vector.load %arg1[%c3_165, %c0_166, %c0_167] : memref<9x32x32xf32, #tpu.memory_space<vmem>>, vector<1x32x32xf32>
    %168 = vector.shape_cast %167 : vector<1x32x32xf32> to vector<32x32xf32>
    %cst_168 = arith.constant dense<0.000000e+00> : vector<32x8xf32>
    %169 = tpu.matmul %168, %166, %cst_168 {dimension_numbers = #tpu.dot_dimension_numbers<[1], [0], [0], [1], [0, 0, 1, 1], [], []>} : vector<32x32xf32>, vector<32x8xf32>, vector<32x8xf32> -> vector<32x8xf32>
    %170 = arith.addf %163, %169 : vector<32x8xf32>
    %c22 = arith.constant 22 : index
    %c0_169 = arith.constant 0 : index
    %c0_170 = arith.constant 0 : index
    %171 = vector.load %arg6[%c22, %c0_169, %c0_170] : memref<36x8x8xf32, #tpu.memory_space<vmem>>, vector<1x8x8xf32>
    %172 = vector.shape_cast %171 : vector<1x8x8xf32> to vector<8x8xf32>
    %cst_171 = arith.constant dense<0.000000e+00> : vector<32x8xf32>
    %173 = tpu.matmul %143, %172, %cst_171 {dimension_numbers = #tpu.dot_dimension_numbers<[1], [0], [0], [1], [0, 0, 1, 1], [], []>} : vector<32x8xf32>, vector<8x8xf32>, vector<32x8xf32> -> vector<32x8xf32>
    %c4_172 = arith.constant 4 : index
    %c0_173 = arith.constant 0 : index
    %c0_174 = arith.constant 0 : index
    %174 = vector.load %arg1[%c4_172, %c0_173, %c0_174] : memref<9x32x32xf32, #tpu.memory_space<vmem>>, vector<1x32x32xf32>
    %175 = vector.shape_cast %174 : vector<1x32x32xf32> to vector<32x32xf32>
    %cst_175 = arith.constant dense<0.000000e+00> : vector<32x8xf32>
    %176 = tpu.matmul %175, %173, %cst_175 {dimension_numbers = #tpu.dot_dimension_numbers<[1], [0], [0], [1], [0, 0, 1, 1], [], []>} : vector<32x32xf32>, vector<32x8xf32>, vector<32x8xf32> -> vector<32x8xf32>
    %177 = arith.addf %170, %176 : vector<32x8xf32>
    %c23 = arith.constant 23 : index
    %c0_176 = arith.constant 0 : index
    %c0_177 = arith.constant 0 : index
    %178 = vector.load %arg6[%c23, %c0_176, %c0_177] : memref<36x8x8xf32, #tpu.memory_space<vmem>>, vector<1x8x8xf32>
    %179 = vector.shape_cast %178 : vector<1x8x8xf32> to vector<8x8xf32>
    %cst_178 = arith.constant dense<0.000000e+00> : vector<32x8xf32>
    %180 = tpu.matmul %143, %179, %cst_178 {dimension_numbers = #tpu.dot_dimension_numbers<[1], [0], [0], [1], [0, 0, 1, 1], [], []>} : vector<32x8xf32>, vector<8x8xf32>, vector<32x8xf32> -> vector<32x8xf32>
    %c5_179 = arith.constant 5 : index
    %c0_180 = arith.constant 0 : index
    %c0_181 = arith.constant 0 : index
    %181 = vector.load %arg1[%c5_179, %c0_180, %c0_181] : memref<9x32x32xf32, #tpu.memory_space<vmem>>, vector<1x32x32xf32>
    %182 = vector.shape_cast %181 : vector<1x32x32xf32> to vector<32x32xf32>
    %cst_182 = arith.constant dense<0.000000e+00> : vector<32x8xf32>
    %183 = tpu.matmul %182, %180, %cst_182 {dimension_numbers = #tpu.dot_dimension_numbers<[1], [0], [0], [1], [0, 0, 1, 1], [], []>} : vector<32x32xf32>, vector<32x8xf32>, vector<32x8xf32> -> vector<32x8xf32>
    %184 = arith.addf %177, %183 : vector<32x8xf32>
    %c24 = arith.constant 24 : index
    %c0_183 = arith.constant 0 : index
    %c0_184 = arith.constant 0 : index
    %185 = vector.load %arg6[%c24, %c0_183, %c0_184] : memref<36x8x8xf32, #tpu.memory_space<vmem>>, vector<1x8x8xf32>
    %186 = vector.shape_cast %185 : vector<1x8x8xf32> to vector<8x8xf32>
    %cst_185 = arith.constant dense<0.000000e+00> : vector<32x8xf32>
    %187 = tpu.matmul %143, %186, %cst_185 {dimension_numbers = #tpu.dot_dimension_numbers<[1], [0], [0], [1], [0, 0, 1, 1], [], []>} : vector<32x8xf32>, vector<8x8xf32>, vector<32x8xf32> -> vector<32x8xf32>
    %c6_186 = arith.constant 6 : index
    %c0_187 = arith.constant 0 : index
    %c0_188 = arith.constant 0 : index
    %188 = vector.load %arg1[%c6_186, %c0_187, %c0_188] : memref<9x32x32xf32, #tpu.memory_space<vmem>>, vector<1x32x32xf32>
    %189 = vector.shape_cast %188 : vector<1x32x32xf32> to vector<32x32xf32>
    %cst_189 = arith.constant dense<0.000000e+00> : vector<32x8xf32>
    %190 = tpu.matmul %189, %187, %cst_189 {dimension_numbers = #tpu.dot_dimension_numbers<[1], [0], [0], [1], [0, 0, 1, 1], [], []>} : vector<32x32xf32>, vector<32x8xf32>, vector<32x8xf32> -> vector<32x8xf32>
    %191 = arith.addf %184, %190 : vector<32x8xf32>
    %c25 = arith.constant 25 : index
    %c0_190 = arith.constant 0 : index
    %c0_191 = arith.constant 0 : index
    %192 = vector.load %arg6[%c25, %c0_190, %c0_191] : memref<36x8x8xf32, #tpu.memory_space<vmem>>, vector<1x8x8xf32>
    %193 = vector.shape_cast %192 : vector<1x8x8xf32> to vector<8x8xf32>
    %cst_192 = arith.constant dense<0.000000e+00> : vector<32x8xf32>
    %194 = tpu.matmul %143, %193, %cst_192 {dimension_numbers = #tpu.dot_dimension_numbers<[1], [0], [0], [1], [0, 0, 1, 1], [], []>} : vector<32x8xf32>, vector<8x8xf32>, vector<32x8xf32> -> vector<32x8xf32>
    %c7_193 = arith.constant 7 : index
    %c0_194 = arith.constant 0 : index
    %c0_195 = arith.constant 0 : index
    %195 = vector.load %arg1[%c7_193, %c0_194, %c0_195] : memref<9x32x32xf32, #tpu.memory_space<vmem>>, vector<1x32x32xf32>
    %196 = vector.shape_cast %195 : vector<1x32x32xf32> to vector<32x32xf32>
    %cst_196 = arith.constant dense<0.000000e+00> : vector<32x8xf32>
    %197 = tpu.matmul %196, %194, %cst_196 {dimension_numbers = #tpu.dot_dimension_numbers<[1], [0], [0], [1], [0, 0, 1, 1], [], []>} : vector<32x32xf32>, vector<32x8xf32>, vector<32x8xf32> -> vector<32x8xf32>
    %198 = arith.addf %191, %197 : vector<32x8xf32>
    %c26 = arith.constant 26 : index
    %c0_197 = arith.constant 0 : index
    %c0_198 = arith.constant 0 : index
    %199 = vector.load %arg6[%c26, %c0_197, %c0_198] : memref<36x8x8xf32, #tpu.memory_space<vmem>>, vector<1x8x8xf32>
    %200 = vector.shape_cast %199 : vector<1x8x8xf32> to vector<8x8xf32>
    %cst_199 = arith.constant dense<0.000000e+00> : vector<32x8xf32>
    %201 = tpu.matmul %143, %200, %cst_199 {dimension_numbers = #tpu.dot_dimension_numbers<[1], [0], [0], [1], [0, 0, 1, 1], [], []>} : vector<32x8xf32>, vector<8x8xf32>, vector<32x8xf32> -> vector<32x8xf32>
    %c8_200 = arith.constant 8 : index
    %c0_201 = arith.constant 0 : index
    %c0_202 = arith.constant 0 : index
    %202 = vector.load %arg1[%c8_200, %c0_201, %c0_202] : memref<9x32x32xf32, #tpu.memory_space<vmem>>, vector<1x32x32xf32>
    %203 = vector.shape_cast %202 : vector<1x32x32xf32> to vector<32x32xf32>
    %cst_203 = arith.constant dense<0.000000e+00> : vector<32x8xf32>
    %204 = tpu.matmul %203, %201, %cst_203 {dimension_numbers = #tpu.dot_dimension_numbers<[1], [0], [0], [1], [0, 0, 1, 1], [], []>} : vector<32x32xf32>, vector<32x8xf32>, vector<32x8xf32> -> vector<32x8xf32>
    %205 = arith.addf %198, %204 : vector<32x8xf32>
    %c2_204 = arith.constant 2 : index
    %c0_205 = arith.constant 0 : index
    %c0_206 = arith.constant 0 : index
    %206 = vector.load %arg7[%c2_204, %c0_205, %c0_206] : memref<4x1x8xf32, #tpu.memory_space<vmem>>, vector<1x1x8xf32>
    %207 = vector.shape_cast %206 : vector<1x1x8xf32> to vector<1x8xf32>
    %208 = vector.broadcast %207 : vector<1x8xf32> to vector<32x8xf32>
    %209 = arith.addf %205, %208 : vector<32x8xf32>
    %cst_207 = arith.constant 0.000000e+00 : f32
    %210 = vector.broadcast %cst_207 : f32 to vector<32x8xf32>
    %211 = arith.maximumf %209, %210 : vector<32x8xf32>
    %c27 = arith.constant 27 : index
    %c0_208 = arith.constant 0 : index
    %c0_209 = arith.constant 0 : index
    %212 = vector.load %arg6[%c27, %c0_208, %c0_209] : memref<36x8x8xf32, #tpu.memory_space<vmem>>, vector<1x8x8xf32>
    %213 = vector.shape_cast %212 : vector<1x8x8xf32> to vector<8x8xf32>
    %cst_210 = arith.constant dense<0.000000e+00> : vector<32x8xf32>
    %214 = tpu.matmul %211, %213, %cst_210 {dimension_numbers = #tpu.dot_dimension_numbers<[1], [0], [0], [1], [0, 0, 1, 1], [], []>} : vector<32x8xf32>, vector<8x8xf32>, vector<32x8xf32> -> vector<32x8xf32>
    %c0_211 = arith.constant 0 : index
    %c0_212 = arith.constant 0 : index
    %c0_213 = arith.constant 0 : index
    %215 = vector.load %arg1[%c0_211, %c0_212, %c0_213] : memref<9x32x32xf32, #tpu.memory_space<vmem>>, vector<1x32x32xf32>
    %216 = vector.shape_cast %215 : vector<1x32x32xf32> to vector<32x32xf32>
    %cst_214 = arith.constant dense<0.000000e+00> : vector<32x8xf32>
    %217 = tpu.matmul %216, %214, %cst_214 {dimension_numbers = #tpu.dot_dimension_numbers<[1], [0], [0], [1], [0, 0, 1, 1], [], []>} : vector<32x32xf32>, vector<32x8xf32>, vector<32x8xf32> -> vector<32x8xf32>
    %c28 = arith.constant 28 : index
    %c0_215 = arith.constant 0 : index
    %c0_216 = arith.constant 0 : index
    %218 = vector.load %arg6[%c28, %c0_215, %c0_216] : memref<36x8x8xf32, #tpu.memory_space<vmem>>, vector<1x8x8xf32>
    %219 = vector.shape_cast %218 : vector<1x8x8xf32> to vector<8x8xf32>
    %cst_217 = arith.constant dense<0.000000e+00> : vector<32x8xf32>
    %220 = tpu.matmul %211, %219, %cst_217 {dimension_numbers = #tpu.dot_dimension_numbers<[1], [0], [0], [1], [0, 0, 1, 1], [], []>} : vector<32x8xf32>, vector<8x8xf32>, vector<32x8xf32> -> vector<32x8xf32>
    %c1_218 = arith.constant 1 : index
    %c0_219 = arith.constant 0 : index
    %c0_220 = arith.constant 0 : index
    %221 = vector.load %arg1[%c1_218, %c0_219, %c0_220] : memref<9x32x32xf32, #tpu.memory_space<vmem>>, vector<1x32x32xf32>
    %222 = vector.shape_cast %221 : vector<1x32x32xf32> to vector<32x32xf32>
    %cst_221 = arith.constant dense<0.000000e+00> : vector<32x8xf32>
    %223 = tpu.matmul %222, %220, %cst_221 {dimension_numbers = #tpu.dot_dimension_numbers<[1], [0], [0], [1], [0, 0, 1, 1], [], []>} : vector<32x32xf32>, vector<32x8xf32>, vector<32x8xf32> -> vector<32x8xf32>
    %224 = arith.addf %217, %223 : vector<32x8xf32>
    %c29 = arith.constant 29 : index
    %c0_222 = arith.constant 0 : index
    %c0_223 = arith.constant 0 : index
    %225 = vector.load %arg6[%c29, %c0_222, %c0_223] : memref<36x8x8xf32, #tpu.memory_space<vmem>>, vector<1x8x8xf32>
    %226 = vector.shape_cast %225 : vector<1x8x8xf32> to vector<8x8xf32>
    %cst_224 = arith.constant dense<0.000000e+00> : vector<32x8xf32>
    %227 = tpu.matmul %211, %226, %cst_224 {dimension_numbers = #tpu.dot_dimension_numbers<[1], [0], [0], [1], [0, 0, 1, 1], [], []>} : vector<32x8xf32>, vector<8x8xf32>, vector<32x8xf32> -> vector<32x8xf32>
    %c2_225 = arith.constant 2 : index
    %c0_226 = arith.constant 0 : index
    %c0_227 = arith.constant 0 : index
    %228 = vector.load %arg1[%c2_225, %c0_226, %c0_227] : memref<9x32x32xf32, #tpu.memory_space<vmem>>, vector<1x32x32xf32>
    %229 = vector.shape_cast %228 : vector<1x32x32xf32> to vector<32x32xf32>
    %cst_228 = arith.constant dense<0.000000e+00> : vector<32x8xf32>
    %230 = tpu.matmul %229, %227, %cst_228 {dimension_numbers = #tpu.dot_dimension_numbers<[1], [0], [0], [1], [0, 0, 1, 1], [], []>} : vector<32x32xf32>, vector<32x8xf32>, vector<32x8xf32> -> vector<32x8xf32>
    %231 = arith.addf %224, %230 : vector<32x8xf32>
    %c30 = arith.constant 30 : index
    %c0_229 = arith.constant 0 : index
    %c0_230 = arith.constant 0 : index
    %232 = vector.load %arg6[%c30, %c0_229, %c0_230] : memref<36x8x8xf32, #tpu.memory_space<vmem>>, vector<1x8x8xf32>
    %233 = vector.shape_cast %232 : vector<1x8x8xf32> to vector<8x8xf32>
    %cst_231 = arith.constant dense<0.000000e+00> : vector<32x8xf32>
    %234 = tpu.matmul %211, %233, %cst_231 {dimension_numbers = #tpu.dot_dimension_numbers<[1], [0], [0], [1], [0, 0, 1, 1], [], []>} : vector<32x8xf32>, vector<8x8xf32>, vector<32x8xf32> -> vector<32x8xf32>
    %c3_232 = arith.constant 3 : index
    %c0_233 = arith.constant 0 : index
    %c0_234 = arith.constant 0 : index
    %235 = vector.load %arg1[%c3_232, %c0_233, %c0_234] : memref<9x32x32xf32, #tpu.memory_space<vmem>>, vector<1x32x32xf32>
    %236 = vector.shape_cast %235 : vector<1x32x32xf32> to vector<32x32xf32>
    %cst_235 = arith.constant dense<0.000000e+00> : vector<32x8xf32>
    %237 = tpu.matmul %236, %234, %cst_235 {dimension_numbers = #tpu.dot_dimension_numbers<[1], [0], [0], [1], [0, 0, 1, 1], [], []>} : vector<32x32xf32>, vector<32x8xf32>, vector<32x8xf32> -> vector<32x8xf32>
    %238 = arith.addf %231, %237 : vector<32x8xf32>
    %c31 = arith.constant 31 : index
    %c0_236 = arith.constant 0 : index
    %c0_237 = arith.constant 0 : index
    %239 = vector.load %arg6[%c31, %c0_236, %c0_237] : memref<36x8x8xf32, #tpu.memory_space<vmem>>, vector<1x8x8xf32>
    %240 = vector.shape_cast %239 : vector<1x8x8xf32> to vector<8x8xf32>
    %cst_238 = arith.constant dense<0.000000e+00> : vector<32x8xf32>
    %241 = tpu.matmul %211, %240, %cst_238 {dimension_numbers = #tpu.dot_dimension_numbers<[1], [0], [0], [1], [0, 0, 1, 1], [], []>} : vector<32x8xf32>, vector<8x8xf32>, vector<32x8xf32> -> vector<32x8xf32>
    %c4_239 = arith.constant 4 : index
    %c0_240 = arith.constant 0 : index
    %c0_241 = arith.constant 0 : index
    %242 = vector.load %arg1[%c4_239, %c0_240, %c0_241] : memref<9x32x32xf32, #tpu.memory_space<vmem>>, vector<1x32x32xf32>
    %243 = vector.shape_cast %242 : vector<1x32x32xf32> to vector<32x32xf32>
    %cst_242 = arith.constant dense<0.000000e+00> : vector<32x8xf32>
    %244 = tpu.matmul %243, %241, %cst_242 {dimension_numbers = #tpu.dot_dimension_numbers<[1], [0], [0], [1], [0, 0, 1, 1], [], []>} : vector<32x32xf32>, vector<32x8xf32>, vector<32x8xf32> -> vector<32x8xf32>
    %245 = arith.addf %238, %244 : vector<32x8xf32>
    %c32 = arith.constant 32 : index
    %c0_243 = arith.constant 0 : index
    %c0_244 = arith.constant 0 : index
    %246 = vector.load %arg6[%c32, %c0_243, %c0_244] : memref<36x8x8xf32, #tpu.memory_space<vmem>>, vector<1x8x8xf32>
    %247 = vector.shape_cast %246 : vector<1x8x8xf32> to vector<8x8xf32>
    %cst_245 = arith.constant dense<0.000000e+00> : vector<32x8xf32>
    %248 = tpu.matmul %211, %247, %cst_245 {dimension_numbers = #tpu.dot_dimension_numbers<[1], [0], [0], [1], [0, 0, 1, 1], [], []>} : vector<32x8xf32>, vector<8x8xf32>, vector<32x8xf32> -> vector<32x8xf32>
    %c5_246 = arith.constant 5 : index
    %c0_247 = arith.constant 0 : index
    %c0_248 = arith.constant 0 : index
    %249 = vector.load %arg1[%c5_246, %c0_247, %c0_248] : memref<9x32x32xf32, #tpu.memory_space<vmem>>, vector<1x32x32xf32>
    %250 = vector.shape_cast %249 : vector<1x32x32xf32> to vector<32x32xf32>
    %cst_249 = arith.constant dense<0.000000e+00> : vector<32x8xf32>
    %251 = tpu.matmul %250, %248, %cst_249 {dimension_numbers = #tpu.dot_dimension_numbers<[1], [0], [0], [1], [0, 0, 1, 1], [], []>} : vector<32x32xf32>, vector<32x8xf32>, vector<32x8xf32> -> vector<32x8xf32>
    %252 = arith.addf %245, %251 : vector<32x8xf32>
    %c33 = arith.constant 33 : index
    %c0_250 = arith.constant 0 : index
    %c0_251 = arith.constant 0 : index
    %253 = vector.load %arg6[%c33, %c0_250, %c0_251] : memref<36x8x8xf32, #tpu.memory_space<vmem>>, vector<1x8x8xf32>
    %254 = vector.shape_cast %253 : vector<1x8x8xf32> to vector<8x8xf32>
    %cst_252 = arith.constant dense<0.000000e+00> : vector<32x8xf32>
    %255 = tpu.matmul %211, %254, %cst_252 {dimension_numbers = #tpu.dot_dimension_numbers<[1], [0], [0], [1], [0, 0, 1, 1], [], []>} : vector<32x8xf32>, vector<8x8xf32>, vector<32x8xf32> -> vector<32x8xf32>
    %c6_253 = arith.constant 6 : index
    %c0_254 = arith.constant 0 : index
    %c0_255 = arith.constant 0 : index
    %256 = vector.load %arg1[%c6_253, %c0_254, %c0_255] : memref<9x32x32xf32, #tpu.memory_space<vmem>>, vector<1x32x32xf32>
    %257 = vector.shape_cast %256 : vector<1x32x32xf32> to vector<32x32xf32>
    %cst_256 = arith.constant dense<0.000000e+00> : vector<32x8xf32>
    %258 = tpu.matmul %257, %255, %cst_256 {dimension_numbers = #tpu.dot_dimension_numbers<[1], [0], [0], [1], [0, 0, 1, 1], [], []>} : vector<32x32xf32>, vector<32x8xf32>, vector<32x8xf32> -> vector<32x8xf32>
    %259 = arith.addf %252, %258 : vector<32x8xf32>
    %c34 = arith.constant 34 : index
    %c0_257 = arith.constant 0 : index
    %c0_258 = arith.constant 0 : index
    %260 = vector.load %arg6[%c34, %c0_257, %c0_258] : memref<36x8x8xf32, #tpu.memory_space<vmem>>, vector<1x8x8xf32>
    %261 = vector.shape_cast %260 : vector<1x8x8xf32> to vector<8x8xf32>
    %cst_259 = arith.constant dense<0.000000e+00> : vector<32x8xf32>
    %262 = tpu.matmul %211, %261, %cst_259 {dimension_numbers = #tpu.dot_dimension_numbers<[1], [0], [0], [1], [0, 0, 1, 1], [], []>} : vector<32x8xf32>, vector<8x8xf32>, vector<32x8xf32> -> vector<32x8xf32>
    %c7_260 = arith.constant 7 : index
    %c0_261 = arith.constant 0 : index
    %c0_262 = arith.constant 0 : index
    %263 = vector.load %arg1[%c7_260, %c0_261, %c0_262] : memref<9x32x32xf32, #tpu.memory_space<vmem>>, vector<1x32x32xf32>
    %264 = vector.shape_cast %263 : vector<1x32x32xf32> to vector<32x32xf32>
    %cst_263 = arith.constant dense<0.000000e+00> : vector<32x8xf32>
    %265 = tpu.matmul %264, %262, %cst_263 {dimension_numbers = #tpu.dot_dimension_numbers<[1], [0], [0], [1], [0, 0, 1, 1], [], []>} : vector<32x32xf32>, vector<32x8xf32>, vector<32x8xf32> -> vector<32x8xf32>
    %266 = arith.addf %259, %265 : vector<32x8xf32>
    %c35 = arith.constant 35 : index
    %c0_264 = arith.constant 0 : index
    %c0_265 = arith.constant 0 : index
    %267 = vector.load %arg6[%c35, %c0_264, %c0_265] : memref<36x8x8xf32, #tpu.memory_space<vmem>>, vector<1x8x8xf32>
    %268 = vector.shape_cast %267 : vector<1x8x8xf32> to vector<8x8xf32>
    %cst_266 = arith.constant dense<0.000000e+00> : vector<32x8xf32>
    %269 = tpu.matmul %211, %268, %cst_266 {dimension_numbers = #tpu.dot_dimension_numbers<[1], [0], [0], [1], [0, 0, 1, 1], [], []>} : vector<32x8xf32>, vector<8x8xf32>, vector<32x8xf32> -> vector<32x8xf32>
    %c8_267 = arith.constant 8 : index
    %c0_268 = arith.constant 0 : index
    %c0_269 = arith.constant 0 : index
    %270 = vector.load %arg1[%c8_267, %c0_268, %c0_269] : memref<9x32x32xf32, #tpu.memory_space<vmem>>, vector<1x32x32xf32>
    %271 = vector.shape_cast %270 : vector<1x32x32xf32> to vector<32x32xf32>
    %cst_270 = arith.constant dense<0.000000e+00> : vector<32x8xf32>
    %272 = tpu.matmul %271, %269, %cst_270 {dimension_numbers = #tpu.dot_dimension_numbers<[1], [0], [0], [1], [0, 0, 1, 1], [], []>} : vector<32x32xf32>, vector<32x8xf32>, vector<32x8xf32> -> vector<32x8xf32>
    %273 = arith.addf %266, %272 : vector<32x8xf32>
    %c3_271 = arith.constant 3 : index
    %c0_272 = arith.constant 0 : index
    %c0_273 = arith.constant 0 : index
    %274 = vector.load %arg7[%c3_271, %c0_272, %c0_273] : memref<4x1x8xf32, #tpu.memory_space<vmem>>, vector<1x1x8xf32>
    %275 = vector.shape_cast %274 : vector<1x1x8xf32> to vector<1x8xf32>
    %276 = vector.broadcast %275 : vector<1x8xf32> to vector<32x8xf32>
    %277 = arith.addf %273, %276 : vector<32x8xf32>
    %cst_274 = arith.constant 0.000000e+00 : f32
    %278 = vector.broadcast %cst_274 : f32 to vector<32x8xf32>
    %279 = arith.maximumf %277, %278 : vector<32x8xf32>
    %280 = arith.mulf %7, %7 : vector<32x8xf32>
    %cst_275 = arith.constant dense<0.000000e+00> : vector<32xf32>
    %281 = vector.multi_reduction <add>, %280, %cst_275 [1] : vector<32x8xf32> to vector<32xf32>
    %282 = vector.shape_cast %281 : vector<32xf32> to vector<32x1xf32>
    %cst_276 = arith.constant 8.000000e+00 : f32
    %283 = vector.broadcast %cst_276 : f32 to vector<32x1xf32>
    %284 = arith.divf %282, %283 : vector<32x1xf32>
    %285 = vector.shape_cast %284 : vector<32x1xf32> to vector<32x1xf32>
    %286 = vector.broadcast %285 : vector<32x1xf32> to vector<32x8xf32>
    %c0_277 = arith.constant 0 : index
    %c0_278 = arith.constant 0 : index
    %287 = vector.load %arg2[%c0_277, %c0_278] : memref<32x32xf32, #tpu.memory_space<vmem>>, vector<32x32xf32>
    %288 = arith.mulf %286, %286 : vector<32x8xf32>
    %cst_279 = arith.constant dense<0.000000e+00> : vector<32x8xf32>
    %289 = tpu.matmul %287, %288, %cst_279 {dimension_numbers = #tpu.dot_dimension_numbers<[1], [0], [0], [1], [0, 0, 1, 1], [], []>} : vector<32x32xf32>, vector<32x8xf32>, vector<32x8xf32> -> vector<32x8xf32>
    %cst_280 = arith.constant 1.000000e-24 : f32
    %290 = vector.broadcast %cst_280 : f32 to vector<32x8xf32>
    %291 = arith.maximumf %289, %290 : vector<32x8xf32>
    %292 = math.rsqrt %291 : vector<32x8xf32>
    %293 = arith.mulf %286, %292 : vector<32x8xf32>
    %294 = arith.mulf %211, %211 : vector<32x8xf32>
    %cst_281 = arith.constant dense<0.000000e+00> : vector<32xf32>
    %295 = vector.multi_reduction <add>, %294, %cst_281 [1] : vector<32x8xf32> to vector<32xf32>
    %296 = vector.shape_cast %295 : vector<32xf32> to vector<32x1xf32>
    %cst_282 = arith.constant 8.000000e+00 : f32
    %297 = vector.broadcast %cst_282 : f32 to vector<32x1xf32>
    %298 = arith.divf %296, %297 : vector<32x1xf32>
    %299 = vector.shape_cast %298 : vector<32x1xf32> to vector<32x1xf32>
    %300 = vector.broadcast %299 : vector<32x1xf32> to vector<32x8xf32>
    %c0_283 = arith.constant 0 : index
    %c0_284 = arith.constant 0 : index
    %301 = vector.load %arg2[%c0_283, %c0_284] : memref<32x32xf32, #tpu.memory_space<vmem>>, vector<32x32xf32>
    %302 = arith.mulf %300, %300 : vector<32x8xf32>
    %cst_285 = arith.constant dense<0.000000e+00> : vector<32x8xf32>
    %303 = tpu.matmul %301, %302, %cst_285 {dimension_numbers = #tpu.dot_dimension_numbers<[1], [0], [0], [1], [0, 0, 1, 1], [], []>} : vector<32x32xf32>, vector<32x8xf32>, vector<32x8xf32> -> vector<32x8xf32>
    %cst_286 = arith.constant 1.000000e-24 : f32
    %304 = vector.broadcast %cst_286 : f32 to vector<32x8xf32>
    %305 = arith.maximumf %303, %304 : vector<32x8xf32>
    %306 = math.rsqrt %305 : vector<32x8xf32>
    %307 = arith.mulf %300, %306 : vector<32x8xf32>
    %308 = arith.mulf %279, %279 : vector<32x8xf32>
    %cst_287 = arith.constant dense<0.000000e+00> : vector<32xf32>
    %309 = vector.multi_reduction <add>, %308, %cst_287 [1] : vector<32x8xf32> to vector<32xf32>
    %310 = vector.shape_cast %309 : vector<32xf32> to vector<32x1xf32>
    %cst_288 = arith.constant 8.000000e+00 : f32
    %311 = vector.broadcast %cst_288 : f32 to vector<32x1xf32>
    %312 = arith.divf %310, %311 : vector<32x1xf32>
    %313 = vector.shape_cast %312 : vector<32x1xf32> to vector<32x1xf32>
    %314 = vector.broadcast %313 : vector<32x1xf32> to vector<32x8xf32>
    %c0_289 = arith.constant 0 : index
    %c0_290 = arith.constant 0 : index
    %315 = vector.load %arg2[%c0_289, %c0_290] : memref<32x32xf32, #tpu.memory_space<vmem>>, vector<32x32xf32>
    %316 = arith.mulf %314, %314 : vector<32x8xf32>
    %cst_291 = arith.constant dense<0.000000e+00> : vector<32x8xf32>
    %317 = tpu.matmul %315, %316, %cst_291 {dimension_numbers = #tpu.dot_dimension_numbers<[1], [0], [0], [1], [0, 0, 1, 1], [], []>} : vector<32x32xf32>, vector<32x8xf32>, vector<32x8xf32> -> vector<32x8xf32>
    %cst_292 = arith.constant 1.000000e-24 : f32
    %318 = vector.broadcast %cst_292 : f32 to vector<32x8xf32>
    %319 = arith.maximumf %317, %318 : vector<32x8xf32>
    %320 = math.rsqrt %319 : vector<32x8xf32>
    %321 = arith.mulf %314, %320 : vector<32x8xf32>
    %322 = arith.addf %293, %307 : vector<32x8xf32>
    %323 = arith.addf %322, %321 : vector<32x8xf32>
    %324 = arith.addf %7, %211 : vector<32x8xf32>
    %325 = arith.addf %324, %279 : vector<32x8xf32>
    %326 = arith.mulf %325, %323 : vector<32x8xf32>
    %c0_293 = arith.constant 0 : index
    %c0_294 = arith.constant 0 : index
    %327 = vector.load %arg3[%c0_293, %c0_294] : memref<2x32xf32, #tpu.memory_space<vmem>>, vector<2x32xf32>
    %cst_295 = arith.constant dense<0.000000e+00> : vector<2x8xf32>
    %328 = tpu.matmul %327, %326, %cst_295 {dimension_numbers = #tpu.dot_dimension_numbers<[1], [0], [0], [1], [0, 0, 1, 1], [], []>} : vector<2x32xf32>, vector<32x8xf32>, vector<2x8xf32> -> vector<2x8xf32>
    %c0_296 = arith.constant 0 : index
    %c0_297 = arith.constant 0 : index
    %329 = vector.load %arg8[%c0_296, %c0_297] : memref<8x16xf32, #tpu.memory_space<vmem>>, vector<8x16xf32>
    %cst_298 = arith.constant dense<0.000000e+00> : vector<2x16xf32>
    %330 = tpu.matmul %328, %329, %cst_298 {dimension_numbers = #tpu.dot_dimension_numbers<[1], [0], [0], [1], [0, 0, 1, 1], [], []>} : vector<2x8xf32>, vector<8x16xf32>, vector<2x16xf32> -> vector<2x16xf32>
    %c0_299 = arith.constant 0 : index
    %c0_300 = arith.constant 0 : index
    %331 = vector.load %arg9[%c0_299, %c0_300] : memref<1x16xf32, #tpu.memory_space<vmem>>, vector<1x16xf32>
    %332 = vector.broadcast %331 : vector<1x16xf32> to vector<2x16xf32>
    %333 = arith.addf %330, %332 : vector<2x16xf32>
    %c0_301 = arith.constant 0 : index
    %c0_302 = arith.constant 0 : index
    %334 = vector.load %arg10[%c0_301, %c0_302] : memref<2x16xf32, #tpu.memory_space<vmem>>, vector<2x16xf32>
    tpu.vector_store %arg10[%c0_301, %c0_302], %333 {strides = array<i32>} : memref<2x16xf32, #tpu.memory_space<vmem>>, vector<2x16xf32>,
    %335 = vector.extract_strided_slice %293 {offsets = [0, 0], sizes = [32, 1], strides = [1, 1]} : vector<32x8xf32> to vector<32x1xf32>
    %c0_303 = arith.constant 0 : index
    %c0_304 = arith.constant 0 : index
    %336 = vector.load %arg11[%c0_303, %c0_304] : memref<32x1xf32, #tpu.memory_space<vmem>>, vector<32x1xf32>
    tpu.vector_store %arg11[%c0_303, %c0_304], %335 {strides = array<i32>} : memref<32x1xf32, #tpu.memory_space<vmem>>, vector<32x1xf32>,
    %337 = vector.extract_strided_slice %307 {offsets = [0, 0], sizes = [32, 1], strides = [1, 1]} : vector<32x8xf32> to vector<32x1xf32>
    %c0_305 = arith.constant 0 : index
    %c0_306 = arith.constant 0 : index
    %338 = vector.load %arg12[%c0_305, %c0_306] : memref<32x1xf32, #tpu.memory_space<vmem>>, vector<32x1xf32>
    tpu.vector_store %arg12[%c0_305, %c0_306], %337 {strides = array<i32>} : memref<32x1xf32, #tpu.memory_space<vmem>>, vector<32x1xf32>,
    %339 = vector.extract_strided_slice %321 {offsets = [0, 0], sizes = [32, 1], strides = [1, 1]} : vector<32x8xf32> to vector<32x1xf32>
    %c0_307 = arith.constant 0 : index
    %c0_308 = arith.constant 0 : index
    %340 = vector.load %arg13[%c0_307, %c0_308] : memref<32x1xf32, #tpu.memory_space<vmem>>, vector<32x1xf32>
    tpu.vector_store %arg13[%c0_307, %c0_308], %339 {strides = array<i32>} : memref<32x1xf32, #tpu.memory_space<vmem>>, vector<32x1xf32>,
    %c0_309 = arith.constant 0 : index
    %c0_310 = arith.constant 0 : index
    %341 = vector.load %arg14[%c0_309, %c0_310] : memref<2x8xf32, #tpu.memory_space<vmem>>, vector<2x8xf32>
    tpu.vector_store %arg14[%c0_309, %c0_310], %328 {strides = array<i32>} : memref<2x8xf32, #tpu.memory_space<vmem>>, vector<2x8xf32>,
    return
  }
}

</mosaic_0001>

<llo_original>
// kernel: drn1_forward.5
$region0: #{drn1_forward.5}
  #allocation0 [shape = 'u32[]', space=smem, size = 0x4, offset = 0x4, fixed_abs, tag = 'smem constant byte address 0x4 - core index']
  #allocation1 [shape = 'u32[144,128]{1,0:T(1,128)}', space=vmem, size = 0x12000, scoped, tag = 'internal scratch']
  %s0 = inlined_call_operand.vmem [shape: bf16[2048,27], index: 0, kind: input, shape index: {}]
  %s1 = inlined_call_operand.vmem [shape: bf16[27,8], index: 1, kind: input, shape index: {}]
  %s2 = inlined_call_operand.vmem [shape: f32[1,8], index: 2, kind: input, shape index: {}]
  %s3 = inlined_call_operand.vmem [shape: f32[2048,8], index: 3, kind: output, shape index: {}]
  %s4 = sld [smem:[#allocation0]]
  $region45: #{drn1_forward.5} parent=0
    _
  %s6 = ssub.s32 1, %s4
  %s7 = scalar_select 0, %s6, %s4
  loop: start=0, step=1, limit=6
  $region2: #{drn1_forward.5} parent=0 // loop_pre_header
    _
  $region3: #{drn1_forward.5} parent=0 // loop_header
    %s9 = sphi 0, %s13
    %p10 = scmp.ge.s32.totalorder %s9, 6
    %s19 = sphi 0, %s21
    %s22 = sphi 0, %s19
    %s23 = sphi 0, %s22
    %s39 = sphi 0, %s23
    %s43 = sphi 0, %s43
    %s45 = sphi 0, %s43
    %s46 = sphi 0, %s45
    %s60 = sphi 0, %s46
    %s64 = sphi 0, %s64
    %s66 = sphi 0, %s64
    %s67 = sphi 0, %s66
    %s81 = sphi 0, %s67
    %s87 = sphi 0, %s89
    %s90 = sphi 0, %s87
    %s91 = sphi 0, %s90
    %s107 = sphi 0, %s91
  $region4: #{drn1_forward.5} parent=0 // loop_header_branch
    %12 = sbr.rel (%p10) target = $region8
  $region5: #{drn1_forward.5} parent=0 // loop_body
    %s14 = ssub.s32 %s9, 1
    %s15 = ssub.s32 %s9, 2
    %s16 = sadd.s32 %s9, 1
    %s17 = ssub.s32 %s9, %s16
    %p18 = scmp.eq.s32.totalorder %s17, 0
    %s20 = sadd.s32 %s19, 1
    %s21 = scalar_select %p18, %s19, %s20
    %p24 = pneg %p18
    %p25 = scmp.eq.s32.totalorder %s9, 3
    %p26 = por %p24, %p25
    %p27 = scmp.ne.s32.totalorder %s19, %s22
    %p28 = scmp.eq.s32.totalorder %s9, 0
    %p29 = por %p27, %p28
    %p30 = scmp.ne.s32.totalorder %s19, %s22
    %p31 = scmp.eq.s32.totalorder %s14, 3
    %p32 = por %p30, %p31
    %p33 = scmp.ne.s32.totalorder %s22, %s23
    %p34 = scmp.eq.s32.totalorder %s14, 0
    %p35 = por %p33, %p34
    %p36 = scmp.ne.s32.totalorder %s22, %s23
    %p37 = scmp.eq.s32.totalorder %s15, 3
    %p38 = por %p36, %p37
    %p40 = scmp.ne.s32.totalorder %s23, %s39
    %p41 = scmp.eq.s32.totalorder %s15, 0
    %p42 = por %p40, %p41
    %s44 = sadd.s32 %s43, 1
    %p47 = scmp.eq.s32.totalorder %s9, 3
    %p48 = scmp.ne.s32.totalorder %s43, %s45
    %p49 = scmp.eq.s32.totalorder %s9, 0
    %p50 = por %p48, %p49
    %p51 = scmp.ne.s32.totalorder %s43, %s45
    %p52 = scmp.eq.s32.totalorder %s14, 3
    %p53 = por %p51, %p52
    %p54 = scmp.ne.s32.totalorder %s45, %s46
    %p55 = scmp.eq.s32.totalorder %s14, 0
    %p56 = por %p54, %p55
    %p57 = scmp.ne.s32.totalorder %s45, %s46
    %p58 = scmp.eq.s32.totalorder %s15, 3
    %p59 = por %p57, %p58
    %p61 = scmp.ne.s32.totalorder %s46, %s60
    %p62 = scmp.eq.s32.totalorder %s15, 0
    %p63 = por %p61, %p62
    %s65 = sadd.s32 %s64, 1
    %p68 = scmp.eq.s32.totalorder %s9, 3
    %p69 = scmp.ne.s32.totalorder %s64, %s66
    %p70 = scmp.eq.s32.totalorder %s9, 0
    %p71 = por %p69, %p70
    %p72 = scmp.ne.s32.totalorder %s64, %s66
    %p73 = scmp.eq.s32.totalorder %s14, 3
    %p74 = por %p72, %p73
    %p75 = scmp.ne.s32.totalorder %s66, %s67
    %p76 = scmp.eq.s32.totalorder %s14, 0
    %p77 = por %p75, %p76
    %p78 = scmp.ne.s32.totalorder %s66, %s67
    %p79 = scmp.eq.s32.totalorder %s15, 3
    %p80 = por %p78, %p79
    %p82 = scmp.ne.s32.totalorder %s67, %s81
    %p83 = scmp.eq.s32.totalorder %s15, 0
    %p84 = por %p82, %p83
    %s85 = ssub.s32 %s9, %s16
    %p86 = scmp.eq.s32.totalorder %s85, 0
    %s88 = sadd.s32 %s87, 1
    %s89 = scalar_select %p86, %s87, %s88
    %p92 = pneg %p86
    %p93 = scmp.eq.s32.totalorder %s9, 3
    %p94 = por %p92, %p93
    %p95 = scmp.ne.s32.totalorder %s87, %s90
    %p96 = scmp.eq.s32.totalorder %s9, 0
    %p97 = por %p95, %p96
    %p98 = scmp.ne.s32.totalorder %s87, %s90
    %p99 = scmp.eq.s32.totalorder %s14, 3
    %p100 = por %p98, %p99
    %p101 = scmp.ne.s32.totalorder %s90, %s91
    %p102 = scmp.eq.s32.totalorder %s14, 0
    %p103 = por %p101, %p102
    %p104 = scmp.ne.s32.totalorder %s90, %s91
    %p105 = scmp.eq.s32.totalorder %s15, 3
    %p106 = por %p104, %p105
    %p108 = scmp.ne.s32.totalorder %s91, %s107
    %p109 = scmp.eq.s32.totalorder %s15, 0
    %p110 = por %p108, %p109
    %p111 = scmp.le.s32.totalorder 1, %s9
    %p112 = scmp.lt.s32.totalorder %s9, 5
    %p113 = pnand %p111, %p112
    %p114 = pneg %p113
    // Predicated region
    $region9: #{drn1_forward.5} parent=5 // pred_check
      _
    $region10: #{drn1_forward.5} parent=5 // pred_check_branch
      %116 = sbr.rel (%p113) target = $region12
    $region11: #{drn1_forward.5} parent=5 // pred_region
      %s117 = ssub.s32 %s9, 1
      // Predicated region
      $region13: #{drn1_forward.5} parent=11 // pred_check
        %p118 = pneg %p56
      $region14: #{drn1_forward.5} parent=11 // pred_check_branch
        %120 = sbr.rel (%p118) target = $region16
      $region15: #{drn1_forward.5} parent=11 // pred_region
        _
      $region16: #{drn1_forward.5} parent=11 // pred_fallthru
        _
      // Predicated region
      $region17: #{drn1_forward.5} parent=11 // pred_check
        %p121 = pneg %p77
      $region18: #{drn1_forward.5} parent=11 // pred_check_branch
        %123 = sbr.rel (%p121) target = $region20
      $region19: #{drn1_forward.5} parent=11 // pred_region
        _
      $region20: #{drn1_forward.5} parent=11 // pred_fallthru
        _
    $region12: #{drn1_forward.5} parent=5 // pred_fallthru
      _
    %p124 = scmp.lt.s32.totalorder %s9, 4
    // Predicated region
    $region21: #{drn1_forward.5} parent=5 // pred_check
      %p125 = pneg %p124
    $region22: #{drn1_forward.5} parent=5 // pred_check_branch
      %127 = sbr.rel (%p125) target = $region24
    $region23: #{drn1_forward.5} parent=5 // pred_region
      // Predicated region
      $region25: #{drn1_forward.5} parent=23 // pred_check
        %p128 = pneg %p29
      $region26: #{drn1_forward.5} parent=23 // pred_check_branch
        %130 = sbr.rel (%p128) target = $region28
      $region27: #{drn1_forward.5} parent=23 // pred_region
        %s131 = smul.u32 64, %s9
        %p132 = scmp.lt.s32.totalorder %s131, 255
        %s133 = scalar_select %p132, %s131, 255
        %s134 = smul.addr %s133, 4
        %s135 = scalar_lea.vmem %s0, %s134
        %s136 = smul.u32 64, %s9
      $region28: #{drn1_forward.5} parent=23 // pred_fallthru
        _
    $region24: #{drn1_forward.5} parent=5 // pred_fallthru
      _
    %p137 = scmp.le.s32.totalorder 1, %s9
    %p138 = scmp.lt.s32.totalorder %s9, 5
    %p139 = pnand %p137, %p138
    %p140 = pneg %p139
    // Predicated region
    $region29: #{drn1_forward.5} parent=5 // pred_check
      _
    $region30: #{drn1_forward.5} parent=5 // pred_check_branch
      %142 = sbr.rel (%p139) target = $region32
    $region31: #{drn1_forward.5} parent=5 // pred_region
      %s143 = ssub.s32 %s9, 1
      %s144 = smul.u32 64, %s14
      %p145 = scmp.lt.s32.totalorder %s144, 255
      %s146 = scalar_select %p145, %s144, 255
      %s147 = smul.addr %s146, 4
      %s148 = scalar_lea.vmem %s0, %s147
      %p149 = pneg %p35
      %p150 = pneg %p32
      %p151 = pneg %p56
      %p152 = pneg %p53
      %p153 = pneg %p77
      %p154 = pneg %p74
      %p155 = pneg %p103
      %p156 = pneg %p100
      %s157 = smul.u32 64, %s14
      %p158 = scmp.lt.s32.totalorder %s157, 255
      %s159 = scalar_select %p158, %s157, 255
      %s160 = smul.addr %s159, 8
      %s161 = scalar_lea.vmem %s3, %s160
      %s162 = smul.u32 64, %s14
      %p163 = scmp.lt.s32.totalorder %s162, 255
      %s164 = scalar_select %p163, %s162, 255
      %s165 = smul.addr %s164, 4
      %s166 = scalar_lea.vmem %s0, %s165
      %s167 = smul.u32 64, %s14
      %s168 = smul.u32 64, %s14
      %p169 = scmp.lt.s32.totalorder %s168, 255
      %s170 = scalar_select %p169, %s168, 255
      %s171 = smul.addr %s170, 8
      %s172 = scalar_lea.vmem %s3, %s171
      %s173 = smul.u32 64, %s14
      %v175 = vld [vmem:[%s166] sm:$0xf]
      %v176 = vld [vmem:[%s166 + $0x4] sm:$0xf]
      %v177 = vld [vmem:[%s166 + $0x8] sm:$0xf]
      %v178 = vld [vmem:[%s166 + $0xc] sm:$0xf]
      %v179 = vld [vmem:[%s166 + $0x10] sm:$0xf]
      %v180 = vld [vmem:[%s166 + $0x14] sm:$0xf]
      %v181 = vld [vmem:[%s166 + $0x18] sm:$0xf]
      %v182 = vld [vmem:[%s166 + $0x1c] sm:$0xf]
      %v183 = vld [vmem:[%s166 + $0x20] sm:$0xf]
      %v184 = vld [vmem:[%s166 + $0x24] sm:$0xf]
      %v185 = vld [vmem:[%s166 + $0x28] sm:$0xf]
      %v186 = vld [vmem:[%s166 + $0x2c] sm:$0xf]
      %v187 = vld [vmem:[%s166 + $0x30] sm:$0xf]
      %v188 = vld [vmem:[%s166 + $0x34] sm:$0xf]
      %v189 = vld [vmem:[%s166 + $0x38] sm:$0xf]
      %v190 = vld [vmem:[%s166 + $0x3c] sm:$0xf]
      %v191 = vld [vmem:[%s166 + $0x40] sm:$0xf]
      %v192 = vld [vmem:[%s166 + $0x44] sm:$0xf]
      %v193 = vld [vmem:[%s166 + $0x48] sm:$0xf]
      %v194 = vld [vmem:[%s166 + $0x4c] sm:$0xf]
      %v195 = vld [vmem:[%s166 + $0x50] sm:$0xf]
      %v196 = vld [vmem:[%s166 + $0x54] sm:$0xf]
      %v197 = vld [vmem:[%s166 + $0x58] sm:$0xf]
      %v198 = vld [vmem:[%s166 + $0x5c] sm:$0xf]
      %v199 = vld [vmem:[%s166 + $0x60] sm:$0xf]
      %v200 = vld [vmem:[%s166 + $0x64] sm:$0xf]
      %v201 = vld [vmem:[%s166 + $0x68] sm:$0xf]
      %v202 = vld [vmem:[%s166 + $0x6c] sm:$0xf]
      %v203 = vld [vmem:[%s166 + $0x70] sm:$0xf]
      %v204 = vld [vmem:[%s166 + $0x74] sm:$0xf]
      %v205 = vld [vmem:[%s166 + $0x78] sm:$0xf]
      %v206 = vld [vmem:[%s166 + $0x7c] sm:$0xf]
      %v207 = vld [vmem:[%s166 + $0x80] sm:$0xf]
      %v208 = vld [vmem:[%s166 + $0x84] sm:$0xf]
      %v209 = vld [vmem:[%s166 + $0x88] sm:$0xf]
      %v210 = vld [vmem:[%s166 + $0x8c] sm:$0xf]
      %v211 = vld [vmem:[%s166 + $0x90] sm:$0xf]
      %v212 = vld [vmem:[%s166 + $0x94] sm:$0xf]
      %v213 = vld [vmem:[%s166 + $0x98] sm:$0xf]
      %v214 = vld [vmem:[%s166 + $0x9c] sm:$0xf]
      %v215 = vld [vmem:[%s166 + $0xa0] sm:$0xf]
      %v216 = vld [vmem:[%s166 + $0xa4] sm:$0xf]
      %v217 = vld [vmem:[%s166 + $0xa8] sm:$0xf]
      %v218 = vld [vmem:[%s166 + $0xac] sm:$0xf]
      %v219 = vld [vmem:[%s166 + $0xb0] sm:$0xf]
      %v220 = vld [vmem:[%s166 + $0xb4] sm:$0xf]
      %v221 = vld [vmem:[%s166 + $0xb8] sm:$0xf]
      %v222 = vld [vmem:[%s166 + $0xbc] sm:$0xf]
      %v223 = vld [vmem:[%s166 + $0xc0] sm:$0xf]
      %v224 = vld [vmem:[%s166 + $0xc4] sm:$0xf]
      %v225 = vld [vmem:[%s166 + $0xc8] sm:$0xf]
      %v226 = vld [vmem:[%s166 + $0xcc] sm:$0xf]
      %v227 = vld [vmem:[%s166 + $0xd0] sm:$0xf]
      %v228 = vld [vmem:[%s166 + $0xd4] sm:$0xf]
      %v229 = vld [vmem:[%s166 + $0xd8] sm:$0xf]
      %v230 = vld [vmem:[%s166 + $0xdc] sm:$0xf]
      %v231 = vld [vmem:[%s166 + $0xe0] sm:$0xf]
      %v232 = vld [vmem:[%s166 + $0xe4] sm:$0xf]
      %v233 = vld [vmem:[%s166 + $0xe8] sm:$0xf]
      %v234 = vld [vmem:[%s166 + $0xec] sm:$0xf]
      %v235 = vld [vmem:[%s166 + $0xf0] sm:$0xf]
      %v236 = vld [vmem:[%s166 + $0xf4] sm:$0xf]
      %v237 = vld [vmem:[%s166 + $0xf8] sm:$0xf]
      %v238 = vld [vmem:[%s166 + $0xfc] sm:$0xf]
      %v239 = vld [vmem:[%s1] sm:$0xf]
      %v240 = vld [vmem:[%s1 + $0x4] sm:$0xf]
      %v241 = vld [vmem:[%s1 + $0x8] sm:$0xf]
      %v242 = vld [vmem:[%s1 + $0xc] sm:$0x3]
      %v243 = vld [vmem:[%s2] sm:$0x1]
      %v245 = vlaneseq
      %v246 = vshrl.u32 %v245, 7
      %v247 = vsub.s32 0, %v246
      %v248 = vrot.slane %v243, %v247
      %v314 = vunpack.c.l.b16 %v175
      %v315 = vunpack.c.l.b16 %v176
      %v316 = vunpack.c.l.b16 %v177
      %v317 = vunpack.c.l.b16 %v178
      %v318 = vunpack.c.l.b16 %v179
      %v319 = vunpack.c.l.b16 %v180
      %v320 = vunpack.c.l.b16 %v181
      %v321 = vunpack.c.l.b16 %v182
      %v322 = vunpack.c.l.b16 %v183
      %v323 = vunpack.c.l.b16 %v184
      %v324 = vunpack.c.l.b16 %v185
      %v325 = vunpack.c.l.b16 %v186
      %v326 = vunpack.c.l.b16 %v187
      %v327 = vunpack.c.l.b16 %v188
      %v328 = vunpack.c.l.b16 %v189
      %v329 = vunpack.c.l.b16 %v190
      %v330 = vunpack.c.l.b16 %v191
      %v331 = vunpack.c.l.b16 %v192
      %v332 = vunpack.c.l.b16 %v193
      %v333 = vunpack.c.l.b16 %v194
      %v334 = vunpack.c.l.b16 %v195
      %v335 = vunpack.c.l.b16 %v196
      %v336 = vunpack.c.l.b16 %v197
      %v337 = vunpack.c.l.b16 %v198
      %v338 = vunpack.c.l.b16 %v199
      %v339 = vunpack.c.l.b16 %v200
      %v340 = vunpack.c.l.b16 %v201
      %v341 = vunpack.c.l.b16 %v202
      %v342 = vunpack.c.l.b16 %v203
      %v343 = vunpack.c.l.b16 %v204
      %v344 = vunpack.c.l.b16 %v205
      %v345 = vunpack.c.l.b16 %v206
      %v346 = vunpack.c.l.b16 %v207
      %v347 = vunpack.c.l.b16 %v208
      %v348 = vunpack.c.l.b16 %v209
      %v349 = vunpack.c.l.b16 %v210
      %v350 = vunpack.c.l.b16 %v211
      %v351 = vunpack.c.l.b16 %v212
      %v352 = vunpack.c.l.b16 %v213
      %v353 = vunpack.c.l.b16 %v214
      %v354 = vunpack.c.l.b16 %v215
      %v355 = vunpack.c.l.b16 %v216
      %v356 = vunpack.c.l.b16 %v217
      %v357 = vunpack.c.l.b16 %v218
      %v358 = vunpack.c.l.b16 %v219
      %v359 = vunpack.c.l.b16 %v220
      %v360 = vunpack.c.l.b16 %v221
      %v361 = vunpack.c.l.b16 %v222
      %v362 = vunpack.c.l.b16 %v223
      %v363 = vunpack.c.l.b16 %v224
      %v364 = vunpack.c.l.b16 %v225
      %v365 = vunpack.c.l.b16 %v226
      %v366 = vunpack.c.l.b16 %v227
      %v367 = vunpack.c.l.b16 %v228
      %v368 = vunpack.c.l.b16 %v229
      %v369 = vunpack.c.l.b16 %v230
      %v370 = vunpack.c.l.b16 %v231
      %v371 = vunpack.c.l.b16 %v232
      %v372 = vunpack.c.l.b16 %v233
      %v373 = vunpack.c.l.b16 %v234
      %v374 = vunpack.c.l.b16 %v235
      %v375 = vunpack.c.l.b16 %v236
      %v376 = vunpack.c.l.b16 %v237
      %v377 = vunpack.c.l.b16 %v238
      %v378 = vpack.c.b16 %v315, %v314
      %v379 = vpack.c.b16 %v317, %v316
      %v380 = vpack.c.b16 %v319, %v318
      %v381 = vpack.c.b16 %v321, %v320
      %v382 = vpack.c.b16 %v323, %v322
      %v383 = vpack.c.b16 %v325, %v324
      %v384 = vpack.c.b16 %v327, %v326
      %v385 = vpack.c.b16 %v329, %v328
      %v386 = vpack.c.b16 %v331, %v330
      %v387 = vpack.c.b16 %v333, %v332
      %v388 = vpack.c.b16 %v335, %v334
      %v389 = vpack.c.b16 %v337, %v336
      %v390 = vpack.c.b16 %v339, %v338
      %v391 = vpack.c.b16 %v341, %v340
      %v392 = vpack.c.b16 %v343, %v342
      %v393 = vpack.c.b16 %v345, %v344
      %v394 = vpack.c.b16 %v347, %v346
      %v395 = vpack.c.b16 %v349, %v348
      %v396 = vpack.c.b16 %v351, %v350
      %v397 = vpack.c.b16 %v353, %v352
      %v398 = vpack.c.b16 %v355, %v354
      %v399 = vpack.c.b16 %v357, %v356
      %v400 = vpack.c.b16 %v359, %v358
      %v401 = vpack.c.b16 %v361, %v360
      %v402 = vpack.c.b16 %v363, %v362
      %v403 = vpack.c.b16 %v365, %v364
      %v404 = vpack.c.b16 %v367, %v366
      %v405 = vpack.c.b16 %v369, %v368
      %v406 = vpack.c.b16 %v371, %v370
      %v407 = vpack.c.b16 %v373, %v372
      %v408 = vpack.c.b16 %v375, %v374
      %v409 = vpack.c.b16 %v377, %v376
      %v414 = vunpack.c.l.b16 %v239
      %v415 = vunpack.c.l.b16 %v240
      %v416 = vunpack.c.l.b16 %v241
      %v417 = vunpack.c.l.b16 %v242
      %v418 = vpack.c.b16 %v415, %v414
      %v419 = vpack.c.b16 %v417, %v416
      %vm421 = vcmask 220160
      %v423 = vsel %vm421, %v378, 0
      %v426 = vsel %vm421, %v379, 0
      %v429 = vsel %vm421, %v380, 0
      %v432 = vsel %vm421, %v381, 0
      %v435 = vsel %vm421, %v382, 0
      %v438 = vsel %vm421, %v383, 0
      %v441 = vsel %vm421, %v384, 0
      %v444 = vsel %vm421, %v385, 0
      %v447 = vsel %vm421, %v386, 0
      %v450 = vsel %vm421, %v387, 0
      %v453 = vsel %vm421, %v388, 0
      %v456 = vsel %vm421, %v389, 0
      %v459 = vsel %vm421, %v390, 0
      %v462 = vsel %vm421, %v391, 0
      %v465 = vsel %vm421, %v392, 0
      %v468 = vsel %vm421, %v393, 0
      %v471 = vsel %vm421, %v394, 0
      %v474 = vsel %vm421, %v395, 0
      %v477 = vsel %vm421, %v396, 0
      %v480 = vsel %vm421, %v397, 0
      %v483 = vsel %vm421, %v398, 0
      %v486 = vsel %vm421, %v399, 0
      %v489 = vsel %vm421, %v400, 0
      %v492 = vsel %vm421, %v401, 0
      %v495 = vsel %vm421, %v402, 0
      %v498 = vsel %vm421, %v403, 0
      %v501 = vsel %vm421, %v404, 0
      %v504 = vsel %vm421, %v405, 0
      %v507 = vsel %vm421, %v406, 0
      %v510 = vsel %vm421, %v407, 0
      %v513 = vsel %vm421, %v408, 0
      %v516 = vsel %vm421, %v409, 0
      %vm518 = vcmask 1044480
      %vm519 = vcmask 1045504
      %v520 = vsel %vm518, 4294967295, 65535
      %v521 = vsel %vm519, %v520, 0
      %v523 = vand.u32 %v419, %v521
      %525 = vmatprep.subr.bf16.mxu0 0
      %526 = vmatpush1.bf16.msra.mxu0 %v418
      %527 = vmatprep.subr.bf16.mxu0 0
      %528 = vmatpush1.bf16.msra.mxu0 %v523
      %529 = vmatprep.subr.bf16.mxu0 0
      %530 = vmatpush1.bf16.msra.mxu0 0
      %531 = vmatprep.subr.bf16.mxu0 0
      %532 = vmatpush1.bf16.msra.mxu0 0
      %533 = vmatprep.subr.bf16.mxu0 0
      %534 = vmatpush1.bf16.msra.mxu0 0
      %535 = vmatprep.subr.bf16.mxu0 0
      %536 = vmatpush1.bf16.msra.mxu0 0
      %537 = vmatprep.subr.bf16.mxu0 0
      %538 = vmatpush1.bf16.msra.mxu0 0
      %539 = vmatprep.subr.bf16.mxu0 0
      %540 = vmatpush1.bf16.msra.mxu0 0
      %541 = vmatprep.subr.bf16.mxu0 0
      %542 = vmatpush1.bf16.msra.mxu0 0
      %543 = vmatprep.subr.bf16.mxu0 0
      %544 = vmatpush1.bf16.msra.mxu0 0
      %545 = vmatprep.subr.bf16.mxu0 0
      %546 = vmatpush1.bf16.msra.mxu0 0
      %547 = vmatprep.subr.bf16.mxu0 0
      %548 = vmatpush1.bf16.msra.mxu0 0
      %549 = vmatprep.subr.bf16.mxu0 0
      %550 = vmatpush1.bf16.msra.mxu0 0
      %551 = vmatprep.subr.bf16.mxu0 0
      %552 = vmatpush1.bf16.msra.mxu0 0
      %553 = vmatprep.subr.bf16.mxu0 0
      %554 = vmatpush1.bf16.msra.mxu0 0
      %555 = vmatprep.subr.bf16.mxu0 0
      %556 = vmatpush1.bf16.msra.mxu0 0
      %557 = vmatprep.mubr.bf16.mxu0 0
      %558 = vmatmul.mubr.bf16.gmra.mrb[0].mxu0 %v423
      %v559 = vpop.f32.mrb[0].mxu0
      %v560 = vadd.f32 %v248, %v559
      %v561 = vpop.f32.mrb[0].mxu0
      %v562 = vpop.f32.mrb[0].mxu0
      %v563 = vadd.f32 %v248, %v562
      %v564 = vpop.f32.mrb[0].mxu0
      %565 = vmatprep.mubr.bf16.mxu0 0
      %566 = vmatmul.mubr.bf16.gmra.mrb[0].mxu0 %v426
      %v567 = vpop.f32.mrb[0].mxu0
      %v568 = vadd.f32 %v248, %v567
      %v569 = vpop.f32.mrb[0].mxu0
      %v570 = vpop.f32.mrb[0].mxu0
      %v571 = vadd.f32 %v248, %v570
      %v572 = vpop.f32.mrb[0].mxu0
      %573 = vmatprep.mubr.bf16.mxu0 0
      %574 = vmatmul.mubr.bf16.gmra.mrb[0].mxu0 %v429
      %v575 = vpop.f32.mrb[0].mxu0
      %v576 = vadd.f32 %v248, %v575
      %v577 = vpop.f32.mrb[0].mxu0
      %v578 = vpop.f32.mrb[0].mxu0
      %v579 = vadd.f32 %v248, %v578
      %v580 = vpop.f32.mrb[0].mxu0
      %581 = vmatprep.mubr.bf16.mxu0 0
      %582 = vmatmul.mubr.bf16.gmra.mrb[0].mxu0 %v432
      %v583 = vpop.f32.mrb[0].mxu0
      %v584 = vadd.f32 %v248, %v583
      %v585 = vpop.f32.mrb[0].mxu0
      %v586 = vpop.f32.mrb[0].mxu0
      %v587 = vadd.f32 %v248, %v586
      %v588 = vpop.f32.mrb[0].mxu0
      %589 = vmatprep.mubr.bf16.mxu0 0
      %590 = vmatmul.mubr.bf16.gmra.mrb[0].mxu0 %v435
      %v591 = vpop.f32.mrb[0].mxu0
      %v592 = vadd.f32 %v248, %v591
      %v593 = vpop.f32.mrb[0].mxu0
      %v594 = vpop.f32.mrb[0].mxu0
      %v595 = vadd.f32 %v248, %v594
      %v596 = vpop.f32.mrb[0].mxu0
      %597 = vmatprep.mubr.bf16.mxu0 0
      %598 = vmatmul.mubr.bf16.gmra.mrb[0].mxu0 %v438
      %v599 = vpop.f32.mrb[0].mxu0
      %v600 = vadd.f32 %v248, %v599
      %v601 = vpop.f32.mrb[0].mxu0
      %v602 = vpop.f32.mrb[0].mxu0
      %v603 = vadd.f32 %v248, %v602
      %v604 = vpop.f32.mrb[0].mxu0
      %605 = vmatprep.mubr.bf16.mxu0 0
      %606 = vmatmul.mubr.bf16.gmra.mrb[0].mxu0 %v441
      %v607 = vpop.f32.mrb[0].mxu0
      %v608 = vadd.f32 %v248, %v607
      %v609 = vpop.f32.mrb[0].mxu0
      %v610 = vpop.f32.mrb[0].mxu0
      %v611 = vadd.f32 %v248, %v610
      %v612 = vpop.f32.mrb[0].mxu0
      %613 = vmatprep.mubr.bf16.mxu0 0
      %614 = vmatmul.mubr.bf16.gmra.mrb[0].mxu0 %v444
      %v615 = vpop.f32.mrb[0].mxu0
      %v616 = vadd.f32 %v248, %v615
      %v617 = vpop.f32.mrb[0].mxu0
      %v618 = vpop.f32.mrb[0].mxu0
      %v619 = vadd.f32 %v248, %v618
      %v620 = vpop.f32.mrb[0].mxu0
      %621 = vmatprep.mubr.bf16.mxu0 0
      %622 = vmatmul.mubr.bf16.gmra.mrb[0].mxu0 %v447
      %v623 = vpop.f32.mrb[0].mxu0
      %v624 = vadd.f32 %v248, %v623
      %v625 = vpop.f32.mrb[0].mxu0
      %v626 = vpop.f32.mrb[0].mxu0
      %v627 = vadd.f32 %v248, %v626
      %v628 = vpop.f32.mrb[0].mxu0
      %629 = vmatprep.mubr.bf16.mxu0 0
      %630 = vmatmul.mubr.bf16.gmra.mrb[0].mxu0 %v450
      %v631 = vpop.f32.mrb[0].mxu0
      %v632 = vadd.f32 %v248, %v631
      %v633 = vpop.f32.mrb[0].mxu0
      %v634 = vpop.f32.mrb[0].mxu0
      %v635 = vadd.f32 %v248, %v634
      %v636 = vpop.f32.mrb[0].mxu0
      %637 = vmatprep.mubr.bf16.mxu0 0
      %638 = vmatmul.mubr.bf16.gmra.mrb[0].mxu0 %v453
      %v639 = vpop.f32.mrb[0].mxu0
      %v640 = vadd.f32 %v248, %v639
      %v641 = vpop.f32.mrb[0].mxu0
      %v642 = vpop.f32.mrb[0].mxu0
      %v643 = vadd.f32 %v248, %v642
      %v644 = vpop.f32.mrb[0].mxu0
      %645 = vmatprep.mubr.bf16.mxu0 0
      %646 = vmatmul.mubr.bf16.gmra.mrb[0].mxu0 %v456
      %v647 = vpop.f32.mrb[0].mxu0
      %v648 = vadd.f32 %v248, %v647
      %v649 = vpop.f32.mrb[0].mxu0
      %v650 = vpop.f32.mrb[0].mxu0
      %v651 = vadd.f32 %v248, %v650
      %v652 = vpop.f32.mrb[0].mxu0
      %653 = vmatprep.mubr.bf16.mxu0 0
      %654 = vmatmul.mubr.bf16.gmra.mrb[0].mxu0 %v459
      %v655 = vpop.f32.mrb[0].mxu0
      %v656 = vadd.f32 %v248, %v655
      %v657 = vpop.f32.mrb[0].mxu0
      %v658 = vpop.f32.mrb[0].mxu0
      %v659 = vadd.f32 %v248, %v658
      %v660 = vpop.f32.mrb[0].mxu0
      %661 = vmatprep.mubr.bf16.mxu0 0
      %662 = vmatmul.mubr.bf16.gmra.mrb[0].mxu0 %v462
      %v663 = vpop.f32.mrb[0].mxu0
      %v664 = vadd.f32 %v248, %v663
      %v665 = vpop.f32.mrb[0].mxu0
      %v666 = vpop.f32.mrb[0].mxu0
      %v667 = vadd.f32 %v248, %v666
      %v668 = vpop.f32.mrb[0].mxu0
      %669 = vmatprep.mubr.bf16.mxu0 0
      %670 = vmatmul.mubr.bf16.gmra.mrb[0].mxu0 %v465
      %v671 = vpop.f32.mrb[0].mxu0
      %v672 = vadd.f32 %v248, %v671
      %v673 = vpop.f32.mrb[0].mxu0
      %v674 = vpop.f32.mrb[0].mxu0
      %v675 = vadd.f32 %v248, %v674
      %v676 = vpop.f32.mrb[0].mxu0
      %677 = vmatprep.mubr.bf16.mxu0 0
      %678 = vmatmul.mubr.bf16.gmra.mrb[0].mxu0 %v468
      %v679 = vpop.f32.mrb[0].mxu0
      %v680 = vadd.f32 %v248, %v679
      %v681 = vpop.f32.mrb[0].mxu0
      %v682 = vpop.f32.mrb[0].mxu0
      %v683 = vadd.f32 %v248, %v682
      %v684 = vpop.f32.mrb[0].mxu0
      %685 = vmatprep.mubr.bf16.mxu0 0
      %686 = vmatmul.mubr.bf16.gmra.mrb[0].mxu0 %v471
      %v687 = vpop.f32.mrb[0].mxu0
      %v688 = vadd.f32 %v248, %v687
      %v689 = vpop.f32.mrb[0].mxu0
      %v690 = vpop.f32.mrb[0].mxu0
      %v691 = vadd.f32 %v248, %v690
      %v692 = vpop.f32.mrb[0].mxu0
      %693 = vmatprep.mubr.bf16.mxu0 0
      %694 = vmatmul.mubr.bf16.gmra.mrb[0].mxu0 %v474
      %v695 = vpop.f32.mrb[0].mxu0
      %v696 = vadd.f32 %v248, %v695
      %v697 = vpop.f32.mrb[0].mxu0
      %v698 = vpop.f32.mrb[0].mxu0
      %v699 = vadd.f32 %v248, %v698
      %v700 = vpop.f32.mrb[0].mxu0
      %701 = vmatprep.mubr.bf16.mxu0 0
      %702 = vmatmul.mubr.bf16.gmra.mrb[0].mxu0 %v477
      %v703 = vpop.f32.mrb[0].mxu0
      %v704 = vadd.f32 %v248, %v703
      %v705 = vpop.f32.mrb[0].mxu0
      %v706 = vpop.f32.mrb[0].mxu0
      %v707 = vadd.f32 %v248, %v706
      %v708 = vpop.f32.mrb[0].mxu0
      %709 = vmatprep.mubr.bf16.mxu0 0
      %710 = vmatmul.mubr.bf16.gmra.mrb[0].mxu0 %v480
      %v711 = vpop.f32.mrb[0].mxu0
      %v712 = vadd.f32 %v248, %v711
      %v713 = vpop.f32.mrb[0].mxu0
      %v714 = vpop.f32.mrb[0].mxu0
      %v715 = vadd.f32 %v248, %v714
      %v716 = vpop.f32.mrb[0].mxu0
      %717 = vmatprep.mubr.bf16.mxu0 0
      %718 = vmatmul.mubr.bf16.gmra.mrb[0].mxu0 %v483
      %v719 = vpop.f32.mrb[0].mxu0
      %v720 = vadd.f32 %v248, %v719
      %v721 = vpop.f32.mrb[0].mxu0
      %v722 = vpop.f32.mrb[0].mxu0
      %v723 = vadd.f32 %v248, %v722
      %v724 = vpop.f32.mrb[0].mxu0
      %725 = vmatprep.mubr.bf16.mxu0 0
      %726 = vmatmul.mubr.bf16.gmra.mrb[0].mxu0 %v486
      %v727 = vpop.f32.mrb[0].mxu0
      %v728 = vadd.f32 %v248, %v727
      %v729 = vpop.f32.mrb[0].mxu0
      %v730 = vpop.f32.mrb[0].mxu0
      %v731 = vadd.f32 %v248, %v730
      %v732 = vpop.f32.mrb[0].mxu0
      %733 = vmatprep.mubr.bf16.mxu0 0
      %734 = vmatmul.mubr.bf16.gmra.mrb[0].mxu0 %v489
      %v735 = vpop.f32.mrb[0].mxu0
      %v736 = vadd.f32 %v248, %v735
      %v737 = vpop.f32.mrb[0].mxu0
      %v738 = vpop.f32.mrb[0].mxu0
      %v739 = vadd.f32 %v248, %v738
      %v740 = vpop.f32.mrb[0].mxu0
      %741 = vmatprep.mubr.bf16.mxu0 0
      %742 = vmatmul.mubr.bf16.gmra.mrb[0].mxu0 %v492
      %v743 = vpop.f32.mrb[0].mxu0
      %v744 = vadd.f32 %v248, %v743
      %v745 = vpop.f32.mrb[0].mxu0
      %v746 = vpop.f32.mrb[0].mxu0
      %v747 = vadd.f32 %v248, %v746
      %v748 = vpop.f32.mrb[0].mxu0
      %749 = vmatprep.mubr.bf16.mxu0 0
      %750 = vmatmul.mubr.bf16.gmra.mrb[0].mxu0 %v495
      %v751 = vpop.f32.mrb[0].mxu0
      %v752 = vadd.f32 %v248, %v751
      %v753 = vpop.f32.mrb[0].mxu0
      %v754 = vpop.f32.mrb[0].mxu0
      %v755 = vadd.f32 %v248, %v754
      %v756 = vpop.f32.mrb[0].mxu0
      %757 = vmatprep.mubr.bf16.mxu0 0
      %758 = vmatmul.mubr.bf16.gmra.mrb[0].mxu0 %v498
      %v759 = vpop.f32.mrb[0].mxu0
      %v760 = vadd.f32 %v248, %v759
      %v761 = vpop.f32.mrb[0].mxu0
      %v762 = vpop.f32.mrb[0].mxu0
      %v763 = vadd.f32 %v248, %v762
      %v764 = vpop.f32.mrb[0].mxu0
      %765 = vmatprep.mubr.bf16.mxu0 0
      %766 = vmatmul.mubr.bf16.gmra.mrb[0].mxu0 %v501
      %v767 = vpop.f32.mrb[0].mxu0
      %v768 = vadd.f32 %v248, %v767
      %v769 = vpop.f32.mrb[0].mxu0
      %v770 = vpop.f32.mrb[0].mxu0
      %v771 = vadd.f32 %v248, %v770
      %v772 = vpop.f32.mrb[0].mxu0
      %773 = vmatprep.mubr.bf16.mxu0 0
      %774 = vmatmul.mubr.bf16.gmra.mrb[0].mxu0 %v504
      %v775 = vpop.f32.mrb[0].mxu0
      %v776 = vadd.f32 %v248, %v775
      %v777 = vpop.f32.mrb[0].mxu0
      %v778 = vpop.f32.mrb[0].mxu0
      %v779 = vadd.f32 %v248, %v778
      %v780 = vpop.f32.mrb[0].mxu0
      %781 = vmatprep.mubr.bf16.mxu0 0
      %782 = vmatmul.mubr.bf16.gmra.mrb[0].mxu0 %v507
      %v783 = vpop.f32.mrb[0].mxu0
      %v784 = vadd.f32 %v248, %v783
      %v785 = vpop.f32.mrb[0].mxu0
      %v786 = vpop.f32.mrb[0].mxu0
      %v787 = vadd.f32 %v248, %v786
      %v788 = vpop.f32.mrb[0].mxu0
      %789 = vmatprep.mubr.bf16.mxu0 0
      %790 = vmatmul.mubr.bf16.gmra.mrb[0].mxu0 %v510
      %v791 = vpop.f32.mrb[0].mxu0
      %v792 = vadd.f32 %v248, %v791
      %v793 = vpop.f32.mrb[0].mxu0
      %v794 = vpop.f32.mrb[0].mxu0
      %v795 = vadd.f32 %v248, %v794
      %v796 = vpop.f32.mrb[0].mxu0
      %797 = vmatprep.mubr.bf16.mxu0 0
      %798 = vmatmul.mubr.bf16.gmra.mrb[0].mxu0 %v513
      %v799 = vpop.f32.mrb[0].mxu0
      %v800 = vadd.f32 %v248, %v799
      %v801 = vpop.f32.mrb[0].mxu0
      %v802 = vpop.f32.mrb[0].mxu0
      %v803 = vadd.f32 %v248, %v802
      %v804 = vpop.f32.mrb[0].mxu0
      %805 = vmatprep.mubr.bf16.mxu0 0
      %806 = vmatmul.mubr.bf16.gmra.mrb[0].mxu0 %v516
      %v807 = vpop.f32.mrb[0].mxu0
      %v808 = vadd.f32 %v248, %v807
      %v809 = vpop.f32.mrb[0].mxu0
      %v810 = vpop.f32.mrb[0].mxu0
      %v811 = vadd.f32 %v248, %v810
      %v812 = vpop.f32.mrb[0].mxu0
      %813 = vdwg.mxu0
      %v814 = vmax.f32 %v560, 0.0
      %v815 = vmax.f32 %v563, 0.0
      %v816 = vmax.f32 %v568, 0.0
      %v817 = vmax.f32 %v571, 0.0
      %v818 = vmax.f32 %v576, 0.0
      %v819 = vmax.f32 %v579, 0.0
      %v820 = vmax.f32 %v584, 0.0
      %v821 = vmax.f32 %v587, 0.0
      %v822 = vmax.f32 %v592, 0.0
      %v823 = vmax.f32 %v595, 0.0
      %v824 = vmax.f32 %v600, 0.0
      %v825 = vmax.f32 %v603, 0.0
      %v826 = vmax.f32 %v608, 0.0
      %v827 = vmax.f32 %v611, 0.0
      %v828 = vmax.f32 %v616, 0.0
      %v829 = vmax.f32 %v619, 0.0
      %v830 = vmax.f32 %v624, 0.0
      %v831 = vmax.f32 %v627, 0.0
      %v832 = vmax.f32 %v632, 0.0
      %v833 = vmax.f32 %v635, 0.0
      %v834 = vmax.f32 %v640, 0.0
      %v835 = vmax.f32 %v643, 0.0
      %v836 = vmax.f32 %v648, 0.0
      %v837 = vmax.f32 %v651, 0.0
      %v838 = vmax.f32 %v656, 0.0
      %v839 = vmax.f32 %v659, 0.0
      %v840 = vmax.f32 %v664, 0.0
      %v841 = vmax.f32 %v667, 0.0
      %v842 = vmax.f32 %v672, 0.0
      %v843 = vmax.f32 %v675, 0.0
      %v844 = vmax.f32 %v680, 0.0
      %v845 = vmax.f32 %v683, 0.0
      %v846 = vmax.f32 %v688, 0.0
      %v847 = vmax.f32 %v691, 0.0
      %v848 = vmax.f32 %v696, 0.0
      %v849 = vmax.f32 %v699, 0.0
      %v850 = vmax.f32 %v704, 0.0
      %v851 = vmax.f32 %v707, 0.0
      %v852 = vmax.f32 %v712, 0.0
      %v853 = vmax.f32 %v715, 0.0
      %v854 = vmax.f32 %v720, 0.0
      %v855 = vmax.f32 %v723, 0.0
      %v856 = vmax.f32 %v728, 0.0
      %v857 = vmax.f32 %v731, 0.0
      %v858 = vmax.f32 %v736, 0.0
      %v859 = vmax.f32 %v739, 0.0
      %v860 = vmax.f32 %v744, 0.0
      %v861 = vmax.f32 %v747, 0.0
      %v862 = vmax.f32 %v752, 0.0
      %v863 = vmax.f32 %v755, 0.0
      %v864 = vmax.f32 %v760, 0.0
      %v865 = vmax.f32 %v763, 0.0
      %v866 = vmax.f32 %v768, 0.0
      %v867 = vmax.f32 %v771, 0.0
      %v868 = vmax.f32 %v776, 0.0
      %v869 = vmax.f32 %v779, 0.0
      %v870 = vmax.f32 %v784, 0.0
      %v871 = vmax.f32 %v787, 0.0
      %v872 = vmax.f32 %v792, 0.0
      %v873 = vmax.f32 %v795, 0.0
      %v874 = vmax.f32 %v800, 0.0
      %v875 = vmax.f32 %v803, 0.0
      %v876 = vmax.f32 %v808, 0.0
      %v877 = vmax.f32 %v811, 0.0
      %vm878 = vcmask 64512
      %879 = vst.msk [vmem:[%s172] sm:$0xff] %vm878, %v814
      %880 = vst.msk [vmem:[%s172 + $0x8] sm:$0xff] %vm878, %v815
      %881 = vst.msk [vmem:[%s172 + $0x10] sm:$0xff] %vm878, %v816
      %882 = vst.msk [vmem:[%s172 + $0x18] sm:$0xff] %vm878, %v817
      %883 = vst.msk [vmem:[%s172 + $0x20] sm:$0xff] %vm878, %v818
      %884 = vst.msk [vmem:[%s172 + $0x28] sm:$0xff] %vm878, %v819
      %885 = vst.msk [vmem:[%s172 + $0x30] sm:$0xff] %vm878, %v820
      %886 = vst.msk [vmem:[%s172 + $0x38] sm:$0xff] %vm878, %v821
      %887 = vst.msk [vmem:[%s172 + $0x40] sm:$0xff] %vm878, %v822
      %888 = vst.msk [vmem:[%s172 + $0x48] sm:$0xff] %vm878, %v823
      %889 = vst.msk [vmem:[%s172 + $0x50] sm:$0xff] %vm878, %v824
      %890 = vst.msk [vmem:[%s172 + $0x58] sm:$0xff] %vm878, %v825
      %891 = vst.msk [vmem:[%s172 + $0x60] sm:$0xff] %vm878, %v826
      %892 = vst.msk [vmem:[%s172 + $0x68] sm:$0xff] %vm878, %v827
      %893 = vst.msk [vmem:[%s172 + $0x70] sm:$0xff] %vm878, %v828
      %894 = vst.msk [vmem:[%s172 + $0x78] sm:$0xff] %vm878, %v829
      %895 = vst.msk [vmem:[%s172 + $0x80] sm:$0xff] %vm878, %v830
      %896 = vst.msk [vmem:[%s172 + $0x88] sm:$0xff] %vm878, %v831
      %897 = vst.msk [vmem:[%s172 + $0x90] sm:$0xff] %vm878, %v832
      %898 = vst.msk [vmem:[%s172 + $0x98] sm:$0xff] %vm878, %v833
      %899 = vst.msk [vmem:[%s172 + $0xa0] sm:$0xff] %vm878, %v834
      %900 = vst.msk [vmem:[%s172 + $0xa8] sm:$0xff] %vm878, %v835
      %901 = vst.msk [vmem:[%s172 + $0xb0] sm:$0xff] %vm878, %v836
      %902 = vst.msk [vmem:[%s172 + $0xb8] sm:$0xff] %vm878, %v837
      %903 = vst.msk [vmem:[%s172 + $0xc0] sm:$0xff] %vm878, %v838
      %904 = vst.msk [vmem:[%s172 + $0xc8] sm:$0xff] %vm878, %v839
      %905 = vst.msk [vmem:[%s172 + $0xd0] sm:$0xff] %vm878, %v840
      %906 = vst.msk [vmem:[%s172 + $0xd8] sm:$0xff] %vm878, %v841
      %907 = vst.msk [vmem:[%s172 + $0xe0] sm:$0xff] %vm878, %v842
      %908 = vst.msk [vmem:[%s172 + $0xe8] sm:$0xff] %vm878, %v843
      %909 = vst.msk [vmem:[%s172 + $0xf0] sm:$0xff] %vm878, %v844
      %910 = vst.msk [vmem:[%s172 + $0xf8] sm:$0xff] %vm878, %v845
      %911 = vst.msk [vmem:[%s172 + $0x100] sm:$0xff] %vm878, %v846
      %912 = vst.msk [vmem:[%s172 + $0x108] sm:$0xff] %vm878, %v847
      %913 = vst.msk [vmem:[%s172 + $0x110] sm:$0xff] %vm878, %v848
      %914 = vst.msk [vmem:[%s172 + $0x118] sm:$0xff] %vm878, %v849
      %915 = vst.msk [vmem:[%s172 + $0x120] sm:$0xff] %vm878, %v850
      %916 = vst.msk [vmem:[%s172 + $0x128] sm:$0xff] %vm878, %v851
      %917 = vst.msk [vmem:[%s172 + $0x130] sm:$0xff] %vm878, %v852
      %918 = vst.msk [vmem:[%s172 + $0x138] sm:$0xff] %vm878, %v853
      %919 = vst.msk [vmem:[%s172 + $0x140] sm:$0xff] %vm878, %v854
      %920 = vst.msk [vmem:[%s172 + $0x148] sm:$0xff] %vm878, %v855
      %921 = vst.msk [vmem:[%s172 + $0x150] sm:$0xff] %vm878, %v856
      %922 = vst.msk [vmem:[%s172 + $0x158] sm:$0xff] %vm878, %v857
      %923 = vst.msk [vmem:[%s172 + $0x160] sm:$0xff] %vm878, %v858
      %924 = vst.msk [vmem:[%s172 + $0x168] sm:$0xff] %vm878, %v859
      %925 = vst.msk [vmem:[%s172 + $0x170] sm:$0xff] %vm878, %v860
      %926 = vst.msk [vmem:[%s172 + $0x178] sm:$0xff] %vm878, %v861
      %927 = vst.msk [vmem:[%s172 + $0x180] sm:$0xff] %vm878, %v862
      %928 = vst.msk [vmem:[%s172 + $0x188] sm:$0xff] %vm878, %v863
      %929 = vst.msk [vmem:[%s172 + $0x190] sm:$0xff] %vm878, %v864
      %930 = vst.msk [vmem:[%s172 + $0x198] sm:$0xff] %vm878, %v865
      %931 = vst.msk [vmem:[%s172 + $0x1a0] sm:$0xff] %vm878, %v866
      %932 = vst.msk [vmem:[%s172 + $0x1a8] sm:$0xff] %vm878, %v867
      %933 = vst.msk [vmem:[%s172 + $0x1b0] sm:$0xff] %vm878, %v868
      %934 = vst.msk [vmem:[%s172 + $0x1b8] sm:$0xff] %vm878, %v869
      %935 = vst.msk [vmem:[%s172 + $0x1c0] sm:$0xff] %vm878, %v870
      %936 = vst.msk [vmem:[%s172 + $0x1c8] sm:$0xff] %vm878, %v871
      %937 = vst.msk [vmem:[%s172 + $0x1d0] sm:$0xff] %vm878, %v872
      %938 = vst.msk [vmem:[%s172 + $0x1d8] sm:$0xff] %vm878, %v873
      %939 = vst.msk [vmem:[%s172 + $0x1e0] sm:$0xff] %vm878, %v874
      %940 = vst.msk [vmem:[%s172 + $0x1e8] sm:$0xff] %vm878, %v875
      %941 = vst.msk [vmem:[%s172 + $0x1f0] sm:$0xff] %vm878, %v876
      %942 = vst.msk [vmem:[%s172 + $0x1f8] sm:$0xff] %vm878, %v877
      %s943 = smul.u32 64, %s14
      %p944 = scmp.lt.s32.totalorder %s943, 255
      %s945 = scalar_select %p944, %s943, 255
      %s946 = smul.addr %s945, 8
      %s947 = scalar_lea.vmem %s3, %s946
      // Predicated region
      $region33: #{drn1_forward.5} parent=31 // pred_check
        %p948 = pneg %p100
      $region34: #{drn1_forward.5} parent=31 // pred_check_branch
        %950 = sbr.rel (%p948) target = $region36
      $region35: #{drn1_forward.5} parent=31 // pred_region
        %s951 = smul.u32 64, %s14
      $region36: #{drn1_forward.5} parent=31 // pred_fallthru
        _
    $region32: #{drn1_forward.5} parent=5 // pred_fallthru
      _
    %p952 = scmp.le.s32.totalorder 2, %s9
    // Predicated region
    $region37: #{drn1_forward.5} parent=5 // pred_check
      %p953 = pneg %p952
    $region38: #{drn1_forward.5} parent=5 // pred_check_branch
      %955 = sbr.rel (%p953) target = $region40
    $region39: #{drn1_forward.5} parent=5 // pred_region
      %s956 = ssub.s32 %s9, 2
      // Predicated region
      $region41: #{drn1_forward.5} parent=39 // pred_check
        %p957 = pneg %p106
      $region42: #{drn1_forward.5} parent=39 // pred_check_branch
        %959 = sbr.rel (%p957) target = $region44
      $region43: #{drn1_forward.5} parent=39 // pred_region
        %s960 = smul.u32 64, %s15
        %p961 = scmp.lt.s32.totalorder %s960, 255
        %s962 = scalar_select %p961, %s960, 255
        %s963 = smul.addr %s962, 8
        %s964 = scalar_lea.vmem %s3, %s963
      $region44: #{drn1_forward.5} parent=39 // pred_fallthru
        _
    $region40: #{drn1_forward.5} parent=5 // pred_fallthru
      _
  $region6: #{drn1_forward.5} parent=0 // loop_footer
    %s13 = sadd.s32 1, %s9
  $region7: #{drn1_forward.5} parent=0 // loop_footer_branch
    %8 = sbr.rel target = $region3
  $region8: #{drn1_forward.5} parent=0 // loop_exit
    _

// kernel: drn1_forward.6
$region0: #{drn1_forward.6}
  #allocation0 [shape = 'u32[]', space=smem, size = 0x4, offset = 0x4, fixed_abs, tag = 'smem constant byte address 0x4 - core index']
  #allocation1 [shape = 'u32[144,128]{1,0:T(1,128)}', space=vmem, size = 0x12000, scoped, tag = 'internal scratch']
  %s0 = inlined_call_operand.vmem [shape: bf16[2048,72], index: 0, kind: input, shape index: {}]
  %s1 = inlined_call_operand.vmem [shape: bf16[72,8], index: 1, kind: input, shape index: {}]
  %s2 = inlined_call_operand.vmem [shape: f32[1,8], index: 2, kind: input, shape index: {}]
  %s3 = inlined_call_operand.vmem [shape: f32[2048,8], index: 3, kind: output, shape index: {}]
  %s4 = sld [smem:[#allocation0]]
  $region45: #{drn1_forward.6} parent=0
    _
  %s6 = ssub.s32 1, %s4
  %s7 = scalar_select 0, %s6, %s4
  loop: start=0, step=1, limit=6
  $region2: #{drn1_forward.6} parent=0 // loop_pre_header
    _
  $region3: #{drn1_forward.6} parent=0 // loop_header
    %s9 = sphi 0, %s13
    %p10 = scmp.ge.s32.totalorder %s9, 6
    %s19 = sphi 0, %s21
    %s22 = sphi 0, %s19
    %s23 = sphi 0, %s22
    %s39 = sphi 0, %s23
    %s43 = sphi 0, %s43
    %s45 = sphi 0, %s43
    %s46 = sphi 0, %s45
    %s60 = sphi 0, %s46
    %s64 = sphi 0, %s64
    %s66 = sphi 0, %s64
    %s67 = sphi 0, %s66
    %s81 = sphi 0, %s67
    %s87 = sphi 0, %s89
    %s90 = sphi 0, %s87
    %s91 = sphi 0, %s90
    %s107 = sphi 0, %s91
  $region4: #{drn1_forward.6} parent=0 // loop_header_branch
    %12 = sbr.rel (%p10) target = $region8
  $region5: #{drn1_forward.6} parent=0 // loop_body
    %s14 = ssub.s32 %s9, 1
    %s15 = ssub.s32 %s9, 2
    %s16 = sadd.s32 %s9, 1
    %s17 = ssub.s32 %s9, %s16
    %p18 = scmp.eq.s32.totalorder %s17, 0
    %s20 = sadd.s32 %s19, 1
    %s21 = scalar_select %p18, %s19, %s20
    %p24 = pneg %p18
    %p25 = scmp.eq.s32.totalorder %s9, 3
    %p26 = por %p24, %p25
    %p27 = scmp.ne.s32.totalorder %s19, %s22
    %p28 = scmp.eq.s32.totalorder %s9, 0
    %p29 = por %p27, %p28
    %p30 = scmp.ne.s32.totalorder %s19, %s22
    %p31 = scmp.eq.s32.totalorder %s14, 3
    %p32 = por %p30, %p31
    %p33 = scmp.ne.s32.totalorder %s22, %s23
    %p34 = scmp.eq.s32.totalorder %s14, 0
    %p35 = por %p33, %p34
    %p36 = scmp.ne.s32.totalorder %s22, %s23
    %p37 = scmp.eq.s32.totalorder %s15, 3
    %p38 = por %p36, %p37
    %p40 = scmp.ne.s32.totalorder %s23, %s39
    %p41 = scmp.eq.s32.totalorder %s15, 0
    %p42 = por %p40, %p41
    %s44 = sadd.s32 %s43, 1
    %p47 = scmp.eq.s32.totalorder %s9, 3
    %p48 = scmp.ne.s32.totalorder %s43, %s45
    %p49 = scmp.eq.s32.totalorder %s9, 0
    %p50 = por %p48, %p49
    %p51 = scmp.ne.s32.totalorder %s43, %s45
    %p52 = scmp.eq.s32.totalorder %s14, 3
    %p53 = por %p51, %p52
    %p54 = scmp.ne.s32.totalorder %s45, %s46
    %p55 = scmp.eq.s32.totalorder %s14, 0
    %p56 = por %p54, %p55
    %p57 = scmp.ne.s32.totalorder %s45, %s46
    %p58 = scmp.eq.s32.totalorder %s15, 3
    %p59 = por %p57, %p58
    %p61 = scmp.ne.s32.totalorder %s46, %s60
    %p62 = scmp.eq.s32.totalorder %s15, 0
    %p63 = por %p61, %p62
    %s65 = sadd.s32 %s64, 1
    %p68 = scmp.eq.s32.totalorder %s9, 3
    %p69 = scmp.ne.s32.totalorder %s64, %s66
    %p70 = scmp.eq.s32.totalorder %s9, 0
    %p71 = por %p69, %p70
    %p72 = scmp.ne.s32.totalorder %s64, %s66
    %p73 = scmp.eq.s32.totalorder %s14, 3
    %p74 = por %p72, %p73
    %p75 = scmp.ne.s32.totalorder %s66, %s67
    %p76 = scmp.eq.s32.totalorder %s14, 0
    %p77 = por %p75, %p76
    %p78 = scmp.ne.s32.totalorder %s66, %s67
    %p79 = scmp.eq.s32.totalorder %s15, 3
    %p80 = por %p78, %p79
    %p82 = scmp.ne.s32.totalorder %s67, %s81
    %p83 = scmp.eq.s32.totalorder %s15, 0
    %p84 = por %p82, %p83
    %s85 = ssub.s32 %s9, %s16
    %p86 = scmp.eq.s32.totalorder %s85, 0
    %s88 = sadd.s32 %s87, 1
    %s89 = scalar_select %p86, %s87, %s88
    %p92 = pneg %p86
    %p93 = scmp.eq.s32.totalorder %s9, 3
    %p94 = por %p92, %p93
    %p95 = scmp.ne.s32.totalorder %s87, %s90
    %p96 = scmp.eq.s32.totalorder %s9, 0
    %p97 = por %p95, %p96
    %p98 = scmp.ne.s32.totalorder %s87, %s90
    %p99 = scmp.eq.s32.totalorder %s14, 3
    %p100 = por %p98, %p99
    %p101 = scmp.ne.s32.totalorder %s90, %s91
    %p102 = scmp.eq.s32.totalorder %s14, 0
    %p103 = por %p101, %p102
    %p104 = scmp.ne.s32.totalorder %s90, %s91
    %p105 = scmp.eq.s32.totalorder %s15, 3
    %p106 = por %p104, %p105
    %p108 = scmp.ne.s32.totalorder %s91, %s107
    %p109 = scmp.eq.s32.totalorder %s15, 0
    %p110 = por %p108, %p109
    %p111 = scmp.le.s32.totalorder 1, %s9
    %p112 = scmp.lt.s32.totalorder %s9, 5
    %p113 = pnand %p111, %p112
    %p114 = pneg %p113
    // Predicated region
    $region9: #{drn1_forward.6} parent=5 // pred_check
      _
    $region10: #{drn1_forward.6} parent=5 // pred_check_branch
      %116 = sbr.rel (%p113) target = $region12
    $region11: #{drn1_forward.6} parent=5 // pred_region
      %s117 = ssub.s32 %s9, 1
      // Predicated region
      $region13: #{drn1_forward.6} parent=11 // pred_check
        %p118 = pneg %p56
      $region14: #{drn1_forward.6} parent=11 // pred_check_branch
        %120 = sbr.rel (%p118) target = $region16
      $region15: #{drn1_forward.6} parent=11 // pred_region
        _
      $region16: #{drn1_forward.6} parent=11 // pred_fallthru
        _
      // Predicated region
      $region17: #{drn1_forward.6} parent=11 // pred_check
        %p121 = pneg %p77
      $region18: #{drn1_forward.6} parent=11 // pred_check_branch
        %123 = sbr.rel (%p121) target = $region20
      $region19: #{drn1_forward.6} parent=11 // pred_region
        _
      $region20: #{drn1_forward.6} parent=11 // pred_fallthru
        _
    $region12: #{drn1_forward.6} parent=5 // pred_fallthru
      _
    %p124 = scmp.lt.s32.totalorder %s9, 4
    // Predicated region
    $region21: #{drn1_forward.6} parent=5 // pred_check
      %p125 = pneg %p124
    $region22: #{drn1_forward.6} parent=5 // pred_check_branch
      %127 = sbr.rel (%p125) target = $region24
    $region23: #{drn1_forward.6} parent=5 // pred_region
      // Predicated region
      $region25: #{drn1_forward.6} parent=23 // pred_check
        %p128 = pneg %p29
      $region26: #{drn1_forward.6} parent=23 // pred_check_branch
        %130 = sbr.rel (%p128) target = $region28
      $region27: #{drn1_forward.6} parent=23 // pred_region
        %s131 = smul.u32 64, %s9
        %p132 = scmp.lt.s32.totalorder %s131, 255
        %s133 = scalar_select %p132, %s131, 255
        %s134 = smul.addr %s133, 4
        %s135 = scalar_lea.vmem %s0, %s134
        %s136 = smul.u32 64, %s9
      $region28: #{drn1_forward.6} parent=23 // pred_fallthru
        _
    $region24: #{drn1_forward.6} parent=5 // pred_fallthru
      _
    %p137 = scmp.le.s32.totalorder 1, %s9
    %p138 = scmp.lt.s32.totalorder %s9, 5
    %p139 = pnand %p137, %p138
    %p140 = pneg %p139
    // Predicated region
    $region29: #{drn1_forward.6} parent=5 // pred_check
      _
    $region30: #{drn1_forward.6} parent=5 // pred_check_branch
      %142 = sbr.rel (%p139) target = $region32
    $region31: #{drn1_forward.6} parent=5 // pred_region
      %s143 = ssub.s32 %s9, 1
      %s144 = smul.u32 64, %s14
      %p145 = scmp.lt.s32.totalorder %s144, 255
      %s146 = scalar_select %p145, %s144, 255
      %s147 = smul.addr %s146, 4
      %s148 = scalar_lea.vmem %s0, %s147
      %p149 = pneg %p35
      %p150 = pneg %p32
      %p151 = pneg %p56
      %p152 = pneg %p53
      %p153 = pneg %p77
      %p154 = pneg %p74
      %p155 = pneg %p103
      %p156 = pneg %p100
      %s157 = smul.u32 64, %s14
      %p158 = scmp.lt.s32.totalorder %s157, 255
      %s159 = scalar_select %p158, %s157, 255
      %s160 = smul.addr %s159, 8
      %s161 = scalar_lea.vmem %s3, %s160
      %s162 = smul.u32 64, %s14
      %p163 = scmp.lt.s32.totalorder %s162, 255
      %s164 = scalar_select %p163, %s162, 255
      %s165 = smul.addr %s164, 4
      %s166 = scalar_lea.vmem %s0, %s165
      %s167 = smul.u32 64, %s14
      %s168 = smul.u32 64, %s14
      %p169 = scmp.lt.s32.totalorder %s168, 255
      %s170 = scalar_select %p169, %s168, 255
      %s171 = smul.addr %s170, 8
      %s172 = scalar_lea.vmem %s3, %s171
      %s173 = smul.u32 64, %s14
      %v175 = vld [vmem:[%s166] sm:$0xf]
      %v176 = vld [vmem:[%s166 + $0x4] sm:$0xf]
      %v177 = vld [vmem:[%s166 + $0x8] sm:$0xf]
      %v178 = vld [vmem:[%s166 + $0xc] sm:$0xf]
      %v179 = vld [vmem:[%s166 + $0x10] sm:$0xf]
      %v180 = vld [vmem:[%s166 + $0x14] sm:$0xf]
      %v181 = vld [vmem:[%s166 + $0x18] sm:$0xf]
      %v182 = vld [vmem:[%s166 + $0x1c] sm:$0xf]
      %v183 = vld [vmem:[%s166 + $0x20] sm:$0xf]
      %v184 = vld [vmem:[%s166 + $0x24] sm:$0xf]
      %v185 = vld [vmem:[%s166 + $0x28] sm:$0xf]
      %v186 = vld [vmem:[%s166 + $0x2c] sm:$0xf]
      %v187 = vld [vmem:[%s166 + $0x30] sm:$0xf]
      %v188 = vld [vmem:[%s166 + $0x34] sm:$0xf]
      %v189 = vld [vmem:[%s166 + $0x38] sm:$0xf]
      %v190 = vld [vmem:[%s166 + $0x3c] sm:$0xf]
      %v191 = vld [vmem:[%s166 + $0x40] sm:$0xf]
      %v192 = vld [vmem:[%s166 + $0x44] sm:$0xf]
      %v193 = vld [vmem:[%s166 + $0x48] sm:$0xf]
      %v194 = vld [vmem:[%s166 + $0x4c] sm:$0xf]
      %v195 = vld [vmem:[%s166 + $0x50] sm:$0xf]
      %v196 = vld [vmem:[%s166 + $0x54] sm:$0xf]
      %v197 = vld [vmem:[%s166 + $0x58] sm:$0xf]
      %v198 = vld [vmem:[%s166 + $0x5c] sm:$0xf]
      %v199 = vld [vmem:[%s166 + $0x60] sm:$0xf]
      %v200 = vld [vmem:[%s166 + $0x64] sm:$0xf]
      %v201 = vld [vmem:[%s166 + $0x68] sm:$0xf]
      %v202 = vld [vmem:[%s166 + $0x6c] sm:$0xf]
      %v203 = vld [vmem:[%s166 + $0x70] sm:$0xf]
      %v204 = vld [vmem:[%s166 + $0x74] sm:$0xf]
      %v205 = vld [vmem:[%s166 + $0x78] sm:$0xf]
      %v206 = vld [vmem:[%s166 + $0x7c] sm:$0xf]
      %v207 = vld [vmem:[%s166 + $0x80] sm:$0xf]
      %v208 = vld [vmem:[%s166 + $0x84] sm:$0xf]
      %v209 = vld [vmem:[%s166 + $0x88] sm:$0xf]
      %v210 = vld [vmem:[%s166 + $0x8c] sm:$0xf]
      %v211 = vld [vmem:[%s166 + $0x90] sm:$0xf]
      %v212 = vld [vmem:[%s166 + $0x94] sm:$0xf]
      %v213 = vld [vmem:[%s166 + $0x98] sm:$0xf]
      %v214 = vld [vmem:[%s166 + $0x9c] sm:$0xf]
      %v215 = vld [vmem:[%s166 + $0xa0] sm:$0xf]
      %v216 = vld [vmem:[%s166 + $0xa4] sm:$0xf]
      %v217 = vld [vmem:[%s166 + $0xa8] sm:$0xf]
      %v218 = vld [vmem:[%s166 + $0xac] sm:$0xf]
      %v219 = vld [vmem:[%s166 + $0xb0] sm:$0xf]
      %v220 = vld [vmem:[%s166 + $0xb4] sm:$0xf]
      %v221 = vld [vmem:[%s166 + $0xb8] sm:$0xf]
      %v222 = vld [vmem:[%s166 + $0xbc] sm:$0xf]
      %v223 = vld [vmem:[%s166 + $0xc0] sm:$0xf]
      %v224 = vld [vmem:[%s166 + $0xc4] sm:$0xf]
      %v225 = vld [vmem:[%s166 + $0xc8] sm:$0xf]
      %v226 = vld [vmem:[%s166 + $0xcc] sm:$0xf]
      %v227 = vld [vmem:[%s166 + $0xd0] sm:$0xf]
      %v228 = vld [vmem:[%s166 + $0xd4] sm:$0xf]
      %v229 = vld [vmem:[%s166 + $0xd8] sm:$0xf]
      %v230 = vld [vmem:[%s166 + $0xdc] sm:$0xf]
      %v231 = vld [vmem:[%s166 + $0xe0] sm:$0xf]
      %v232 = vld [vmem:[%s166 + $0xe4] sm:$0xf]
      %v233 = vld [vmem:[%s166 + $0xe8] sm:$0xf]
      %v234 = vld [vmem:[%s166 + $0xec] sm:$0xf]
      %v235 = vld [vmem:[%s166 + $0xf0] sm:$0xf]
      %v236 = vld [vmem:[%s166 + $0xf4] sm:$0xf]
      %v237 = vld [vmem:[%s166 + $0xf8] sm:$0xf]
      %v238 = vld [vmem:[%s166 + $0xfc] sm:$0xf]
      %v239 = vld [vmem:[%s1] sm:$0xf]
      %v240 = vld [vmem:[%s1 + $0x4] sm:$0xf]
      %v241 = vld [vmem:[%s1 + $0x8] sm:$0xf]
      %v242 = vld [vmem:[%s1 + $0xc] sm:$0xf]
      %v243 = vld [vmem:[%s1 + $0x10] sm:$0xf]
      %v244 = vld [vmem:[%s1 + $0x14] sm:$0xf]
      %v245 = vld [vmem:[%s1 + $0x18] sm:$0xf]
      %v246 = vld [vmem:[%s1 + $0x1c] sm:$0xf]
      %v247 = vld [vmem:[%s1 + $0x20] sm:$0xf]
      %v248 = vld [vmem:[%s2] sm:$0x1]
      %v250 = vlaneseq
      %v251 = vshrl.u32 %v250, 7
      %v252 = vsub.s32 0, %v251
      %v253 = vrot.slane %v248, %v252
      %v319 = vunpack.c.l.b16 %v175
      %v320 = vunpack.c.l.b16 %v176
      %v321 = vunpack.c.l.b16 %v177
      %v322 = vunpack.c.l.b16 %v178
      %v323 = vunpack.c.l.b16 %v179
      %v324 = vunpack.c.l.b16 %v180
      %v325 = vunpack.c.l.b16 %v181
      %v326 = vunpack.c.l.b16 %v182
      %v327 = vunpack.c.l.b16 %v183
      %v328 = vunpack.c.l.b16 %v184
      %v329 = vunpack.c.l.b16 %v185
      %v330 = vunpack.c.l.b16 %v186
      %v331 = vunpack.c.l.b16 %v187
      %v332 = vunpack.c.l.b16 %v188
      %v333 = vunpack.c.l.b16 %v189
      %v334 = vunpack.c.l.b16 %v190
      %v335 = vunpack.c.l.b16 %v191
      %v336 = vunpack.c.l.b16 %v192
      %v337 = vunpack.c.l.b16 %v193
      %v338 = vunpack.c.l.b16 %v194
      %v339 = vunpack.c.l.b16 %v195
      %v340 = vunpack.c.l.b16 %v196
      %v341 = vunpack.c.l.b16 %v197
      %v342 = vunpack.c.l.b16 %v198
      %v343 = vunpack.c.l.b16 %v199
      %v344 = vunpack.c.l.b16 %v200
      %v345 = vunpack.c.l.b16 %v201
      %v346 = vunpack.c.l.b16 %v202
      %v347 = vunpack.c.l.b16 %v203
      %v348 = vunpack.c.l.b16 %v204
      %v349 = vunpack.c.l.b16 %v205
      %v350 = vunpack.c.l.b16 %v206
      %v351 = vunpack.c.l.b16 %v207
      %v352 = vunpack.c.l.b16 %v208
      %v353 = vunpack.c.l.b16 %v209
      %v354 = vunpack.c.l.b16 %v210
      %v355 = vunpack.c.l.b16 %v211
      %v356 = vunpack.c.l.b16 %v212
      %v357 = vunpack.c.l.b16 %v213
      %v358 = vunpack.c.l.b16 %v214
      %v359 = vunpack.c.l.b16 %v215
      %v360 = vunpack.c.l.b16 %v216
      %v361 = vunpack.c.l.b16 %v217
      %v362 = vunpack.c.l.b16 %v218
      %v363 = vunpack.c.l.b16 %v219
      %v364 = vunpack.c.l.b16 %v220
      %v365 = vunpack.c.l.b16 %v221
      %v366 = vunpack.c.l.b16 %v222
      %v367 = vunpack.c.l.b16 %v223
      %v368 = vunpack.c.l.b16 %v224
      %v369 = vunpack.c.l.b16 %v225
      %v370 = vunpack.c.l.b16 %v226
      %v371 = vunpack.c.l.b16 %v227
      %v372 = vunpack.c.l.b16 %v228
      %v373 = vunpack.c.l.b16 %v229
      %v374 = vunpack.c.l.b16 %v230
      %v375 = vunpack.c.l.b16 %v231
      %v376 = vunpack.c.l.b16 %v232
      %v377 = vunpack.c.l.b16 %v233
      %v378 = vunpack.c.l.b16 %v234
      %v379 = vunpack.c.l.b16 %v235
      %v380 = vunpack.c.l.b16 %v236
      %v381 = vunpack.c.l.b16 %v237
      %v382 = vunpack.c.l.b16 %v238
      %v383 = vpack.c.b16 %v320, %v319
      %v384 = vpack.c.b16 %v322, %v321
      %v385 = vpack.c.b16 %v324, %v323
      %v386 = vpack.c.b16 %v326, %v325
      %v387 = vpack.c.b16 %v328, %v327
      %v388 = vpack.c.b16 %v330, %v329
      %v389 = vpack.c.b16 %v332, %v331
      %v390 = vpack.c.b16 %v334, %v333
      %v391 = vpack.c.b16 %v336, %v335
      %v392 = vpack.c.b16 %v338, %v337
      %v393 = vpack.c.b16 %v340, %v339
      %v394 = vpack.c.b16 %v342, %v341
      %v395 = vpack.c.b16 %v344, %v343
      %v396 = vpack.c.b16 %v346, %v345
      %v397 = vpack.c.b16 %v348, %v347
      %v398 = vpack.c.b16 %v350, %v349
      %v399 = vpack.c.b16 %v352, %v351
      %v400 = vpack.c.b16 %v354, %v353
      %v401 = vpack.c.b16 %v356, %v355
      %v402 = vpack.c.b16 %v358, %v357
      %v403 = vpack.c.b16 %v360, %v359
      %v404 = vpack.c.b16 %v362, %v361
      %v405 = vpack.c.b16 %v364, %v363
      %v406 = vpack.c.b16 %v366, %v365
      %v407 = vpack.c.b16 %v368, %v367
      %v408 = vpack.c.b16 %v370, %v369
      %v409 = vpack.c.b16 %v372, %v371
      %v410 = vpack.c.b16 %v374, %v373
      %v411 = vpack.c.b16 %v376, %v375
      %v412 = vpack.c.b16 %v378, %v377
      %v413 = vpack.c.b16 %v380, %v379
      %v414 = vpack.c.b16 %v382, %v381
      %v424 = vunpack.c.l.b16 %v239
      %v425 = vunpack.c.l.b16 %v240
      %v426 = vunpack.c.l.b16 %v241
      %v427 = vunpack.c.l.b16 %v242
      %v428 = vunpack.c.l.b16 %v243
      %v429 = vunpack.c.l.b16 %v244
      %v430 = vunpack.c.l.b16 %v245
      %v431 = vunpack.c.l.b16 %v246
      %v432 = vunpack.c.l.b16 %v247
      %v433 = vpack.c.b16 %v425, %v424
      %v434 = vpack.c.b16 %v427, %v426
      %v435 = vpack.c.b16 %v429, %v428
      %v436 = vpack.c.b16 %v431, %v430
      %v437 = vpack.c.b16 %v432, %v432
      %vm442 = vcmask 588800
      %v444 = vsel %vm442, %v383, 0
      %v447 = vsel %vm442, %v384, 0
      %v450 = vsel %vm442, %v385, 0
      %v453 = vsel %vm442, %v386, 0
      %v456 = vsel %vm442, %v387, 0
      %v459 = vsel %vm442, %v388, 0
      %v462 = vsel %vm442, %v389, 0
      %v465 = vsel %vm442, %v390, 0
      %v468 = vsel %vm442, %v391, 0
      %v471 = vsel %vm442, %v392, 0
      %v474 = vsel %vm442, %v393, 0
      %v477 = vsel %vm442, %v394, 0
      %v480 = vsel %vm442, %v395, 0
      %v483 = vsel %vm442, %v396, 0
      %v486 = vsel %vm442, %v397, 0
      %v489 = vsel %vm442, %v398, 0
      %v492 = vsel %vm442, %v399, 0
      %v495 = vsel %vm442, %v400, 0
      %v498 = vsel %vm442, %v401, 0
      %v501 = vsel %vm442, %v402, 0
      %v504 = vsel %vm442, %v403, 0
      %v507 = vsel %vm442, %v404, 0
      %v510 = vsel %vm442, %v405, 0
      %v513 = vsel %vm442, %v406, 0
      %v516 = vsel %vm442, %v407, 0
      %v519 = vsel %vm442, %v408, 0
      %v522 = vsel %vm442, %v409, 0
      %v525 = vsel %vm442, %v410, 0
      %v528 = vsel %vm442, %v411, 0
      %v531 = vsel %vm442, %v412, 0
      %v534 = vsel %vm442, %v413, 0
      %v537 = vsel %vm442, %v414, 0
      %vm539 = vcmask 1043456
      %v541 = vsel %vm539, %v437, 0
      %543 = vmatprep.subr.bf16.mxu0 0
      %544 = vmatpush1.bf16.msra.mxu0 %v433
      %545 = vmatprep.subr.bf16.mxu0 0
      %546 = vmatpush1.bf16.msra.mxu0 %v434
      %547 = vmatprep.subr.bf16.mxu0 0
      %548 = vmatpush1.bf16.msra.mxu0 %v435
      %549 = vmatprep.subr.bf16.mxu0 0
      %550 = vmatpush1.bf16.msra.mxu0 %v436
      %551 = vmatprep.subr.bf16.mxu0 0
      %552 = vmatpush1.bf16.msra.mxu0 %v541
      %553 = vmatprep.subr.bf16.mxu0 0
      %554 = vmatpush1.bf16.msra.mxu0 0
      %555 = vmatprep.subr.bf16.mxu0 0
      %556 = vmatpush1.bf16.msra.mxu0 0
      %557 = vmatprep.subr.bf16.mxu0 0
      %558 = vmatpush1.bf16.msra.mxu0 0
      %559 = vmatprep.subr.bf16.mxu0 0
      %560 = vmatpush1.bf16.msra.mxu0 0
      %561 = vmatprep.subr.bf16.mxu0 0
      %562 = vmatpush1.bf16.msra.mxu0 0
      %563 = vmatprep.subr.bf16.mxu0 0
      %564 = vmatpush1.bf16.msra.mxu0 0
      %565 = vmatprep.subr.bf16.mxu0 0
      %566 = vmatpush1.bf16.msra.mxu0 0
      %567 = vmatprep.subr.bf16.mxu0 0
      %568 = vmatpush1.bf16.msra.mxu0 0
      %569 = vmatprep.subr.bf16.mxu0 0
      %570 = vmatpush1.bf16.msra.mxu0 0
      %571 = vmatprep.subr.bf16.mxu0 0
      %572 = vmatpush1.bf16.msra.mxu0 0
      %573 = vmatprep.subr.bf16.mxu0 0
      %574 = vmatpush1.bf16.msra.mxu0 0
      %575 = vmatprep.mubr.bf16.mxu0 0
      %576 = vmatmul.mubr.bf16.gmra.mrb[0].mxu0 %v444
      %v577 = vpop.f32.mrb[0].mxu0
      %v578 = vadd.f32 %v253, %v577
      %v579 = vpop.f32.mrb[0].mxu0
      %v580 = vpop.f32.mrb[0].mxu0
      %v581 = vadd.f32 %v253, %v580
      %v582 = vpop.f32.mrb[0].mxu0
      %583 = vmatprep.mubr.bf16.mxu0 0
      %584 = vmatmul.mubr.bf16.gmra.mrb[0].mxu0 %v447
      %v585 = vpop.f32.mrb[0].mxu0
      %v586 = vadd.f32 %v253, %v585
      %v587 = vpop.f32.mrb[0].mxu0
      %v588 = vpop.f32.mrb[0].mxu0
      %v589 = vadd.f32 %v253, %v588
      %v590 = vpop.f32.mrb[0].mxu0
      %591 = vmatprep.mubr.bf16.mxu0 0
      %592 = vmatmul.mubr.bf16.gmra.mrb[0].mxu0 %v450
      %v593 = vpop.f32.mrb[0].mxu0
      %v594 = vadd.f32 %v253, %v593
      %v595 = vpop.f32.mrb[0].mxu0
      %v596 = vpop.f32.mrb[0].mxu0
      %v597 = vadd.f32 %v253, %v596
      %v598 = vpop.f32.mrb[0].mxu0
      %599 = vmatprep.mubr.bf16.mxu0 0
      %600 = vmatmul.mubr.bf16.gmra.mrb[0].mxu0 %v453
      %v601 = vpop.f32.mrb[0].mxu0
      %v602 = vadd.f32 %v253, %v601
      %v603 = vpop.f32.mrb[0].mxu0
      %v604 = vpop.f32.mrb[0].mxu0
      %v605 = vadd.f32 %v253, %v604
      %v606 = vpop.f32.mrb[0].mxu0
      %607 = vmatprep.mubr.bf16.mxu0 0
      %608 = vmatmul.mubr.bf16.gmra.mrb[0].mxu0 %v456
      %v609 = vpop.f32.mrb[0].mxu0
      %v610 = vadd.f32 %v253, %v609
      %v611 = vpop.f32.mrb[0].mxu0
      %v612 = vpop.f32.mrb[0].mxu0
      %v613 = vadd.f32 %v253, %v612
      %v614 = vpop.f32.mrb[0].mxu0
      %615 = vmatprep.mubr.bf16.mxu0 0
      %616 = vmatmul.mubr.bf16.gmra.mrb[0].mxu0 %v459
      %v617 = vpop.f32.mrb[0].mxu0
      %v618 = vadd.f32 %v253, %v617
      %v619 = vpop.f32.mrb[0].mxu0
      %v620 = vpop.f32.mrb[0].mxu0
      %v621 = vadd.f32 %v253, %v620
      %v622 = vpop.f32.mrb[0].mxu0
      %623 = vmatprep.mubr.bf16.mxu0 0
      %624 = vmatmul.mubr.bf16.gmra.mrb[0].mxu0 %v462
      %v625 = vpop.f32.mrb[0].mxu0
      %v626 = vadd.f32 %v253, %v625
      %v627 = vpop.f32.mrb[0].mxu0
      %v628 = vpop.f32.mrb[0].mxu0
      %v629 = vadd.f32 %v253, %v628
      %v630 = vpop.f32.mrb[0].mxu0
      %631 = vmatprep.mubr.bf16.mxu0 0
      %632 = vmatmul.mubr.bf16.gmra.mrb[0].mxu0 %v465
      %v633 = vpop.f32.mrb[0].mxu0
      %v634 = vadd.f32 %v253, %v633
      %v635 = vpop.f32.mrb[0].mxu0
      %v636 = vpop.f32.mrb[0].mxu0
      %v637 = vadd.f32 %v253, %v636
      %v638 = vpop.f32.mrb[0].mxu0
      %639 = vmatprep.mubr.bf16.mxu0 0
      %640 = vmatmul.mubr.bf16.gmra.mrb[0].mxu0 %v468
      %v641 = vpop.f32.mrb[0].mxu0
      %v642 = vadd.f32 %v253, %v641
      %v643 = vpop.f32.mrb[0].mxu0
      %v644 = vpop.f32.mrb[0].mxu0
      %v645 = vadd.f32 %v253, %v644
      %v646 = vpop.f32.mrb[0].mxu0
      %647 = vmatprep.mubr.bf16.mxu0 0
      %648 = vmatmul.mubr.bf16.gmra.mrb[0].mxu0 %v471
      %v649 = vpop.f32.mrb[0].mxu0
      %v650 = vadd.f32 %v253, %v649
      %v651 = vpop.f32.mrb[0].mxu0
      %v652 = vpop.f32.mrb[0].mxu0
      %v653 = vadd.f32 %v253, %v652
      %v654 = vpop.f32.mrb[0].mxu0
      %655 = vmatprep.mubr.bf16.mxu0 0
      %656 = vmatmul.mubr.bf16.gmra.mrb[0].mxu0 %v474
      %v657 = vpop.f32.mrb[0].mxu0
      %v658 = vadd.f32 %v253, %v657
      %v659 = vpop.f32.mrb[0].mxu0
      %v660 = vpop.f32.mrb[0].mxu0
      %v661 = vadd.f32 %v253, %v660
      %v662 = vpop.f32.mrb[0].mxu0
      %663 = vmatprep.mubr.bf16.mxu0 0
      %664 = vmatmul.mubr.bf16.gmra.mrb[0].mxu0 %v477
      %v665 = vpop.f32.mrb[0].mxu0
      %v666 = vadd.f32 %v253, %v665
      %v667 = vpop.f32.mrb[0].mxu0
      %v668 = vpop.f32.mrb[0].mxu0
      %v669 = vadd.f32 %v253, %v668
      %v670 = vpop.f32.mrb[0].mxu0
      %671 = vmatprep.mubr.bf16.mxu0 0
      %672 = vmatmul.mubr.bf16.gmra.mrb[0].mxu0 %v480
      %v673 = vpop.f32.mrb[0].mxu0
      %v674 = vadd.f32 %v253, %v673
      %v675 = vpop.f32.mrb[0].mxu0
      %v676 = vpop.f32.mrb[0].mxu0
      %v677 = vadd.f32 %v253, %v676
      %v678 = vpop.f32.mrb[0].mxu0
      %679 = vmatprep.mubr.bf16.mxu0 0
      %680 = vmatmul.mubr.bf16.gmra.mrb[0].mxu0 %v483
      %v681 = vpop.f32.mrb[0].mxu0
      %v682 = vadd.f32 %v253, %v681
      %v683 = vpop.f32.mrb[0].mxu0
      %v684 = vpop.f32.mrb[0].mxu0
      %v685 = vadd.f32 %v253, %v684
      %v686 = vpop.f32.mrb[0].mxu0
      %687 = vmatprep.mubr.bf16.mxu0 0
      %688 = vmatmul.mubr.bf16.gmra.mrb[0].mxu0 %v486
      %v689 = vpop.f32.mrb[0].mxu0
      %v690 = vadd.f32 %v253, %v689
      %v691 = vpop.f32.mrb[0].mxu0
      %v692 = vpop.f32.mrb[0].mxu0
      %v693 = vadd.f32 %v253, %v692
      %v694 = vpop.f32.mrb[0].mxu0
      %695 = vmatprep.mubr.bf16.mxu0 0
      %696 = vmatmul.mubr.bf16.gmra.mrb[0].mxu0 %v489
      %v697 = vpop.f32.mrb[0].mxu0
      %v698 = vadd.f32 %v253, %v697
      %v699 = vpop.f32.mrb[0].mxu0
      %v700 = vpop.f32.mrb[0].mxu0
      %v701 = vadd.f32 %v253, %v700
      %v702 = vpop.f32.mrb[0].mxu0
      %703 = vmatprep.mubr.bf16.mxu0 0
      %704 = vmatmul.mubr.bf16.gmra.mrb[0].mxu0 %v492
      %v705 = vpop.f32.mrb[0].mxu0
      %v706 = vadd.f32 %v253, %v705
      %v707 = vpop.f32.mrb[0].mxu0
      %v708 = vpop.f32.mrb[0].mxu0
      %v709 = vadd.f32 %v253, %v708
      %v710 = vpop.f32.mrb[0].mxu0
      %711 = vmatprep.mubr.bf16.mxu0 0
      %712 = vmatmul.mubr.bf16.gmra.mrb[0].mxu0 %v495
      %v713 = vpop.f32.mrb[0].mxu0
      %v714 = vadd.f32 %v253, %v713
      %v715 = vpop.f32.mrb[0].mxu0
      %v716 = vpop.f32.mrb[0].mxu0
      %v717 = vadd.f32 %v253, %v716
      %v718 = vpop.f32.mrb[0].mxu0
      %719 = vmatprep.mubr.bf16.mxu0 0
      %720 = vmatmul.mubr.bf16.gmra.mrb[0].mxu0 %v498
      %v721 = vpop.f32.mrb[0].mxu0
      %v722 = vadd.f32 %v253, %v721
      %v723 = vpop.f32.mrb[0].mxu0
      %v724 = vpop.f32.mrb[0].mxu0
      %v725 = vadd.f32 %v253, %v724
      %v726 = vpop.f32.mrb[0].mxu0
      %727 = vmatprep.mubr.bf16.mxu0 0
      %728 = vmatmul.mubr.bf16.gmra.mrb[0].mxu0 %v501
      %v729 = vpop.f32.mrb[0].mxu0
      %v730 = vadd.f32 %v253, %v729
      %v731 = vpop.f32.mrb[0].mxu0
      %v732 = vpop.f32.mrb[0].mxu0
      %v733 = vadd.f32 %v253, %v732
      %v734 = vpop.f32.mrb[0].mxu0
      %735 = vmatprep.mubr.bf16.mxu0 0
      %736 = vmatmul.mubr.bf16.gmra.mrb[0].mxu0 %v504
      %v737 = vpop.f32.mrb[0].mxu0
      %v738 = vadd.f32 %v253, %v737
      %v739 = vpop.f32.mrb[0].mxu0
      %v740 = vpop.f32.mrb[0].mxu0
      %v741 = vadd.f32 %v253, %v740
      %v742 = vpop.f32.mrb[0].mxu0
      %743 = vmatprep.mubr.bf16.mxu0 0
      %744 = vmatmul.mubr.bf16.gmra.mrb[0].mxu0 %v507
      %v745 = vpop.f32.mrb[0].mxu0
      %v746 = vadd.f32 %v253, %v745
      %v747 = vpop.f32.mrb[0].mxu0
      %v748 = vpop.f32.mrb[0].mxu0
      %v749 = vadd.f32 %v253, %v748
      %v750 = vpop.f32.mrb[0].mxu0
      %751 = vmatprep.mubr.bf16.mxu0 0
      %752 = vmatmul.mubr.bf16.gmra.mrb[0].mxu0 %v510
      %v753 = vpop.f32.mrb[0].mxu0
      %v754 = vadd.f32 %v253, %v753
      %v755 = vpop.f32.mrb[0].mxu0
      %v756 = vpop.f32.mrb[0].mxu0
      %v757 = vadd.f32 %v253, %v756
      %v758 = vpop.f32.mrb[0].mxu0
      %759 = vmatprep.mubr.bf16.mxu0 0
      %760 = vmatmul.mubr.bf16.gmra.mrb[0].mxu0 %v513
      %v761 = vpop.f32.mrb[0].mxu0
      %v762 = vadd.f32 %v253, %v761
      %v763 = vpop.f32.mrb[0].mxu0
      %v764 = vpop.f32.mrb[0].mxu0
      %v765 = vadd.f32 %v253, %v764
      %v766 = vpop.f32.mrb[0].mxu0
      %767 = vmatprep.mubr.bf16.mxu0 0
      %768 = vmatmul.mubr.bf16.gmra.mrb[0].mxu0 %v516
      %v769 = vpop.f32.mrb[0].mxu0
      %v770 = vadd.f32 %v253, %v769
      %v771 = vpop.f32.mrb[0].mxu0
      %v772 = vpop.f32.mrb[0].mxu0
      %v773 = vadd.f32 %v253, %v772
      %v774 = vpop.f32.mrb[0].mxu0
      %775 = vmatprep.mubr.bf16.mxu0 0
      %776 = vmatmul.mubr.bf16.gmra.mrb[0].mxu0 %v519
      %v777 = vpop.f32.mrb[0].mxu0
      %v778 = vadd.f32 %v253, %v777
      %v779 = vpop.f32.mrb[0].mxu0
      %v780 = vpop.f32.mrb[0].mxu0
      %v781 = vadd.f32 %v253, %v780
      %v782 = vpop.f32.mrb[0].mxu0
      %783 = vmatprep.mubr.bf16.mxu0 0
      %784 = vmatmul.mubr.bf16.gmra.mrb[0].mxu0 %v522
      %v785 = vpop.f32.mrb[0].mxu0
      %v786 = vadd.f32 %v253, %v785
      %v787 = vpop.f32.mrb[0].mxu0
      %v788 = vpop.f32.mrb[0].mxu0
      %v789 = vadd.f32 %v253, %v788
      %v790 = vpop.f32.mrb[0].mxu0
      %791 = vmatprep.mubr.bf16.mxu0 0
      %792 = vmatmul.mubr.bf16.gmra.mrb[0].mxu0 %v525
      %v793 = vpop.f32.mrb[0].mxu0
      %v794 = vadd.f32 %v253, %v793
      %v795 = vpop.f32.mrb[0].mxu0
      %v796 = vpop.f32.mrb[0].mxu0
      %v797 = vadd.f32 %v253, %v796
      %v798 = vpop.f32.mrb[0].mxu0
      %799 = vmatprep.mubr.bf16.mxu0 0
      %800 = vmatmul.mubr.bf16.gmra.mrb[0].mxu0 %v528
      %v801 = vpop.f32.mrb[0].mxu0
      %v802 = vadd.f32 %v253, %v801
      %v803 = vpop.f32.mrb[0].mxu0
      %v804 = vpop.f32.mrb[0].mxu0
      %v805 = vadd.f32 %v253, %v804
      %v806 = vpop.f32.mrb[0].mxu0
      %807 = vmatprep.mubr.bf16.mxu0 0
      %808 = vmatmul.mubr.bf16.gmra.mrb[0].mxu0 %v531
      %v809 = vpop.f32.mrb[0].mxu0
      %v810 = vadd.f32 %v253, %v809
      %v811 = vpop.f32.mrb[0].mxu0
      %v812 = vpop.f32.mrb[0].mxu0
      %v813 = vadd.f32 %v253, %v812
      %v814 = vpop.f32.mrb[0].mxu0
      %815 = vmatprep.mubr.bf16.mxu0 0
      %816 = vmatmul.mubr.bf16.gmra.mrb[0].mxu0 %v534
      %v817 = vpop.f32.mrb[0].mxu0
      %v818 = vadd.f32 %v253, %v817
      %v819 = vpop.f32.mrb[0].mxu0
      %v820 = vpop.f32.mrb[0].mxu0
      %v821 = vadd.f32 %v253, %v820
      %v822 = vpop.f32.mrb[0].mxu0
      %823 = vmatprep.mubr.bf16.mxu0 0
      %824 = vmatmul.mubr.bf16.gmra.mrb[0].mxu0 %v537
      %v825 = vpop.f32.mrb[0].mxu0
      %v826 = vadd.f32 %v253, %v825
      %v827 = vpop.f32.mrb[0].mxu0
      %v828 = vpop.f32.mrb[0].mxu0
      %v829 = vadd.f32 %v253, %v828
      %v830 = vpop.f32.mrb[0].mxu0
      %831 = vdwg.mxu0
      %v832 = vmax.f32 %v578, 0.0
      %v833 = vmax.f32 %v581, 0.0
      %v834 = vmax.f32 %v586, 0.0
      %v835 = vmax.f32 %v589, 0.0
      %v836 = vmax.f32 %v594, 0.0
      %v837 = vmax.f32 %v597, 0.0
      %v838 = vmax.f32 %v602, 0.0
      %v839 = vmax.f32 %v605, 0.0
      %v840 = vmax.f32 %v610, 0.0
      %v841 = vmax.f32 %v613, 0.0
      %v842 = vmax.f32 %v618, 0.0
      %v843 = vmax.f32 %v621, 0.0
      %v844 = vmax.f32 %v626, 0.0
      %v845 = vmax.f32 %v629, 0.0
      %v846 = vmax.f32 %v634, 0.0
      %v847 = vmax.f32 %v637, 0.0
      %v848 = vmax.f32 %v642, 0.0
      %v849 = vmax.f32 %v645, 0.0
      %v850 = vmax.f32 %v650, 0.0
      %v851 = vmax.f32 %v653, 0.0
      %v852 = vmax.f32 %v658, 0.0
      %v853 = vmax.f32 %v661, 0.0
      %v854 = vmax.f32 %v666, 0.0
      %v855 = vmax.f32 %v669, 0.0
      %v856 = vmax.f32 %v674, 0.0
      %v857 = vmax.f32 %v677, 0.0
      %v858 = vmax.f32 %v682, 0.0
      %v859 = vmax.f32 %v685, 0.0
      %v860 = vmax.f32 %v690, 0.0
      %v861 = vmax.f32 %v693, 0.0
      %v862 = vmax.f32 %v698, 0.0
      %v863 = vmax.f32 %v701, 0.0
      %v864 = vmax.f32 %v706, 0.0
      %v865 = vmax.f32 %v709, 0.0
      %v866 = vmax.f32 %v714, 0.0
      %v867 = vmax.f32 %v717, 0.0
      %v868 = vmax.f32 %v722, 0.0
      %v869 = vmax.f32 %v725, 0.0
      %v870 = vmax.f32 %v730, 0.0
      %v871 = vmax.f32 %v733, 0.0
      %v872 = vmax.f32 %v738, 0.0
      %v873 = vmax.f32 %v741, 0.0
      %v874 = vmax.f32 %v746, 0.0
      %v875 = vmax.f32 %v749, 0.0
      %v876 = vmax.f32 %v754, 0.0
      %v877 = vmax.f32 %v757, 0.0
      %v878 = vmax.f32 %v762, 0.0
      %v879 = vmax.f32 %v765, 0.0
      %v880 = vmax.f32 %v770, 0.0
      %v881 = vmax.f32 %v773, 0.0
      %v882 = vmax.f32 %v778, 0.0
      %v883 = vmax.f32 %v781, 0.0
      %v884 = vmax.f32 %v786, 0.0
      %v885 = vmax.f32 %v789, 0.0
      %v886 = vmax.f32 %v794, 0.0
      %v887 = vmax.f32 %v797, 0.0
      %v888 = vmax.f32 %v802, 0.0
      %v889 = vmax.f32 %v805, 0.0
      %v890 = vmax.f32 %v810, 0.0
      %v891 = vmax.f32 %v813, 0.0
      %v892 = vmax.f32 %v818, 0.0
      %v893 = vmax.f32 %v821, 0.0
      %v894 = vmax.f32 %v826, 0.0
      %v895 = vmax.f32 %v829, 0.0
      %vm896 = vcmask 64512
      %897 = vst.msk [vmem:[%s172] sm:$0xff] %vm896, %v832
      %898 = vst.msk [vmem:[%s172 + $0x8] sm:$0xff] %vm896, %v833
      %899 = vst.msk [vmem:[%s172 + $0x10] sm:$0xff] %vm896, %v834
      %900 = vst.msk [vmem:[%s172 + $0x18] sm:$0xff] %vm896, %v835
      %901 = vst.msk [vmem:[%s172 + $0x20] sm:$0xff] %vm896, %v836
      %902 = vst.msk [vmem:[%s172 + $0x28] sm:$0xff] %vm896, %v837
      %903 = vst.msk [vmem:[%s172 + $0x30] sm:$0xff] %vm896, %v838
      %904 = vst.msk [vmem:[%s172 + $0x38] sm:$0xff] %vm896, %v839
      %905 = vst.msk [vmem:[%s172 + $0x40] sm:$0xff] %vm896, %v840
      %906 = vst.msk [vmem:[%s172 + $0x48] sm:$0xff] %vm896, %v841
      %907 = vst.msk [vmem:[%s172 + $0x50] sm:$0xff] %vm896, %v842
      %908 = vst.msk [vmem:[%s172 + $0x58] sm:$0xff] %vm896, %v843
      %909 = vst.msk [vmem:[%s172 + $0x60] sm:$0xff] %vm896, %v844
      %910 = vst.msk [vmem:[%s172 + $0x68] sm:$0xff] %vm896, %v845
      %911 = vst.msk [vmem:[%s172 + $0x70] sm:$0xff] %vm896, %v846
      %912 = vst.msk [vmem:[%s172 + $0x78] sm:$0xff] %vm896, %v847
      %913 = vst.msk [vmem:[%s172 + $0x80] sm:$0xff] %vm896, %v848
      %914 = vst.msk [vmem:[%s172 + $0x88] sm:$0xff] %vm896, %v849
      %915 = vst.msk [vmem:[%s172 + $0x90] sm:$0xff] %vm896, %v850
      %916 = vst.msk [vmem:[%s172 + $0x98] sm:$0xff] %vm896, %v851
      %917 = vst.msk [vmem:[%s172 + $0xa0] sm:$0xff] %vm896, %v852
      %918 = vst.msk [vmem:[%s172 + $0xa8] sm:$0xff] %vm896, %v853
      %919 = vst.msk [vmem:[%s172 + $0xb0] sm:$0xff] %vm896, %v854
      %920 = vst.msk [vmem:[%s172 + $0xb8] sm:$0xff] %vm896, %v855
      %921 = vst.msk [vmem:[%s172 + $0xc0] sm:$0xff] %vm896, %v856
      %922 = vst.msk [vmem:[%s172 + $0xc8] sm:$0xff] %vm896, %v857
      %923 = vst.msk [vmem:[%s172 + $0xd0] sm:$0xff] %vm896, %v858
      %924 = vst.msk [vmem:[%s172 + $0xd8] sm:$0xff] %vm896, %v859
      %925 = vst.msk [vmem:[%s172 + $0xe0] sm:$0xff] %vm896, %v860
      %926 = vst.msk [vmem:[%s172 + $0xe8] sm:$0xff] %vm896, %v861
      %927 = vst.msk [vmem:[%s172 + $0xf0] sm:$0xff] %vm896, %v862
      %928 = vst.msk [vmem:[%s172 + $0xf8] sm:$0xff] %vm896, %v863
      %929 = vst.msk [vmem:[%s172 + $0x100] sm:$0xff] %vm896, %v864
      %930 = vst.msk [vmem:[%s172 + $0x108] sm:$0xff] %vm896, %v865
      %931 = vst.msk [vmem:[%s172 + $0x110] sm:$0xff] %vm896, %v866
      %932 = vst.msk [vmem:[%s172 + $0x118] sm:$0xff] %vm896, %v867
      %933 = vst.msk [vmem:[%s172 + $0x120] sm:$0xff] %vm896, %v868
      %934 = vst.msk [vmem:[%s172 + $0x128] sm:$0xff] %vm896, %v869
      %935 = vst.msk [vmem:[%s172 + $0x130] sm:$0xff] %vm896, %v870
      %936 = vst.msk [vmem:[%s172 + $0x138] sm:$0xff] %vm896, %v871
      %937 = vst.msk [vmem:[%s172 + $0x140] sm:$0xff] %vm896, %v872
      %938 = vst.msk [vmem:[%s172 + $0x148] sm:$0xff] %vm896, %v873
      %939 = vst.msk [vmem:[%s172 + $0x150] sm:$0xff] %vm896, %v874
      %940 = vst.msk [vmem:[%s172 + $0x158] sm:$0xff] %vm896, %v875
      %941 = vst.msk [vmem:[%s172 + $0x160] sm:$0xff] %vm896, %v876
      %942 = vst.msk [vmem:[%s172 + $0x168] sm:$0xff] %vm896, %v877
      %943 = vst.msk [vmem:[%s172 + $0x170] sm:$0xff] %vm896, %v878
      %944 = vst.msk [vmem:[%s172 + $0x178] sm:$0xff] %vm896, %v879
      %945 = vst.msk [vmem:[%s172 + $0x180] sm:$0xff] %vm896, %v880
      %946 = vst.msk [vmem:[%s172 + $0x188] sm:$0xff] %vm896, %v881
      %947 = vst.msk [vmem:[%s172 + $0x190] sm:$0xff] %vm896, %v882
      %948 = vst.msk [vmem:[%s172 + $0x198] sm:$0xff] %vm896, %v883
      %949 = vst.msk [vmem:[%s172 + $0x1a0] sm:$0xff] %vm896, %v884
      %950 = vst.msk [vmem:[%s172 + $0x1a8] sm:$0xff] %vm896, %v885
      %951 = vst.msk [vmem:[%s172 + $0x1b0] sm:$0xff] %vm896, %v886
      %952 = vst.msk [vmem:[%s172 + $0x1b8] sm:$0xff] %vm896, %v887
      %953 = vst.msk [vmem:[%s172 + $0x1c0] sm:$0xff] %vm896, %v888
      %954 = vst.msk [vmem:[%s172 + $0x1c8] sm:$0xff] %vm896, %v889
      %955 = vst.msk [vmem:[%s172 + $0x1d0] sm:$0xff] %vm896, %v890
      %956 = vst.msk [vmem:[%s172 + $0x1d8] sm:$0xff] %vm896, %v891
      %957 = vst.msk [vmem:[%s172 + $0x1e0] sm:$0xff] %vm896, %v892
      %958 = vst.msk [vmem:[%s172 + $0x1e8] sm:$0xff] %vm896, %v893
      %959 = vst.msk [vmem:[%s172 + $0x1f0] sm:$0xff] %vm896, %v894
      %960 = vst.msk [vmem:[%s172 + $0x1f8] sm:$0xff] %vm896, %v895
      %s961 = smul.u32 64, %s14
      %p962 = scmp.lt.s32.totalorder %s961, 255
      %s963 = scalar_select %p962, %s961, 255
      %s964 = smul.addr %s963, 8
      %s965 = scalar_lea.vmem %s3, %s964
      // Predicated region
      $region33: #{drn1_forward.6} parent=31 // pred_check
        %p966 = pneg %p100
      $region34: #{drn1_forward.6} parent=31 // pred_check_branch
        %968 = sbr.rel (%p966) target = $region36
      $region35: #{drn1_forward.6} parent=31 // pred_region
        %s969 = smul.u32 64, %s14
      $region36: #{drn1_forward.6} parent=31 // pred_fallthru
        _
    $region32: #{drn1_forward.6} parent=5 // pred_fallthru
      _
    %p970 = scmp.le.s32.totalorder 2, %s9
    // Predicated region
    $region37: #{drn1_forward.6} parent=5 // pred_check
      %p971 = pneg %p970
    $region38: #{drn1_forward.6} parent=5 // pred_check_branch
      %973 = sbr.rel (%p971) target = $region40
    $region39: #{drn1_forward.6} parent=5 // pred_region
      %s974 = ssub.s32 %s9, 2
      // Predicated region
      $region41: #{drn1_forward.6} parent=39 // pred_check
        %p975 = pneg %p106
      $region42: #{drn1_forward.6} parent=39 // pred_check_branch
        %977 = sbr.rel (%p975) target = $region44
      $region43: #{drn1_forward.6} parent=39 // pred_region
        %s978 = smul.u32 64, %s15
        %p979 = scmp.lt.s32.totalorder %s978, 255
        %s980 = scalar_select %p979, %s978, 255
        %s981 = smul.addr %s980, 8
        %s982 = scalar_lea.vmem %s3, %s981
      $region44: #{drn1_forward.6} parent=39 // pred_fallthru
        _
    $region40: #{drn1_forward.6} parent=5 // pred_fallthru
      _
  $region6: #{drn1_forward.6} parent=0 // loop_footer
    %s13 = sadd.s32 1, %s9
  $region7: #{drn1_forward.6} parent=0 // loop_footer_branch
    %8 = sbr.rel target = $region3
  $region8: #{drn1_forward.6} parent=0 // loop_exit
    _

// kernel: drn1_forward.7
$region0: #{drn1_forward.7}
  #allocation0 [shape = 'u32[]', space=smem, size = 0x4, offset = 0x4, fixed_abs, tag = 'smem constant byte address 0x4 - core index']
  #allocation1 [shape = 'u32[144,128]{1,0:T(1,128)}', space=vmem, size = 0x12000, scoped, tag = 'internal scratch']
  %s0 = inlined_call_operand.vmem [shape: bf16[512,72], index: 0, kind: input, shape index: {}]
  %s1 = inlined_call_operand.vmem [shape: bf16[72,8], index: 1, kind: input, shape index: {}]
  %s2 = inlined_call_operand.vmem [shape: f32[1,8], index: 2, kind: input, shape index: {}]
  %s3 = inlined_call_operand.vmem [shape: f32[512,8], index: 3, kind: output, shape index: {}]
  %s4 = sld [smem:[#allocation0]]
  $region22: #{drn1_forward.7} parent=0
    _
  %s6 = ssub.s32 1, %s4
  %s7 = scalar_select 0, %s6, %s4
  // Predicated region
  $region2: #{drn1_forward.7} parent=0 // pred_check
    _
  $region3: #{drn1_forward.7} parent=0 // pred_check_branch
    %9 = sbr.rel (0) target = $region5
  $region4: #{drn1_forward.7} parent=0 // pred_region
    _
  $region5: #{drn1_forward.7} parent=0 // pred_fallthru
    _
  // Predicated region
  $region6: #{drn1_forward.7} parent=0 // pred_check
    _
  $region7: #{drn1_forward.7} parent=0 // pred_check_branch
    %11 = sbr.rel (0) target = $region9
  $region8: #{drn1_forward.7} parent=0 // pred_region
    _
  $region9: #{drn1_forward.7} parent=0 // pred_fallthru
    _
  // Predicated region
  $region10: #{drn1_forward.7} parent=0 // pred_check
    _
  $region11: #{drn1_forward.7} parent=0 // pred_check_branch
    %13 = sbr.rel (0) target = $region13
  $region12: #{drn1_forward.7} parent=0 // pred_region
    _
  $region13: #{drn1_forward.7} parent=0 // pred_fallthru
    _
  %v15 = vld [vmem:[%s0] sm:$0xf]
  %v16 = vld [vmem:[%s0 + $0x4] sm:$0xf]
  %v17 = vld [vmem:[%s0 + $0x8] sm:$0xf]
  %v18 = vld [vmem:[%s0 + $0xc] sm:$0xf]
  %v19 = vld [vmem:[%s0 + $0x10] sm:$0xf]
  %v20 = vld [vmem:[%s0 + $0x14] sm:$0xf]
  %v21 = vld [vmem:[%s0 + $0x18] sm:$0xf]
  %v22 = vld [vmem:[%s0 + $0x1c] sm:$0xf]
  %v23 = vld [vmem:[%s0 + $0x20] sm:$0xf]
  %v24 = vld [vmem:[%s0 + $0x24] sm:$0xf]
  %v25 = vld [vmem:[%s0 + $0x28] sm:$0xf]
  %v26 = vld [vmem:[%s0 + $0x2c] sm:$0xf]
  %v27 = vld [vmem:[%s0 + $0x30] sm:$0xf]
  %v28 = vld [vmem:[%s0 + $0x34] sm:$0xf]
  %v29 = vld [vmem:[%s0 + $0x38] sm:$0xf]
  %v30 = vld [vmem:[%s0 + $0x3c] sm:$0xf]
  %v31 = vld [vmem:[%s0 + $0x40] sm:$0xf]
  %v32 = vld [vmem:[%s0 + $0x44] sm:$0xf]
  %v33 = vld [vmem:[%s0 + $0x48] sm:$0xf]
  %v34 = vld [vmem:[%s0 + $0x4c] sm:$0xf]
  %v35 = vld [vmem:[%s0 + $0x50] sm:$0xf]
  %v36 = vld [vmem:[%s0 + $0x54] sm:$0xf]
  %v37 = vld [vmem:[%s0 + $0x58] sm:$0xf]
  %v38 = vld [vmem:[%s0 + $0x5c] sm:$0xf]
  %v39 = vld [vmem:[%s0 + $0x60] sm:$0xf]
  %v40 = vld [vmem:[%s0 + $0x64] sm:$0xf]
  %v41 = vld [vmem:[%s0 + $0x68] sm:$0xf]
  %v42 = vld [vmem:[%s0 + $0x6c] sm:$0xf]
  %v43 = vld [vmem:[%s0 + $0x70] sm:$0xf]
  %v44 = vld [vmem:[%s0 + $0x74] sm:$0xf]
  %v45 = vld [vmem:[%s0 + $0x78] sm:$0xf]
  %v46 = vld [vmem:[%s0 + $0x7c] sm:$0xf]
  %v47 = vld [vmem:[%s0 + $0x80] sm:$0xf]
  %v48 = vld [vmem:[%s0 + $0x84] sm:$0xf]
  %v49 = vld [vmem:[%s0 + $0x88] sm:$0xf]
  %v50 = vld [vmem:[%s0 + $0x8c] sm:$0xf]
  %v51 = vld [vmem:[%s0 + $0x90] sm:$0xf]
  %v52 = vld [vmem:[%s0 + $0x94] sm:$0xf]
  %v53 = vld [vmem:[%s0 + $0x98] sm:$0xf]
  %v54 = vld [vmem:[%s0 + $0x9c] sm:$0xf]
  %v55 = vld [vmem:[%s0 + $0xa0] sm:$0xf]
  %v56 = vld [vmem:[%s0 + $0xa4] sm:$0xf]
  %v57 = vld [vmem:[%s0 + $0xa8] sm:$0xf]
  %v58 = vld [vmem:[%s0 + $0xac] sm:$0xf]
  %v59 = vld [vmem:[%s0 + $0xb0] sm:$0xf]
  %v60 = vld [vmem:[%s0 + $0xb4] sm:$0xf]
  %v61 = vld [vmem:[%s0 + $0xb8] sm:$0xf]
  %v62 = vld [vmem:[%s0 + $0xbc] sm:$0xf]
  %v63 = vld [vmem:[%s0 + $0xc0] sm:$0xf]
  %v64 = vld [vmem:[%s0 + $0xc4] sm:$0xf]
  %v65 = vld [vmem:[%s0 + $0xc8] sm:$0xf]
  %v66 = vld [vmem:[%s0 + $0xcc] sm:$0xf]
  %v67 = vld [vmem:[%s0 + $0xd0] sm:$0xf]
  %v68 = vld [vmem:[%s0 + $0xd4] sm:$0xf]
  %v69 = vld [vmem:[%s0 + $0xd8] sm:$0xf]
  %v70 = vld [vmem:[%s0 + $0xdc] sm:$0xf]
  %v71 = vld [vmem:[%s0 + $0xe0] sm:$0xf]
  %v72 = vld [vmem:[%s0 + $0xe4] sm:$0xf]
  %v73 = vld [vmem:[%s0 + $0xe8] sm:$0xf]
  %v74 = vld [vmem:[%s0 + $0xec] sm:$0xf]
  %v75 = vld [vmem:[%s0 + $0xf0] sm:$0xf]
  %v76 = vld [vmem:[%s0 + $0xf4] sm:$0xf]
  %v77 = vld [vmem:[%s0 + $0xf8] sm:$0xf]
  %v78 = vld [vmem:[%s0 + $0xfc] sm:$0xf]
  %v79 = vld [vmem:[%s1] sm:$0xf]
  %v80 = vld [vmem:[%s1 + $0x4] sm:$0xf]
  %v81 = vld [vmem:[%s1 + $0x8] sm:$0xf]
  %v82 = vld [vmem:[%s1 + $0xc] sm:$0xf]
  %v83 = vld [vmem:[%s1 + $0x10] sm:$0xf]
  %v84 = vld [vmem:[%s1 + $0x14] sm:$0xf]
  %v85 = vld [vmem:[%s1 + $0x18] sm:$0xf]
  %v86 = vld [vmem:[%s1 + $0x1c] sm:$0xf]
  %v87 = vld [vmem:[%s1 + $0x20] sm:$0xf]
  %v88 = vld [vmem:[%s2] sm:$0x1]
  %v90 = vlaneseq
  %v91 = vshrl.u32 %v90, 7
  %v92 = vsub.s32 0, %v91
  %v93 = vrot.slane %v88, %v92
  %v159 = vunpack.c.l.b16 %v15
  %v160 = vunpack.c.l.b16 %v16
  %v161 = vunpack.c.l.b16 %v17
  %v162 = vunpack.c.l.b16 %v18
  %v163 = vunpack.c.l.b16 %v19
  %v164 = vunpack.c.l.b16 %v20
  %v165 = vunpack.c.l.b16 %v21
  %v166 = vunpack.c.l.b16 %v22
  %v167 = vunpack.c.l.b16 %v23
  %v168 = vunpack.c.l.b16 %v24
  %v169 = vunpack.c.l.b16 %v25
  %v170 = vunpack.c.l.b16 %v26
  %v171 = vunpack.c.l.b16 %v27
  %v172 = vunpack.c.l.b16 %v28
  %v173 = vunpack.c.l.b16 %v29
  %v174 = vunpack.c.l.b16 %v30
  %v175 = vunpack.c.l.b16 %v31
  %v176 = vunpack.c.l.b16 %v32
  %v177 = vunpack.c.l.b16 %v33
  %v178 = vunpack.c.l.b16 %v34
  %v179 = vunpack.c.l.b16 %v35
  %v180 = vunpack.c.l.b16 %v36
  %v181 = vunpack.c.l.b16 %v37
  %v182 = vunpack.c.l.b16 %v38
  %v183 = vunpack.c.l.b16 %v39
  %v184 = vunpack.c.l.b16 %v40
  %v185 = vunpack.c.l.b16 %v41
  %v186 = vunpack.c.l.b16 %v42
  %v187 = vunpack.c.l.b16 %v43
  %v188 = vunpack.c.l.b16 %v44
  %v189 = vunpack.c.l.b16 %v45
  %v190 = vunpack.c.l.b16 %v46
  %v191 = vunpack.c.l.b16 %v47
  %v192 = vunpack.c.l.b16 %v48
  %v193 = vunpack.c.l.b16 %v49
  %v194 = vunpack.c.l.b16 %v50
  %v195 = vunpack.c.l.b16 %v51
  %v196 = vunpack.c.l.b16 %v52
  %v197 = vunpack.c.l.b16 %v53
  %v198 = vunpack.c.l.b16 %v54
  %v199 = vunpack.c.l.b16 %v55
  %v200 = vunpack.c.l.b16 %v56
  %v201 = vunpack.c.l.b16 %v57
  %v202 = vunpack.c.l.b16 %v58
  %v203 = vunpack.c.l.b16 %v59
  %v204 = vunpack.c.l.b16 %v60
  %v205 = vunpack.c.l.b16 %v61
  %v206 = vunpack.c.l.b16 %v62
  %v207 = vunpack.c.l.b16 %v63
  %v208 = vunpack.c.l.b16 %v64
  %v209 = vunpack.c.l.b16 %v65
  %v210 = vunpack.c.l.b16 %v66
  %v211 = vunpack.c.l.b16 %v67
  %v212 = vunpack.c.l.b16 %v68
  %v213 = vunpack.c.l.b16 %v69
  %v214 = vunpack.c.l.b16 %v70
  %v215 = vunpack.c.l.b16 %v71
  %v216 = vunpack.c.l.b16 %v72
  %v217 = vunpack.c.l.b16 %v73
  %v218 = vunpack.c.l.b16 %v74
  %v219 = vunpack.c.l.b16 %v75
  %v220 = vunpack.c.l.b16 %v76
  %v221 = vunpack.c.l.b16 %v77
  %v222 = vunpack.c.l.b16 %v78
  %v223 = vpack.c.b16 %v160, %v159
  %v224 = vpack.c.b16 %v162, %v161
  %v225 = vpack.c.b16 %v164, %v163
  %v226 = vpack.c.b16 %v166, %v165
  %v227 = vpack.c.b16 %v168, %v167
  %v228 = vpack.c.b16 %v170, %v169
  %v229 = vpack.c.b16 %v172, %v171
  %v230 = vpack.c.b16 %v174, %v173
  %v231 = vpack.c.b16 %v176, %v175
  %v232 = vpack.c.b16 %v178, %v177
  %v233 = vpack.c.b16 %v180, %v179
  %v234 = vpack.c.b16 %v182, %v181
  %v235 = vpack.c.b16 %v184, %v183
  %v236 = vpack.c.b16 %v186, %v185
  %v237 = vpack.c.b16 %v188, %v187
  %v238 = vpack.c.b16 %v190, %v189
  %v239 = vpack.c.b16 %v192, %v191
  %v240 = vpack.c.b16 %v194, %v193
  %v241 = vpack.c.b16 %v196, %v195
  %v242 = vpack.c.b16 %v198, %v197
  %v243 = vpack.c.b16 %v200, %v199
  %v244 = vpack.c.b16 %v202, %v201
  %v245 = vpack.c.b16 %v204, %v203
  %v246 = vpack.c.b16 %v206, %v205
  %v247 = vpack.c.b16 %v208, %v207
  %v248 = vpack.c.b16 %v210, %v209
  %v249 = vpack.c.b16 %v212, %v211
  %v250 = vpack.c.b16 %v214, %v213
  %v251 = vpack.c.b16 %v216, %v215
  %v252 = vpack.c.b16 %v218, %v217
  %v253 = vpack.c.b16 %v220, %v219
  %v254 = vpack.c.b16 %v222, %v221
  %v264 = vunpack.c.l.b16 %v79
  %v265 = vunpack.c.l.b16 %v80
  %v266 = vunpack.c.l.b16 %v81
  %v267 = vunpack.c.l.b16 %v82
  %v268 = vunpack.c.l.b16 %v83
  %v269 = vunpack.c.l.b16 %v84
  %v270 = vunpack.c.l.b16 %v85
  %v271 = vunpack.c.l.b16 %v86
  %v272 = vunpack.c.l.b16 %v87
  %v273 = vpack.c.b16 %v265, %v264
  %v274 = vpack.c.b16 %v267, %v266
  %v275 = vpack.c.b16 %v269, %v268
  %v276 = vpack.c.b16 %v271, %v270
  %v277 = vpack.c.b16 %v272, %v272
  %vm282 = vcmask 588800
  %v284 = vsel %vm282, %v223, 0
  %v287 = vsel %vm282, %v224, 0
  %v290 = vsel %vm282, %v225, 0
  %v293 = vsel %vm282, %v226, 0
  %v296 = vsel %vm282, %v227, 0
  %v299 = vsel %vm282, %v228, 0
  %v302 = vsel %vm282, %v229, 0
  %v305 = vsel %vm282, %v230, 0
  %v308 = vsel %vm282, %v231, 0
  %v311 = vsel %vm282, %v232, 0
  %v314 = vsel %vm282, %v233, 0
  %v317 = vsel %vm282, %v234, 0
  %v320 = vsel %vm282, %v235, 0
  %v323 = vsel %vm282, %v236, 0
  %v326 = vsel %vm282, %v237, 0
  %v329 = vsel %vm282, %v238, 0
  %v332 = vsel %vm282, %v239, 0
  %v335 = vsel %vm282, %v240, 0
  %v338 = vsel %vm282, %v241, 0
  %v341 = vsel %vm282, %v242, 0
  %v344 = vsel %vm282, %v243, 0
  %v347 = vsel %vm282, %v244, 0
  %v350 = vsel %vm282, %v245, 0
  %v353 = vsel %vm282, %v246, 0
  %v356 = vsel %vm282, %v247, 0
  %v359 = vsel %vm282, %v248, 0
  %v362 = vsel %vm282, %v249, 0
  %v365 = vsel %vm282, %v250, 0
  %v368 = vsel %vm282, %v251, 0
  %v371 = vsel %vm282, %v252, 0
  %v374 = vsel %vm282, %v253, 0
  %v377 = vsel %vm282, %v254, 0
  %vm379 = vcmask 1043456
  %v381 = vsel %vm379, %v277, 0
  %383 = vmatprep.subr.bf16.mxu0 0
  %384 = vmatpush1.bf16.msra.mxu0 %v273
  %385 = vmatprep.subr.bf16.mxu0 0
  %386 = vmatpush1.bf16.msra.mxu0 %v274
  %387 = vmatprep.subr.bf16.mxu0 0
  %388 = vmatpush1.bf16.msra.mxu0 %v275
  %389 = vmatprep.subr.bf16.mxu0 0
  %390 = vmatpush1.bf16.msra.mxu0 %v276
  %391 = vmatprep.subr.bf16.mxu0 0
  %392 = vmatpush1.bf16.msra.mxu0 %v381
  %393 = vmatprep.subr.bf16.mxu0 0
  %394 = vmatpush1.bf16.msra.mxu0 0
  %395 = vmatprep.subr.bf16.mxu0 0
  %396 = vmatpush1.bf16.msra.mxu0 0
  %397 = vmatprep.subr.bf16.mxu0 0
  %398 = vmatpush1.bf16.msra.mxu0 0
  %399 = vmatprep.subr.bf16.mxu0 0
  %400 = vmatpush1.bf16.msra.mxu0 0
  %401 = vmatprep.subr.bf16.mxu0 0
  %402 = vmatpush1.bf16.msra.mxu0 0
  %403 = vmatprep.subr.bf16.mxu0 0
  %404 = vmatpush1.bf16.msra.mxu0 0
  %405 = vmatprep.subr.bf16.mxu0 0
  %406 = vmatpush1.bf16.msra.mxu0 0
  %407 = vmatprep.subr.bf16.mxu0 0
  %408 = vmatpush1.bf16.msra.mxu0 0
  %409 = vmatprep.subr.bf16.mxu0 0
  %410 = vmatpush1.bf16.msra.mxu0 0
  %411 = vmatprep.subr.bf16.mxu0 0
  %412 = vmatpush1.bf16.msra.mxu0 0
  %413 = vmatprep.subr.bf16.mxu0 0
  %414 = vmatpush1.bf16.msra.mxu0 0
  %415 = vmatprep.mubr.bf16.mxu0 0
  %416 = vmatmul.mubr.bf16.gmra.mrb[0].mxu0 %v284
  %v417 = vpop.f32.mrb[0].mxu0
  %v418 = vadd.f32 %v93, %v417
  %v419 = vpop.f32.mrb[0].mxu0
  %v420 = vpop.f32.mrb[0].mxu0
  %v421 = vadd.f32 %v93, %v420
  %v422 = vpop.f32.mrb[0].mxu0
  %423 = vmatprep.mubr.bf16.mxu0 0
  %424 = vmatmul.mubr.bf16.gmra.mrb[0].mxu0 %v287
  %v425 = vpop.f32.mrb[0].mxu0
  %v426 = vadd.f32 %v93, %v425
  %v427 = vpop.f32.mrb[0].mxu0
  %v428 = vpop.f32.mrb[0].mxu0
  %v429 = vadd.f32 %v93, %v428
  %v430 = vpop.f32.mrb[0].mxu0
  %431 = vmatprep.mubr.bf16.mxu0 0
  %432 = vmatmul.mubr.bf16.gmra.mrb[0].mxu0 %v290
  %v433 = vpop.f32.mrb[0].mxu0
  %v434 = vadd.f32 %v93, %v433
  %v435 = vpop.f32.mrb[0].mxu0
  %v436 = vpop.f32.mrb[0].mxu0
  %v437 = vadd.f32 %v93, %v436
  %v438 = vpop.f32.mrb[0].mxu0
  %439 = vmatprep.mubr.bf16.mxu0 0
  %440 = vmatmul.mubr.bf16.gmra.mrb[0].mxu0 %v293
  %v441 = vpop.f32.mrb[0].mxu0
  %v442 = vadd.f32 %v93, %v441
  %v443 = vpop.f32.mrb[0].mxu0
  %v444 = vpop.f32.mrb[0].mxu0
  %v445 = vadd.f32 %v93, %v444
  %v446 = vpop.f32.mrb[0].mxu0
  %447 = vmatprep.mubr.bf16.mxu0 0
  %448 = vmatmul.mubr.bf16.gmra.mrb[0].mxu0 %v296
  %v449 = vpop.f32.mrb[0].mxu0
  %v450 = vadd.f32 %v93, %v449
  %v451 = vpop.f32.mrb[0].mxu0
  %v452 = vpop.f32.mrb[0].mxu0
  %v453 = vadd.f32 %v93, %v452
  %v454 = vpop.f32.mrb[0].mxu0
  %455 = vmatprep.mubr.bf16.mxu0 0
  %456 = vmatmul.mubr.bf16.gmra.mrb[0].mxu0 %v299
  %v457 = vpop.f32.mrb[0].mxu0
  %v458 = vadd.f32 %v93, %v457
  %v459 = vpop.f32.mrb[0].mxu0
  %v460 = vpop.f32.mrb[0].mxu0
  %v461 = vadd.f32 %v93, %v460
  %v462 = vpop.f32.mrb[0].mxu0
  %463 = vmatprep.mubr.bf16.mxu0 0
  %464 = vmatmul.mubr.bf16.gmra.mrb[0].mxu0 %v302
  %v465 = vpop.f32.mrb[0].mxu0
  %v466 = vadd.f32 %v93, %v465
  %v467 = vpop.f32.mrb[0].mxu0
  %v468 = vpop.f32.mrb[0].mxu0
  %v469 = vadd.f32 %v93, %v468
  %v470 = vpop.f32.mrb[0].mxu0
  %471 = vmatprep.mubr.bf16.mxu0 0
  %472 = vmatmul.mubr.bf16.gmra.mrb[0].mxu0 %v305
  %v473 = vpop.f32.mrb[0].mxu0
  %v474 = vadd.f32 %v93, %v473
  %v475 = vpop.f32.mrb[0].mxu0
  %v476 = vpop.f32.mrb[0].mxu0
  %v477 = vadd.f32 %v93, %v476
  %v478 = vpop.f32.mrb[0].mxu0
  %479 = vmatprep.mubr.bf16.mxu0 0
  %480 = vmatmul.mubr.bf16.gmra.mrb[0].mxu0 %v308
  %v481 = vpop.f32.mrb[0].mxu0
  %v482 = vadd.f32 %v93, %v481
  %v483 = vpop.f32.mrb[0].mxu0
  %v484 = vpop.f32.mrb[0].mxu0
  %v485 = vadd.f32 %v93, %v484
  %v486 = vpop.f32.mrb[0].mxu0
  %487 = vmatprep.mubr.bf16.mxu0 0
  %488 = vmatmul.mubr.bf16.gmra.mrb[0].mxu0 %v311
  %v489 = vpop.f32.mrb[0].mxu0
  %v490 = vadd.f32 %v93, %v489
  %v491 = vpop.f32.mrb[0].mxu0
  %v492 = vpop.f32.mrb[0].mxu0
  %v493 = vadd.f32 %v93, %v492
  %v494 = vpop.f32.mrb[0].mxu0
  %495 = vmatprep.mubr.bf16.mxu0 0
  %496 = vmatmul.mubr.bf16.gmra.mrb[0].mxu0 %v314
  %v497 = vpop.f32.mrb[0].mxu0
  %v498 = vadd.f32 %v93, %v497
  %v499 = vpop.f32.mrb[0].mxu0
  %v500 = vpop.f32.mrb[0].mxu0
  %v501 = vadd.f32 %v93, %v500
  %v502 = vpop.f32.mrb[0].mxu0
  %503 = vmatprep.mubr.bf16.mxu0 0
  %504 = vmatmul.mubr.bf16.gmra.mrb[0].mxu0 %v317
  %v505 = vpop.f32.mrb[0].mxu0
  %v506 = vadd.f32 %v93, %v505
  %v507 = vpop.f32.mrb[0].mxu0
  %v508 = vpop.f32.mrb[0].mxu0
  %v509 = vadd.f32 %v93, %v508
  %v510 = vpop.f32.mrb[0].mxu0
  %511 = vmatprep.mubr.bf16.mxu0 0
  %512 = vmatmul.mubr.bf16.gmra.mrb[0].mxu0 %v320
  %v513 = vpop.f32.mrb[0].mxu0
  %v514 = vadd.f32 %v93, %v513
  %v515 = vpop.f32.mrb[0].mxu0
  %v516 = vpop.f32.mrb[0].mxu0
  %v517 = vadd.f32 %v93, %v516
  %v518 = vpop.f32.mrb[0].mxu0
  %519 = vmatprep.mubr.bf16.mxu0 0
  %520 = vmatmul.mubr.bf16.gmra.mrb[0].mxu0 %v323
  %v521 = vpop.f32.mrb[0].mxu0
  %v522 = vadd.f32 %v93, %v521
  %v523 = vpop.f32.mrb[0].mxu0
  %v524 = vpop.f32.mrb[0].mxu0
  %v525 = vadd.f32 %v93, %v524
  %v526 = vpop.f32.mrb[0].mxu0
  %527 = vmatprep.mubr.bf16.mxu0 0
  %528 = vmatmul.mubr.bf16.gmra.mrb[0].mxu0 %v326
  %v529 = vpop.f32.mrb[0].mxu0
  %v530 = vadd.f32 %v93, %v529
  %v531 = vpop.f32.mrb[0].mxu0
  %v532 = vpop.f32.mrb[0].mxu0
  %v533 = vadd.f32 %v93, %v532
  %v534 = vpop.f32.mrb[0].mxu0
  %535 = vmatprep.mubr.bf16.mxu0 0
  %536 = vmatmul.mubr.bf16.gmra.mrb[0].mxu0 %v329
  %v537 = vpop.f32.mrb[0].mxu0
  %v538 = vadd.f32 %v93, %v537
  %v539 = vpop.f32.mrb[0].mxu0
  %v540 = vpop.f32.mrb[0].mxu0
  %v541 = vadd.f32 %v93, %v540
  %v542 = vpop.f32.mrb[0].mxu0
  %543 = vmatprep.mubr.bf16.mxu0 0
  %544 = vmatmul.mubr.bf16.gmra.mrb[0].mxu0 %v332
  %v545 = vpop.f32.mrb[0].mxu0
  %v546 = vadd.f32 %v93, %v545
  %v547 = vpop.f32.mrb[0].mxu0
  %v548 = vpop.f32.mrb[0].mxu0
  %v549 = vadd.f32 %v93, %v548
  %v550 = vpop.f32.mrb[0].mxu0
  %551 = vmatprep.mubr.bf16.mxu0 0
  %552 = vmatmul.mubr.bf16.gmra.mrb[0].mxu0 %v335
  %v553 = vpop.f32.mrb[0].mxu0
  %v554 = vadd.f32 %v93, %v553
  %v555 = vpop.f32.mrb[0].mxu0
  %v556 = vpop.f32.mrb[0].mxu0
  %v557 = vadd.f32 %v93, %v556
  %v558 = vpop.f32.mrb[0].mxu0
  %559 = vmatprep.mubr.bf16.mxu0 0
  %560 = vmatmul.mubr.bf16.gmra.mrb[0].mxu0 %v338
  %v561 = vpop.f32.mrb[0].mxu0
  %v562 = vadd.f32 %v93, %v561
  %v563 = vpop.f32.mrb[0].mxu0
  %v564 = vpop.f32.mrb[0].mxu0
  %v565 = vadd.f32 %v93, %v564
  %v566 = vpop.f32.mrb[0].mxu0
  %567 = vmatprep.mubr.bf16.mxu0 0
  %568 = vmatmul.mubr.bf16.gmra.mrb[0].mxu0 %v341
  %v569 = vpop.f32.mrb[0].mxu0
  %v570 = vadd.f32 %v93, %v569
  %v571 = vpop.f32.mrb[0].mxu0
  %v572 = vpop.f32.mrb[0].mxu0
  %v573 = vadd.f32 %v93, %v572
  %v574 = vpop.f32.mrb[0].mxu0
  %575 = vmatprep.mubr.bf16.mxu0 0
  %576 = vmatmul.mubr.bf16.gmra.mrb[0].mxu0 %v344
  %v577 = vpop.f32.mrb[0].mxu0
  %v578 = vadd.f32 %v93, %v577
  %v579 = vpop.f32.mrb[0].mxu0
  %v580 = vpop.f32.mrb[0].mxu0
  %v581 = vadd.f32 %v93, %v580
  %v582 = vpop.f32.mrb[0].mxu0
  %583 = vmatprep.mubr.bf16.mxu0 0
  %584 = vmatmul.mubr.bf16.gmra.mrb[0].mxu0 %v347
  %v585 = vpop.f32.mrb[0].mxu0
  %v586 = vadd.f32 %v93, %v585
  %v587 = vpop.f32.mrb[0].mxu0
  %v588 = vpop.f32.mrb[0].mxu0
  %v589 = vadd.f32 %v93, %v588
  %v590 = vpop.f32.mrb[0].mxu0
  %591 = vmatprep.mubr.bf16.mxu0 0
  %592 = vmatmul.mubr.bf16.gmra.mrb[0].mxu0 %v350
  %v593 = vpop.f32.mrb[0].mxu0
  %v594 = vadd.f32 %v93, %v593
  %v595 = vpop.f32.mrb[0].mxu0
  %v596 = vpop.f32.mrb[0].mxu0
  %v597 = vadd.f32 %v93, %v596
  %v598 = vpop.f32.mrb[0].mxu0
  %599 = vmatprep.mubr.bf16.mxu0 0
  %600 = vmatmul.mubr.bf16.gmra.mrb[0].mxu0 %v353
  %v601 = vpop.f32.mrb[0].mxu0
  %v602 = vadd.f32 %v93, %v601
  %v603 = vpop.f32.mrb[0].mxu0
  %v604 = vpop.f32.mrb[0].mxu0
  %v605 = vadd.f32 %v93, %v604
  %v606 = vpop.f32.mrb[0].mxu0
  %607 = vmatprep.mubr.bf16.mxu0 0
  %608 = vmatmul.mubr.bf16.gmra.mrb[0].mxu0 %v356
  %v609 = vpop.f32.mrb[0].mxu0
  %v610 = vadd.f32 %v93, %v609
  %v611 = vpop.f32.mrb[0].mxu0
  %v612 = vpop.f32.mrb[0].mxu0
  %v613 = vadd.f32 %v93, %v612
  %v614 = vpop.f32.mrb[0].mxu0
  %615 = vmatprep.mubr.bf16.mxu0 0
  %616 = vmatmul.mubr.bf16.gmra.mrb[0].mxu0 %v359
  %v617 = vpop.f32.mrb[0].mxu0
  %v618 = vadd.f32 %v93, %v617
  %v619 = vpop.f32.mrb[0].mxu0
  %v620 = vpop.f32.mrb[0].mxu0
  %v621 = vadd.f32 %v93, %v620
  %v622 = vpop.f32.mrb[0].mxu0
  %623 = vmatprep.mubr.bf16.mxu0 0
  %624 = vmatmul.mubr.bf16.gmra.mrb[0].mxu0 %v362
  %v625 = vpop.f32.mrb[0].mxu0
  %v626 = vadd.f32 %v93, %v625
  %v627 = vpop.f32.mrb[0].mxu0
  %v628 = vpop.f32.mrb[0].mxu0
  %v629 = vadd.f32 %v93, %v628
  %v630 = vpop.f32.mrb[0].mxu0
  %631 = vmatprep.mubr.bf16.mxu0 0
  %632 = vmatmul.mubr.bf16.gmra.mrb[0].mxu0 %v365
  %v633 = vpop.f32.mrb[0].mxu0
  %v634 = vadd.f32 %v93, %v633
  %v635 = vpop.f32.mrb[0].mxu0
  %v636 = vpop.f32.mrb[0].mxu0
  %v637 = vadd.f32 %v93, %v636
  %v638 = vpop.f32.mrb[0].mxu0
  %639 = vmatprep.mubr.bf16.mxu0 0
  %640 = vmatmul.mubr.bf16.gmra.mrb[0].mxu0 %v368
  %v641 = vpop.f32.mrb[0].mxu0
  %v642 = vadd.f32 %v93, %v641
  %v643 = vpop.f32.mrb[0].mxu0
  %v644 = vpop.f32.mrb[0].mxu0
  %v645 = vadd.f32 %v93, %v644
  %v646 = vpop.f32.mrb[0].mxu0
  %647 = vmatprep.mubr.bf16.mxu0 0
  %648 = vmatmul.mubr.bf16.gmra.mrb[0].mxu0 %v371
  %v649 = vpop.f32.mrb[0].mxu0
  %v650 = vadd.f32 %v93, %v649
  %v651 = vpop.f32.mrb[0].mxu0
  %v652 = vpop.f32.mrb[0].mxu0
  %v653 = vadd.f32 %v93, %v652
  %v654 = vpop.f32.mrb[0].mxu0
  %655 = vmatprep.mubr.bf16.mxu0 0
  %656 = vmatmul.mubr.bf16.gmra.mrb[0].mxu0 %v374
  %v657 = vpop.f32.mrb[0].mxu0
  %v658 = vadd.f32 %v93, %v657
  %v659 = vpop.f32.mrb[0].mxu0
  %v660 = vpop.f32.mrb[0].mxu0
  %v661 = vadd.f32 %v93, %v660
  %v662 = vpop.f32.mrb[0].mxu0
  %663 = vmatprep.mubr.bf16.mxu0 0
  %664 = vmatmul.mubr.bf16.gmra.mrb[0].mxu0 %v377
  %v665 = vpop.f32.mrb[0].mxu0
  %v666 = vadd.f32 %v93, %v665
  %v667 = vpop.f32.mrb[0].mxu0
  %v668 = vpop.f32.mrb[0].mxu0
  %v669 = vadd.f32 %v93, %v668
  %v670 = vpop.f32.mrb[0].mxu0
  %671 = vdwg.mxu0
  %v672 = vmax.f32 %v418, 0.0
  %v673 = vmax.f32 %v421, 0.0
  %v674 = vmax.f32 %v426, 0.0
  %v675 = vmax.f32 %v429, 0.0
  %v676 = vmax.f32 %v434, 0.0
  %v677 = vmax.f32 %v437, 0.0
  %v678 = vmax.f32 %v442, 0.0
  %v679 = vmax.f32 %v445, 0.0
  %v680 = vmax.f32 %v450, 0.0
  %v681 = vmax.f32 %v453, 0.0
  %v682 = vmax.f32 %v458, 0.0
  %v683 = vmax.f32 %v461, 0.0
  %v684 = vmax.f32 %v466, 0.0
  %v685 = vmax.f32 %v469, 0.0
  %v686 = vmax.f32 %v474, 0.0
  %v687 = vmax.f32 %v477, 0.0
  %v688 = vmax.f32 %v482, 0.0
  %v689 = vmax.f32 %v485, 0.0
  %v690 = vmax.f32 %v490, 0.0
  %v691 = vmax.f32 %v493, 0.0
  %v692 = vmax.f32 %v498, 0.0
  %v693 = vmax.f32 %v501, 0.0
  %v694 = vmax.f32 %v506, 0.0
  %v695 = vmax.f32 %v509, 0.0
  %v696 = vmax.f32 %v514, 0.0
  %v697 = vmax.f32 %v517, 0.0
  %v698 = vmax.f32 %v522, 0.0
  %v699 = vmax.f32 %v525, 0.0
  %v700 = vmax.f32 %v530, 0.0
  %v701 = vmax.f32 %v533, 0.0
  %v702 = vmax.f32 %v538, 0.0
  %v703 = vmax.f32 %v541, 0.0
  %v704 = vmax.f32 %v546, 0.0
  %v705 = vmax.f32 %v549, 0.0
  %v706 = vmax.f32 %v554, 0.0
  %v707 = vmax.f32 %v557, 0.0
  %v708 = vmax.f32 %v562, 0.0
  %v709 = vmax.f32 %v565, 0.0
  %v710 = vmax.f32 %v570, 0.0
  %v711 = vmax.f32 %v573, 0.0
  %v712 = vmax.f32 %v578, 0.0
  %v713 = vmax.f32 %v581, 0.0
  %v714 = vmax.f32 %v586, 0.0
  %v715 = vmax.f32 %v589, 0.0
  %v716 = vmax.f32 %v594, 0.0
  %v717 = vmax.f32 %v597, 0.0
  %v718 = vmax.f32 %v602, 0.0
  %v719 = vmax.f32 %v605, 0.0
  %v720 = vmax.f32 %v610, 0.0
  %v721 = vmax.f32 %v613, 0.0
  %v722 = vmax.f32 %v618, 0.0
  %v723 = vmax.f32 %v621, 0.0
  %v724 = vmax.f32 %v626, 0.0
  %v725 = vmax.f32 %v629, 0.0
  %v726 = vmax.f32 %v634, 0.0
  %v727 = vmax.f32 %v637, 0.0
  %v728 = vmax.f32 %v642, 0.0
  %v729 = vmax.f32 %v645, 0.0
  %v730 = vmax.f32 %v650, 0.0
  %v731 = vmax.f32 %v653, 0.0
  %v732 = vmax.f32 %v658, 0.0
  %v733 = vmax.f32 %v661, 0.0
  %v734 = vmax.f32 %v666, 0.0
  %v735 = vmax.f32 %v669, 0.0
  %vm736 = vcmask 64512
  %737 = vst.msk [vmem:[%s3] sm:$0xff] %vm736, %v672
  %738 = vst.msk [vmem:[%s3 + $0x8] sm:$0xff] %vm736, %v673
  %739 = vst.msk [vmem:[%s3 + $0x10] sm:$0xff] %vm736, %v674
  %740 = vst.msk [vmem:[%s3 + $0x18] sm:$0xff] %vm736, %v675
  %741 = vst.msk [vmem:[%s3 + $0x20] sm:$0xff] %vm736, %v676
  %742 = vst.msk [vmem:[%s3 + $0x28] sm:$0xff] %vm736, %v677
  %743 = vst.msk [vmem:[%s3 + $0x30] sm:$0xff] %vm736, %v678
  %744 = vst.msk [vmem:[%s3 + $0x38] sm:$0xff] %vm736, %v679
  %745 = vst.msk [vmem:[%s3 + $0x40] sm:$0xff] %vm736, %v680
  %746 = vst.msk [vmem:[%s3 + $0x48] sm:$0xff] %vm736, %v681
  %747 = vst.msk [vmem:[%s3 + $0x50] sm:$0xff] %vm736, %v682
  %748 = vst.msk [vmem:[%s3 + $0x58] sm:$0xff] %vm736, %v683
  %749 = vst.msk [vmem:[%s3 + $0x60] sm:$0xff] %vm736, %v684
  %750 = vst.msk [vmem:[%s3 + $0x68] sm:$0xff] %vm736, %v685
  %751 = vst.msk [vmem:[%s3 + $0x70] sm:$0xff] %vm736, %v686
  %752 = vst.msk [vmem:[%s3 + $0x78] sm:$0xff] %vm736, %v687
  %753 = vst.msk [vmem:[%s3 + $0x80] sm:$0xff] %vm736, %v688
  %754 = vst.msk [vmem:[%s3 + $0x88] sm:$0xff] %vm736, %v689
  %755 = vst.msk [vmem:[%s3 + $0x90] sm:$0xff] %vm736, %v690
  %756 = vst.msk [vmem:[%s3 + $0x98] sm:$0xff] %vm736, %v691
  %757 = vst.msk [vmem:[%s3 + $0xa0] sm:$0xff] %vm736, %v692
  %758 = vst.msk [vmem:[%s3 + $0xa8] sm:$0xff] %vm736, %v693
  %759 = vst.msk [vmem:[%s3 + $0xb0] sm:$0xff] %vm736, %v694
  %760 = vst.msk [vmem:[%s3 + $0xb8] sm:$0xff] %vm736, %v695
  %761 = vst.msk [vmem:[%s3 + $0xc0] sm:$0xff] %vm736, %v696
  %762 = vst.msk [vmem:[%s3 + $0xc8] sm:$0xff] %vm736, %v697
  %763 = vst.msk [vmem:[%s3 + $0xd0] sm:$0xff] %vm736, %v698
  %764 = vst.msk [vmem:[%s3 + $0xd8] sm:$0xff] %vm736, %v699
  %765 = vst.msk [vmem:[%s3 + $0xe0] sm:$0xff] %vm736, %v700
  %766 = vst.msk [vmem:[%s3 + $0xe8] sm:$0xff] %vm736, %v701
  %767 = vst.msk [vmem:[%s3 + $0xf0] sm:$0xff] %vm736, %v702
  %768 = vst.msk [vmem:[%s3 + $0xf8] sm:$0xff] %vm736, %v703
  %769 = vst.msk [vmem:[%s3 + $0x100] sm:$0xff] %vm736, %v704
  %770 = vst.msk [vmem:[%s3 + $0x108] sm:$0xff] %vm736, %v705
  %771 = vst.msk [vmem:[%s3 + $0x110] sm:$0xff] %vm736, %v706
  %772 = vst.msk [vmem:[%s3 + $0x118] sm:$0xff] %vm736, %v707
  %773 = vst.msk [vmem:[%s3 + $0x120] sm:$0xff] %vm736, %v708
  %774 = vst.msk [vmem:[%s3 + $0x128] sm:$0xff] %vm736, %v709
  %775 = vst.msk [vmem:[%s3 + $0x130] sm:$0xff] %vm736, %v710
  %776 = vst.msk [vmem:[%s3 + $0x138] sm:$0xff] %vm736, %v711
  %777 = vst.msk [vmem:[%s3 + $0x140] sm:$0xff] %vm736, %v712
  %778 = vst.msk [vmem:[%s3 + $0x148] sm:$0xff] %vm736, %v713
  %779 = vst.msk [vmem:[%s3 + $0x150] sm:$0xff] %vm736, %v714
  %780 = vst.msk [vmem:[%s3 + $0x158] sm:$0xff] %vm736, %v715
  %781 = vst.msk [vmem:[%s3 + $0x160] sm:$0xff] %vm736, %v716
  %782 = vst.msk [vmem:[%s3 + $0x168] sm:$0xff] %vm736, %v717
  %783 = vst.msk [vmem:[%s3 + $0x170] sm:$0xff] %vm736, %v718
  %784 = vst.msk [vmem:[%s3 + $0x178] sm:$0xff] %vm736, %v719
  %785 = vst.msk [vmem:[%s3 + $0x180] sm:$0xff] %vm736, %v720
  %786 = vst.msk [vmem:[%s3 + $0x188] sm:$0xff] %vm736, %v721
  %787 = vst.msk [vmem:[%s3 + $0x190] sm:$0xff] %vm736, %v722
  %788 = vst.msk [vmem:[%s3 + $0x198] sm:$0xff] %vm736, %v723
  %789 = vst.msk [vmem:[%s3 + $0x1a0] sm:$0xff] %vm736, %v724
  %790 = vst.msk [vmem:[%s3 + $0x1a8] sm:$0xff] %vm736, %v725
  %791 = vst.msk [vmem:[%s3 + $0x1b0] sm:$0xff] %vm736, %v726
  %792 = vst.msk [vmem:[%s3 + $0x1b8] sm:$0xff] %vm736, %v727
  %793 = vst.msk [vmem:[%s3 + $0x1c0] sm:$0xff] %vm736, %v728
  %794 = vst.msk [vmem:[%s3 + $0x1c8] sm:$0xff] %vm736, %v729
  %795 = vst.msk [vmem:[%s3 + $0x1d0] sm:$0xff] %vm736, %v730
  %796 = vst.msk [vmem:[%s3 + $0x1d8] sm:$0xff] %vm736, %v731
  %797 = vst.msk [vmem:[%s3 + $0x1e0] sm:$0xff] %vm736, %v732
  %798 = vst.msk [vmem:[%s3 + $0x1e8] sm:$0xff] %vm736, %v733
  %799 = vst.msk [vmem:[%s3 + $0x1f0] sm:$0xff] %vm736, %v734
  %800 = vst.msk [vmem:[%s3 + $0x1f8] sm:$0xff] %vm736, %v735
  // Predicated region
  $region14: #{drn1_forward.7} parent=0 // pred_check
    _
  $region15: #{drn1_forward.7} parent=0 // pred_check_branch
    %802 = sbr.rel (0) target = $region17
  $region16: #{drn1_forward.7} parent=0 // pred_region
    _
  $region17: #{drn1_forward.7} parent=0 // pred_fallthru
    _
  // Predicated region
  $region18: #{drn1_forward.7} parent=0 // pred_check
    _
  $region19: #{drn1_forward.7} parent=0 // pred_check_branch
    %804 = sbr.rel (0) target = $region21
  $region20: #{drn1_forward.7} parent=0 // pred_region
    _
  $region21: #{drn1_forward.7} parent=0 // pred_fallthru
    _

// kernel: drn1_forward.8
$region0: #{drn1_forward.8}
  #allocation0 [shape = 'u32[]', space=smem, size = 0x4, offset = 0x4, fixed_abs, tag = 'smem constant byte address 0x4 - core index']
  #allocation1 [shape = 'u32[144,128]{1,0:T(1,128)}', space=vmem, size = 0x12000, scoped, tag = 'internal scratch']
  %s0 = inlined_call_operand.vmem [shape: bf16[128,72], index: 0, kind: input, shape index: {}]
  %s1 = inlined_call_operand.vmem [shape: bf16[72,8], index: 1, kind: input, shape index: {}]
  %s2 = inlined_call_operand.vmem [shape: f32[1,8], index: 2, kind: input, shape index: {}]
  %s3 = inlined_call_operand.vmem [shape: f32[128,8], index: 3, kind: output, shape index: {}]
  %s4 = sld [smem:[#allocation0]]
  $region22: #{drn1_forward.8} parent=0
    _
  %s6 = ssub.s32 1, %s4
  %s7 = scalar_select 0, %s6, %s4
  // Predicated region
  $region2: #{drn1_forward.8} parent=0 // pred_check
    _
  $region3: #{drn1_forward.8} parent=0 // pred_check_branch
    %9 = sbr.rel (0) target = $region5
  $region4: #{drn1_forward.8} parent=0 // pred_region
    _
  $region5: #{drn1_forward.8} parent=0 // pred_fallthru
    _
  // Predicated region
  $region6: #{drn1_forward.8} parent=0 // pred_check
    _
  $region7: #{drn1_forward.8} parent=0 // pred_check_branch
    %11 = sbr.rel (0) target = $region9
  $region8: #{drn1_forward.8} parent=0 // pred_region
    _
  $region9: #{drn1_forward.8} parent=0 // pred_fallthru
    _
  // Predicated region
  $region10: #{drn1_forward.8} parent=0 // pred_check
    _
  $region11: #{drn1_forward.8} parent=0 // pred_check_branch
    %13 = sbr.rel (0) target = $region13
  $region12: #{drn1_forward.8} parent=0 // pred_region
    _
  $region13: #{drn1_forward.8} parent=0 // pred_fallthru
    _
  %v15 = vld [vmem:[%s0] sm:$0xf]
  %v16 = vld [vmem:[%s0 + $0x4] sm:$0xf]
  %v17 = vld [vmem:[%s0 + $0x8] sm:$0xf]
  %v18 = vld [vmem:[%s0 + $0xc] sm:$0xf]
  %v19 = vld [vmem:[%s0 + $0x10] sm:$0xf]
  %v20 = vld [vmem:[%s0 + $0x14] sm:$0xf]
  %v21 = vld [vmem:[%s0 + $0x18] sm:$0xf]
  %v22 = vld [vmem:[%s0 + $0x1c] sm:$0xf]
  %v23 = vld [vmem:[%s0 + $0x20] sm:$0xf]
  %v24 = vld [vmem:[%s0 + $0x24] sm:$0xf]
  %v25 = vld [vmem:[%s0 + $0x28] sm:$0xf]
  %v26 = vld [vmem:[%s0 + $0x2c] sm:$0xf]
  %v27 = vld [vmem:[%s0 + $0x30] sm:$0xf]
  %v28 = vld [vmem:[%s0 + $0x34] sm:$0xf]
  %v29 = vld [vmem:[%s0 + $0x38] sm:$0xf]
  %v30 = vld [vmem:[%s0 + $0x3c] sm:$0xf]
  %v31 = vld [vmem:[%s1] sm:$0xf]
  %v32 = vld [vmem:[%s1 + $0x4] sm:$0xf]
  %v33 = vld [vmem:[%s1 + $0x8] sm:$0xf]
  %v34 = vld [vmem:[%s1 + $0xc] sm:$0xf]
  %v35 = vld [vmem:[%s1 + $0x10] sm:$0xf]
  %v36 = vld [vmem:[%s1 + $0x14] sm:$0xf]
  %v37 = vld [vmem:[%s1 + $0x18] sm:$0xf]
  %v38 = vld [vmem:[%s1 + $0x1c] sm:$0xf]
  %v39 = vld [vmem:[%s1 + $0x20] sm:$0xf]
  %v40 = vld [vmem:[%s2] sm:$0x1]
  %v42 = vlaneseq
  %v43 = vshrl.u32 %v42, 7
  %v44 = vsub.s32 0, %v43
  %v45 = vrot.slane %v40, %v44
  %v63 = vunpack.c.l.b16 %v15
  %v64 = vunpack.c.l.b16 %v16
  %v65 = vunpack.c.l.b16 %v17
  %v66 = vunpack.c.l.b16 %v18
  %v67 = vunpack.c.l.b16 %v19
  %v68 = vunpack.c.l.b16 %v20
  %v69 = vunpack.c.l.b16 %v21
  %v70 = vunpack.c.l.b16 %v22
  %v71 = vunpack.c.l.b16 %v23
  %v72 = vunpack.c.l.b16 %v24
  %v73 = vunpack.c.l.b16 %v25
  %v74 = vunpack.c.l.b16 %v26
  %v75 = vunpack.c.l.b16 %v27
  %v76 = vunpack.c.l.b16 %v28
  %v77 = vunpack.c.l.b16 %v29
  %v78 = vunpack.c.l.b16 %v30
  %v79 = vpack.c.b16 %v64, %v63
  %v80 = vpack.c.b16 %v66, %v65
  %v81 = vpack.c.b16 %v68, %v67
  %v82 = vpack.c.b16 %v70, %v69
  %v83 = vpack.c.b16 %v72, %v71
  %v84 = vpack.c.b16 %v74, %v73
  %v85 = vpack.c.b16 %v76, %v75
  %v86 = vpack.c.b16 %v78, %v77
  %v96 = vunpack.c.l.b16 %v31
  %v97 = vunpack.c.l.b16 %v32
  %v98 = vunpack.c.l.b16 %v33
  %v99 = vunpack.c.l.b16 %v34
  %v100 = vunpack.c.l.b16 %v35
  %v101 = vunpack.c.l.b16 %v36
  %v102 = vunpack.c.l.b16 %v37
  %v103 = vunpack.c.l.b16 %v38
  %v104 = vunpack.c.l.b16 %v39
  %v105 = vpack.c.b16 %v97, %v96
  %v106 = vpack.c.b16 %v99, %v98
  %v107 = vpack.c.b16 %v101, %v100
  %v108 = vpack.c.b16 %v103, %v102
  %v109 = vpack.c.b16 %v104, %v104
  %vm114 = vcmask 588800
  %v116 = vsel %vm114, %v79, 0
  %v119 = vsel %vm114, %v80, 0
  %v122 = vsel %vm114, %v81, 0
  %v125 = vsel %vm114, %v82, 0
  %v128 = vsel %vm114, %v83, 0
  %v131 = vsel %vm114, %v84, 0
  %v134 = vsel %vm114, %v85, 0
  %v137 = vsel %vm114, %v86, 0
  %vm139 = vcmask 1043456
  %v141 = vsel %vm139, %v109, 0
  %143 = vmatprep.subr.bf16.mxu0 0
  %144 = vmatpush1.bf16.msra.mxu0 %v105
  %145 = vmatprep.subr.bf16.mxu0 0
  %146 = vmatpush1.bf16.msra.mxu0 %v106
  %147 = vmatprep.subr.bf16.mxu0 0
  %148 = vmatpush1.bf16.msra.mxu0 %v107
  %149 = vmatprep.subr.bf16.mxu0 0
  %150 = vmatpush1.bf16.msra.mxu0 %v108
  %151 = vmatprep.subr.bf16.mxu0 0
  %152 = vmatpush1.bf16.msra.mxu0 %v141
  %153 = vmatprep.subr.bf16.mxu0 0
  %154 = vmatpush1.bf16.msra.mxu0 0
  %155 = vmatprep.subr.bf16.mxu0 0
  %156 = vmatpush1.bf16.msra.mxu0 0
  %157 = vmatprep.subr.bf16.mxu0 0
  %158 = vmatpush1.bf16.msra.mxu0 0
  %159 = vmatprep.subr.bf16.mxu0 0
  %160 = vmatpush1.bf16.msra.mxu0 0
  %161 = vmatprep.subr.bf16.mxu0 0
  %162 = vmatpush1.bf16.msra.mxu0 0
  %163 = vmatprep.subr.bf16.mxu0 0
  %164 = vmatpush1.bf16.msra.mxu0 0
  %165 = vmatprep.subr.bf16.mxu0 0
  %166 = vmatpush1.bf16.msra.mxu0 0
  %167 = vmatprep.subr.bf16.mxu0 0
  %168 = vmatpush1.bf16.msra.mxu0 0
  %169 = vmatprep.subr.bf16.mxu0 0
  %170 = vmatpush1.bf16.msra.mxu0 0
  %171 = vmatprep.subr.bf16.mxu0 0
  %172 = vmatpush1.bf16.msra.mxu0 0
  %173 = vmatprep.subr.bf16.mxu0 0
  %174 = vmatpush1.bf16.msra.mxu0 0
  %175 = vmatprep.mubr.bf16.mxu0 0
  %176 = vmatmul.mubr.bf16.gmra.mrb[0].mxu0 %v116
  %v177 = vpop.f32.mrb[0].mxu0
  %v178 = vadd.f32 %v45, %v177
  %v179 = vpop.f32.mrb[0].mxu0
  %v180 = vpop.f32.mrb[0].mxu0
  %v181 = vadd.f32 %v45, %v180
  %v182 = vpop.f32.mrb[0].mxu0
  %183 = vmatprep.mubr.bf16.mxu0 0
  %184 = vmatmul.mubr.bf16.gmra.mrb[0].mxu0 %v119
  %v185 = vpop.f32.mrb[0].mxu0
  %v186 = vadd.f32 %v45, %v185
  %v187 = vpop.f32.mrb[0].mxu0
  %v188 = vpop.f32.mrb[0].mxu0
  %v189 = vadd.f32 %v45, %v188
  %v190 = vpop.f32.mrb[0].mxu0
  %191 = vmatprep.mubr.bf16.mxu0 0
  %192 = vmatmul.mubr.bf16.gmra.mrb[0].mxu0 %v122
  %v193 = vpop.f32.mrb[0].mxu0
  %v194 = vadd.f32 %v45, %v193
  %v195 = vpop.f32.mrb[0].mxu0
  %v196 = vpop.f32.mrb[0].mxu0
  %v197 = vadd.f32 %v45, %v196
  %v198 = vpop.f32.mrb[0].mxu0
  %199 = vmatprep.mubr.bf16.mxu0 0
  %200 = vmatmul.mubr.bf16.gmra.mrb[0].mxu0 %v125
  %v201 = vpop.f32.mrb[0].mxu0
  %v202 = vadd.f32 %v45, %v201
  %v203 = vpop.f32.mrb[0].mxu0
  %v204 = vpop.f32.mrb[0].mxu0
  %v205 = vadd.f32 %v45, %v204
  %v206 = vpop.f32.mrb[0].mxu0
  %207 = vmatprep.mubr.bf16.mxu0 0
  %208 = vmatmul.mubr.bf16.gmra.mrb[0].mxu0 %v128
  %v209 = vpop.f32.mrb[0].mxu0
  %v210 = vadd.f32 %v45, %v209
  %v211 = vpop.f32.mrb[0].mxu0
  %v212 = vpop.f32.mrb[0].mxu0
  %v213 = vadd.f32 %v45, %v212
  %v214 = vpop.f32.mrb[0].mxu0
  %215 = vmatprep.mubr.bf16.mxu0 0
  %216 = vmatmul.mubr.bf16.gmra.mrb[0].mxu0 %v131
  %v217 = vpop.f32.mrb[0].mxu0
  %v218 = vadd.f32 %v45, %v217
  %v219 = vpop.f32.mrb[0].mxu0
  %v220 = vpop.f32.mrb[0].mxu0
  %v221 = vadd.f32 %v45, %v220
  %v222 = vpop.f32.mrb[0].mxu0
  %223 = vmatprep.mubr.bf16.mxu0 0
  %224 = vmatmul.mubr.bf16.gmra.mrb[0].mxu0 %v134
  %v225 = vpop.f32.mrb[0].mxu0
  %v226 = vadd.f32 %v45, %v225
  %v227 = vpop.f32.mrb[0].mxu0
  %v228 = vpop.f32.mrb[0].mxu0
  %v229 = vadd.f32 %v45, %v228
  %v230 = vpop.f32.mrb[0].mxu0
  %231 = vmatprep.mubr.bf16.mxu0 0
  %232 = vmatmul.mubr.bf16.gmra.mrb[0].mxu0 %v137
  %v233 = vpop.f32.mrb[0].mxu0
  %v234 = vadd.f32 %v45, %v233
  %v235 = vpop.f32.mrb[0].mxu0
  %v236 = vpop.f32.mrb[0].mxu0
  %v237 = vadd.f32 %v45, %v236
  %v238 = vpop.f32.mrb[0].mxu0
  %239 = vdwg.mxu0
  %v240 = vmax.f32 %v178, 0.0
  %v241 = vmax.f32 %v181, 0.0
  %v242 = vmax.f32 %v186, 0.0
  %v243 = vmax.f32 %v189, 0.0
  %v244 = vmax.f32 %v194, 0.0
  %v245 = vmax.f32 %v197, 0.0
  %v246 = vmax.f32 %v202, 0.0
  %v247 = vmax.f32 %v205, 0.0
  %v248 = vmax.f32 %v210, 0.0
  %v249 = vmax.f32 %v213, 0.0
  %v250 = vmax.f32 %v218, 0.0
  %v251 = vmax.f32 %v221, 0.0
  %v252 = vmax.f32 %v226, 0.0
  %v253 = vmax.f32 %v229, 0.0
  %v254 = vmax.f32 %v234, 0.0
  %v255 = vmax.f32 %v237, 0.0
  %vm256 = vcmask 64512
  %257 = vst.msk [vmem:[%s3] sm:$0xff] %vm256, %v240
  %258 = vst.msk [vmem:[%s3 + $0x8] sm:$0xff] %vm256, %v241
  %259 = vst.msk [vmem:[%s3 + $0x10] sm:$0xff] %vm256, %v242
  %260 = vst.msk [vmem:[%s3 + $0x18] sm:$0xff] %vm256, %v243
  %261 = vst.msk [vmem:[%s3 + $0x20] sm:$0xff] %vm256, %v244
  %262 = vst.msk [vmem:[%s3 + $0x28] sm:$0xff] %vm256, %v245
  %263 = vst.msk [vmem:[%s3 + $0x30] sm:$0xff] %vm256, %v246
  %264 = vst.msk [vmem:[%s3 + $0x38] sm:$0xff] %vm256, %v247
  %265 = vst.msk [vmem:[%s3 + $0x40] sm:$0xff] %vm256, %v248
  %266 = vst.msk [vmem:[%s3 + $0x48] sm:$0xff] %vm256, %v249
  %267 = vst.msk [vmem:[%s3 + $0x50] sm:$0xff] %vm256, %v250
  %268 = vst.msk [vmem:[%s3 + $0x58] sm:$0xff] %vm256, %v251
  %269 = vst.msk [vmem:[%s3 + $0x60] sm:$0xff] %vm256, %v252
  %270 = vst.msk [vmem:[%s3 + $0x68] sm:$0xff] %vm256, %v253
  %271 = vst.msk [vmem:[%s3 + $0x70] sm:$0xff] %vm256, %v254
  %272 = vst.msk [vmem:[%s3 + $0x78] sm:$0xff] %vm256, %v255
  // Predicated region
  $region14: #{drn1_forward.8} parent=0 // pred_check
    _
  $region15: #{drn1_forward.8} parent=0 // pred_check_branch
    %274 = sbr.rel (0) target = $region17
  $region16: #{drn1_forward.8} parent=0 // pred_region
    _
  $region17: #{drn1_forward.8} parent=0 // pred_fallthru
    _
  // Predicated region
  $region18: #{drn1_forward.8} parent=0 // pred_check
    _
  $region19: #{drn1_forward.8} parent=0 // pred_check_branch
    %276 = sbr.rel (0) target = $region21
  $region20: #{drn1_forward.8} parent=0 // pred_region
    _
  $region21: #{drn1_forward.8} parent=0 // pred_fallthru
    _

// kernel: drn1_forward.9
$region0: #{drn1_forward.9}
  #allocation0 [shape = 'u32[]', space=smem, size = 0x4, offset = 0x4, fixed_abs, tag = 'smem constant byte address 0x4 - core index']
  #allocation1 [shape = 'u32[144,128]{1,0:T(1,128)}', space=vmem, size = 0x12000, scoped, tag = 'internal scratch']
  %s0 = inlined_call_operand.vmem [shape: f32[32,72], index: 0, kind: input, shape index: {}]
  %s1 = inlined_call_operand.vmem [shape: f32[9,32,32], index: 1, kind: input, shape index: {}]
  %s2 = inlined_call_operand.vmem [shape: f32[32,32], index: 2, kind: input, shape index: {}]
  %s3 = inlined_call_operand.vmem [shape: f32[2,32], index: 3, kind: input, shape index: {}]
  %s4 = inlined_call_operand.vmem [shape: f32[72,8], index: 4, kind: input, shape index: {}]
  %s5 = inlined_call_operand.vmem [shape: f32[1,8], index: 5, kind: input, shape index: {}]
  %s6 = inlined_call_operand.vmem [shape: f32[36,8,8], index: 6, kind: input, shape index: {}]
  %s7 = inlined_call_operand.vmem [shape: f32[4,1,8], index: 7, kind: input, shape index: {}]
  %s8 = inlined_call_operand.vmem [shape: f32[8,16], index: 8, kind: input, shape index: {}]
  %s9 = inlined_call_operand.vmem [shape: f32[1,16], index: 9, kind: input, shape index: {}]
  %s10 = inlined_call_operand.hbm [shape: f32[2,16], index: 10, kind: output, shape index: {0}]
  %s11 = inlined_call_operand.vmem [shape: f32[32,1], index: 11, kind: output, shape index: {1}]
  %s12 = inlined_call_operand.vmem [shape: f32[32,1], index: 12, kind: output, shape index: {2}]
  %s13 = inlined_call_operand.vmem [shape: f32[32,1], index: 13, kind: output, shape index: {3}]
  %s14 = inlined_call_operand.hbm [shape: f32[2,8], index: 14, kind: output, shape index: {4}]
  %15 = xla_tuple %s10, %s11, %s12, %s13, %s14
  %s16 = sld [smem:[#allocation0]]
  $region82: #{drn1_forward.9} parent=0
    _
  %s18 = ssub.s32 1, %s16
  %s19 = scalar_select 0, %s18, %s16
  $region1: #{drn1_forward.9} parent=0
    #allocation2 [shape = 'u8[1024]{0}', space=vmem, size = 0x400, scoped, tag = 'output window, operand 0, single buffered']
    #allocation3 [shape = 's32[1]{0}', space=sflag, size = 0x4, scoped, tag = 'scoped memory for drn1_forward.9']
    #allocation4 [shape = 'u8[1024]{0}', space=vmem, size = 0x400, scoped, tag = 'output window, operand 4, single buffered']
    #allocation5 [shape = 's32[1]{0}', space=sflag, size = 0x4, scoped, tag = 'scoped memory for drn1_forward.9']
    %20 = vsyncpa [#allocation3], 0
    %21 = vsyncpa [#allocation5], 0
    // Predicated region
    $region2: #{drn1_forward.9} parent=1 // pred_check
      _
    $region3: #{drn1_forward.9} parent=1 // pred_check_branch
      %23 = sbr.rel (0) target = $region5
    $region4: #{drn1_forward.9} parent=1 // pred_region
      _
    $region5: #{drn1_forward.9} parent=1 // pred_fallthru
      _
    // Predicated region
    $region6: #{drn1_forward.9} parent=1 // pred_check
      _
    $region7: #{drn1_forward.9} parent=1 // pred_check_branch
      %25 = sbr.rel (0) target = $region9
    $region8: #{drn1_forward.9} parent=1 // pred_region
      _
    $region9: #{drn1_forward.9} parent=1 // pred_fallthru
      _
    // Predicated region
    $region10: #{drn1_forward.9} parent=1 // pred_check
      _
    $region11: #{drn1_forward.9} parent=1 // pred_check_branch
      %27 = sbr.rel (0) target = $region13
    $region12: #{drn1_forward.9} parent=1 // pred_region
      _
    $region13: #{drn1_forward.9} parent=1 // pred_fallthru
      _
    // Predicated region
    $region14: #{drn1_forward.9} parent=1 // pred_check
      _
    $region15: #{drn1_forward.9} parent=1 // pred_check_branch
      %29 = sbr.rel (0) target = $region17
    $region16: #{drn1_forward.9} parent=1 // pred_region
      _
    $region17: #{drn1_forward.9} parent=1 // pred_fallthru
      _
    // Predicated region
    $region18: #{drn1_forward.9} parent=1 // pred_check
      _
    $region19: #{drn1_forward.9} parent=1 // pred_check_branch
      %31 = sbr.rel (0) target = $region21
    $region20: #{drn1_forward.9} parent=1 // pred_region
      _
    $region21: #{drn1_forward.9} parent=1 // pred_fallthru
      _
    // Predicated region
    $region22: #{drn1_forward.9} parent=1 // pred_check
      _
    $region23: #{drn1_forward.9} parent=1 // pred_check_branch
      %33 = sbr.rel (0) target = $region25
    $region24: #{drn1_forward.9} parent=1 // pred_region
      _
    $region25: #{drn1_forward.9} parent=1 // pred_fallthru
      _
    // Predicated region
    $region26: #{drn1_forward.9} parent=1 // pred_check
      _
    $region27: #{drn1_forward.9} parent=1 // pred_check_branch
      %35 = sbr.rel (0) target = $region29
    $region28: #{drn1_forward.9} parent=1 // pred_region
      _
    $region29: #{drn1_forward.9} parent=1 // pred_fallthru
      _
    // Predicated region
    $region30: #{drn1_forward.9} parent=1 // pred_check
      _
    $region31: #{drn1_forward.9} parent=1 // pred_check_branch
      %37 = sbr.rel (0) target = $region33
    $region32: #{drn1_forward.9} parent=1 // pred_region
      _
    $region33: #{drn1_forward.9} parent=1 // pred_fallthru
      _
    // Predicated region
    $region34: #{drn1_forward.9} parent=1 // pred_check
      _
    $region35: #{drn1_forward.9} parent=1 // pred_check_branch
      %39 = sbr.rel (0) target = $region37
    $region36: #{drn1_forward.9} parent=1 // pred_region
      _
    $region37: #{drn1_forward.9} parent=1 // pred_fallthru
      _
    // Predicated region
    $region38: #{drn1_forward.9} parent=1 // pred_check
      _
    $region39: #{drn1_forward.9} parent=1 // pred_check_branch
      %41 = sbr.rel (0) target = $region41
    $region40: #{drn1_forward.9} parent=1 // pred_region
      _
    $region41: #{drn1_forward.9} parent=1 // pred_fallthru
      _
    %v42 = vld [vmem:[%s0] sm:$0xff]
    %v43 = vld [vmem:[%s0 + $0x8] sm:$0xff]
    %v44 = vld [vmem:[%s0 + $0x10] sm:$0xff]
    %v45 = vld [vmem:[%s0 + $0x18] sm:$0xff]
    %v46 = vld [vmem:[%s4] sm:$0xff]
    %v47 = vld [vmem:[%s4 + $0x8] sm:$0xff]
    %v48 = vld [vmem:[%s4 + $0x10] sm:$0xff]
    %v49 = vld [vmem:[%s4 + $0x18] sm:$0xff]
    %v50 = vld [vmem:[%s4 + $0x20] sm:$0xff]
    %v51 = vld [vmem:[%s4 + $0x28] sm:$0xff]
    %v52 = vld [vmem:[%s4 + $0x30] sm:$0xff]
    %v53 = vld [vmem:[%s4 + $0x38] sm:$0xff]
    %v54 = vld [vmem:[%s4 + $0x40] sm:$0xff]
    %v55 = vld [vmem:[%s5] sm:$0x1]
    %v57 = vlaneseq
    %v58 = vshrl.u32 %v57, 7
    %v59 = vsub.s32 0, %v58
    %v60 = vrot.slane %v55, %v59
    %vm62 = vcmask 588800
    %v64 = vsel %vm62, %v42, 0
    %v67 = vsel %vm62, %v43, 0
    %v70 = vsel %vm62, %v44, 0
    %v73 = vsel %vm62, %v45, 0
    %75 = vmatprep.subr.mxu0 0.0
    %76 = vmatpush1.msra.mxu0 %v46
    %77 = vmatprep.subr.mxu0 0.0
    %78 = vmatpush1.msra.mxu0 %v47
    %79 = vmatprep.subr.mxu0 0.0
    %80 = vmatpush1.msra.mxu0 %v48
    %81 = vmatprep.subr.mxu0 0.0
    %82 = vmatpush1.msra.mxu0 %v49
    %83 = vmatprep.subr.mxu0 0.0
    %84 = vmatpush1.msra.mxu0 %v50
    %85 = vmatprep.subr.mxu0 0.0
    %86 = vmatpush1.msra.mxu0 %v51
    %87 = vmatprep.subr.mxu0 0.0
    %88 = vmatpush1.msra.mxu0 %v52
    %89 = vmatprep.subr.mxu0 0.0
    %90 = vmatpush1.msra.mxu0 %v53
    %91 = vmatprep.subr.mxu0 0.0
    %92 = vmatpush1.msra.mxu0 %v54
    %93 = vmatprep.subr.mxu0 0.0
    %94 = vmatpush1.msra.mxu0 0.0
    %95 = vmatprep.subr.mxu0 0.0
    %96 = vmatpush1.msra.mxu0 0.0
    %97 = vmatprep.subr.mxu0 0.0
    %98 = vmatpush1.msra.mxu0 0.0
    %99 = vmatprep.subr.mxu0 0.0
    %100 = vmatpush1.msra.mxu0 0.0
    %101 = vmatprep.subr.mxu0 0.0
    %102 = vmatpush1.msra.mxu0 0.0
    %103 = vmatprep.subr.mxu0 0.0
    %104 = vmatpush1.msra.mxu0 0.0
    %105 = vmatprep.subr.mxu0 0.0
    %106 = vmatpush1.msra.mxu0 0.0
    %107 = vmatprep.subr.mxu0 0.0
    %108 = vmatpush1.msra.mxu0 0.0
    %109 = vmatprep.subr.mxu0 0.0
    %110 = vmatpush1.msra.mxu0 0.0
    %111 = vmatprep.subr.mxu0 0.0
    %112 = vmatpush1.msra.mxu0 0.0
    %113 = vmatprep.subr.mxu0 0.0
    %114 = vmatpush1.msra.mxu0 0.0
    %115 = vmatprep.subr.mxu0 0.0
    %116 = vmatpush1.msra.mxu0 0.0
    %117 = vmatprep.subr.mxu0 0.0
    %118 = vmatpush1.msra.mxu0 0.0
    %119 = vmatprep.subr.mxu0 0.0
    %120 = vmatpush1.msra.mxu0 0.0
    %121 = vmatprep.subr.mxu0 0.0
    %122 = vmatpush1.msra.mxu0 0.0
    %123 = vmatprep.subr.mxu0 0.0
    %124 = vmatpush1.msra.mxu0 0.0
    %125 = vmatprep.subr.mxu0 0.0
    %126 = vmatpush1.msra.mxu0 0.0
    %127 = vmatprep.subr.mxu0 0.0
    %128 = vmatpush1.msra.mxu0 0.0
    %129 = vmatprep.subr.mxu0 0.0
    %130 = vmatpush1.msra.mxu0 0.0
    %131 = vmatprep.subr.mxu0 0.0
    %132 = vmatpush1.msra.mxu0 0.0
    %133 = vmatprep.subr.mxu0 0.0
    %134 = vmatpush1.msra.mxu0 0.0
    %135 = vmatprep.subr.mxu0 0.0
    %136 = vmatpush1.msra.mxu0 0.0
    %137 = vmatprep.subr.mxu0 0.0
    %138 = vmatpush1.msra.mxu0 0.0
    %139 = vmatprep.mubr.f32.mxu0 0.0
    %140 = vmatmul.mubr.f32.gmra.mrb[0].mxu0 %v64
    %v141 = vpop.f32.mrb[0].mxu0
    %v142 = vadd.f32 %v60, %v141
    %v143 = vpop.f32.mrb[0].mxu0
    %144 = vmatprep.mubr.f32.mxu0 0.0
    %145 = vmatmul.mubr.f32.gmra.mrb[0].mxu0 %v67
    %v146 = vpop.f32.mrb[0].mxu0
    %v147 = vadd.f32 %v60, %v146
    %v148 = vpop.f32.mrb[0].mxu0
    %149 = vmatprep.mubr.f32.mxu0 0.0
    %150 = vmatmul.mubr.f32.gmra.mrb[0].mxu0 %v70
    %v151 = vpop.f32.mrb[0].mxu0
    %v152 = vadd.f32 %v60, %v151
    %v153 = vpop.f32.mrb[0].mxu0
    %154 = vmatprep.mubr.f32.mxu0 0.0
    %155 = vmatmul.mubr.f32.gmra.mrb[0].mxu0 %v73
    %v156 = vpop.f32.mrb[0].mxu0
    %v157 = vadd.f32 %v60, %v156
    %v158 = vpop.f32.mrb[0].mxu0
    %159 = vdwg.mxu0
    %v160 = vmax.f32 %v142, 0.0
    %v161 = vmax.f32 %v147, 0.0
    %v162 = vmax.f32 %v152, 0.0
    %v163 = vmax.f32 %v157, 0.0
    %v164 = vld [vmem:[%s6] sm:$0xff]
    %vm165 = vcmask 64512
    %v167 = vsel %vm165, %v160, 0
    %v170 = vsel %vm165, %v161, 0
    %v173 = vsel %vm165, %v162, 0
    %v176 = vsel %vm165, %v163, 0
    %178 = vmatprep.subr.mxu0 0.0
    %179 = vmatpush1.msra.mxu0 %v164
    %180 = vmatprep.subr.mxu0 0.0
    %181 = vmatpush1.msra.mxu0 0.0
    %182 = vmatprep.subr.mxu0 0.0
    %183 = vmatpush1.msra.mxu0 0.0
    %184 = vmatprep.subr.mxu0 0.0
    %185 = vmatpush1.msra.mxu0 0.0
    %186 = vmatprep.subr.mxu0 0.0
    %187 = vmatpush1.msra.mxu0 0.0
    %188 = vmatprep.subr.mxu0 0.0
    %189 = vmatpush1.msra.mxu0 0.0
    %190 = vmatprep.subr.mxu0 0.0
    %191 = vmatpush1.msra.mxu0 0.0
    %192 = vmatprep.subr.mxu0 0.0
    %193 = vmatpush1.msra.mxu0 0.0
    %194 = vmatprep.subr.mxu0 0.0
    %195 = vmatpush1.msra.mxu0 0.0
    %196 = vmatprep.subr.mxu0 0.0
    %197 = vmatpush1.msra.mxu0 0.0
    %198 = vmatprep.subr.mxu0 0.0
    %199 = vmatpush1.msra.mxu0 0.0
    %200 = vmatprep.subr.mxu0 0.0
    %201 = vmatpush1.msra.mxu0 0.0
    %202 = vmatprep.subr.mxu0 0.0
    %203 = vmatpush1.msra.mxu0 0.0
    %204 = vmatprep.subr.mxu0 0.0
    %205 = vmatpush1.msra.mxu0 0.0
    %206 = vmatprep.subr.mxu0 0.0
    %207 = vmatpush1.msra.mxu0 0.0
    %208 = vmatprep.subr.mxu0 0.0
    %209 = vmatpush1.msra.mxu0 0.0
    %210 = vmatprep.subr.mxu0 0.0
    %211 = vmatpush1.msra.mxu0 0.0
    %212 = vmatprep.subr.mxu0 0.0
    %213 = vmatpush1.msra.mxu0 0.0
    %214 = vmatprep.subr.mxu0 0.0
    %215 = vmatpush1.msra.mxu0 0.0
    %216 = vmatprep.subr.mxu0 0.0
    %217 = vmatpush1.msra.mxu0 0.0
    %218 = vmatprep.subr.mxu0 0.0
    %219 = vmatpush1.msra.mxu0 0.0
    %220 = vmatprep.subr.mxu0 0.0
    %221 = vmatpush1.msra.mxu0 0.0
    %222 = vmatprep.subr.mxu0 0.0
    %223 = vmatpush1.msra.mxu0 0.0
    %224 = vmatprep.subr.mxu0 0.0
    %225 = vmatpush1.msra.mxu0 0.0
    %226 = vmatprep.subr.mxu0 0.0
    %227 = vmatpush1.msra.mxu0 0.0
    %228 = vmatprep.subr.mxu0 0.0
    %229 = vmatpush1.msra.mxu0 0.0
    %230 = vmatprep.subr.mxu0 0.0
    %231 = vmatpush1.msra.mxu0 0.0
    %232 = vmatprep.subr.mxu0 0.0
    %233 = vmatpush1.msra.mxu0 0.0
    %234 = vmatprep.subr.mxu0 0.0
    %235 = vmatpush1.msra.mxu0 0.0
    %236 = vmatprep.subr.mxu0 0.0
    %237 = vmatpush1.msra.mxu0 0.0
    %238 = vmatprep.subr.mxu0 0.0
    %239 = vmatpush1.msra.mxu0 0.0
    %240 = vmatprep.subr.mxu0 0.0
    %241 = vmatpush1.msra.mxu0 0.0
    %242 = vmatprep.mubr.f32.mxu0 0.0
    %243 = vmatmul.mubr.f32.gmra.mrb[0].mxu0 %v167
    %v244 = vpop.f32.mrb[0].mxu0
    %v245 = vadd.f32 0.0, %v244
    %v246 = vpop.f32.mrb[0].mxu0
    %247 = vmatprep.mubr.f32.mxu0 0.0
    %248 = vmatmul.mubr.f32.gmra.mrb[0].mxu0 %v170
    %v249 = vpop.f32.mrb[0].mxu0
    %v250 = vadd.f32 0.0, %v249
    %v251 = vpop.f32.mrb[0].mxu0
    %252 = vmatprep.mubr.f32.mxu0 0.0
    %253 = vmatmul.mubr.f32.gmra.mrb[0].mxu0 %v173
    %v254 = vpop.f32.mrb[0].mxu0
    %v255 = vadd.f32 0.0, %v254
    %v256 = vpop.f32.mrb[0].mxu0
    %257 = vmatprep.mubr.f32.mxu0 0.0
    %258 = vmatmul.mubr.f32.gmra.mrb[0].mxu0 %v176
    %v259 = vpop.f32.mrb[0].mxu0
    %v260 = vadd.f32 0.0, %v259
    %v261 = vpop.f32.mrb[0].mxu0
    %262 = vdwg.mxu0
    %v263 = vld [vmem:[%s1] sm:$0xff]
    %v264 = vld [vmem:[%s1 + $0x8] sm:$0xff]
    %v265 = vld [vmem:[%s1 + $0x10] sm:$0xff]
    %v266 = vld [vmem:[%s1 + $0x18] sm:$0xff]
    %s267 = scalar_lea.vmem %s6, 8
    %v268 = vld [vmem:[%s267] sm:$0xff]
    %269 = vmatprep.subr.mxu0 0.0
    %270 = vmatpush1.msra.mxu0 %v268
    %271 = vmatprep.subr.mxu0 0.0
    %272 = vmatpush1.msra.mxu0 0.0
    %273 = vmatprep.subr.mxu0 0.0
    %274 = vmatpush1.msra.mxu0 0.0
    %275 = vmatprep.subr.mxu0 0.0
    %276 = vmatpush1.msra.mxu0 0.0
    %277 = vmatprep.subr.mxu0 0.0
    %278 = vmatpush1.msra.mxu0 0.0
    %279 = vmatprep.subr.mxu0 0.0
    %280 = vmatpush1.msra.mxu0 0.0
    %281 = vmatprep.subr.mxu0 0.0
    %282 = vmatpush1.msra.mxu0 0.0
    %283 = vmatprep.subr.mxu0 0.0
    %284 = vmatpush1.msra.mxu0 0.0
    %285 = vmatprep.subr.mxu0 0.0
    %286 = vmatpush1.msra.mxu0 0.0
    %287 = vmatprep.subr.mxu0 0.0
    %288 = vmatpush1.msra.mxu0 0.0
    %289 = vmatprep.subr.mxu0 0.0
    %290 = vmatpush1.msra.mxu0 0.0
    %291 = vmatprep.subr.mxu0 0.0
    %292 = vmatpush1.msra.mxu0 0.0
    %293 = vmatprep.subr.mxu0 0.0
    %294 = vmatpush1.msra.mxu0 0.0
    %295 = vmatprep.subr.mxu0 0.0
    %296 = vmatpush1.msra.mxu0 0.0
    %297 = vmatprep.subr.mxu0 0.0
    %298 = vmatpush1.msra.mxu0 0.0
    %299 = vmatprep.subr.mxu0 0.0
    %300 = vmatpush1.msra.mxu0 0.0
    %301 = vmatprep.subr.mxu0 0.0
    %302 = vmatpush1.msra.mxu0 0.0
    %303 = vmatprep.subr.mxu0 0.0
    %304 = vmatpush1.msra.mxu0 0.0
    %305 = vmatprep.subr.mxu0 0.0
    %306 = vmatpush1.msra.mxu0 0.0
    %307 = vmatprep.subr.mxu0 0.0
    %308 = vmatpush1.msra.mxu0 0.0
    %309 = vmatprep.subr.mxu0 0.0
    %310 = vmatpush1.msra.mxu0 0.0
    %311 = vmatprep.subr.mxu0 0.0
    %312 = vmatpush1.msra.mxu0 0.0
    %313 = vmatprep.subr.mxu0 0.0
    %314 = vmatpush1.msra.mxu0 0.0
    %315 = vmatprep.subr.mxu0 0.0
    %316 = vmatpush1.msra.mxu0 0.0
    %317 = vmatprep.subr.mxu0 0.0
    %318 = vmatpush1.msra.mxu0 0.0
    %319 = vmatprep.subr.mxu0 0.0
    %320 = vmatpush1.msra.mxu0 0.0
    %321 = vmatprep.subr.mxu0 0.0
    %322 = vmatpush1.msra.mxu0 0.0
    %323 = vmatprep.subr.mxu0 0.0
    %324 = vmatpush1.msra.mxu0 0.0
    %325 = vmatprep.subr.mxu0 0.0
    %326 = vmatpush1.msra.mxu0 0.0
    %327 = vmatprep.subr.mxu0 0.0
    %328 = vmatpush1.msra.mxu0 0.0
    %329 = vmatprep.subr.mxu0 0.0
    %330 = vmatpush1.msra.mxu0 0.0
    %331 = vmatprep.subr.mxu0 0.0
    %332 = vmatpush1.msra.mxu0 0.0
    %333 = vmatprep.mubr.f32.mxu0 0.0
    %334 = vmatmul.mubr.f32.gmra.mrb[0].mxu0 %v167
    %v335 = vpop.f32.mrb[0].mxu0
    %v336 = vadd.f32 0.0, %v335
    %v337 = vpop.f32.mrb[0].mxu0
    %338 = vmatprep.mubr.f32.mxu0 0.0
    %339 = vmatmul.mubr.f32.gmra.mrb[0].mxu0 %v170
    %v340 = vpop.f32.mrb[0].mxu0
    %v341 = vadd.f32 0.0, %v340
    %v342 = vpop.f32.mrb[0].mxu0
    %343 = vmatprep.mubr.f32.mxu0 0.0
    %344 = vmatmul.mubr.f32.gmra.mrb[0].mxu0 %v173
    %v345 = vpop.f32.mrb[0].mxu0
    %v346 = vadd.f32 0.0, %v345
    %v347 = vpop.f32.mrb[0].mxu0
    %348 = vmatprep.mubr.f32.mxu0 0.0
    %349 = vmatmul.mubr.f32.gmra.mrb[0].mxu0 %v176
    %v350 = vpop.f32.mrb[0].mxu0
    %v351 = vadd.f32 0.0, %v350
    %v352 = vpop.f32.mrb[0].mxu0
    %353 = vdwg.mxu0
    %s354 = scalar_lea.vmem %s1, 32
    %v355 = vld [vmem:[%s354] sm:$0xff]
    %v356 = vld [vmem:[%s354 + $0x8] sm:$0xff]
    %v357 = vld [vmem:[%s354 + $0x10] sm:$0xff]
    %v358 = vld [vmem:[%s354 + $0x18] sm:$0xff]
    %vm359 = vcmask 261120
    %v361 = vsel %vm359, %v355, 0
    %v364 = vsel %vm359, %v356, 0
    %v367 = vsel %vm359, %v357, 0
    %v370 = vsel %vm359, %v358, 0
    %372 = vmatprep.subr.mxu0 0.0
    %373 = vmatpush1.msra.mxu0 %v336
    %374 = vmatprep.subr.mxu0 0.0
    %375 = vmatpush1.msra.mxu0 %v341
    %376 = vmatprep.subr.mxu0 0.0
    %377 = vmatpush1.msra.mxu0 %v346
    %378 = vmatprep.subr.mxu0 0.0
    %379 = vmatpush1.msra.mxu0 %v351
    %380 = vmatprep.subr.mxu0 0.0
    %381 = vmatpush1.msra.mxu0 0.0
    %382 = vmatprep.subr.mxu0 0.0
    %383 = vmatpush1.msra.mxu0 0.0
    %384 = vmatprep.subr.mxu0 0.0
    %385 = vmatpush1.msra.mxu0 0.0
    %386 = vmatprep.subr.mxu0 0.0
    %387 = vmatpush1.msra.mxu0 0.0
    %388 = vmatprep.subr.mxu0 0.0
    %389 = vmatpush1.msra.mxu0 0.0
    %390 = vmatprep.subr.mxu0 0.0
    %391 = vmatpush1.msra.mxu0 0.0
    %392 = vmatprep.subr.mxu0 0.0
    %393 = vmatpush1.msra.mxu0 0.0
    %394 = vmatprep.subr.mxu0 0.0
    %395 = vmatpush1.msra.mxu0 0.0
    %396 = vmatprep.subr.mxu0 0.0
    %397 = vmatpush1.msra.mxu0 0.0
    %398 = vmatprep.subr.mxu0 0.0
    %399 = vmatpush1.msra.mxu0 0.0
    %400 = vmatprep.subr.mxu0 0.0
    %401 = vmatpush1.msra.mxu0 0.0
    %402 = vmatprep.subr.mxu0 0.0
    %403 = vmatpush1.msra.mxu0 0.0
    %404 = vmatprep.subr.mxu0 0.0
    %405 = vmatpush1.msra.mxu0 0.0
    %406 = vmatprep.subr.mxu0 0.0
    %407 = vmatpush1.msra.mxu0 0.0
    %408 = vmatprep.subr.mxu0 0.0
    %409 = vmatpush1.msra.mxu0 0.0
    %410 = vmatprep.subr.mxu0 0.0
    %411 = vmatpush1.msra.mxu0 0.0
    %412 = vmatprep.subr.mxu0 0.0
    %413 = vmatpush1.msra.mxu0 0.0
    %414 = vmatprep.subr.mxu0 0.0
    %415 = vmatpush1.msra.mxu0 0.0
    %416 = vmatprep.subr.mxu0 0.0
    %417 = vmatpush1.msra.mxu0 0.0
    %418 = vmatprep.subr.mxu0 0.0
    %419 = vmatpush1.msra.mxu0 0.0
    %420 = vmatprep.subr.mxu0 0.0
    %421 = vmatpush1.msra.mxu0 0.0
    %422 = vmatprep.subr.mxu0 0.0
    %423 = vmatpush1.msra.mxu0 0.0
    %424 = vmatprep.subr.mxu0 0.0
    %425 = vmatpush1.msra.mxu0 0.0
    %426 = vmatprep.subr.mxu0 0.0
    %427 = vmatpush1.msra.mxu0 0.0
    %428 = vmatprep.subr.mxu0 0.0
    %429 = vmatpush1.msra.mxu0 0.0
    %430 = vmatprep.subr.mxu0 0.0
    %431 = vmatpush1.msra.mxu0 0.0
    %432 = vmatprep.subr.mxu0 0.0
    %433 = vmatpush1.msra.mxu0 0.0
    %434 = vmatprep.subr.mxu0 0.0
    %435 = vmatpush1.msra.mxu0 0.0
    %436 = vmatprep.mubr.f32.mxu0 0.0
    %437 = vmatmul.mubr.f32.gmra.mrb[0].mxu0 %v361
    %v438 = vpop.f32.mrb[0].mxu0
    %v439 = vadd.f32 0.0, %v438
    %v440 = vpop.f32.mrb[0].mxu0
    %441 = vmatprep.mubr.f32.mxu0 0.0
    %442 = vmatmul.mubr.f32.gmra.mrb[0].mxu0 %v364
    %v443 = vpop.f32.mrb[0].mxu0
    %v444 = vadd.f32 0.0, %v443
    %v445 = vpop.f32.mrb[0].mxu0
    %446 = vmatprep.mubr.f32.mxu0 0.0
    %447 = vmatmul.mubr.f32.gmra.mrb[0].mxu0 %v367
    %v448 = vpop.f32.mrb[0].mxu0
    %v449 = vadd.f32 0.0, %v448
    %v450 = vpop.f32.mrb[0].mxu0
    %451 = vmatprep.mubr.f32.mxu0 0.0
    %452 = vmatmul.mubr.f32.gmra.mrb[0].mxu0 %v370
    %v453 = vpop.f32.mrb[0].mxu0
    %v454 = vadd.f32 0.0, %v453
    %v455 = vpop.f32.mrb[0].mxu0
    %456 = vdwg.mxu0
    %v458 = vsel %vm359, %v263, 0
    %v461 = vsel %vm359, %v264, 0
    %v464 = vsel %vm359, %v265, 0
    %v467 = vsel %vm359, %v266, 0
    %469 = vmatprep.subr.mxu0 0.0
    %470 = vmatpush1.msra.mxu0 %v245
    %471 = vmatprep.subr.mxu0 0.0
    %472 = vmatpush1.msra.mxu0 %v250
    %473 = vmatprep.subr.mxu0 0.0
    %474 = vmatpush1.msra.mxu0 %v255
    %475 = vmatprep.subr.mxu0 0.0
    %476 = vmatpush1.msra.mxu0 %v260
    %477 = vmatprep.subr.mxu0 0.0
    %478 = vmatpush1.msra.mxu0 0.0
    %479 = vmatprep.subr.mxu0 0.0
    %480 = vmatpush1.msra.mxu0 0.0
    %481 = vmatprep.subr.mxu0 0.0
    %482 = vmatpush1.msra.mxu0 0.0
    %483 = vmatprep.subr.mxu0 0.0
    %484 = vmatpush1.msra.mxu0 0.0
    %485 = vmatprep.subr.mxu0 0.0
    %486 = vmatpush1.msra.mxu0 0.0
    %487 = vmatprep.subr.mxu0 0.0
    %488 = vmatpush1.msra.mxu0 0.0
    %489 = vmatprep.subr.mxu0 0.0
    %490 = vmatpush1.msra.mxu0 0.0
    %491 = vmatprep.subr.mxu0 0.0
    %492 = vmatpush1.msra.mxu0 0.0
    %493 = vmatprep.subr.mxu0 0.0
    %494 = vmatpush1.msra.mxu0 0.0
    %495 = vmatprep.subr.mxu0 0.0
    %496 = vmatpush1.msra.mxu0 0.0
    %497 = vmatprep.subr.mxu0 0.0
    %498 = vmatpush1.msra.mxu0 0.0
    %499 = vmatprep.subr.mxu0 0.0
    %500 = vmatpush1.msra.mxu0 0.0
    %501 = vmatprep.subr.mxu0 0.0
    %502 = vmatpush1.msra.mxu0 0.0
    %503 = vmatprep.subr.mxu0 0.0
    %504 = vmatpush1.msra.mxu0 0.0
    %505 = vmatprep.subr.mxu0 0.0
    %506 = vmatpush1.msra.mxu0 0.0
    %507 = vmatprep.subr.mxu0 0.0
    %508 = vmatpush1.msra.mxu0 0.0
    %509 = vmatprep.subr.mxu0 0.0
    %510 = vmatpush1.msra.mxu0 0.0
    %511 = vmatprep.subr.mxu0 0.0
    %512 = vmatpush1.msra.mxu0 0.0
    %513 = vmatprep.subr.mxu0 0.0
    %514 = vmatpush1.msra.mxu0 0.0
    %515 = vmatprep.subr.mxu0 0.0
    %516 = vmatpush1.msra.mxu0 0.0
    %517 = vmatprep.subr.mxu0 0.0
    %518 = vmatpush1.msra.mxu0 0.0
    %519 = vmatprep.subr.mxu0 0.0
    %520 = vmatpush1.msra.mxu0 0.0
    %521 = vmatprep.subr.mxu0 0.0
    %522 = vmatpush1.msra.mxu0 0.0
    %523 = vmatprep.subr.mxu0 0.0
    %524 = vmatpush1.msra.mxu0 0.0
    %525 = vmatprep.subr.mxu0 0.0
    %526 = vmatpush1.msra.mxu0 0.0
    %527 = vmatprep.subr.mxu0 0.0
    %528 = vmatpush1.msra.mxu0 0.0
    %529 = vmatprep.subr.mxu0 0.0
    %530 = vmatpush1.msra.mxu0 0.0
    %531 = vmatprep.subr.mxu0 0.0
    %532 = vmatpush1.msra.mxu0 0.0
    %533 = vmatprep.mubr.f32.mxu0 0.0
    %534 = vmatmul.mubr.f32.gmra.mrb[0].mxu0 %v458
    %v535 = vpop.f32.mrb[0].mxu0
    %v536 = vadd.f32 %v439, %v535
    %v537 = vpop.f32.mrb[0].mxu0
    %538 = vmatprep.mubr.f32.mxu0 0.0
    %539 = vmatmul.mubr.f32.gmra.mrb[0].mxu0 %v461
    %v540 = vpop.f32.mrb[0].mxu0
    %v541 = vadd.f32 %v444, %v540
    %v542 = vpop.f32.mrb[0].mxu0
    %543 = vmatprep.mubr.f32.mxu0 0.0
    %544 = vmatmul.mubr.f32.gmra.mrb[0].mxu0 %v464
    %v545 = vpop.f32.mrb[0].mxu0
    %v546 = vadd.f32 %v449, %v545
    %v547 = vpop.f32.mrb[0].mxu0
    %548 = vmatprep.mubr.f32.mxu0 0.0
    %549 = vmatmul.mubr.f32.gmra.mrb[0].mxu0 %v467
    %v550 = vpop.f32.mrb[0].mxu0
    %v551 = vadd.f32 %v454, %v550
    %v552 = vpop.f32.mrb[0].mxu0
    %553 = vdwg.mxu0
    %s554 = scalar_lea.vmem %s6, 16
    %v555 = vld [vmem:[%s554] sm:$0xff]
    %556 = vmatprep.subr.mxu0 0.0
    %557 = vmatpush1.msra.mxu0 %v555
    %558 = vmatprep.subr.mxu0 0.0
    %559 = vmatpush1.msra.mxu0 0.0
    %560 = vmatprep.subr.mxu0 0.0
    %561 = vmatpush1.msra.mxu0 0.0
    %562 = vmatprep.subr.mxu0 0.0
    %563 = vmatpush1.msra.mxu0 0.0
    %564 = vmatprep.subr.mxu0 0.0
    %565 = vmatpush1.msra.mxu0 0.0
    %566 = vmatprep.subr.mxu0 0.0
    %567 = vmatpush1.msra.mxu0 0.0
    %568 = vmatprep.subr.mxu0 0.0
    %569 = vmatpush1.msra.mxu0 0.0
    %570 = vmatprep.subr.mxu0 0.0
    %571 = vmatpush1.msra.mxu0 0.0
    %572 = vmatprep.subr.mxu0 0.0
    %573 = vmatpush1.msra.mxu0 0.0
    %574 = vmatprep.subr.mxu0 0.0
    %575 = vmatpush1.msra.mxu0 0.0
    %576 = vmatprep.subr.mxu0 0.0
    %577 = vmatpush1.msra.mxu0 0.0
    %578 = vmatprep.subr.mxu0 0.0
    %579 = vmatpush1.msra.mxu0 0.0
    %580 = vmatprep.subr.mxu0 0.0
    %581 = vmatpush1.msra.mxu0 0.0
    %582 = vmatprep.subr.mxu0 0.0
    %583 = vmatpush1.msra.mxu0 0.0
    %584 = vmatprep.subr.mxu0 0.0
    %585 = vmatpush1.msra.mxu0 0.0
    %586 = vmatprep.subr.mxu0 0.0
    %587 = vmatpush1.msra.mxu0 0.0
    %588 = vmatprep.subr.mxu0 0.0
    %589 = vmatpush1.msra.mxu0 0.0
    %590 = vmatprep.subr.mxu0 0.0
    %591 = vmatpush1.msra.mxu0 0.0
    %592 = vmatprep.subr.mxu0 0.0
    %593 = vmatpush1.msra.mxu0 0.0
    %594 = vmatprep.subr.mxu0 0.0
    %595 = vmatpush1.msra.mxu0 0.0
    %596 = vmatprep.subr.mxu0 0.0
    %597 = vmatpush1.msra.mxu0 0.0
    %598 = vmatprep.subr.mxu0 0.0
    %599 = vmatpush1.msra.mxu0 0.0
    %600 = vmatprep.subr.mxu0 0.0
    %601 = vmatpush1.msra.mxu0 0.0
    %602 = vmatprep.subr.mxu0 0.0
    %603 = vmatpush1.msra.mxu0 0.0
    %604 = vmatprep.subr.mxu0 0.0
    %605 = vmatpush1.msra.mxu0 0.0
    %606 = vmatprep.subr.mxu0 0.0
    %607 = vmatpush1.msra.mxu0 0.0
    %608 = vmatprep.subr.mxu0 0.0
    %609 = vmatpush1.msra.mxu0 0.0
    %610 = vmatprep.subr.mxu0 0.0
    %611 = vmatpush1.msra.mxu0 0.0
    %612 = vmatprep.subr.mxu0 0.0
    %613 = vmatpush1.msra.mxu0 0.0
    %614 = vmatprep.subr.mxu0 0.0
    %615 = vmatpush1.msra.mxu0 0.0
    %616 = vmatprep.subr.mxu0 0.0
    %617 = vmatpush1.msra.mxu0 0.0
    %618 = vmatprep.subr.mxu0 0.0
    %619 = vmatpush1.msra.mxu0 0.0
    %620 = vmatprep.mubr.f32.mxu0 0.0
    %621 = vmatmul.mubr.f32.gmra.mrb[0].mxu0 %v167
    %v622 = vpop.f32.mrb[0].mxu0
    %v623 = vadd.f32 0.0, %v622
    %v624 = vpop.f32.mrb[0].mxu0
    %625 = vmatprep.mubr.f32.mxu0 0.0
    %626 = vmatmul.mubr.f32.gmra.mrb[0].mxu0 %v170
    %v627 = vpop.f32.mrb[0].mxu0
    %v628 = vadd.f32 0.0, %v627
    %v629 = vpop.f32.mrb[0].mxu0
    %630 = vmatprep.mubr.f32.mxu0 0.0
    %631 = vmatmul.mubr.f32.gmra.mrb[0].mxu0 %v173
    %v632 = vpop.f32.mrb[0].mxu0
    %v633 = vadd.f32 0.0, %v632
    %v634 = vpop.f32.mrb[0].mxu0
    %635 = vmatprep.mubr.f32.mxu0 0.0
    %636 = vmatmul.mubr.f32.gmra.mrb[0].mxu0 %v176
    %v637 = vpop.f32.mrb[0].mxu0
    %v638 = vadd.f32 0.0, %v637
    %v639 = vpop.f32.mrb[0].mxu0
    %640 = vdwg.mxu0
    %s641 = scalar_lea.vmem %s1, 64
    %v642 = vld [vmem:[%s641] sm:$0xff]
    %v643 = vld [vmem:[%s641 + $0x8] sm:$0xff]
    %v644 = vld [vmem:[%s641 + $0x10] sm:$0xff]
    %v645 = vld [vmem:[%s641 + $0x18] sm:$0xff]
    %v647 = vsel %vm359, %v642, 0
    %v650 = vsel %vm359, %v643, 0
    %v653 = vsel %vm359, %v644, 0
    %v656 = vsel %vm359, %v645, 0
    %658 = vmatprep.subr.mxu0 0.0
    %659 = vmatpush1.msra.mxu0 %v623
    %660 = vmatprep.subr.mxu0 0.0
    %661 = vmatpush1.msra.mxu0 %v628
    %662 = vmatprep.subr.mxu0 0.0
    %663 = vmatpush1.msra.mxu0 %v633
    %664 = vmatprep.subr.mxu0 0.0
    %665 = vmatpush1.msra.mxu0 %v638
    %666 = vmatprep.subr.mxu0 0.0
    %667 = vmatpush1.msra.mxu0 0.0
    %668 = vmatprep.subr.mxu0 0.0
    %669 = vmatpush1.msra.mxu0 0.0
    %670 = vmatprep.subr.mxu0 0.0
    %671 = vmatpush1.msra.mxu0 0.0
    %672 = vmatprep.subr.mxu0 0.0
    %673 = vmatpush1.msra.mxu0 0.0
    %674 = vmatprep.subr.mxu0 0.0
    %675 = vmatpush1.msra.mxu0 0.0
    %676 = vmatprep.subr.mxu0 0.0
    %677 = vmatpush1.msra.mxu0 0.0
    %678 = vmatprep.subr.mxu0 0.0
    %679 = vmatpush1.msra.mxu0 0.0
    %680 = vmatprep.subr.mxu0 0.0
    %681 = vmatpush1.msra.mxu0 0.0
    %682 = vmatprep.subr.mxu0 0.0
    %683 = vmatpush1.msra.mxu0 0.0
    %684 = vmatprep.subr.mxu0 0.0
    %685 = vmatpush1.msra.mxu0 0.0
    %686 = vmatprep.subr.mxu0 0.0
    %687 = vmatpush1.msra.mxu0 0.0
    %688 = vmatprep.subr.mxu0 0.0
    %689 = vmatpush1.msra.mxu0 0.0
    %690 = vmatprep.subr.mxu0 0.0
    %691 = vmatpush1.msra.mxu0 0.0
    %692 = vmatprep.subr.mxu0 0.0
    %693 = vmatpush1.msra.mxu0 0.0
    %694 = vmatprep.subr.mxu0 0.0
    %695 = vmatpush1.msra.mxu0 0.0
    %696 = vmatprep.subr.mxu0 0.0
    %697 = vmatpush1.msra.mxu0 0.0
    %698 = vmatprep.subr.mxu0 0.0
    %699 = vmatpush1.msra.mxu0 0.0
    %700 = vmatprep.subr.mxu0 0.0
    %701 = vmatpush1.msra.mxu0 0.0
    %702 = vmatprep.subr.mxu0 0.0
    %703 = vmatpush1.msra.mxu0 0.0
    %704 = vmatprep.subr.mxu0 0.0
    %705 = vmatpush1.msra.mxu0 0.0
    %706 = vmatprep.subr.mxu0 0.0
    %707 = vmatpush1.msra.mxu0 0.0
    %708 = vmatprep.subr.mxu0 0.0
    %709 = vmatpush1.msra.mxu0 0.0
    %710 = vmatprep.subr.mxu0 0.0
    %711 = vmatpush1.msra.mxu0 0.0
    %712 = vmatprep.subr.mxu0 0.0
    %713 = vmatpush1.msra.mxu0 0.0
    %714 = vmatprep.subr.mxu0 0.0
    %715 = vmatpush1.msra.mxu0 0.0
    %716 = vmatprep.subr.mxu0 0.0
    %717 = vmatpush1.msra.mxu0 0.0
    %718 = vmatprep.subr.mxu0 0.0
    %719 = vmatpush1.msra.mxu0 0.0
    %720 = vmatprep.subr.mxu0 0.0
    %721 = vmatpush1.msra.mxu0 0.0
    %722 = vmatprep.mubr.f32.mxu0 0.0
    %723 = vmatmul.mubr.f32.gmra.mrb[0].mxu0 %v647
    %v724 = vpop.f32.mrb[0].mxu0
    %v725 = vadd.f32 0.0, %v724
    %v726 = vpop.f32.mrb[0].mxu0
    %727 = vmatprep.mubr.f32.mxu0 0.0
    %728 = vmatmul.mubr.f32.gmra.mrb[0].mxu0 %v650
    %v729 = vpop.f32.mrb[0].mxu0
    %v730 = vadd.f32 0.0, %v729
    %v731 = vpop.f32.mrb[0].mxu0
    %732 = vmatprep.mubr.f32.mxu0 0.0
    %733 = vmatmul.mubr.f32.gmra.mrb[0].mxu0 %v653
    %v734 = vpop.f32.mrb[0].mxu0
    %v735 = vadd.f32 0.0, %v734
    %v736 = vpop.f32.mrb[0].mxu0
    %737 = vmatprep.mubr.f32.mxu0 0.0
    %738 = vmatmul.mubr.f32.gmra.mrb[0].mxu0 %v656
    %v739 = vpop.f32.mrb[0].mxu0
    %v740 = vadd.f32 0.0, %v739
    %v741 = vpop.f32.mrb[0].mxu0
    %742 = vdwg.mxu0
    %v743 = vadd.f32 %v536, %v725
    %v744 = vadd.f32 %v541, %v730
    %v745 = vadd.f32 %v546, %v735
    %v746 = vadd.f32 %v551, %v740
    %s747 = scalar_lea.vmem %s6, 24
    %v748 = vld [vmem:[%s747] sm:$0xff]
    %749 = vmatprep.subr.mxu0 0.0
    %750 = vmatpush1.msra.mxu0 %v748
    %751 = vmatprep.subr.mxu0 0.0
    %752 = vmatpush1.msra.mxu0 0.0
    %753 = vmatprep.subr.mxu0 0.0
    %754 = vmatpush1.msra.mxu0 0.0
    %755 = vmatprep.subr.mxu0 0.0
    %756 = vmatpush1.msra.mxu0 0.0
    %757 = vmatprep.subr.mxu0 0.0
    %758 = vmatpush1.msra.mxu0 0.0
    %759 = vmatprep.subr.mxu0 0.0
    %760 = vmatpush1.msra.mxu0 0.0
    %761 = vmatprep.subr.mxu0 0.0
    %762 = vmatpush1.msra.mxu0 0.0
    %763 = vmatprep.subr.mxu0 0.0
    %764 = vmatpush1.msra.mxu0 0.0
    %765 = vmatprep.subr.mxu0 0.0
    %766 = vmatpush1.msra.mxu0 0.0
    %767 = vmatprep.subr.mxu0 0.0
    %768 = vmatpush1.msra.mxu0 0.0
    %769 = vmatprep.subr.mxu0 0.0
    %770 = vmatpush1.msra.mxu0 0.0
    %771 = vmatprep.subr.mxu0 0.0
    %772 = vmatpush1.msra.mxu0 0.0
    %773 = vmatprep.subr.mxu0 0.0
    %774 = vmatpush1.msra.mxu0 0.0
    %775 = vmatprep.subr.mxu0 0.0
    %776 = vmatpush1.msra.mxu0 0.0
    %777 = vmatprep.subr.mxu0 0.0
    %778 = vmatpush1.msra.mxu0 0.0
    %779 = vmatprep.subr.mxu0 0.0
    %780 = vmatpush1.msra.mxu0 0.0
    %781 = vmatprep.subr.mxu0 0.0
    %782 = vmatpush1.msra.mxu0 0.0
    %783 = vmatprep.subr.mxu0 0.0
    %784 = vmatpush1.msra.mxu0 0.0
    %785 = vmatprep.subr.mxu0 0.0
    %786 = vmatpush1.msra.mxu0 0.0
    %787 = vmatprep.subr.mxu0 0.0
    %788 = vmatpush1.msra.mxu0 0.0
    %789 = vmatprep.subr.mxu0 0.0
    %790 = vmatpush1.msra.mxu0 0.0
    %791 = vmatprep.subr.mxu0 0.0
    %792 = vmatpush1.msra.mxu0 0.0
    %793 = vmatprep.subr.mxu0 0.0
    %794 = vmatpush1.msra.mxu0 0.0
    %795 = vmatprep.subr.mxu0 0.0
    %796 = vmatpush1.msra.mxu0 0.0
    %797 = vmatprep.subr.mxu0 0.0
    %798 = vmatpush1.msra.mxu0 0.0
    %799 = vmatprep.subr.mxu0 0.0
    %800 = vmatpush1.msra.mxu0 0.0
    %801 = vmatprep.subr.mxu0 0.0
    %802 = vmatpush1.msra.mxu0 0.0
    %803 = vmatprep.subr.mxu0 0.0
    %804 = vmatpush1.msra.mxu0 0.0
    %805 = vmatprep.subr.mxu0 0.0
    %806 = vmatpush1.msra.mxu0 0.0
    %807 = vmatprep.subr.mxu0 0.0
    %808 = vmatpush1.msra.mxu0 0.0
    %809 = vmatprep.subr.mxu0 0.0
    %810 = vmatpush1.msra.mxu0 0.0
    %811 = vmatprep.subr.mxu0 0.0
    %812 = vmatpush1.msra.mxu0 0.0
    %813 = vmatprep.mubr.f32.mxu0 0.0
    %814 = vmatmul.mubr.f32.gmra.mrb[0].mxu0 %v167
    %v815 = vpop.f32.mrb[0].mxu0
    %v816 = vadd.f32 0.0, %v815
    %v817 = vpop.f32.mrb[0].mxu0
    %818 = vmatprep.mubr.f32.mxu0 0.0
    %819 = vmatmul.mubr.f32.gmra.mrb[0].mxu0 %v170
    %v820 = vpop.f32.mrb[0].mxu0
    %v821 = vadd.f32 0.0, %v820
    %v822 = vpop.f32.mrb[0].mxu0
    %823 = vmatprep.mubr.f32.mxu0 0.0
    %824 = vmatmul.mubr.f32.gmra.mrb[0].mxu0 %v173
    %v825 = vpop.f32.mrb[0].mxu0
    %v826 = vadd.f32 0.0, %v825
    %v827 = vpop.f32.mrb[0].mxu0
    %828 = vmatprep.mubr.f32.mxu0 0.0
    %829 = vmatmul.mubr.f32.gmra.mrb[0].mxu0 %v176
    %v830 = vpop.f32.mrb[0].mxu0
    %v831 = vadd.f32 0.0, %v830
    %v832 = vpop.f32.mrb[0].mxu0
    %833 = vdwg.mxu0
    %s834 = scalar_lea.vmem %s1, 96
    %v835 = vld [vmem:[%s834] sm:$0xff]
    %v836 = vld [vmem:[%s834 + $0x8] sm:$0xff]
    %v837 = vld [vmem:[%s834 + $0x10] sm:$0xff]
    %v838 = vld [vmem:[%s834 + $0x18] sm:$0xff]
    %v840 = vsel %vm359, %v835, 0
    %v843 = vsel %vm359, %v836, 0
    %v846 = vsel %vm359, %v837, 0
    %v849 = vsel %vm359, %v838, 0
    %851 = vmatprep.subr.mxu0 0.0
    %852 = vmatpush1.msra.mxu0 %v816
    %853 = vmatprep.subr.mxu0 0.0
    %854 = vmatpush1.msra.mxu0 %v821
    %855 = vmatprep.subr.mxu0 0.0
    %856 = vmatpush1.msra.mxu0 %v826
    %857 = vmatprep.subr.mxu0 0.0
    %858 = vmatpush1.msra.mxu0 %v831
    %859 = vmatprep.subr.mxu0 0.0
    %860 = vmatpush1.msra.mxu0 0.0
    %861 = vmatprep.subr.mxu0 0.0
    %862 = vmatpush1.msra.mxu0 0.0
    %863 = vmatprep.subr.mxu0 0.0
    %864 = vmatpush1.msra.mxu0 0.0
    %865 = vmatprep.subr.mxu0 0.0
    %866 = vmatpush1.msra.mxu0 0.0
    %867 = vmatprep.subr.mxu0 0.0
    %868 = vmatpush1.msra.mxu0 0.0
    %869 = vmatprep.subr.mxu0 0.0
    %870 = vmatpush1.msra.mxu0 0.0
    %871 = vmatprep.subr.mxu0 0.0
    %872 = vmatpush1.msra.mxu0 0.0
    %873 = vmatprep.subr.mxu0 0.0
    %874 = vmatpush1.msra.mxu0 0.0
    %875 = vmatprep.subr.mxu0 0.0
    %876 = vmatpush1.msra.mxu0 0.0
    %877 = vmatprep.subr.mxu0 0.0
    %878 = vmatpush1.msra.mxu0 0.0
    %879 = vmatprep.subr.mxu0 0.0
    %880 = vmatpush1.msra.mxu0 0.0
    %881 = vmatprep.subr.mxu0 0.0
    %882 = vmatpush1.msra.mxu0 0.0
    %883 = vmatprep.subr.mxu0 0.0
    %884 = vmatpush1.msra.mxu0 0.0
    %885 = vmatprep.subr.mxu0 0.0
    %886 = vmatpush1.msra.mxu0 0.0
    %887 = vmatprep.subr.mxu0 0.0
    %888 = vmatpush1.msra.mxu0 0.0
    %889 = vmatprep.subr.mxu0 0.0
    %890 = vmatpush1.msra.mxu0 0.0
    %891 = vmatprep.subr.mxu0 0.0
    %892 = vmatpush1.msra.mxu0 0.0
    %893 = vmatprep.subr.mxu0 0.0
    %894 = vmatpush1.msra.mxu0 0.0
    %895 = vmatprep.subr.mxu0 0.0
    %896 = vmatpush1.msra.mxu0 0.0
    %897 = vmatprep.subr.mxu0 0.0
    %898 = vmatpush1.msra.mxu0 0.0
    %899 = vmatprep.subr.mxu0 0.0
    %900 = vmatpush1.msra.mxu0 0.0
    %901 = vmatprep.subr.mxu0 0.0
    %902 = vmatpush1.msra.mxu0 0.0
    %903 = vmatprep.subr.mxu0 0.0
    %904 = vmatpush1.msra.mxu0 0.0
    %905 = vmatprep.subr.mxu0 0.0
    %906 = vmatpush1.msra.mxu0 0.0
    %907 = vmatprep.subr.mxu0 0.0
    %908 = vmatpush1.msra.mxu0 0.0
    %909 = vmatprep.subr.mxu0 0.0
    %910 = vmatpush1.msra.mxu0 0.0
    %911 = vmatprep.subr.mxu0 0.0
    %912 = vmatpush1.msra.mxu0 0.0
    %913 = vmatprep.subr.mxu0 0.0
    %914 = vmatpush1.msra.mxu0 0.0
    %915 = vmatprep.mubr.f32.mxu0 0.0
    %916 = vmatmul.mubr.f32.gmra.mrb[0].mxu0 %v840
    %v917 = vpop.f32.mrb[0].mxu0
    %v918 = vadd.f32 0.0, %v917
    %v919 = vpop.f32.mrb[0].mxu0
    %920 = vmatprep.mubr.f32.mxu0 0.0
    %921 = vmatmul.mubr.f32.gmra.mrb[0].mxu0 %v843
    %v922 = vpop.f32.mrb[0].mxu0
    %v923 = vadd.f32 0.0, %v922
    %v924 = vpop.f32.mrb[0].mxu0
    %925 = vmatprep.mubr.f32.mxu0 0.0
    %926 = vmatmul.mubr.f32.gmra.mrb[0].mxu0 %v846
    %v927 = vpop.f32.mrb[0].mxu0
    %v928 = vadd.f32 0.0, %v927
    %v929 = vpop.f32.mrb[0].mxu0
    %930 = vmatprep.mubr.f32.mxu0 0.0
    %931 = vmatmul.mubr.f32.gmra.mrb[0].mxu0 %v849
    %v932 = vpop.f32.mrb[0].mxu0
    %v933 = vadd.f32 0.0, %v932
    %v934 = vpop.f32.mrb[0].mxu0
    %935 = vdwg.mxu0
    %v936 = vadd.f32 %v743, %v918
    %v937 = vadd.f32 %v744, %v923
    %v938 = vadd.f32 %v745, %v928
    %v939 = vadd.f32 %v746, %v933
    %s940 = scalar_lea.vmem %s6, 32
    %v941 = vld [vmem:[%s940] sm:$0xff]
    %942 = vmatprep.subr.mxu0 0.0
    %943 = vmatpush1.msra.mxu0 %v941
    %944 = vmatprep.subr.mxu0 0.0
    %945 = vmatpush1.msra.mxu0 0.0
    %946 = vmatprep.subr.mxu0 0.0
    %947 = vmatpush1.msra.mxu0 0.0
    %948 = vmatprep.subr.mxu0 0.0
    %949 = vmatpush1.msra.mxu0 0.0
    %950 = vmatprep.subr.mxu0 0.0
    %951 = vmatpush1.msra.mxu0 0.0
    %952 = vmatprep.subr.mxu0 0.0
    %953 = vmatpush1.msra.mxu0 0.0
    %954 = vmatprep.subr.mxu0 0.0
    %955 = vmatpush1.msra.mxu0 0.0
    %956 = vmatprep.subr.mxu0 0.0
    %957 = vmatpush1.msra.mxu0 0.0
    %958 = vmatprep.subr.mxu0 0.0
    %959 = vmatpush1.msra.mxu0 0.0
    %960 = vmatprep.subr.mxu0 0.0
    %961 = vmatpush1.msra.mxu0 0.0
    %962 = vmatprep.subr.mxu0 0.0
    %963 = vmatpush1.msra.mxu0 0.0
    %964 = vmatprep.subr.mxu0 0.0
    %965 = vmatpush1.msra.mxu0 0.0
    %966 = vmatprep.subr.mxu0 0.0
    %967 = vmatpush1.msra.mxu0 0.0
    %968 = vmatprep.subr.mxu0 0.0
    %969 = vmatpush1.msra.mxu0 0.0
    %970 = vmatprep.subr.mxu0 0.0
    %971 = vmatpush1.msra.mxu0 0.0
    %972 = vmatprep.subr.mxu0 0.0
    %973 = vmatpush1.msra.mxu0 0.0
    %974 = vmatprep.subr.mxu0 0.0
    %975 = vmatpush1.msra.mxu0 0.0
    %976 = vmatprep.subr.mxu0 0.0
    %977 = vmatpush1.msra.mxu0 0.0
    %978 = vmatprep.subr.mxu0 0.0
    %979 = vmatpush1.msra.mxu0 0.0
    %980 = vmatprep.subr.mxu0 0.0
    %981 = vmatpush1.msra.mxu0 0.0
    %982 = vmatprep.subr.mxu0 0.0
    %983 = vmatpush1.msra.mxu0 0.0
    %984 = vmatprep.subr.mxu0 0.0
    %985 = vmatpush1.msra.mxu0 0.0
    %986 = vmatprep.subr.mxu0 0.0
    %987 = vmatpush1.msra.mxu0 0.0
    %988 = vmatprep.subr.mxu0 0.0
    %989 = vmatpush1.msra.mxu0 0.0
    %990 = vmatprep.subr.mxu0 0.0
    %991 = vmatpush1.msra.mxu0 0.0
    %992 = vmatprep.subr.mxu0 0.0
    %993 = vmatpush1.msra.mxu0 0.0
    %994 = vmatprep.subr.mxu0 0.0
    %995 = vmatpush1.msra.mxu0 0.0
    %996 = vmatprep.subr.mxu0 0.0
    %997 = vmatpush1.msra.mxu0 0.0
    %998 = vmatprep.subr.mxu0 0.0
    %999 = vmatpush1.msra.mxu0 0.0
    %1000 = vmatprep.subr.mxu0 0.0
    %1001 = vmatpush1.msra.mxu0 0.0
    %1002 = vmatprep.subr.mxu0 0.0
    %1003 = vmatpush1.msra.mxu0 0.0
    %1004 = vmatprep.subr.mxu0 0.0
    %1005 = vmatpush1.msra.mxu0 0.0
    %1006 = vmatprep.mubr.f32.mxu0 0.0
    %1007 = vmatmul.mubr.f32.gmra.mrb[0].mxu0 %v167
    %v1008 = vpop.f32.mrb[0].mxu0
    %v1009 = vadd.f32 0.0, %v1008
    %v1010 = vpop.f32.mrb[0].mxu0
    %1011 = vmatprep.mubr.f32.mxu0 0.0
    %1012 = vmatmul.mubr.f32.gmra.mrb[0].mxu0 %v170
    %v1013 = vpop.f32.mrb[0].mxu0
    %v1014 = vadd.f32 0.0, %v1013
    %v1015 = vpop.f32.mrb[0].mxu0
    %1016 = vmatprep.mubr.f32.mxu0 0.0
    %1017 = vmatmul.mubr.f32.gmra.mrb[0].mxu0 %v173
    %v1018 = vpop.f32.mrb[0].mxu0
    %v1019 = vadd.f32 0.0, %v1018
    %v1020 = vpop.f32.mrb[0].mxu0
    %1021 = vmatprep.mubr.f32.mxu0 0.0
    %1022 = vmatmul.mubr.f32.gmra.mrb[0].mxu0 %v176
    %v1023 = vpop.f32.mrb[0].mxu0
    %v1024 = vadd.f32 0.0, %v1023
    %v1025 = vpop.f32.mrb[0].mxu0
    %1026 = vdwg.mxu0
    %s1027 = scalar_lea.vmem %s1, 128
    %v1028 = vld [vmem:[%s1027] sm:$0xff]
    %v1029 = vld [vmem:[%s1027 + $0x8] sm:$0xff]
    %v1030 = vld [vmem:[%s1027 + $0x10] sm:$0xff]
    %v1031 = vld [vmem:[%s1027 + $0x18] sm:$0xff]
    %v1033 = vsel %vm359, %v1028, 0
    %v1036 = vsel %vm359, %v1029, 0
    %v1039 = vsel %vm359, %v1030, 0
    %v1042 = vsel %vm359, %v1031, 0
    %1044 = vmatprep.subr.mxu0 0.0
    %1045 = vmatpush1.msra.mxu0 %v1009
    %1046 = vmatprep.subr.mxu0 0.0
    %1047 = vmatpush1.msra.mxu0 %v1014
    %1048 = vmatprep.subr.mxu0 0.0
    %1049 = vmatpush1.msra.mxu0 %v1019
    %1050 = vmatprep.subr.mxu0 0.0
    %1051 = vmatpush1.msra.mxu0 %v1024
    %1052 = vmatprep.subr.mxu0 0.0
    %1053 = vmatpush1.msra.mxu0 0.0
    %1054 = vmatprep.subr.mxu0 0.0
    %1055 = vmatpush1.msra.mxu0 0.0
    %1056 = vmatprep.subr.mxu0 0.0
    %1057 = vmatpush1.msra.mxu0 0.0
    %1058 = vmatprep.subr.mxu0 0.0
    %1059 = vmatpush1.msra.mxu0 0.0
    %1060 = vmatprep.subr.mxu0 0.0
    %1061 = vmatpush1.msra.mxu0 0.0
    %1062 = vmatprep.subr.mxu0 0.0
    %1063 = vmatpush1.msra.mxu0 0.0
    %1064 = vmatprep.subr.mxu0 0.0
    %1065 = vmatpush1.msra.mxu0 0.0
    %1066 = vmatprep.subr.mxu0 0.0
    %1067 = vmatpush1.msra.mxu0 0.0
    %1068 = vmatprep.subr.mxu0 0.0
    %1069 = vmatpush1.msra.mxu0 0.0
    %1070 = vmatprep.subr.mxu0 0.0
    %1071 = vmatpush1.msra.mxu0 0.0
    %1072 = vmatprep.subr.mxu0 0.0
    %1073 = vmatpush1.msra.mxu0 0.0
    %1074 = vmatprep.subr.mxu0 0.0
    %1075 = vmatpush1.msra.mxu0 0.0
    %1076 = vmatprep.subr.mxu0 0.0
    %1077 = vmatpush1.msra.mxu0 0.0
    %1078 = vmatprep.subr.mxu0 0.0
    %1079 = vmatpush1.msra.mxu0 0.0
    %1080 = vmatprep.subr.mxu0 0.0
    %1081 = vmatpush1.msra.mxu0 0.0
    %1082 = vmatprep.subr.mxu0 0.0
    %1083 = vmatpush1.msra.mxu0 0.0
    %1084 = vmatprep.subr.mxu0 0.0
    %1085 = vmatpush1.msra.mxu0 0.0
    %1086 = vmatprep.subr.mxu0 0.0
    %1087 = vmatpush1.msra.mxu0 0.0
    %1088 = vmatprep.subr.mxu0 0.0
    %1089 = vmatpush1.msra.mxu0 0.0
    %1090 = vmatprep.subr.mxu0 0.0
    %1091 = vmatpush1.msra.mxu0 0.0
    %1092 = vmatprep.subr.mxu0 0.0
    %1093 = vmatpush1.msra.mxu0 0.0
    %1094 = vmatprep.subr.mxu0 0.0
    %1095 = vmatpush1.msra.mxu0 0.0
    %1096 = vmatprep.subr.mxu0 0.0
    %1097 = vmatpush1.msra.mxu0 0.0
    %1098 = vmatprep.subr.mxu0 0.0
    %1099 = vmatpush1.msra.mxu0 0.0
    %1100 = vmatprep.subr.mxu0 0.0
    %1101 = vmatpush1.msra.mxu0 0.0
    %1102 = vmatprep.subr.mxu0 0.0
    %1103 = vmatpush1.msra.mxu0 0.0
    %1104 = vmatprep.subr.mxu0 0.0
    %1105 = vmatpush1.msra.mxu0 0.0
    %1106 = vmatprep.subr.mxu0 0.0
    %1107 = vmatpush1.msra.mxu0 0.0
    %1108 = vmatprep.mubr.f32.mxu0 0.0
    %1109 = vmatmul.mubr.f32.gmra.mrb[0].mxu0 %v1033
    %v1110 = vpop.f32.mrb[0].mxu0
    %v1111 = vadd.f32 0.0, %v1110
    %v1112 = vpop.f32.mrb[0].mxu0
    %1113 = vmatprep.mubr.f32.mxu0 0.0
    %1114 = vmatmul.mubr.f32.gmra.mrb[0].mxu0 %v1036
    %v1115 = vpop.f32.mrb[0].mxu0
    %v1116 = vadd.f32 0.0, %v1115
    %v1117 = vpop.f32.mrb[0].mxu0
    %1118 = vmatprep.mubr.f32.mxu0 0.0
    %1119 = vmatmul.mubr.f32.gmra.mrb[0].mxu0 %v1039
    %v1120 = vpop.f32.mrb[0].mxu0
    %v1121 = vadd.f32 0.0, %v1120
    %v1122 = vpop.f32.mrb[0].mxu0
    %1123 = vmatprep.mubr.f32.mxu0 0.0
    %1124 = vmatmul.mubr.f32.gmra.mrb[0].mxu0 %v1042
    %v1125 = vpop.f32.mrb[0].mxu0
    %v1126 = vadd.f32 0.0, %v1125
    %v1127 = vpop.f32.mrb[0].mxu0
    %1128 = vdwg.mxu0
    %v1129 = vadd.f32 %v936, %v1111
    %v1130 = vadd.f32 %v937, %v1116
    %v1131 = vadd.f32 %v938, %v1121
    %v1132 = vadd.f32 %v939, %v1126
    %s1133 = scalar_lea.vmem %s6, 40
    %v1134 = vld [vmem:[%s1133] sm:$0xff]
    %1135 = vmatprep.subr.mxu0 0.0
    %1136 = vmatpush1.msra.mxu0 %v1134
    %1137 = vmatprep.subr.mxu0 0.0
    %1138 = vmatpush1.msra.mxu0 0.0
    %1139 = vmatprep.subr.mxu0 0.0
    %1140 = vmatpush1.msra.mxu0 0.0
    %1141 = vmatprep.subr.mxu0 0.0
    %1142 = vmatpush1.msra.mxu0 0.0
    %1143 = vmatprep.subr.mxu0 0.0
    %1144 = vmatpush1.msra.mxu0 0.0
    %1145 = vmatprep.subr.mxu0 0.0
    %1146 = vmatpush1.msra.mxu0 0.0
    %1147 = vmatprep.subr.mxu0 0.0
    %1148 = vmatpush1.msra.mxu0 0.0
    %1149 = vmatprep.subr.mxu0 0.0
    %1150 = vmatpush1.msra.mxu0 0.0
    %1151 = vmatprep.subr.mxu0 0.0
    %1152 = vmatpush1.msra.mxu0 0.0
    %1153 = vmatprep.subr.mxu0 0.0
    %1154 = vmatpush1.msra.mxu0 0.0
    %1155 = vmatprep.subr.mxu0 0.0
    %1156 = vmatpush1.msra.mxu0 0.0
    %1157 = vmatprep.subr.mxu0 0.0
    %1158 = vmatpush1.msra.mxu0 0.0
    %1159 = vmatprep.subr.mxu0 0.0
    %1160 = vmatpush1.msra.mxu0 0.0
    %1161 = vmatprep.subr.mxu0 0.0
    %1162 = vmatpush1.msra.mxu0 0.0
    %1163 = vmatprep.subr.mxu0 0.0
    %1164 = vmatpush1.msra.mxu0 0.0
    %1165 = vmatprep.subr.mxu0 0.0
    %1166 = vmatpush1.msra.mxu0 0.0
    %1167 = vmatprep.subr.mxu0 0.0
    %1168 = vmatpush1.msra.mxu0 0.0
    %1169 = vmatprep.subr.mxu0 0.0
    %1170 = vmatpush1.msra.mxu0 0.0
    %1171 = vmatprep.subr.mxu0 0.0
    %1172 = vmatpush1.msra.mxu0 0.0
    %1173 = vmatprep.subr.mxu0 0.0
    %1174 = vmatpush1.msra.mxu0 0.0
    %1175 = vmatprep.subr.mxu0 0.0
    %1176 = vmatpush1.msra.mxu0 0.0
    %1177 = vmatprep.subr.mxu0 0.0
    %1178 = vmatpush1.msra.mxu0 0.0
    %1179 = vmatprep.subr.mxu0 0.0
    %1180 = vmatpush1.msra.mxu0 0.0
    %1181 = vmatprep.subr.mxu0 0.0
    %1182 = vmatpush1.msra.mxu0 0.0
    %1183 = vmatprep.subr.mxu0 0.0
    %1184 = vmatpush1.msra.mxu0 0.0
    %1185 = vmatprep.subr.mxu0 0.0
    %1186 = vmatpush1.msra.mxu0 0.0
    %1187 = vmatprep.subr.mxu0 0.0
    %1188 = vmatpush1.msra.mxu0 0.0
    %1189 = vmatprep.subr.mxu0 0.0
    %1190 = vmatpush1.msra.mxu0 0.0
    %1191 = vmatprep.subr.mxu0 0.0
    %1192 = vmatpush1.msra.mxu0 0.0
    %1193 = vmatprep.subr.mxu0 0.0
    %1194 = vmatpush1.msra.mxu0 0.0
    %1195 = vmatprep.subr.mxu0 0.0
    %1196 = vmatpush1.msra.mxu0 0.0
    %1197 = vmatprep.subr.mxu0 0.0
    %1198 = vmatpush1.msra.mxu0 0.0
    %1199 = vmatprep.mubr.f32.mxu0 0.0
    %1200 = vmatmul.mubr.f32.gmra.mrb[0].mxu0 %v167
    %v1201 = vpop.f32.mrb[0].mxu0
    %v1202 = vadd.f32 0.0, %v1201
    %v1203 = vpop.f32.mrb[0].mxu0
    %1204 = vmatprep.mubr.f32.mxu0 0.0
    %1205 = vmatmul.mubr.f32.gmra.mrb[0].mxu0 %v170
    %v1206 = vpop.f32.mrb[0].mxu0
    %v1207 = vadd.f32 0.0, %v1206
    %v1208 = vpop.f32.mrb[0].mxu0
    %1209 = vmatprep.mubr.f32.mxu0 0.0
    %1210 = vmatmul.mubr.f32.gmra.mrb[0].mxu0 %v173
    %v1211 = vpop.f32.mrb[0].mxu0
    %v1212 = vadd.f32 0.0, %v1211
    %v1213 = vpop.f32.mrb[0].mxu0
    %1214 = vmatprep.mubr.f32.mxu0 0.0
    %1215 = vmatmul.mubr.f32.gmra.mrb[0].mxu0 %v176
    %v1216 = vpop.f32.mrb[0].mxu0
    %v1217 = vadd.f32 0.0, %v1216
    %v1218 = vpop.f32.mrb[0].mxu0
    %1219 = vdwg.mxu0
    %s1220 = scalar_lea.vmem %s1, 160
    %v1221 = vld [vmem:[%s1220] sm:$0xff]
    %v1222 = vld [vmem:[%s1220 + $0x8] sm:$0xff]
    %v1223 = vld [vmem:[%s1220 + $0x10] sm:$0xff]
    %v1224 = vld [vmem:[%s1220 + $0x18] sm:$0xff]
    %v1226 = vsel %vm359, %v1221, 0
    %v1229 = vsel %vm359, %v1222, 0
    %v1232 = vsel %vm359, %v1223, 0
    %v1235 = vsel %vm359, %v1224, 0
    %1237 = vmatprep.subr.mxu0 0.0
    %1238 = vmatpush1.msra.mxu0 %v1202
    %1239 = vmatprep.subr.mxu0 0.0
    %1240 = vmatpush1.msra.mxu0 %v1207
    %1241 = vmatprep.subr.mxu0 0.0
    %1242 = vmatpush1.msra.mxu0 %v1212
    %1243 = vmatprep.subr.mxu0 0.0
    %1244 = vmatpush1.msra.mxu0 %v1217
    %1245 = vmatprep.subr.mxu0 0.0
    %1246 = vmatpush1.msra.mxu0 0.0
    %1247 = vmatprep.subr.mxu0 0.0
    %1248 = vmatpush1.msra.mxu0 0.0
    %1249 = vmatprep.subr.mxu0 0.0
    %1250 = vmatpush1.msra.mxu0 0.0
    %1251 = vmatprep.subr.mxu0 0.0
    %1252 = vmatpush1.msra.mxu0 0.0
    %1253 = vmatprep.subr.mxu0 0.0
    %1254 = vmatpush1.msra.mxu0 0.0
    %1255 = vmatprep.subr.mxu0 0.0
    %1256 = vmatpush1.msra.mxu0 0.0
    %1257 = vmatprep.subr.mxu0 0.0
    %1258 = vmatpush1.msra.mxu0 0.0
    %1259 = vmatprep.subr.mxu0 0.0
    %1260 = vmatpush1.msra.mxu0 0.0
    %1261 = vmatprep.subr.mxu0 0.0
    %1262 = vmatpush1.msra.mxu0 0.0
    %1263 = vmatprep.subr.mxu0 0.0
    %1264 = vmatpush1.msra.mxu0 0.0
    %1265 = vmatprep.subr.mxu0 0.0
    %1266 = vmatpush1.msra.mxu0 0.0
    %1267 = vmatprep.subr.mxu0 0.0
    %1268 = vmatpush1.msra.mxu0 0.0
    %1269 = vmatprep.subr.mxu0 0.0
    %1270 = vmatpush1.msra.mxu0 0.0
    %1271 = vmatprep.subr.mxu0 0.0
    %1272 = vmatpush1.msra.mxu0 0.0
    %1273 = vmatprep.subr.mxu0 0.0
    %1274 = vmatpush1.msra.mxu0 0.0
    %1275 = vmatprep.subr.mxu0 0.0
    %1276 = vmatpush1.msra.mxu0 0.0
    %1277 = vmatprep.subr.mxu0 0.0
    %1278 = vmatpush1.msra.mxu0 0.0
    %1279 = vmatprep.subr.mxu0 0.0
    %1280 = vmatpush1.msra.mxu0 0.0
    %1281 = vmatprep.subr.mxu0 0.0
    %1282 = vmatpush1.msra.mxu0 0.0
    %1283 = vmatprep.subr.mxu0 0.0
    %1284 = vmatpush1.msra.mxu0 0.0
    %1285 = vmatprep.subr.mxu0 0.0
    %1286 = vmatpush1.msra.mxu0 0.0
    %1287 = vmatprep.subr.mxu0 0.0
    %1288 = vmatpush1.msra.mxu0 0.0
    %1289 = vmatprep.subr.mxu0 0.0
    %1290 = vmatpush1.msra.mxu0 0.0
    %1291 = vmatprep.subr.mxu0 0.0
    %1292 = vmatpush1.msra.mxu0 0.0
    %1293 = vmatprep.subr.mxu0 0.0
    %1294 = vmatpush1.msra.mxu0 0.0
    %1295 = vmatprep.subr.mxu0 0.0
    %1296 = vmatpush1.msra.mxu0 0.0
    %1297 = vmatprep.subr.mxu0 0.0
    %1298 = vmatpush1.msra.mxu0 0.0
    %1299 = vmatprep.subr.mxu0 0.0
    %1300 = vmatpush1.msra.mxu0 0.0
    %1301 = vmatprep.mubr.f32.mxu0 0.0
    %1302 = vmatmul.mubr.f32.gmra.mrb[0].mxu0 %v1226
    %v1303 = vpop.f32.mrb[0].mxu0
    %v1304 = vadd.f32 0.0, %v1303
    %v1305 = vpop.f32.mrb[0].mxu0
    %1306 = vmatprep.mubr.f32.mxu0 0.0
    %1307 = vmatmul.mubr.f32.gmra.mrb[0].mxu0 %v1229
    %v1308 = vpop.f32.mrb[0].mxu0
    %v1309 = vadd.f32 0.0, %v1308
    %v1310 = vpop.f32.mrb[0].mxu0
    %1311 = vmatprep.mubr.f32.mxu0 0.0
    %1312 = vmatmul.mubr.f32.gmra.mrb[0].mxu0 %v1232
    %v1313 = vpop.f32.mrb[0].mxu0
    %v1314 = vadd.f32 0.0, %v1313
    %v1315 = vpop.f32.mrb[0].mxu0
    %1316 = vmatprep.mubr.f32.mxu0 0.0
    %1317 = vmatmul.mubr.f32.gmra.mrb[0].mxu0 %v1235
    %v1318 = vpop.f32.mrb[0].mxu0
    %v1319 = vadd.f32 0.0, %v1318
    %v1320 = vpop.f32.mrb[0].mxu0
    %1321 = vdwg.mxu0
    %v1322 = vadd.f32 %v1129, %v1304
    %v1323 = vadd.f32 %v1130, %v1309
    %v1324 = vadd.f32 %v1131, %v1314
    %v1325 = vadd.f32 %v1132, %v1319
    %s1326 = scalar_lea.vmem %s6, 48
    %v1327 = vld [vmem:[%s1326] sm:$0xff]
    %1328 = vmatprep.subr.mxu0 0.0
    %1329 = vmatpush1.msra.mxu0 %v1327
    %1330 = vmatprep.subr.mxu0 0.0
    %1331 = vmatpush1.msra.mxu0 0.0
    %1332 = vmatprep.subr.mxu0 0.0
    %1333 = vmatpush1.msra.mxu0 0.0
    %1334 = vmatprep.subr.mxu0 0.0
    %1335 = vmatpush1.msra.mxu0 0.0
    %1336 = vmatprep.subr.mxu0 0.0
    %1337 = vmatpush1.msra.mxu0 0.0
    %1338 = vmatprep.subr.mxu0 0.0
    %1339 = vmatpush1.msra.mxu0 0.0
    %1340 = vmatprep.subr.mxu0 0.0
    %1341 = vmatpush1.msra.mxu0 0.0
    %1342 = vmatprep.subr.mxu0 0.0
    %1343 = vmatpush1.msra.mxu0 0.0
    %1344 = vmatprep.subr.mxu0 0.0
    %1345 = vmatpush1.msra.mxu0 0.0
    %1346 = vmatprep.subr.mxu0 0.0
    %1347 = vmatpush1.msra.mxu0 0.0
    %1348 = vmatprep.subr.mxu0 0.0
    %1349 = vmatpush1.msra.mxu0 0.0
    %1350 = vmatprep.subr.mxu0 0.0
    %1351 = vmatpush1.msra.mxu0 0.0
    %1352 = vmatprep.subr.mxu0 0.0
    %1353 = vmatpush1.msra.mxu0 0.0
    %1354 = vmatprep.subr.mxu0 0.0
    %1355 = vmatpush1.msra.mxu0 0.0
    %1356 = vmatprep.subr.mxu0 0.0
    %1357 = vmatpush1.msra.mxu0 0.0
    %1358 = vmatprep.subr.mxu0 0.0
    %1359 = vmatpush1.msra.mxu0 0.0
    %1360 = vmatprep.subr.mxu0 0.0
    %1361 = vmatpush1.msra.mxu0 0.0
    %1362 = vmatprep.subr.mxu0 0.0
    %1363 = vmatpush1.msra.mxu0 0.0
    %1364 = vmatprep.subr.mxu0 0.0
    %1365 = vmatpush1.msra.mxu0 0.0
    %1366 = vmatprep.subr.mxu0 0.0
    %1367 = vmatpush1.msra.mxu0 0.0
    %1368 = vmatprep.subr.mxu0 0.0
    %1369 = vmatpush1.msra.mxu0 0.0
    %1370 = vmatprep.subr.mxu0 0.0
    %1371 = vmatpush1.msra.mxu0 0.0
    %1372 = vmatprep.subr.mxu0 0.0
    %1373 = vmatpush1.msra.mxu0 0.0
    %1374 = vmatprep.subr.mxu0 0.0
    %1375 = vmatpush1.msra.mxu0 0.0
    %1376 = vmatprep.subr.mxu0 0.0
    %1377 = vmatpush1.msra.mxu0 0.0
    %1378 = vmatprep.subr.mxu0 0.0
    %1379 = vmatpush1.msra.mxu0 0.0
    %1380 = vmatprep.subr.mxu0 0.0
    %1381 = vmatpush1.msra.mxu0 0.0
    %1382 = vmatprep.subr.mxu0 0.0
    %1383 = vmatpush1.msra.mxu0 0.0
    %1384 = vmatprep.subr.mxu0 0.0
    %1385 = vmatpush1.msra.mxu0 0.0
    %1386 = vmatprep.subr.mxu0 0.0
    %1387 = vmatpush1.msra.mxu0 0.0
    %1388 = vmatprep.subr.mxu0 0.0
    %1389 = vmatpush1.msra.mxu0 0.0
    %1390 = vmatprep.subr.mxu0 0.0
    %1391 = vmatpush1.msra.mxu0 0.0
    %1392 = vmatprep.mubr.f32.mxu0 0.0
    %1393 = vmatmul.mubr.f32.gmra.mrb[0].mxu0 %v167
    %v1394 = vpop.f32.mrb[0].mxu0
    %v1395 = vadd.f32 0.0, %v1394
    %v1396 = vpop.f32.mrb[0].mxu0
    %1397 = vmatprep.mubr.f32.mxu0 0.0
    %1398 = vmatmul.mubr.f32.gmra.mrb[0].mxu0 %v170
    %v1399 = vpop.f32.mrb[0].mxu0
    %v1400 = vadd.f32 0.0, %v1399
    %v1401 = vpop.f32.mrb[0].mxu0
    %1402 = vmatprep.mubr.f32.mxu0 0.0
    %1403 = vmatmul.mubr.f32.gmra.mrb[0].mxu0 %v173
    %v1404 = vpop.f32.mrb[0].mxu0
    %v1405 = vadd.f32 0.0, %v1404
    %v1406 = vpop.f32.mrb[0].mxu0
    %1407 = vmatprep.mubr.f32.mxu0 0.0
    %1408 = vmatmul.mubr.f32.gmra.mrb[0].mxu0 %v176
    %v1409 = vpop.f32.mrb[0].mxu0
    %v1410 = vadd.f32 0.0, %v1409
    %v1411 = vpop.f32.mrb[0].mxu0
    %1412 = vdwg.mxu0
    %s1413 = scalar_lea.vmem %s1, 192
    %v1414 = vld [vmem:[%s1413] sm:$0xff]
    %v1415 = vld [vmem:[%s1413 + $0x8] sm:$0xff]
    %v1416 = vld [vmem:[%s1413 + $0x10] sm:$0xff]
    %v1417 = vld [vmem:[%s1413 + $0x18] sm:$0xff]
    %v1419 = vsel %vm359, %v1414, 0
    %v1422 = vsel %vm359, %v1415, 0
    %v1425 = vsel %vm359, %v1416, 0
    %v1428 = vsel %vm359, %v1417, 0
    %1430 = vmatprep.subr.mxu0 0.0
    %1431 = vmatpush1.msra.mxu0 %v1395
    %1432 = vmatprep.subr.mxu0 0.0
    %1433 = vmatpush1.msra.mxu0 %v1400
    %1434 = vmatprep.subr.mxu0 0.0
    %1435 = vmatpush1.msra.mxu0 %v1405
    %1436 = vmatprep.subr.mxu0 0.0
    %1437 = vmatpush1.msra.mxu0 %v1410
    %1438 = vmatprep.subr.mxu0 0.0
    %1439 = vmatpush1.msra.mxu0 0.0
    %1440 = vmatprep.subr.mxu0 0.0
    %1441 = vmatpush1.msra.mxu0 0.0
    %1442 = vmatprep.subr.mxu0 0.0
    %1443 = vmatpush1.msra.mxu0 0.0
    %1444 = vmatprep.subr.mxu0 0.0
    %1445 = vmatpush1.msra.mxu0 0.0
    %1446 = vmatprep.subr.mxu0 0.0
    %1447 = vmatpush1.msra.mxu0 0.0
    %1448 = vmatprep.subr.mxu0 0.0
    %1449 = vmatpush1.msra.mxu0 0.0
    %1450 = vmatprep.subr.mxu0 0.0
    %1451 = vmatpush1.msra.mxu0 0.0
    %1452 = vmatprep.subr.mxu0 0.0
    %1453 = vmatpush1.msra.mxu0 0.0
    %1454 = vmatprep.subr.mxu0 0.0
    %1455 = vmatpush1.msra.mxu0 0.0
    %1456 = vmatprep.subr.mxu0 0.0
    %1457 = vmatpush1.msra.mxu0 0.0
    %1458 = vmatprep.subr.mxu0 0.0
    %1459 = vmatpush1.msra.mxu0 0.0
    %1460 = vmatprep.subr.mxu0 0.0
    %1461 = vmatpush1.msra.mxu0 0.0
    %1462 = vmatprep.subr.mxu0 0.0
    %1463 = vmatpush1.msra.mxu0 0.0
    %1464 = vmatprep.subr.mxu0 0.0
    %1465 = vmatpush1.msra.mxu0 0.0
    %1466 = vmatprep.subr.mxu0 0.0
    %1467 = vmatpush1.msra.mxu0 0.0
    %1468 = vmatprep.subr.mxu0 0.0
    %1469 = vmatpush1.msra.mxu0 0.0
    %1470 = vmatprep.subr.mxu0 0.0
    %1471 = vmatpush1.msra.mxu0 0.0
    %1472 = vmatprep.subr.mxu0 0.0
    %1473 = vmatpush1.msra.mxu0 0.0
    %1474 = vmatprep.subr.mxu0 0.0
    %1475 = vmatpush1.msra.mxu0 0.0
    %1476 = vmatprep.subr.mxu0 0.0
    %1477 = vmatpush1.msra.mxu0 0.0
    %1478 = vmatprep.subr.mxu0 0.0
    %1479 = vmatpush1.msra.mxu0 0.0
    %1480 = vmatprep.subr.mxu0 0.0
    %1481 = vmatpush1.msra.mxu0 0.0
    %1482 = vmatprep.subr.mxu0 0.0
    %1483 = vmatpush1.msra.mxu0 0.0
    %1484 = vmatprep.subr.mxu0 0.0
    %1485 = vmatpush1.msra.mxu0 0.0
    %1486 = vmatprep.subr.mxu0 0.0
    %1487 = vmatpush1.msra.mxu0 0.0
    %1488 = vmatprep.subr.mxu0 0.0
    %1489 = vmatpush1.msra.mxu0 0.0
    %1490 = vmatprep.subr.mxu0 0.0
    %1491 = vmatpush1.msra.mxu0 0.0
    %1492 = vmatprep.subr.mxu0 0.0
    %1493 = vmatpush1.msra.mxu0 0.0
    %1494 = vmatprep.mubr.f32.mxu0 0.0
    %1495 = vmatmul.mubr.f32.gmra.mrb[0].mxu0 %v1419
    %v1496 = vpop.f32.mrb[0].mxu0
    %v1497 = vadd.f32 0.0, %v1496
    %v1498 = vpop.f32.mrb[0].mxu0
    %1499 = vmatprep.mubr.f32.mxu0 0.0
    %1500 = vmatmul.mubr.f32.gmra.mrb[0].mxu0 %v1422
    %v1501 = vpop.f32.mrb[0].mxu0
    %v1502 = vadd.f32 0.0, %v1501
    %v1503 = vpop.f32.mrb[0].mxu0
    %1504 = vmatprep.mubr.f32.mxu0 0.0
    %1505 = vmatmul.mubr.f32.gmra.mrb[0].mxu0 %v1425
    %v1506 = vpop.f32.mrb[0].mxu0
    %v1507 = vadd.f32 0.0, %v1506
    %v1508 = vpop.f32.mrb[0].mxu0
    %1509 = vmatprep.mubr.f32.mxu0 0.0
    %1510 = vmatmul.mubr.f32.gmra.mrb[0].mxu0 %v1428
    %v1511 = vpop.f32.mrb[0].mxu0
    %v1512 = vadd.f32 0.0, %v1511
    %v1513 = vpop.f32.mrb[0].mxu0
    %1514 = vdwg.mxu0
    %v1515 = vadd.f32 %v1322, %v1497
    %v1516 = vadd.f32 %v1323, %v1502
    %v1517 = vadd.f32 %v1324, %v1507
    %v1518 = vadd.f32 %v1325, %v1512
    %s1519 = scalar_lea.vmem %s6, 56
    %v1520 = vld [vmem:[%s1519] sm:$0xff]
    %1521 = vmatprep.subr.mxu0 0.0
    %1522 = vmatpush1.msra.mxu0 %v1520
    %1523 = vmatprep.subr.mxu0 0.0
    %1524 = vmatpush1.msra.mxu0 0.0
    %1525 = vmatprep.subr.mxu0 0.0
    %1526 = vmatpush1.msra.mxu0 0.0
    %1527 = vmatprep.subr.mxu0 0.0
    %1528 = vmatpush1.msra.mxu0 0.0
    %1529 = vmatprep.subr.mxu0 0.0
    %1530 = vmatpush1.msra.mxu0 0.0
    %1531 = vmatprep.subr.mxu0 0.0
    %1532 = vmatpush1.msra.mxu0 0.0
    %1533 = vmatprep.subr.mxu0 0.0
    %1534 = vmatpush1.msra.mxu0 0.0
    %1535 = vmatprep.subr.mxu0 0.0
    %1536 = vmatpush1.msra.mxu0 0.0
    %1537 = vmatprep.subr.mxu0 0.0
    %1538 = vmatpush1.msra.mxu0 0.0
    %1539 = vmatprep.subr.mxu0 0.0
    %1540 = vmatpush1.msra.mxu0 0.0
    %1541 = vmatprep.subr.mxu0 0.0
    %1542 = vmatpush1.msra.mxu0 0.0
    %1543 = vmatprep.subr.mxu0 0.0
    %1544 = vmatpush1.msra.mxu0 0.0
    %1545 = vmatprep.subr.mxu0 0.0
    %1546 = vmatpush1.msra.mxu0 0.0
    %1547 = vmatprep.subr.mxu0 0.0
    %1548 = vmatpush1.msra.mxu0 0.0
    %1549 = vmatprep.subr.mxu0 0.0
    %1550 = vmatpush1.msra.mxu0 0.0
    %1551 = vmatprep.subr.mxu0 0.0
    %1552 = vmatpush1.msra.mxu0 0.0
    %1553 = vmatprep.subr.mxu0 0.0
    %1554 = vmatpush1.msra.mxu0 0.0
    %1555 = vmatprep.subr.mxu0 0.0
    %1556 = vmatpush1.msra.mxu0 0.0
    %1557 = vmatprep.subr.mxu0 0.0
    %1558 = vmatpush1.msra.mxu0 0.0
    %1559 = vmatprep.subr.mxu0 0.0
    %1560 = vmatpush1.msra.mxu0 0.0
    %1561 = vmatprep.subr.mxu0 0.0
    %1562 = vmatpush1.msra.mxu0 0.0
    %1563 = vmatprep.subr.mxu0 0.0
    %1564 = vmatpush1.msra.mxu0 0.0
    %1565 = vmatprep.subr.mxu0 0.0
    %1566 = vmatpush1.msra.mxu0 0.0
    %1567 = vmatprep.subr.mxu0 0.0
    %1568 = vmatpush1.msra.mxu0 0.0
    %1569 = vmatprep.subr.mxu0 0.0
    %1570 = vmatpush1.msra.mxu0 0.0
    %1571 = vmatprep.subr.mxu0 0.0
    %1572 = vmatpush1.msra.mxu0 0.0
    %1573 = vmatprep.subr.mxu0 0.0
    %1574 = vmatpush1.msra.mxu0 0.0
    %1575 = vmatprep.subr.mxu0 0.0
    %1576 = vmatpush1.msra.mxu0 0.0
    %1577 = vmatprep.subr.mxu0 0.0
    %1578 = vmatpush1.msra.mxu0 0.0
    %1579 = vmatprep.subr.mxu0 0.0
    %1580 = vmatpush1.msra.mxu0 0.0
    %1581 = vmatprep.subr.mxu0 0.0
    %1582 = vmatpush1.msra.mxu0 0.0
    %1583 = vmatprep.subr.mxu0 0.0
    %1584 = vmatpush1.msra.mxu0 0.0
    %1585 = vmatprep.mubr.f32.mxu0 0.0
    %1586 = vmatmul.mubr.f32.gmra.mrb[0].mxu0 %v167
    %v1587 = vpop.f32.mrb[0].mxu0
    %v1588 = vadd.f32 0.0, %v1587
    %v1589 = vpop.f32.mrb[0].mxu0
    %1590 = vmatprep.mubr.f32.mxu0 0.0
    %1591 = vmatmul.mubr.f32.gmra.mrb[0].mxu0 %v170
    %v1592 = vpop.f32.mrb[0].mxu0
    %v1593 = vadd.f32 0.0, %v1592
    %v1594 = vpop.f32.mrb[0].mxu0
    %1595 = vmatprep.mubr.f32.mxu0 0.0
    %1596 = vmatmul.mubr.f32.gmra.mrb[0].mxu0 %v173
    %v1597 = vpop.f32.mrb[0].mxu0
    %v1598 = vadd.f32 0.0, %v1597
    %v1599 = vpop.f32.mrb[0].mxu0
    %1600 = vmatprep.mubr.f32.mxu0 0.0
    %1601 = vmatmul.mubr.f32.gmra.mrb[0].mxu0 %v176
    %v1602 = vpop.f32.mrb[0].mxu0
    %v1603 = vadd.f32 0.0, %v1602
    %v1604 = vpop.f32.mrb[0].mxu0
    %1605 = vdwg.mxu0
    %s1606 = scalar_lea.vmem %s1, 224
    %v1607 = vld [vmem:[%s1606] sm:$0xff]
    %v1608 = vld [vmem:[%s1606 + $0x8] sm:$0xff]
    %v1609 = vld [vmem:[%s1606 + $0x10] sm:$0xff]
    %v1610 = vld [vmem:[%s1606 + $0x18] sm:$0xff]
    %v1612 = vsel %vm359, %v1607, 0
    %v1615 = vsel %vm359, %v1608, 0
    %v1618 = vsel %vm359, %v1609, 0
    %v1621 = vsel %vm359, %v1610, 0
    %1623 = vmatprep.subr.mxu0 0.0
    %1624 = vmatpush1.msra.mxu0 %v1588
    %1625 = vmatprep.subr.mxu0 0.0
    %1626 = vmatpush1.msra.mxu0 %v1593
    %1627 = vmatprep.subr.mxu0 0.0
    %1628 = vmatpush1.msra.mxu0 %v1598
    %1629 = vmatprep.subr.mxu0 0.0
    %1630 = vmatpush1.msra.mxu0 %v1603
    %1631 = vmatprep.subr.mxu0 0.0
    %1632 = vmatpush1.msra.mxu0 0.0
    %1633 = vmatprep.subr.mxu0 0.0
    %1634 = vmatpush1.msra.mxu0 0.0
    %1635 = vmatprep.subr.mxu0 0.0
    %1636 = vmatpush1.msra.mxu0 0.0
    %1637 = vmatprep.subr.mxu0 0.0
    %1638 = vmatpush1.msra.mxu0 0.0
    %1639 = vmatprep.subr.mxu0 0.0
    %1640 = vmatpush1.msra.mxu0 0.0
    %1641 = vmatprep.subr.mxu0 0.0
    %1642 = vmatpush1.msra.mxu0 0.0
    %1643 = vmatprep.subr.mxu0 0.0
    %1644 = vmatpush1.msra.mxu0 0.0
    %1645 = vmatprep.subr.mxu0 0.0
    %1646 = vmatpush1.msra.mxu0 0.0
    %1647 = vmatprep.subr.mxu0 0.0
    %1648 = vmatpush1.msra.mxu0 0.0
    %1649 = vmatprep.subr.mxu0 0.0
    %1650 = vmatpush1.msra.mxu0 0.0
    %1651 = vmatprep.subr.mxu0 0.0
    %1652 = vmatpush1.msra.mxu0 0.0
    %1653 = vmatprep.subr.mxu0 0.0
    %1654 = vmatpush1.msra.mxu0 0.0
    %1655 = vmatprep.subr.mxu0 0.0
    %1656 = vmatpush1.msra.mxu0 0.0
    %1657 = vmatprep.subr.mxu0 0.0
    %1658 = vmatpush1.msra.mxu0 0.0
    %1659 = vmatprep.subr.mxu0 0.0
    %1660 = vmatpush1.msra.mxu0 0.0
    %1661 = vmatprep.subr.mxu0 0.0
    %1662 = vmatpush1.msra.mxu0 0.0
    %1663 = vmatprep.subr.mxu0 0.0
    %1664 = vmatpush1.msra.mxu0 0.0
    %1665 = vmatprep.subr.mxu0 0.0
    %1666 = vmatpush1.msra.mxu0 0.0
    %1667 = vmatprep.subr.mxu0 0.0
    %1668 = vmatpush1.msra.mxu0 0.0
    %1669 = vmatprep.subr.mxu0 0.0
    %1670 = vmatpush1.msra.mxu0 0.0
    %1671 = vmatprep.subr.mxu0 0.0
    %1672 = vmatpush1.msra.mxu0 0.0
    %1673 = vmatprep.subr.mxu0 0.0
    %1674 = vmatpush1.msra.mxu0 0.0
    %1675 = vmatprep.subr.mxu0 0.0
    %1676 = vmatpush1.msra.mxu0 0.0
    %1677 = vmatprep.subr.mxu0 0.0
    %1678 = vmatpush1.msra.mxu0 0.0
    %1679 = vmatprep.subr.mxu0 0.0
    %1680 = vmatpush1.msra.mxu0 0.0
    %1681 = vmatprep.subr.mxu0 0.0
    %1682 = vmatpush1.msra.mxu0 0.0
    %1683 = vmatprep.subr.mxu0 0.0
    %1684 = vmatpush1.msra.mxu0 0.0
    %1685 = vmatprep.subr.mxu0 0.0
    %1686 = vmatpush1.msra.mxu0 0.0
    %1687 = vmatprep.mubr.f32.mxu0 0.0
    %1688 = vmatmul.mubr.f32.gmra.mrb[0].mxu0 %v1612
    %v1689 = vpop.f32.mrb[0].mxu0
    %v1690 = vadd.f32 0.0, %v1689
    %v1691 = vpop.f32.mrb[0].mxu0
    %1692 = vmatprep.mubr.f32.mxu0 0.0
    %1693 = vmatmul.mubr.f32.gmra.mrb[0].mxu0 %v1615
    %v1694 = vpop.f32.mrb[0].mxu0
    %v1695 = vadd.f32 0.0, %v1694
    %v1696 = vpop.f32.mrb[0].mxu0
    %1697 = vmatprep.mubr.f32.mxu0 0.0
    %1698 = vmatmul.mubr.f32.gmra.mrb[0].mxu0 %v1618
    %v1699 = vpop.f32.mrb[0].mxu0
    %v1700 = vadd.f32 0.0, %v1699
    %v1701 = vpop.f32.mrb[0].mxu0
    %1702 = vmatprep.mubr.f32.mxu0 0.0
    %1703 = vmatmul.mubr.f32.gmra.mrb[0].mxu0 %v1621
    %v1704 = vpop.f32.mrb[0].mxu0
    %v1705 = vadd.f32 0.0, %v1704
    %v1706 = vpop.f32.mrb[0].mxu0
    %1707 = vdwg.mxu0
    %v1708 = vadd.f32 %v1515, %v1690
    %v1709 = vadd.f32 %v1516, %v1695
    %v1710 = vadd.f32 %v1517, %v1700
    %v1711 = vadd.f32 %v1518, %v1705
    %s1712 = scalar_lea.vmem %s6, 64
    %v1713 = vld [vmem:[%s1712] sm:$0xff]
    %1714 = vmatprep.subr.mxu0 0.0
    %1715 = vmatpush1.msra.mxu0 %v1713
    %1716 = vmatprep.subr.mxu0 0.0
    %1717 = vmatpush1.msra.mxu0 0.0
    %1718 = vmatprep.subr.mxu0 0.0
    %1719 = vmatpush1.msra.mxu0 0.0
    %1720 = vmatprep.subr.mxu0 0.0
    %1721 = vmatpush1.msra.mxu0 0.0
    %1722 = vmatprep.subr.mxu0 0.0
    %1723 = vmatpush1.msra.mxu0 0.0
    %1724 = vmatprep.subr.mxu0 0.0
    %1725 = vmatpush1.msra.mxu0 0.0
    %1726 = vmatprep.subr.mxu0 0.0
    %1727 = vmatpush1.msra.mxu0 0.0
    %1728 = vmatprep.subr.mxu0 0.0
    %1729 = vmatpush1.msra.mxu0 0.0
    %1730 = vmatprep.subr.mxu0 0.0
    %1731 = vmatpush1.msra.mxu0 0.0
    %1732 = vmatprep.subr.mxu0 0.0
    %1733 = vmatpush1.msra.mxu0 0.0
    %1734 = vmatprep.subr.mxu0 0.0
    %1735 = vmatpush1.msra.mxu0 0.0
    %1736 = vmatprep.subr.mxu0 0.0
    %1737 = vmatpush1.msra.mxu0 0.0
    %1738 = vmatprep.subr.mxu0 0.0
    %1739 = vmatpush1.msra.mxu0 0.0
    %1740 = vmatprep.subr.mxu0 0.0
    %1741 = vmatpush1.msra.mxu0 0.0
    %1742 = vmatprep.subr.mxu0 0.0
    %1743 = vmatpush1.msra.mxu0 0.0
    %1744 = vmatprep.subr.mxu0 0.0
    %1745 = vmatpush1.msra.mxu0 0.0
    %1746 = vmatprep.subr.mxu0 0.0
    %1747 = vmatpush1.msra.mxu0 0.0
    %1748 = vmatprep.subr.mxu0 0.0
    %1749 = vmatpush1.msra.mxu0 0.0
    %1750 = vmatprep.subr.mxu0 0.0
    %1751 = vmatpush1.msra.mxu0 0.0
    %1752 = vmatprep.subr.mxu0 0.0
    %1753 = vmatpush1.msra.mxu0 0.0
    %1754 = vmatprep.subr.mxu0 0.0
    %1755 = vmatpush1.msra.mxu0 0.0
    %1756 = vmatprep.subr.mxu0 0.0
    %1757 = vmatpush1.msra.mxu0 0.0
    %1758 = vmatprep.subr.mxu0 0.0
    %1759 = vmatpush1.msra.mxu0 0.0
    %1760 = vmatprep.subr.mxu0 0.0
    %1761 = vmatpush1.msra.mxu0 0.0
    %1762 = vmatprep.subr.mxu0 0.0
    %1763 = vmatpush1.msra.mxu0 0.0
    %1764 = vmatprep.subr.mxu0 0.0
    %1765 = vmatpush1.msra.mxu0 0.0
    %1766 = vmatprep.subr.mxu0 0.0
    %1767 = vmatpush1.msra.mxu0 0.0
    %1768 = vmatprep.subr.mxu0 0.0
    %1769 = vmatpush1.msra.mxu0 0.0
    %1770 = vmatprep.subr.mxu0 0.0
    %1771 = vmatpush1.msra.mxu0 0.0
    %1772 = vmatprep.subr.mxu0 0.0
    %1773 = vmatpush1.msra.mxu0 0.0
    %1774 = vmatprep.subr.mxu0 0.0
    %1775 = vmatpush1.msra.mxu0 0.0
    %1776 = vmatprep.subr.mxu0 0.0
    %1777 = vmatpush1.msra.mxu0 0.0
    %1778 = vmatprep.mubr.f32.mxu0 0.0
    %1779 = vmatmul.mubr.f32.gmra.mrb[0].mxu0 %v167
    %v1780 = vpop.f32.mrb[0].mxu0
    %v1781 = vadd.f32 0.0, %v1780
    %v1782 = vpop.f32.mrb[0].mxu0
    %1783 = vmatprep.mubr.f32.mxu0 0.0
    %1784 = vmatmul.mubr.f32.gmra.mrb[0].mxu0 %v170
    %v1785 = vpop.f32.mrb[0].mxu0
    %v1786 = vadd.f32 0.0, %v1785
    %v1787 = vpop.f32.mrb[0].mxu0
    %1788 = vmatprep.mubr.f32.mxu0 0.0
    %1789 = vmatmul.mubr.f32.gmra.mrb[0].mxu0 %v173
    %v1790 = vpop.f32.mrb[0].mxu0
    %v1791 = vadd.f32 0.0, %v1790
    %v1792 = vpop.f32.mrb[0].mxu0
    %1793 = vmatprep.mubr.f32.mxu0 0.0
    %1794 = vmatmul.mubr.f32.gmra.mrb[0].mxu0 %v176
    %v1795 = vpop.f32.mrb[0].mxu0
    %v1796 = vadd.f32 0.0, %v1795
    %v1797 = vpop.f32.mrb[0].mxu0
    %1798 = vdwg.mxu0
    %s1799 = scalar_lea.vmem %s1, 256
    %v1800 = vld [vmem:[%s1799] sm:$0xff]
    %v1801 = vld [vmem:[%s1799 + $0x8] sm:$0xff]
    %v1802 = vld [vmem:[%s1799 + $0x10] sm:$0xff]
    %v1803 = vld [vmem:[%s1799 + $0x18] sm:$0xff]
    %v1805 = vsel %vm359, %v1800, 0
    %v1808 = vsel %vm359, %v1801, 0
    %v1811 = vsel %vm359, %v1802, 0
    %v1814 = vsel %vm359, %v1803, 0
    %1816 = vmatprep.subr.mxu0 0.0
    %1817 = vmatpush1.msra.mxu0 %v1781
    %1818 = vmatprep.subr.mxu0 0.0
    %1819 = vmatpush1.msra.mxu0 %v1786
    %1820 = vmatprep.subr.mxu0 0.0
    %1821 = vmatpush1.msra.mxu0 %v1791
    %1822 = vmatprep.subr.mxu0 0.0
    %1823 = vmatpush1.msra.mxu0 %v1796
    %1824 = vmatprep.subr.mxu0 0.0
    %1825 = vmatpush1.msra.mxu0 0.0
    %1826 = vmatprep.subr.mxu0 0.0
    %1827 = vmatpush1.msra.mxu0 0.0
    %1828 = vmatprep.subr.mxu0 0.0
    %1829 = vmatpush1.msra.mxu0 0.0
    %1830 = vmatprep.subr.mxu0 0.0
    %1831 = vmatpush1.msra.mxu0 0.0
    %1832 = vmatprep.subr.mxu0 0.0
    %1833 = vmatpush1.msra.mxu0 0.0
    %1834 = vmatprep.subr.mxu0 0.0
    %1835 = vmatpush1.msra.mxu0 0.0
    %1836 = vmatprep.subr.mxu0 0.0
    %1837 = vmatpush1.msra.mxu0 0.0
    %1838 = vmatprep.subr.mxu0 0.0
    %1839 = vmatpush1.msra.mxu0 0.0
    %1840 = vmatprep.subr.mxu0 0.0
    %1841 = vmatpush1.msra.mxu0 0.0
    %1842 = vmatprep.subr.mxu0 0.0
    %1843 = vmatpush1.msra.mxu0 0.0
    %1844 = vmatprep.subr.mxu0 0.0
    %1845 = vmatpush1.msra.mxu0 0.0
    %1846 = vmatprep.subr.mxu0 0.0
    %1847 = vmatpush1.msra.mxu0 0.0
    %1848 = vmatprep.subr.mxu0 0.0
    %1849 = vmatpush1.msra.mxu0 0.0
    %1850 = vmatprep.subr.mxu0 0.0
    %1851 = vmatpush1.msra.mxu0 0.0
    %1852 = vmatprep.subr.mxu0 0.0
    %1853 = vmatpush1.msra.mxu0 0.0
    %1854 = vmatprep.subr.mxu0 0.0
    %1855 = vmatpush1.msra.mxu0 0.0
    %1856 = vmatprep.subr.mxu0 0.0
    %1857 = vmatpush1.msra.mxu0 0.0
    %1858 = vmatprep.subr.mxu0 0.0
    %1859 = vmatpush1.msra.mxu0 0.0
    %1860 = vmatprep.subr.mxu0 0.0
    %1861 = vmatpush1.msra.mxu0 0.0
    %1862 = vmatprep.subr.mxu0 0.0
    %1863 = vmatpush1.msra.mxu0 0.0
    %1864 = vmatprep.subr.mxu0 0.0
    %1865 = vmatpush1.msra.mxu0 0.0
    %1866 = vmatprep.subr.mxu0 0.0
    %1867 = vmatpush1.msra.mxu0 0.0
    %1868 = vmatprep.subr.mxu0 0.0
    %1869 = vmatpush1.msra.mxu0 0.0
    %1870 = vmatprep.subr.mxu0 0.0
    %1871 = vmatpush1.msra.mxu0 0.0
    %1872 = vmatprep.subr.mxu0 0.0
    %1873 = vmatpush1.msra.mxu0 0.0
    %1874 = vmatprep.subr.mxu0 0.0
    %1875 = vmatpush1.msra.mxu0 0.0
    %1876 = vmatprep.subr.mxu0 0.0
    %1877 = vmatpush1.msra.mxu0 0.0
    %1878 = vmatprep.subr.mxu0 0.0
    %1879 = vmatpush1.msra.mxu0 0.0
    %1880 = vmatprep.mubr.f32.mxu0 0.0
    %1881 = vmatmul.mubr.f32.gmra.mrb[0].mxu0 %v1805
    %v1882 = vpop.f32.mrb[0].mxu0
    %v1883 = vadd.f32 0.0, %v1882
    %v1884 = vpop.f32.mrb[0].mxu0
    %1885 = vmatprep.mubr.f32.mxu0 0.0
    %1886 = vmatmul.mubr.f32.gmra.mrb[0].mxu0 %v1808
    %v1887 = vpop.f32.mrb[0].mxu0
    %v1888 = vadd.f32 0.0, %v1887
    %v1889 = vpop.f32.mrb[0].mxu0
    %1890 = vmatprep.mubr.f32.mxu0 0.0
    %1891 = vmatmul.mubr.f32.gmra.mrb[0].mxu0 %v1811
    %v1892 = vpop.f32.mrb[0].mxu0
    %v1893 = vadd.f32 0.0, %v1892
    %v1894 = vpop.f32.mrb[0].mxu0
    %1895 = vmatprep.mubr.f32.mxu0 0.0
    %1896 = vmatmul.mubr.f32.gmra.mrb[0].mxu0 %v1814
    %v1897 = vpop.f32.mrb[0].mxu0
    %v1898 = vadd.f32 0.0, %v1897
    %v1899 = vpop.f32.mrb[0].mxu0
    %1900 = vdwg.mxu0
    %v1901 = vadd.f32 %v1708, %v1883
    %v1902 = vadd.f32 %v1709, %v1888
    %v1903 = vadd.f32 %v1710, %v1893
    %v1904 = vadd.f32 %v1711, %v1898
    %v1905 = vld [vmem:[%s7] sm:$0x1]
    %v1907 = vlaneseq
    %v1908 = vshrl.u32 %v1907, 7
    %v1909 = vsub.s32 0, %v1908
    %v1910 = vrot.slane %v1905, %v1909
    %v1912 = vadd.f32 %v1901, %v1910
    %v1913 = vadd.f32 %v1902, %v1910
    %v1914 = vadd.f32 %v1903, %v1910
    %v1915 = vadd.f32 %v1904, %v1910
    %v1916 = vmax.f32 %v1912, 0.0
    %v1917 = vmax.f32 %v1913, 0.0
    %v1918 = vmax.f32 %v1914, 0.0
    %v1919 = vmax.f32 %v1915, 0.0
    %s1920 = scalar_lea.vmem %s6, 72
    %v1921 = vld [vmem:[%s1920] sm:$0xff]
    %v1923 = vsel %vm165, %v1916, 0
    %v1926 = vsel %vm165, %v1917, 0
    %v1929 = vsel %vm165, %v1918, 0
    %v1932 = vsel %vm165, %v1919, 0
    %1934 = vmatprep.subr.mxu0 0.0
    %1935 = vmatpush1.msra.mxu0 %v1921
    %1936 = vmatprep.subr.mxu0 0.0
    %1937 = vmatpush1.msra.mxu0 0.0
    %1938 = vmatprep.subr.mxu0 0.0
    %1939 = vmatpush1.msra.mxu0 0.0
    %1940 = vmatprep.subr.mxu0 0.0
    %1941 = vmatpush1.msra.mxu0 0.0
    %1942 = vmatprep.subr.mxu0 0.0
    %1943 = vmatpush1.msra.mxu0 0.0
    %1944 = vmatprep.subr.mxu0 0.0
    %1945 = vmatpush1.msra.mxu0 0.0
    %1946 = vmatprep.subr.mxu0 0.0
    %1947 = vmatpush1.msra.mxu0 0.0
    %1948 = vmatprep.subr.mxu0 0.0
    %1949 = vmatpush1.msra.mxu0 0.0
    %1950 = vmatprep.subr.mxu0 0.0
    %1951 = vmatpush1.msra.mxu0 0.0
    %1952 = vmatprep.subr.mxu0 0.0
    %1953 = vmatpush1.msra.mxu0 0.0
    %1954 = vmatprep.subr.mxu0 0.0
    %1955 = vmatpush1.msra.mxu0 0.0
    %1956 = vmatprep.subr.mxu0 0.0
    %1957 = vmatpush1.msra.mxu0 0.0
    %1958 = vmatprep.subr.mxu0 0.0
    %1959 = vmatpush1.msra.mxu0 0.0
    %1960 = vmatprep.subr.mxu0 0.0
    %1961 = vmatpush1.msra.mxu0 0.0
    %1962 = vmatprep.subr.mxu0 0.0
    %1963 = vmatpush1.msra.mxu0 0.0
    %1964 = vmatprep.subr.mxu0 0.0
    %1965 = vmatpush1.msra.mxu0 0.0
    %1966 = vmatprep.subr.mxu0 0.0
    %1967 = vmatpush1.msra.mxu0 0.0
    %1968 = vmatprep.subr.mxu0 0.0
    %1969 = vmatpush1.msra.mxu0 0.0
    %1970 = vmatprep.subr.mxu0 0.0
    %1971 = vmatpush1.msra.mxu0 0.0
    %1972 = vmatprep.subr.mxu0 0.0
    %1973 = vmatpush1.msra.mxu0 0.0
    %1974 = vmatprep.subr.mxu0 0.0
    %1975 = vmatpush1.msra.mxu0 0.0
    %1976 = vmatprep.subr.mxu0 0.0
    %1977 = vmatpush1.msra.mxu0 0.0
    %1978 = vmatprep.subr.mxu0 0.0
    %1979 = vmatpush1.msra.mxu0 0.0
    %1980 = vmatprep.subr.mxu0 0.0
    %1981 = vmatpush1.msra.mxu0 0.0
    %1982 = vmatprep.subr.mxu0 0.0
    %1983 = vmatpush1.msra.mxu0 0.0
    %1984 = vmatprep.subr.mxu0 0.0
    %1985 = vmatpush1.msra.mxu0 0.0
    %1986 = vmatprep.subr.mxu0 0.0
    %1987 = vmatpush1.msra.mxu0 0.0
    %1988 = vmatprep.subr.mxu0 0.0
    %1989 = vmatpush1.msra.mxu0 0.0
    %1990 = vmatprep.subr.mxu0 0.0
    %1991 = vmatpush1.msra.mxu0 0.0
    %1992 = vmatprep.subr.mxu0 0.0
    %1993 = vmatpush1.msra.mxu0 0.0
    %1994 = vmatprep.subr.mxu0 0.0
    %1995 = vmatpush1.msra.mxu0 0.0
    %1996 = vmatprep.subr.mxu0 0.0
    %1997 = vmatpush1.msra.mxu0 0.0
    %1998 = vmatprep.mubr.f32.mxu0 0.0
    %1999 = vmatmul.mubr.f32.gmra.mrb[0].mxu0 %v1923
    %v2000 = vpop.f32.mrb[0].mxu0
    %v2001 = vadd.f32 0.0, %v2000
    %v2002 = vpop.f32.mrb[0].mxu0
    %2003 = vmatprep.mubr.f32.mxu0 0.0
    %2004 = vmatmul.mubr.f32.gmra.mrb[0].mxu0 %v1926
    %v2005 = vpop.f32.mrb[0].mxu0
    %v2006 = vadd.f32 0.0, %v2005
    %v2007 = vpop.f32.mrb[0].mxu0
    %2008 = vmatprep.mubr.f32.mxu0 0.0
    %2009 = vmatmul.mubr.f32.gmra.mrb[0].mxu0 %v1929
    %v2010 = vpop.f32.mrb[0].mxu0
    %v2011 = vadd.f32 0.0, %v2010
    %v2012 = vpop.f32.mrb[0].mxu0
    %2013 = vmatprep.mubr.f32.mxu0 0.0
    %2014 = vmatmul.mubr.f32.gmra.mrb[0].mxu0 %v1932
    %v2015 = vpop.f32.mrb[0].mxu0
    %v2016 = vadd.f32 0.0, %v2015
    %v2017 = vpop.f32.mrb[0].mxu0
    %2018 = vdwg.mxu0
    %s2019 = scalar_lea.vmem %s6, 80
    %v2020 = vld [vmem:[%s2019] sm:$0xff]
    %2021 = vmatprep.subr.mxu0 0.0
    %2022 = vmatpush1.msra.mxu0 %v2020
    %2023 = vmatprep.subr.mxu0 0.0
    %2024 = vmatpush1.msra.mxu0 0.0
    %2025 = vmatprep.subr.mxu0 0.0
    %2026 = vmatpush1.msra.mxu0 0.0
    %2027 = vmatprep.subr.mxu0 0.0
    %2028 = vmatpush1.msra.mxu0 0.0
    %2029 = vmatprep.subr.mxu0 0.0
    %2030 = vmatpush1.msra.mxu0 0.0
    %2031 = vmatprep.subr.mxu0 0.0
    %2032 = vmatpush1.msra.mxu0 0.0
    %2033 = vmatprep.subr.mxu0 0.0
    %2034 = vmatpush1.msra.mxu0 0.0
    %2035 = vmatprep.subr.mxu0 0.0
    %2036 = vmatpush1.msra.mxu0 0.0
    %2037 = vmatprep.subr.mxu0 0.0
    %2038 = vmatpush1.msra.mxu0 0.0
    %2039 = vmatprep.subr.mxu0 0.0
    %2040 = vmatpush1.msra.mxu0 0.0
    %2041 = vmatprep.subr.mxu0 0.0
    %2042 = vmatpush1.msra.mxu0 0.0
    %2043 = vmatprep.subr.mxu0 0.0
    %2044 = vmatpush1.msra.mxu0 0.0
    %2045 = vmatprep.subr.mxu0 0.0
    %2046 = vmatpush1.msra.mxu0 0.0
    %2047 = vmatprep.subr.mxu0 0.0
    %2048 = vmatpush1.msra.mxu0 0.0
    %2049 = vmatprep.subr.mxu0 0.0
    %2050 = vmatpush1.msra.mxu0 0.0
    %2051 = vmatprep.subr.mxu0 0.0
    %2052 = vmatpush1.msra.mxu0 0.0
    %2053 = vmatprep.subr.mxu0 0.0
    %2054 = vmatpush1.msra.mxu0 0.0
    %2055 = vmatprep.subr.mxu0 0.0
    %2056 = vmatpush1.msra.mxu0 0.0
    %2057 = vmatprep.subr.mxu0 0.0
    %2058 = vmatpush1.msra.mxu0 0.0
    %2059 = vmatprep.subr.mxu0 0.0
    %2060 = vmatpush1.msra.mxu0 0.0
    %2061 = vmatprep.subr.mxu0 0.0
    %2062 = vmatpush1.msra.mxu0 0.0
    %2063 = vmatprep.subr.mxu0 0.0
    %2064 = vmatpush1.msra.mxu0 0.0
    %2065 = vmatprep.subr.mxu0 0.0
    %2066 = vmatpush1.msra.mxu0 0.0
    %2067 = vmatprep.subr.mxu0 0.0
    %2068 = vmatpush1.msra.mxu0 0.0
    %2069 = vmatprep.subr.mxu0 0.0
    %2070 = vmatpush1.msra.mxu0 0.0
    %2071 = vmatprep.subr.mxu0 0.0
    %2072 = vmatpush1.msra.mxu0 0.0
    %2073 = vmatprep.subr.mxu0 0.0
    %2074 = vmatpush1.msra.mxu0 0.0
    %2075 = vmatprep.subr.mxu0 0.0
    %2076 = vmatpush1.msra.mxu0 0.0
    %2077 = vmatprep.subr.mxu0 0.0
    %2078 = vmatpush1.msra.mxu0 0.0
    %2079 = vmatprep.subr.mxu0 0.0
    %2080 = vmatpush1.msra.mxu0 0.0
    %2081 = vmatprep.subr.mxu0 0.0
    %2082 = vmatpush1.msra.mxu0 0.0
    %2083 = vmatprep.subr.mxu0 0.0
    %2084 = vmatpush1.msra.mxu0 0.0
    %2085 = vmatprep.mubr.f32.mxu0 0.0
    %2086 = vmatmul.mubr.f32.gmra.mrb[0].mxu0 %v1923
    %v2087 = vpop.f32.mrb[0].mxu0
    %v2088 = vadd.f32 0.0, %v2087
    %v2089 = vpop.f32.mrb[0].mxu0
    %2090 = vmatprep.mubr.f32.mxu0 0.0
    %2091 = vmatmul.mubr.f32.gmra.mrb[0].mxu0 %v1926
    %v2092 = vpop.f32.mrb[0].mxu0
    %v2093 = vadd.f32 0.0, %v2092
    %v2094 = vpop.f32.mrb[0].mxu0
    %2095 = vmatprep.mubr.f32.mxu0 0.0
    %2096 = vmatmul.mubr.f32.gmra.mrb[0].mxu0 %v1929
    %v2097 = vpop.f32.mrb[0].mxu0
    %v2098 = vadd.f32 0.0, %v2097
    %v2099 = vpop.f32.mrb[0].mxu0
    %2100 = vmatprep.mubr.f32.mxu0 0.0
    %2101 = vmatmul.mubr.f32.gmra.mrb[0].mxu0 %v1932
    %v2102 = vpop.f32.mrb[0].mxu0
    %v2103 = vadd.f32 0.0, %v2102
    %v2104 = vpop.f32.mrb[0].mxu0
    %2105 = vdwg.mxu0
    %2106 = vmatprep.subr.mxu0 0.0
    %2107 = vmatpush1.msra.mxu0 %v2088
    %2108 = vmatprep.subr.mxu0 0.0
    %2109 = vmatpush1.msra.mxu0 %v2093
    %2110 = vmatprep.subr.mxu0 0.0
    %2111 = vmatpush1.msra.mxu0 %v2098
    %2112 = vmatprep.subr.mxu0 0.0
    %2113 = vmatpush1.msra.mxu0 %v2103
    %2114 = vmatprep.subr.mxu0 0.0
    %2115 = vmatpush1.msra.mxu0 0.0
    %2116 = vmatprep.subr.mxu0 0.0
    %2117 = vmatpush1.msra.mxu0 0.0
    %2118 = vmatprep.subr.mxu0 0.0
    %2119 = vmatpush1.msra.mxu0 0.0
    %2120 = vmatprep.subr.mxu0 0.0
    %2121 = vmatpush1.msra.mxu0 0.0
    %2122 = vmatprep.subr.mxu0 0.0
    %2123 = vmatpush1.msra.mxu0 0.0
    %2124 = vmatprep.subr.mxu0 0.0
    %2125 = vmatpush1.msra.mxu0 0.0
    %2126 = vmatprep.subr.mxu0 0.0
    %2127 = vmatpush1.msra.mxu0 0.0
    %2128 = vmatprep.subr.mxu0 0.0
    %2129 = vmatpush1.msra.mxu0 0.0
    %2130 = vmatprep.subr.mxu0 0.0
    %2131 = vmatpush1.msra.mxu0 0.0
    %2132 = vmatprep.subr.mxu0 0.0
    %2133 = vmatpush1.msra.mxu0 0.0
    %2134 = vmatprep.subr.mxu0 0.0
    %2135 = vmatpush1.msra.mxu0 0.0
    %2136 = vmatprep.subr.mxu0 0.0
    %2137 = vmatpush1.msra.mxu0 0.0
    %2138 = vmatprep.subr.mxu0 0.0
    %2139 = vmatpush1.msra.mxu0 0.0
    %2140 = vmatprep.subr.mxu0 0.0
    %2141 = vmatpush1.msra.mxu0 0.0
    %2142 = vmatprep.subr.mxu0 0.0
    %2143 = vmatpush1.msra.mxu0 0.0
    %2144 = vmatprep.subr.mxu0 0.0
    %2145 = vmatpush1.msra.mxu0 0.0
    %2146 = vmatprep.subr.mxu0 0.0
    %2147 = vmatpush1.msra.mxu0 0.0
    %2148 = vmatprep.subr.mxu0 0.0
    %2149 = vmatpush1.msra.mxu0 0.0
    %2150 = vmatprep.subr.mxu0 0.0
    %2151 = vmatpush1.msra.mxu0 0.0
    %2152 = vmatprep.subr.mxu0 0.0
    %2153 = vmatpush1.msra.mxu0 0.0
    %2154 = vmatprep.subr.mxu0 0.0
    %2155 = vmatpush1.msra.mxu0 0.0
    %2156 = vmatprep.subr.mxu0 0.0
    %2157 = vmatpush1.msra.mxu0 0.0
    %2158 = vmatprep.subr.mxu0 0.0
    %2159 = vmatpush1.msra.mxu0 0.0
    %2160 = vmatprep.subr.mxu0 0.0
    %2161 = vmatpush1.msra.mxu0 0.0
    %2162 = vmatprep.subr.mxu0 0.0
    %2163 = vmatpush1.msra.mxu0 0.0
    %2164 = vmatprep.subr.mxu0 0.0
    %2165 = vmatpush1.msra.mxu0 0.0
    %2166 = vmatprep.subr.mxu0 0.0
    %2167 = vmatpush1.msra.mxu0 0.0
    %2168 = vmatprep.subr.mxu0 0.0
    %2169 = vmatpush1.msra.mxu0 0.0
    %2170 = vmatprep.mubr.f32.mxu0 0.0
    %2171 = vmatmul.mubr.f32.gmra.mrb[0].mxu0 %v361
    %v2172 = vpop.f32.mrb[0].mxu0
    %v2173 = vadd.f32 0.0, %v2172
    %v2174 = vpop.f32.mrb[0].mxu0
    %2175 = vmatprep.mubr.f32.mxu0 0.0
    %2176 = vmatmul.mubr.f32.gmra.mrb[0].mxu0 %v364
    %v2177 = vpop.f32.mrb[0].mxu0
    %v2178 = vadd.f32 0.0, %v2177
    %v2179 = vpop.f32.mrb[0].mxu0
    %2180 = vmatprep.mubr.f32.mxu0 0.0
    %2181 = vmatmul.mubr.f32.gmra.mrb[0].mxu0 %v367
    %v2182 = vpop.f32.mrb[0].mxu0
    %v2183 = vadd.f32 0.0, %v2182
    %v2184 = vpop.f32.mrb[0].mxu0
    %2185 = vmatprep.mubr.f32.mxu0 0.0
    %2186 = vmatmul.mubr.f32.gmra.mrb[0].mxu0 %v370
    %v2187 = vpop.f32.mrb[0].mxu0
    %v2188 = vadd.f32 0.0, %v2187
    %v2189 = vpop.f32.mrb[0].mxu0
    %2190 = vdwg.mxu0
    %2191 = vmatprep.subr.mxu0 0.0
    %2192 = vmatpush1.msra.mxu0 %v2001
    %2193 = vmatprep.subr.mxu0 0.0
    %2194 = vmatpush1.msra.mxu0 %v2006
    %2195 = vmatprep.subr.mxu0 0.0
    %2196 = vmatpush1.msra.mxu0 %v2011
    %2197 = vmatprep.subr.mxu0 0.0
    %2198 = vmatpush1.msra.mxu0 %v2016
    %2199 = vmatprep.subr.mxu0 0.0
    %2200 = vmatpush1.msra.mxu0 0.0
    %2201 = vmatprep.subr.mxu0 0.0
    %2202 = vmatpush1.msra.mxu0 0.0
    %2203 = vmatprep.subr.mxu0 0.0
    %2204 = vmatpush1.msra.mxu0 0.0
    %2205 = vmatprep.subr.mxu0 0.0
    %2206 = vmatpush1.msra.mxu0 0.0
    %2207 = vmatprep.subr.mxu0 0.0
    %2208 = vmatpush1.msra.mxu0 0.0
    %2209 = vmatprep.subr.mxu0 0.0
    %2210 = vmatpush1.msra.mxu0 0.0
    %2211 = vmatprep.subr.mxu0 0.0
    %2212 = vmatpush1.msra.mxu0 0.0
    %2213 = vmatprep.subr.mxu0 0.0
    %2214 = vmatpush1.msra.mxu0 0.0
    %2215 = vmatprep.subr.mxu0 0.0
    %2216 = vmatpush1.msra.mxu0 0.0
    %2217 = vmatprep.subr.mxu0 0.0
    %2218 = vmatpush1.msra.mxu0 0.0
    %2219 = vmatprep.subr.mxu0 0.0
    %2220 = vmatpush1.msra.mxu0 0.0
    %2221 = vmatprep.subr.mxu0 0.0
    %2222 = vmatpush1.msra.mxu0 0.0
    %2223 = vmatprep.subr.mxu0 0.0
    %2224 = vmatpush1.msra.mxu0 0.0
    %2225 = vmatprep.subr.mxu0 0.0
    %2226 = vmatpush1.msra.mxu0 0.0
    %2227 = vmatprep.subr.mxu0 0.0
    %2228 = vmatpush1.msra.mxu0 0.0
    %2229 = vmatprep.subr.mxu0 0.0
    %2230 = vmatpush1.msra.mxu0 0.0
    %2231 = vmatprep.subr.mxu0 0.0
    %2232 = vmatpush1.msra.mxu0 0.0
    %2233 = vmatprep.subr.mxu0 0.0
    %2234 = vmatpush1.msra.mxu0 0.0
    %2235 = vmatprep.subr.mxu0 0.0
    %2236 = vmatpush1.msra.mxu0 0.0
    %2237 = vmatprep.subr.mxu0 0.0
    %2238 = vmatpush1.msra.mxu0 0.0
    %2239 = vmatprep.subr.mxu0 0.0
    %2240 = vmatpush1.msra.mxu0 0.0
    %2241 = vmatprep.subr.mxu0 0.0
    %2242 = vmatpush1.msra.mxu0 0.0
    %2243 = vmatprep.subr.mxu0 0.0
    %2244 = vmatpush1.msra.mxu0 0.0
    %2245 = vmatprep.subr.mxu0 0.0
    %2246 = vmatpush1.msra.mxu0 0.0
    %2247 = vmatprep.subr.mxu0 0.0
    %2248 = vmatpush1.msra.mxu0 0.0
    %2249 = vmatprep.subr.mxu0 0.0
    %2250 = vmatpush1.msra.mxu0 0.0
    %2251 = vmatprep.subr.mxu0 0.0
    %2252 = vmatpush1.msra.mxu0 0.0
    %2253 = vmatprep.subr.mxu0 0.0
    %2254 = vmatpush1.msra.mxu0 0.0
    %2255 = vmatprep.mubr.f32.mxu0 0.0
    %2256 = vmatmul.mubr.f32.gmra.mrb[0].mxu0 %v458
    %v2257 = vpop.f32.mrb[0].mxu0
    %v2258 = vadd.f32 %v2173, %v2257
    %v2259 = vpop.f32.mrb[0].mxu0
    %2260 = vmatprep.mubr.f32.mxu0 0.0
    %2261 = vmatmul.mubr.f32.gmra.mrb[0].mxu0 %v461
    %v2262 = vpop.f32.mrb[0].mxu0
    %v2263 = vadd.f32 %v2178, %v2262
    %v2264 = vpop.f32.mrb[0].mxu0
    %2265 = vmatprep.mubr.f32.mxu0 0.0
    %2266 = vmatmul.mubr.f32.gmra.mrb[0].mxu0 %v464
    %v2267 = vpop.f32.mrb[0].mxu0
    %v2268 = vadd.f32 %v2183, %v2267
    %v2269 = vpop.f32.mrb[0].mxu0
    %2270 = vmatprep.mubr.f32.mxu0 0.0
    %2271 = vmatmul.mubr.f32.gmra.mrb[0].mxu0 %v467
    %v2272 = vpop.f32.mrb[0].mxu0
    %v2273 = vadd.f32 %v2188, %v2272
    %v2274 = vpop.f32.mrb[0].mxu0
    %2275 = vdwg.mxu0
    %s2276 = scalar_lea.vmem %s6, 88
    %v2277 = vld [vmem:[%s2276] sm:$0xff]
    %2278 = vmatprep.subr.mxu0 0.0
    %2279 = vmatpush1.msra.mxu0 %v2277
    %2280 = vmatprep.subr.mxu0 0.0
    %2281 = vmatpush1.msra.mxu0 0.0
    %2282 = vmatprep.subr.mxu0 0.0
    %2283 = vmatpush1.msra.mxu0 0.0
    %2284 = vmatprep.subr.mxu0 0.0
    %2285 = vmatpush1.msra.mxu0 0.0
    %2286 = vmatprep.subr.mxu0 0.0
    %2287 = vmatpush1.msra.mxu0 0.0
    %2288 = vmatprep.subr.mxu0 0.0
    %2289 = vmatpush1.msra.mxu0 0.0
    %2290 = vmatprep.subr.mxu0 0.0
    %2291 = vmatpush1.msra.mxu0 0.0
    %2292 = vmatprep.subr.mxu0 0.0
    %2293 = vmatpush1.msra.mxu0 0.0
    %2294 = vmatprep.subr.mxu0 0.0
    %2295 = vmatpush1.msra.mxu0 0.0
    %2296 = vmatprep.subr.mxu0 0.0
    %2297 = vmatpush1.msra.mxu0 0.0
    %2298 = vmatprep.subr.mxu0 0.0
    %2299 = vmatpush1.msra.mxu0 0.0
    %2300 = vmatprep.subr.mxu0 0.0
    %2301 = vmatpush1.msra.mxu0 0.0
    %2302 = vmatprep.subr.mxu0 0.0
    %2303 = vmatpush1.msra.mxu0 0.0
    %2304 = vmatprep.subr.mxu0 0.0
    %2305 = vmatpush1.msra.mxu0 0.0
    %2306 = vmatprep.subr.mxu0 0.0
    %2307 = vmatpush1.msra.mxu0 0.0
    %2308 = vmatprep.subr.mxu0 0.0
    %2309 = vmatpush1.msra.mxu0 0.0
    %2310 = vmatprep.subr.mxu0 0.0
    %2311 = vmatpush1.msra.mxu0 0.0
    %2312 = vmatprep.subr.mxu0 0.0
    %2313 = vmatpush1.msra.mxu0 0.0
    %2314 = vmatprep.subr.mxu0 0.0
    %2315 = vmatpush1.msra.mxu0 0.0
    %2316 = vmatprep.subr.mxu0 0.0
    %2317 = vmatpush1.msra.mxu0 0.0
    %2318 = vmatprep.subr.mxu0 0.0
    %2319 = vmatpush1.msra.mxu0 0.0
    %2320 = vmatprep.subr.mxu0 0.0
    %2321 = vmatpush1.msra.mxu0 0.0
    %2322 = vmatprep.subr.mxu0 0.0
    %2323 = vmatpush1.msra.mxu0 0.0
    %2324 = vmatprep.subr.mxu0 0.0
    %2325 = vmatpush1.msra.mxu0 0.0
    %2326 = vmatprep.subr.mxu0 0.0
    %2327 = vmatpush1.msra.mxu0 0.0
    %2328 = vmatprep.subr.mxu0 0.0
    %2329 = vmatpush1.msra.mxu0 0.0
    %2330 = vmatprep.subr.mxu0 0.0
    %2331 = vmatpush1.msra.mxu0 0.0
    %2332 = vmatprep.subr.mxu0 0.0
    %2333 = vmatpush1.msra.mxu0 0.0
    %2334 = vmatprep.subr.mxu0 0.0
    %2335 = vmatpush1.msra.mxu0 0.0
    %2336 = vmatprep.subr.mxu0 0.0
    %2337 = vmatpush1.msra.mxu0 0.0
    %2338 = vmatprep.subr.mxu0 0.0
    %2339 = vmatpush1.msra.mxu0 0.0
    %2340 = vmatprep.subr.mxu0 0.0
    %2341 = vmatpush1.msra.mxu0 0.0
    %2342 = vmatprep.mubr.f32.mxu0 0.0
    %2343 = vmatmul.mubr.f32.gmra.mrb[0].mxu0 %v1923
    %v2344 = vpop.f32.mrb[0].mxu0
    %v2345 = vadd.f32 0.0, %v2344
    %v2346 = vpop.f32.mrb[0].mxu0
    %2347 = vmatprep.mubr.f32.mxu0 0.0
    %2348 = vmatmul.mubr.f32.gmra.mrb[0].mxu0 %v1926
    %v2349 = vpop.f32.mrb[0].mxu0
    %v2350 = vadd.f32 0.0, %v2349
    %v2351 = vpop.f32.mrb[0].mxu0
    %2352 = vmatprep.mubr.f32.mxu0 0.0
    %2353 = vmatmul.mubr.f32.gmra.mrb[0].mxu0 %v1929
    %v2354 = vpop.f32.mrb[0].mxu0
    %v2355 = vadd.f32 0.0, %v2354
    %v2356 = vpop.f32.mrb[0].mxu0
    %2357 = vmatprep.mubr.f32.mxu0 0.0
    %2358 = vmatmul.mubr.f32.gmra.mrb[0].mxu0 %v1932
    %v2359 = vpop.f32.mrb[0].mxu0
    %v2360 = vadd.f32 0.0, %v2359
    %v2361 = vpop.f32.mrb[0].mxu0
    %2362 = vdwg.mxu0
    %2363 = vmatprep.subr.mxu0 0.0
    %2364 = vmatpush1.msra.mxu0 %v2345
    %2365 = vmatprep.subr.mxu0 0.0
    %2366 = vmatpush1.msra.mxu0 %v2350
    %2367 = vmatprep.subr.mxu0 0.0
    %2368 = vmatpush1.msra.mxu0 %v2355
    %2369 = vmatprep.subr.mxu0 0.0
    %2370 = vmatpush1.msra.mxu0 %v2360
    %2371 = vmatprep.subr.mxu0 0.0
    %2372 = vmatpush1.msra.mxu0 0.0
    %2373 = vmatprep.subr.mxu0 0.0
    %2374 = vmatpush1.msra.mxu0 0.0
    %2375 = vmatprep.subr.mxu0 0.0
    %2376 = vmatpush1.msra.mxu0 0.0
    %2377 = vmatprep.subr.mxu0 0.0
    %2378 = vmatpush1.msra.mxu0 0.0
    %2379 = vmatprep.subr.mxu0 0.0
    %2380 = vmatpush1.msra.mxu0 0.0
    %2381 = vmatprep.subr.mxu0 0.0
    %2382 = vmatpush1.msra.mxu0 0.0
    %2383 = vmatprep.subr.mxu0 0.0
    %2384 = vmatpush1.msra.mxu0 0.0
    %2385 = vmatprep.subr.mxu0 0.0
    %2386 = vmatpush1.msra.mxu0 0.0
    %2387 = vmatprep.subr.mxu0 0.0
    %2388 = vmatpush1.msra.mxu0 0.0
    %2389 = vmatprep.subr.mxu0 0.0
    %2390 = vmatpush1.msra.mxu0 0.0
    %2391 = vmatprep.subr.mxu0 0.0
    %2392 = vmatpush1.msra.mxu0 0.0
    %2393 = vmatprep.subr.mxu0 0.0
    %2394 = vmatpush1.msra.mxu0 0.0
    %2395 = vmatprep.subr.mxu0 0.0
    %2396 = vmatpush1.msra.mxu0 0.0
    %2397 = vmatprep.subr.mxu0 0.0
    %2398 = vmatpush1.msra.mxu0 0.0
    %2399 = vmatprep.subr.mxu0 0.0
    %2400 = vmatpush1.msra.mxu0 0.0
    %2401 = vmatprep.subr.mxu0 0.0
    %2402 = vmatpush1.msra.mxu0 0.0
    %2403 = vmatprep.subr.mxu0 0.0
    %2404 = vmatpush1.msra.mxu0 0.0
    %2405 = vmatprep.subr.mxu0 0.0
    %2406 = vmatpush1.msra.mxu0 0.0
    %2407 = vmatprep.subr.mxu0 0.0
    %2408 = vmatpush1.msra.mxu0 0.0
    %2409 = vmatprep.subr.mxu0 0.0
    %2410 = vmatpush1.msra.mxu0 0.0
    %2411 = vmatprep.subr.mxu0 0.0
    %2412 = vmatpush1.msra.mxu0 0.0
    %2413 = vmatprep.subr.mxu0 0.0
    %2414 = vmatpush1.msra.mxu0 0.0
    %2415 = vmatprep.subr.mxu0 0.0
    %2416 = vmatpush1.msra.mxu0 0.0
    %2417 = vmatprep.subr.mxu0 0.0
    %2418 = vmatpush1.msra.mxu0 0.0
    %2419 = vmatprep.subr.mxu0 0.0
    %2420 = vmatpush1.msra.mxu0 0.0
    %2421 = vmatprep.subr.mxu0 0.0
    %2422 = vmatpush1.msra.mxu0 0.0
    %2423 = vmatprep.subr.mxu0 0.0
    %2424 = vmatpush1.msra.mxu0 0.0
    %2425 = vmatprep.subr.mxu0 0.0
    %2426 = vmatpush1.msra.mxu0 0.0
    %2427 = vmatprep.mubr.f32.mxu0 0.0
    %2428 = vmatmul.mubr.f32.gmra.mrb[0].mxu0 %v647
    %v2429 = vpop.f32.mrb[0].mxu0
    %v2430 = vadd.f32 0.0, %v2429
    %v2431 = vpop.f32.mrb[0].mxu0
    %2432 = vmatprep.mubr.f32.mxu0 0.0
    %2433 = vmatmul.mubr.f32.gmra.mrb[0].mxu0 %v650
    %v2434 = vpop.f32.mrb[0].mxu0
    %v2435 = vadd.f32 0.0, %v2434
    %v2436 = vpop.f32.mrb[0].mxu0
    %2437 = vmatprep.mubr.f32.mxu0 0.0
    %2438 = vmatmul.mubr.f32.gmra.mrb[0].mxu0 %v653
    %v2439 = vpop.f32.mrb[0].mxu0
    %v2440 = vadd.f32 0.0, %v2439
    %v2441 = vpop.f32.mrb[0].mxu0
    %2442 = vmatprep.mubr.f32.mxu0 0.0
    %2443 = vmatmul.mubr.f32.gmra.mrb[0].mxu0 %v656
    %v2444 = vpop.f32.mrb[0].mxu0
    %v2445 = vadd.f32 0.0, %v2444
    %v2446 = vpop.f32.mrb[0].mxu0
    %2447 = vdwg.mxu0
    %v2448 = vadd.f32 %v2258, %v2430
    %v2449 = vadd.f32 %v2263, %v2435
    %v2450 = vadd.f32 %v2268, %v2440
    %v2451 = vadd.f32 %v2273, %v2445
    %s2452 = scalar_lea.vmem %s6, 96
    %v2453 = vld [vmem:[%s2452] sm:$0xff]
    %2454 = vmatprep.subr.mxu0 0.0
    %2455 = vmatpush1.msra.mxu0 %v2453
    %2456 = vmatprep.subr.mxu0 0.0
    %2457 = vmatpush1.msra.mxu0 0.0
    %2458 = vmatprep.subr.mxu0 0.0
    %2459 = vmatpush1.msra.mxu0 0.0
    %2460 = vmatprep.subr.mxu0 0.0
    %2461 = vmatpush1.msra.mxu0 0.0
    %2462 = vmatprep.subr.mxu0 0.0
    %2463 = vmatpush1.msra.mxu0 0.0
    %2464 = vmatprep.subr.mxu0 0.0
    %2465 = vmatpush1.msra.mxu0 0.0
    %2466 = vmatprep.subr.mxu0 0.0
    %2467 = vmatpush1.msra.mxu0 0.0
    %2468 = vmatprep.subr.mxu0 0.0
    %2469 = vmatpush1.msra.mxu0 0.0
    %2470 = vmatprep.subr.mxu0 0.0
    %2471 = vmatpush1.msra.mxu0 0.0
    %2472 = vmatprep.subr.mxu0 0.0
    %2473 = vmatpush1.msra.mxu0 0.0
    %2474 = vmatprep.subr.mxu0 0.0
    %2475 = vmatpush1.msra.mxu0 0.0
    %2476 = vmatprep.subr.mxu0 0.0
    %2477 = vmatpush1.msra.mxu0 0.0
    %2478 = vmatprep.subr.mxu0 0.0
    %2479 = vmatpush1.msra.mxu0 0.0
    %2480 = vmatprep.subr.mxu0 0.0
    %2481 = vmatpush1.msra.mxu0 0.0
    %2482 = vmatprep.subr.mxu0 0.0
    %2483 = vmatpush1.msra.mxu0 0.0
    %2484 = vmatprep.subr.mxu0 0.0
    %2485 = vmatpush1.msra.mxu0 0.0
    %2486 = vmatprep.subr.mxu0 0.0
    %2487 = vmatpush1.msra.mxu0 0.0
    %2488 = vmatprep.subr.mxu0 0.0
    %2489 = vmatpush1.msra.mxu0 0.0
    %2490 = vmatprep.subr.mxu0 0.0
    %2491 = vmatpush1.msra.mxu0 0.0
    %2492 = vmatprep.subr.mxu0 0.0
    %2493 = vmatpush1.msra.mxu0 0.0
    %2494 = vmatprep.subr.mxu0 0.0
    %2495 = vmatpush1.msra.mxu0 0.0
    %2496 = vmatprep.subr.mxu0 0.0
    %2497 = vmatpush1.msra.mxu0 0.0
    %2498 = vmatprep.subr.mxu0 0.0
    %2499 = vmatpush1.msra.mxu0 0.0
    %2500 = vmatprep.subr.mxu0 0.0
    %2501 = vmatpush1.msra.mxu0 0.0
    %2502 = vmatprep.subr.mxu0 0.0
    %2503 = vmatpush1.msra.mxu0 0.0
    %2504 = vmatprep.subr.mxu0 0.0
    %2505 = vmatpush1.msra.mxu0 0.0
    %2506 = vmatprep.subr.mxu0 0.0
    %2507 = vmatpush1.msra.mxu0 0.0
    %2508 = vmatprep.subr.mxu0 0.0
    %2509 = vmatpush1.msra.mxu0 0.0
    %2510 = vmatprep.subr.mxu0 0.0
    %2511 = vmatpush1.msra.mxu0 0.0
    %2512 = vmatprep.subr.mxu0 0.0
    %2513 = vmatpush1.msra.mxu0 0.0
    %2514 = vmatprep.subr.mxu0 0.0
    %2515 = vmatpush1.msra.mxu0 0.0
    %2516 = vmatprep.subr.mxu0 0.0
    %2517 = vmatpush1.msra.mxu0 0.0
    %2518 = vmatprep.mubr.f32.mxu0 0.0
    %2519 = vmatmul.mubr.f32.gmra.mrb[0].mxu0 %v1923
    %v2520 = vpop.f32.mrb[0].mxu0
    %v2521 = vadd.f32 0.0, %v2520
    %v2522 = vpop.f32.mrb[0].mxu0
    %2523 = vmatprep.mubr.f32.mxu0 0.0
    %2524 = vmatmul.mubr.f32.gmra.mrb[0].mxu0 %v1926
    %v2525 = vpop.f32.mrb[0].mxu0
    %v2526 = vadd.f32 0.0, %v2525
    %v2527 = vpop.f32.mrb[0].mxu0
    %2528 = vmatprep.mubr.f32.mxu0 0.0
    %2529 = vmatmul.mubr.f32.gmra.mrb[0].mxu0 %v1929
    %v2530 = vpop.f32.mrb[0].mxu0
    %v2531 = vadd.f32 0.0, %v2530
    %v2532 = vpop.f32.mrb[0].mxu0
    %2533 = vmatprep.mubr.f32.mxu0 0.0
    %2534 = vmatmul.mubr.f32.gmra.mrb[0].mxu0 %v1932
    %v2535 = vpop.f32.mrb[0].mxu0
    %v2536 = vadd.f32 0.0, %v2535
    %v2537 = vpop.f32.mrb[0].mxu0
    %2538 = vdwg.mxu0
    %2539 = vmatprep.subr.mxu0 0.0
    %2540 = vmatpush1.msra.mxu0 %v2521
    %2541 = vmatprep.subr.mxu0 0.0
    %2542 = vmatpush1.msra.mxu0 %v2526
    %2543 = vmatprep.subr.mxu0 0.0
    %2544 = vmatpush1.msra.mxu0 %v2531
    %2545 = vmatprep.subr.mxu0 0.0
    %2546 = vmatpush1.msra.mxu0 %v2536
    %2547 = vmatprep.subr.mxu0 0.0
    %2548 = vmatpush1.msra.mxu0 0.0
    %2549 = vmatprep.subr.mxu0 0.0
    %2550 = vmatpush1.msra.mxu0 0.0
    %2551 = vmatprep.subr.mxu0 0.0
    %2552 = vmatpush1.msra.mxu0 0.0
    %2553 = vmatprep.subr.mxu0 0.0
    %2554 = vmatpush1.msra.mxu0 0.0
    %2555 = vmatprep.subr.mxu0 0.0
    %2556 = vmatpush1.msra.mxu0 0.0
    %2557 = vmatprep.subr.mxu0 0.0
    %2558 = vmatpush1.msra.mxu0 0.0
    %2559 = vmatprep.subr.mxu0 0.0
    %2560 = vmatpush1.msra.mxu0 0.0
    %2561 = vmatprep.subr.mxu0 0.0
    %2562 = vmatpush1.msra.mxu0 0.0
    %2563 = vmatprep.subr.mxu0 0.0
    %2564 = vmatpush1.msra.mxu0 0.0
    %2565 = vmatprep.subr.mxu0 0.0
    %2566 = vmatpush1.msra.mxu0 0.0
    %2567 = vmatprep.subr.mxu0 0.0
    %2568 = vmatpush1.msra.mxu0 0.0
    %2569 = vmatprep.subr.mxu0 0.0
    %2570 = vmatpush1.msra.mxu0 0.0
    %2571 = vmatprep.subr.mxu0 0.0
    %2572 = vmatpush1.msra.mxu0 0.0
    %2573 = vmatprep.subr.mxu0 0.0
    %2574 = vmatpush1.msra.mxu0 0.0
    %2575 = vmatprep.subr.mxu0 0.0
    %2576 = vmatpush1.msra.mxu0 0.0
    %2577 = vmatprep.subr.mxu0 0.0
    %2578 = vmatpush1.msra.mxu0 0.0
    %2579 = vmatprep.subr.mxu0 0.0
    %2580 = vmatpush1.msra.mxu0 0.0
    %2581 = vmatprep.subr.mxu0 0.0
    %2582 = vmatpush1.msra.mxu0 0.0
    %2583 = vmatprep.subr.mxu0 0.0
    %2584 = vmatpush1.msra.mxu0 0.0
    %2585 = vmatprep.subr.mxu0 0.0
    %2586 = vmatpush1.msra.mxu0 0.0
    %2587 = vmatprep.subr.mxu0 0.0
    %2588 = vmatpush1.msra.mxu0 0.0
    %2589 = vmatprep.subr.mxu0 0.0
    %2590 = vmatpush1.msra.mxu0 0.0
    %2591 = vmatprep.subr.mxu0 0.0
    %2592 = vmatpush1.msra.mxu0 0.0
    %2593 = vmatprep.subr.mxu0 0.0
    %2594 = vmatpush1.msra.mxu0 0.0
    %2595 = vmatprep.subr.mxu0 0.0
    %2596 = vmatpush1.msra.mxu0 0.0
    %2597 = vmatprep.subr.mxu0 0.0
    %2598 = vmatpush1.msra.mxu0 0.0
    %2599 = vmatprep.subr.mxu0 0.0
    %2600 = vmatpush1.msra.mxu0 0.0
    %2601 = vmatprep.subr.mxu0 0.0
    %2602 = vmatpush1.msra.mxu0 0.0
    %2603 = vmatprep.mubr.f32.mxu0 0.0
    %2604 = vmatmul.mubr.f32.gmra.mrb[0].mxu0 %v840
    %v2605 = vpop.f32.mrb[0].mxu0
    %v2606 = vadd.f32 0.0, %v2605
    %v2607 = vpop.f32.mrb[0].mxu0
    %2608 = vmatprep.mubr.f32.mxu0 0.0
    %2609 = vmatmul.mubr.f32.gmra.mrb[0].mxu0 %v843
    %v2610 = vpop.f32.mrb[0].mxu0
    %v2611 = vadd.f32 0.0, %v2610
    %v2612 = vpop.f32.mrb[0].mxu0
    %2613 = vmatprep.mubr.f32.mxu0 0.0
    %2614 = vmatmul.mubr.f32.gmra.mrb[0].mxu0 %v846
    %v2615 = vpop.f32.mrb[0].mxu0
    %v2616 = vadd.f32 0.0, %v2615
    %v2617 = vpop.f32.mrb[0].mxu0
    %2618 = vmatprep.mubr.f32.mxu0 0.0
    %2619 = vmatmul.mubr.f32.gmra.mrb[0].mxu0 %v849
    %v2620 = vpop.f32.mrb[0].mxu0
    %v2621 = vadd.f32 0.0, %v2620
    %v2622 = vpop.f32.mrb[0].mxu0
    %2623 = vdwg.mxu0
    %v2624 = vadd.f32 %v2448, %v2606
    %v2625 = vadd.f32 %v2449, %v2611
    %v2626 = vadd.f32 %v2450, %v2616
    %v2627 = vadd.f32 %v2451, %v2621
    %s2628 = scalar_lea.vmem %s6, 104
    %v2629 = vld [vmem:[%s2628] sm:$0xff]
    %2630 = vmatprep.subr.mxu0 0.0
    %2631 = vmatpush1.msra.mxu0 %v2629
    %2632 = vmatprep.subr.mxu0 0.0
    %2633 = vmatpush1.msra.mxu0 0.0
    %2634 = vmatprep.subr.mxu0 0.0
    %2635 = vmatpush1.msra.mxu0 0.0
    %2636 = vmatprep.subr.mxu0 0.0
    %2637 = vmatpush1.msra.mxu0 0.0
    %2638 = vmatprep.subr.mxu0 0.0
    %2639 = vmatpush1.msra.mxu0 0.0
    %2640 = vmatprep.subr.mxu0 0.0
    %2641 = vmatpush1.msra.mxu0 0.0
    %2642 = vmatprep.subr.mxu0 0.0
    %2643 = vmatpush1.msra.mxu0 0.0
    %2644 = vmatprep.subr.mxu0 0.0
    %2645 = vmatpush1.msra.mxu0 0.0
    %2646 = vmatprep.subr.mxu0 0.0
    %2647 = vmatpush1.msra.mxu0 0.0
    %2648 = vmatprep.subr.mxu0 0.0
    %2649 = vmatpush1.msra.mxu0 0.0
    %2650 = vmatprep.subr.mxu0 0.0
    %2651 = vmatpush1.msra.mxu0 0.0
    %2652 = vmatprep.subr.mxu0 0.0
    %2653 = vmatpush1.msra.mxu0 0.0
    %2654 = vmatprep.subr.mxu0 0.0
    %2655 = vmatpush1.msra.mxu0 0.0
    %2656 = vmatprep.subr.mxu0 0.0
    %2657 = vmatpush1.msra.mxu0 0.0
    %2658 = vmatprep.subr.mxu0 0.0
    %2659 = vmatpush1.msra.mxu0 0.0
    %2660 = vmatprep.subr.mxu0 0.0
    %2661 = vmatpush1.msra.mxu0 0.0
    %2662 = vmatprep.subr.mxu0 0.0
    %2663 = vmatpush1.msra.mxu0 0.0
    %2664 = vmatprep.subr.mxu0 0.0
    %2665 = vmatpush1.msra.mxu0 0.0
    %2666 = vmatprep.subr.mxu0 0.0
    %2667 = vmatpush1.msra.mxu0 0.0
    %2668 = vmatprep.subr.mxu0 0.0
    %2669 = vmatpush1.msra.mxu0 0.0
    %2670 = vmatprep.subr.mxu0 0.0
    %2671 = vmatpush1.msra.mxu0 0.0
    %2672 = vmatprep.subr.mxu0 0.0
    %2673 = vmatpush1.msra.mxu0 0.0
    %2674 = vmatprep.subr.mxu0 0.0
    %2675 = vmatpush1.msra.mxu0 0.0
    %2676 = vmatprep.subr.mxu0 0.0
    %2677 = vmatpush1.msra.mxu0 0.0
    %2678 = vmatprep.subr.mxu0 0.0
    %2679 = vmatpush1.msra.mxu0 0.0
    %2680 = vmatprep.subr.mxu0 0.0
    %2681 = vmatpush1.msra.mxu0 0.0
    %2682 = vmatprep.subr.mxu0 0.0
    %2683 = vmatpush1.msra.mxu0 0.0
    %2684 = vmatprep.subr.mxu0 0.0
    %2685 = vmatpush1.msra.mxu0 0.0
    %2686 = vmatprep.subr.mxu0 0.0
    %2687 = vmatpush1.msra.mxu0 0.0
    %2688 = vmatprep.subr.mxu0 0.0
    %2689 = vmatpush1.msra.mxu0 0.0
    %2690 = vmatprep.subr.mxu0 0.0
    %2691 = vmatpush1.msra.mxu0 0.0
    %2692 = vmatprep.subr.mxu0 0.0
    %2693 = vmatpush1.msra.mxu0 0.0
    %2694 = vmatprep.mubr.f32.mxu0 0.0
    %2695 = vmatmul.mubr.f32.gmra.mrb[0].mxu0 %v1923
    %v2696 = vpop.f32.mrb[0].mxu0
    %v2697 = vadd.f32 0.0, %v2696
    %v2698 = vpop.f32.mrb[0].mxu0
    %2699 = vmatprep.mubr.f32.mxu0 0.0
    %2700 = vmatmul.mubr.f32.gmra.mrb[0].mxu0 %v1926
    %v2701 = vpop.f32.mrb[0].mxu0
    %v2702 = vadd.f32 0.0, %v2701
    %v2703 = vpop.f32.mrb[0].mxu0
    %2704 = vmatprep.mubr.f32.mxu0 0.0
    %2705 = vmatmul.mubr.f32.gmra.mrb[0].mxu0 %v1929
    %v2706 = vpop.f32.mrb[0].mxu0
    %v2707 = vadd.f32 0.0, %v2706
    %v2708 = vpop.f32.mrb[0].mxu0
    %2709 = vmatprep.mubr.f32.mxu0 0.0
    %2710 = vmatmul.mubr.f32.gmra.mrb[0].mxu0 %v1932
    %v2711 = vpop.f32.mrb[0].mxu0
    %v2712 = vadd.f32 0.0, %v2711
    %v2713 = vpop.f32.mrb[0].mxu0
    %2714 = vdwg.mxu0
    %2715 = vmatprep.subr.mxu0 0.0
    %2716 = vmatpush1.msra.mxu0 %v2697
    %2717 = vmatprep.subr.mxu0 0.0
    %2718 = vmatpush1.msra.mxu0 %v2702
    %2719 = vmatprep.subr.mxu0 0.0
    %2720 = vmatpush1.msra.mxu0 %v2707
    %2721 = vmatprep.subr.mxu0 0.0
    %2722 = vmatpush1.msra.mxu0 %v2712
    %2723 = vmatprep.subr.mxu0 0.0
    %2724 = vmatpush1.msra.mxu0 0.0
    %2725 = vmatprep.subr.mxu0 0.0
    %2726 = vmatpush1.msra.mxu0 0.0
    %2727 = vmatprep.subr.mxu0 0.0
    %2728 = vmatpush1.msra.mxu0 0.0
    %2729 = vmatprep.subr.mxu0 0.0
    %2730 = vmatpush1.msra.mxu0 0.0
    %2731 = vmatprep.subr.mxu0 0.0
    %2732 = vmatpush1.msra.mxu0 0.0
    %2733 = vmatprep.subr.mxu0 0.0
    %2734 = vmatpush1.msra.mxu0 0.0
    %2735 = vmatprep.subr.mxu0 0.0
    %2736 = vmatpush1.msra.mxu0 0.0
    %2737 = vmatprep.subr.mxu0 0.0
    %2738 = vmatpush1.msra.mxu0 0.0
    %2739 = vmatprep.subr.mxu0 0.0
    %2740 = vmatpush1.msra.mxu0 0.0
    %2741 = vmatprep.subr.mxu0 0.0
    %2742 = vmatpush1.msra.mxu0 0.0
    %2743 = vmatprep.subr.mxu0 0.0
    %2744 = vmatpush1.msra.mxu0 0.0
    %2745 = vmatprep.subr.mxu0 0.0
    %2746 = vmatpush1.msra.mxu0 0.0
    %2747 = vmatprep.subr.mxu0 0.0
    %2748 = vmatpush1.msra.mxu0 0.0
    %2749 = vmatprep.subr.mxu0 0.0
    %2750 = vmatpush1.msra.mxu0 0.0
    %2751 = vmatprep.subr.mxu0 0.0
    %2752 = vmatpush1.msra.mxu0 0.0
    %2753 = vmatprep.subr.mxu0 0.0
    %2754 = vmatpush1.msra.mxu0 0.0
    %2755 = vmatprep.subr.mxu0 0.0
    %2756 = vmatpush1.msra.mxu0 0.0
    %2757 = vmatprep.subr.mxu0 0.0
    %2758 = vmatpush1.msra.mxu0 0.0
    %2759 = vmatprep.subr.mxu0 0.0
    %2760 = vmatpush1.msra.mxu0 0.0
    %2761 = vmatprep.subr.mxu0 0.0
    %2762 = vmatpush1.msra.mxu0 0.0
    %2763 = vmatprep.subr.mxu0 0.0
    %2764 = vmatpush1.msra.mxu0 0.0
    %2765 = vmatprep.subr.mxu0 0.0
    %2766 = vmatpush1.msra.mxu0 0.0
    %2767 = vmatprep.subr.mxu0 0.0
    %2768 = vmatpush1.msra.mxu0 0.0
    %2769 = vmatprep.subr.mxu0 0.0
    %2770 = vmatpush1.msra.mxu0 0.0
    %2771 = vmatprep.subr.mxu0 0.0
    %2772 = vmatpush1.msra.mxu0 0.0
    %2773 = vmatprep.subr.mxu0 0.0
    %2774 = vmatpush1.msra.mxu0 0.0
    %2775 = vmatprep.subr.mxu0 0.0
    %2776 = vmatpush1.msra.mxu0 0.0
    %2777 = vmatprep.subr.mxu0 0.0
    %2778 = vmatpush1.msra.mxu0 0.0
    %2779 = vmatprep.mubr.f32.mxu0 0.0
    %2780 = vmatmul.mubr.f32.gmra.mrb[0].mxu0 %v1033
    %v2781 = vpop.f32.mrb[0].mxu0
    %v2782 = vadd.f32 0.0, %v2781
    %v2783 = vpop.f32.mrb[0].mxu0
    %2784 = vmatprep.mubr.f32.mxu0 0.0
    %2785 = vmatmul.mubr.f32.gmra.mrb[0].mxu0 %v1036
    %v2786 = vpop.f32.mrb[0].mxu0
    %v2787 = vadd.f32 0.0, %v2786
    %v2788 = vpop.f32.mrb[0].mxu0
    %2789 = vmatprep.mubr.f32.mxu0 0.0
    %2790 = vmatmul.mubr.f32.gmra.mrb[0].mxu0 %v1039
    %v2791 = vpop.f32.mrb[0].mxu0
    %v2792 = vadd.f32 0.0, %v2791
    %v2793 = vpop.f32.mrb[0].mxu0
    %2794 = vmatprep.mubr.f32.mxu0 0.0
    %2795 = vmatmul.mubr.f32.gmra.mrb[0].mxu0 %v1042
    %v2796 = vpop.f32.mrb[0].mxu0
    %v2797 = vadd.f32 0.0, %v2796
    %v2798 = vpop.f32.mrb[0].mxu0
    %2799 = vdwg.mxu0
    %v2800 = vadd.f32 %v2624, %v2782
    %v2801 = vadd.f32 %v2625, %v2787
    %v2802 = vadd.f32 %v2626, %v2792
    %v2803 = vadd.f32 %v2627, %v2797
    %s2804 = scalar_lea.vmem %s6, 112
    %v2805 = vld [vmem:[%s2804] sm:$0xff]
    %2806 = vmatprep.subr.mxu0 0.0
    %2807 = vmatpush1.msra.mxu0 %v2805
    %2808 = vmatprep.subr.mxu0 0.0
    %2809 = vmatpush1.msra.mxu0 0.0
    %2810 = vmatprep.subr.mxu0 0.0
    %2811 = vmatpush1.msra.mxu0 0.0
    %2812 = vmatprep.subr.mxu0 0.0
    %2813 = vmatpush1.msra.mxu0 0.0
    %2814 = vmatprep.subr.mxu0 0.0
    %2815 = vmatpush1.msra.mxu0 0.0
    %2816 = vmatprep.subr.mxu0 0.0
    %2817 = vmatpush1.msra.mxu0 0.0
    %2818 = vmatprep.subr.mxu0 0.0
    %2819 = vmatpush1.msra.mxu0 0.0
    %2820 = vmatprep.subr.mxu0 0.0
    %2821 = vmatpush1.msra.mxu0 0.0
    %2822 = vmatprep.subr.mxu0 0.0
    %2823 = vmatpush1.msra.mxu0 0.0
    %2824 = vmatprep.subr.mxu0 0.0
    %2825 = vmatpush1.msra.mxu0 0.0
    %2826 = vmatprep.subr.mxu0 0.0
    %2827 = vmatpush1.msra.mxu0 0.0
    %2828 = vmatprep.subr.mxu0 0.0
    %2829 = vmatpush1.msra.mxu0 0.0
    %2830 = vmatprep.subr.mxu0 0.0
    %2831 = vmatpush1.msra.mxu0 0.0
    %2832 = vmatprep.subr.mxu0 0.0
    %2833 = vmatpush1.msra.mxu0 0.0
    %2834 = vmatprep.subr.mxu0 0.0
    %2835 = vmatpush1.msra.mxu0 0.0
    %2836 = vmatprep.subr.mxu0 0.0
    %2837 = vmatpush1.msra.mxu0 0.0
    %2838 = vmatprep.subr.mxu0 0.0
    %2839 = vmatpush1.msra.mxu0 0.0
    %2840 = vmatprep.subr.mxu0 0.0
    %2841 = vmatpush1.msra.mxu0 0.0
    %2842 = vmatprep.subr.mxu0 0.0
    %2843 = vmatpush1.msra.mxu0 0.0
    %2844 = vmatprep.subr.mxu0 0.0
    %2845 = vmatpush1.msra.mxu0 0.0
    %2846 = vmatprep.subr.mxu0 0.0
    %2847 = vmatpush1.msra.mxu0 0.0
    %2848 = vmatprep.subr.mxu0 0.0
    %2849 = vmatpush1.msra.mxu0 0.0
    %2850 = vmatprep.subr.mxu0 0.0
    %2851 = vmatpush1.msra.mxu0 0.0
    %2852 = vmatprep.subr.mxu0 0.0
    %2853 = vmatpush1.msra.mxu0 0.0
    %2854 = vmatprep.subr.mxu0 0.0
    %2855 = vmatpush1.msra.mxu0 0.0
    %2856 = vmatprep.subr.mxu0 0.0
    %2857 = vmatpush1.msra.mxu0 0.0
    %2858 = vmatprep.subr.mxu0 0.0
    %2859 = vmatpush1.msra.mxu0 0.0
    %2860 = vmatprep.subr.mxu0 0.0
    %2861 = vmatpush1.msra.mxu0 0.0
    %2862 = vmatprep.subr.mxu0 0.0
    %2863 = vmatpush1.msra.mxu0 0.0
    %2864 = vmatprep.subr.mxu0 0.0
    %2865 = vmatpush1.msra.mxu0 0.0
    %2866 = vmatprep.subr.mxu0 0.0
    %2867 = vmatpush1.msra.mxu0 0.0
    %2868 = vmatprep.subr.mxu0 0.0
    %2869 = vmatpush1.msra.mxu0 0.0
    %2870 = vmatprep.mubr.f32.mxu0 0.0
    %2871 = vmatmul.mubr.f32.gmra.mrb[0].mxu0 %v1923
    %v2872 = vpop.f32.mrb[0].mxu0
    %v2873 = vadd.f32 0.0, %v2872
    %v2874 = vpop.f32.mrb[0].mxu0
    %2875 = vmatprep.mubr.f32.mxu0 0.0
    %2876 = vmatmul.mubr.f32.gmra.mrb[0].mxu0 %v1926
    %v2877 = vpop.f32.mrb[0].mxu0
    %v2878 = vadd.f32 0.0, %v2877
    %v2879 = vpop.f32.mrb[0].mxu0
    %2880 = vmatprep.mubr.f32.mxu0 0.0
    %2881 = vmatmul.mubr.f32.gmra.mrb[0].mxu0 %v1929
    %v2882 = vpop.f32.mrb[0].mxu0
    %v2883 = vadd.f32 0.0, %v2882
    %v2884 = vpop.f32.mrb[0].mxu0
    %2885 = vmatprep.mubr.f32.mxu0 0.0
    %2886 = vmatmul.mubr.f32.gmra.mrb[0].mxu0 %v1932
    %v2887 = vpop.f32.mrb[0].mxu0
    %v2888 = vadd.f32 0.0, %v2887
    %v2889 = vpop.f32.mrb[0].mxu0
    %2890 = vdwg.mxu0
    %2891 = vmatprep.subr.mxu0 0.0
    %2892 = vmatpush1.msra.mxu0 %v2873
    %2893 = vmatprep.subr.mxu0 0.0
    %2894 = vmatpush1.msra.mxu0 %v2878
    %2895 = vmatprep.subr.mxu0 0.0
    %2896 = vmatpush1.msra.mxu0 %v2883
    %2897 = vmatprep.subr.mxu0 0.0
    %2898 = vmatpush1.msra.mxu0 %v2888
    %2899 = vmatprep.subr.mxu0 0.0
    %2900 = vmatpush1.msra.mxu0 0.0
    %2901 = vmatprep.subr.mxu0 0.0
    %2902 = vmatpush1.msra.mxu0 0.0
    %2903 = vmatprep.subr.mxu0 0.0
    %2904 = vmatpush1.msra.mxu0 0.0
    %2905 = vmatprep.subr.mxu0 0.0
    %2906 = vmatpush1.msra.mxu0 0.0
    %2907 = vmatprep.subr.mxu0 0.0
    %2908 = vmatpush1.msra.mxu0 0.0
    %2909 = vmatprep.subr.mxu0 0.0
    %2910 = vmatpush1.msra.mxu0 0.0
    %2911 = vmatprep.subr.mxu0 0.0
    %2912 = vmatpush1.msra.mxu0 0.0
    %2913 = vmatprep.subr.mxu0 0.0
    %2914 = vmatpush1.msra.mxu0 0.0
    %2915 = vmatprep.subr.mxu0 0.0
    %2916 = vmatpush1.msra.mxu0 0.0
    %2917 = vmatprep.subr.mxu0 0.0
    %2918 = vmatpush1.msra.mxu0 0.0
    %2919 = vmatprep.subr.mxu0 0.0
    %2920 = vmatpush1.msra.mxu0 0.0
    %2921 = vmatprep.subr.mxu0 0.0
    %2922 = vmatpush1.msra.mxu0 0.0
    %2923 = vmatprep.subr.mxu0 0.0
    %2924 = vmatpush1.msra.mxu0 0.0
    %2925 = vmatprep.subr.mxu0 0.0
    %2926 = vmatpush1.msra.mxu0 0.0
    %2927 = vmatprep.subr.mxu0 0.0
    %2928 = vmatpush1.msra.mxu0 0.0
    %2929 = vmatprep.subr.mxu0 0.0
    %2930 = vmatpush1.msra.mxu0 0.0
    %2931 = vmatprep.subr.mxu0 0.0
    %2932 = vmatpush1.msra.mxu0 0.0
    %2933 = vmatprep.subr.mxu0 0.0
    %2934 = vmatpush1.msra.mxu0 0.0
    %2935 = vmatprep.subr.mxu0 0.0
    %2936 = vmatpush1.msra.mxu0 0.0
    %2937 = vmatprep.subr.mxu0 0.0
    %2938 = vmatpush1.msra.mxu0 0.0
    %2939 = vmatprep.subr.mxu0 0.0
    %2940 = vmatpush1.msra.mxu0 0.0
    %2941 = vmatprep.subr.mxu0 0.0
    %2942 = vmatpush1.msra.mxu0 0.0
    %2943 = vmatprep.subr.mxu0 0.0
    %2944 = vmatpush1.msra.mxu0 0.0
    %2945 = vmatprep.subr.mxu0 0.0
    %2946 = vmatpush1.msra.mxu0 0.0
    %2947 = vmatprep.subr.mxu0 0.0
    %2948 = vmatpush1.msra.mxu0 0.0
    %2949 = vmatprep.subr.mxu0 0.0
    %2950 = vmatpush1.msra.mxu0 0.0
    %2951 = vmatprep.subr.mxu0 0.0
    %2952 = vmatpush1.msra.mxu0 0.0
    %2953 = vmatprep.subr.mxu0 0.0
    %2954 = vmatpush1.msra.mxu0 0.0
    %2955 = vmatprep.mubr.f32.mxu0 0.0
    %2956 = vmatmul.mubr.f32.gmra.mrb[0].mxu0 %v1226
    %v2957 = vpop.f32.mrb[0].mxu0
    %v2958 = vadd.f32 0.0, %v2957
    %v2959 = vpop.f32.mrb[0].mxu0
    %2960 = vmatprep.mubr.f32.mxu0 0.0
    %2961 = vmatmul.mubr.f32.gmra.mrb[0].mxu0 %v1229
    %v2962 = vpop.f32.mrb[0].mxu0
    %v2963 = vadd.f32 0.0, %v2962
    %v2964 = vpop.f32.mrb[0].mxu0
    %2965 = vmatprep.mubr.f32.mxu0 0.0
    %2966 = vmatmul.mubr.f32.gmra.mrb[0].mxu0 %v1232
    %v2967 = vpop.f32.mrb[0].mxu0
    %v2968 = vadd.f32 0.0, %v2967
    %v2969 = vpop.f32.mrb[0].mxu0
    %2970 = vmatprep.mubr.f32.mxu0 0.0
    %2971 = vmatmul.mubr.f32.gmra.mrb[0].mxu0 %v1235
    %v2972 = vpop.f32.mrb[0].mxu0
    %v2973 = vadd.f32 0.0, %v2972
    %v2974 = vpop.f32.mrb[0].mxu0
    %2975 = vdwg.mxu0
    %v2976 = vadd.f32 %v2800, %v2958
    %v2977 = vadd.f32 %v2801, %v2963
    %v2978 = vadd.f32 %v2802, %v2968
    %v2979 = vadd.f32 %v2803, %v2973
    %s2980 = scalar_lea.vmem %s6, 120
    %v2981 = vld [vmem:[%s2980] sm:$0xff]
    %2982 = vmatprep.subr.mxu0 0.0
    %2983 = vmatpush1.msra.mxu0 %v2981
    %2984 = vmatprep.subr.mxu0 0.0
    %2985 = vmatpush1.msra.mxu0 0.0
    %2986 = vmatprep.subr.mxu0 0.0
    %2987 = vmatpush1.msra.mxu0 0.0
    %2988 = vmatprep.subr.mxu0 0.0
    %2989 = vmatpush1.msra.mxu0 0.0
    %2990 = vmatprep.subr.mxu0 0.0
    %2991 = vmatpush1.msra.mxu0 0.0
    %2992 = vmatprep.subr.mxu0 0.0
    %2993 = vmatpush1.msra.mxu0 0.0
    %2994 = vmatprep.subr.mxu0 0.0
    %2995 = vmatpush1.msra.mxu0 0.0
    %2996 = vmatprep.subr.mxu0 0.0
    %2997 = vmatpush1.msra.mxu0 0.0
    %2998 = vmatprep.subr.mxu0 0.0
    %2999 = vmatpush1.msra.mxu0 0.0
    %3000 = vmatprep.subr.mxu0 0.0
    %3001 = vmatpush1.msra.mxu0 0.0
    %3002 = vmatprep.subr.mxu0 0.0
    %3003 = vmatpush1.msra.mxu0 0.0
    %3004 = vmatprep.subr.mxu0 0.0
    %3005 = vmatpush1.msra.mxu0 0.0
    %3006 = vmatprep.subr.mxu0 0.0
    %3007 = vmatpush1.msra.mxu0 0.0
    %3008 = vmatprep.subr.mxu0 0.0
    %3009 = vmatpush1.msra.mxu0 0.0
    %3010 = vmatprep.subr.mxu0 0.0
    %3011 = vmatpush1.msra.mxu0 0.0
    %3012 = vmatprep.subr.mxu0 0.0
    %3013 = vmatpush1.msra.mxu0 0.0
    %3014 = vmatprep.subr.mxu0 0.0
    %3015 = vmatpush1.msra.mxu0 0.0
    %3016 = vmatprep.subr.mxu0 0.0
    %3017 = vmatpush1.msra.mxu0 0.0
    %3018 = vmatprep.subr.mxu0 0.0
    %3019 = vmatpush1.msra.mxu0 0.0
    %3020 = vmatprep.subr.mxu0 0.0
    %3021 = vmatpush1.msra.mxu0 0.0
    %3022 = vmatprep.subr.mxu0 0.0
    %3023 = vmatpush1.msra.mxu0 0.0
    %3024 = vmatprep.subr.mxu0 0.0
    %3025 = vmatpush1.msra.mxu0 0.0
    %3026 = vmatprep.subr.mxu0 0.0
    %3027 = vmatpush1.msra.mxu0 0.0
    %3028 = vmatprep.subr.mxu0 0.0
    %3029 = vmatpush1.msra.mxu0 0.0
    %3030 = vmatprep.subr.mxu0 0.0
    %3031 = vmatpush1.msra.mxu0 0.0
    %3032 = vmatprep.subr.mxu0 0.0
    %3033 = vmatpush1.msra.mxu0 0.0
    %3034 = vmatprep.subr.mxu0 0.0
    %3035 = vmatpush1.msra.mxu0 0.0
    %3036 = vmatprep.subr.mxu0 0.0
    %3037 = vmatpush1.msra.mxu0 0.0
    %3038 = vmatprep.subr.mxu0 0.0
    %3039 = vmatpush1.msra.mxu0 0.0
    %3040 = vmatprep.subr.mxu0 0.0
    %3041 = vmatpush1.msra.mxu0 0.0
    %3042 = vmatprep.subr.mxu0 0.0
    %3043 = vmatpush1.msra.mxu0 0.0
    %3044 = vmatprep.subr.mxu0 0.0
    %3045 = vmatpush1.msra.mxu0 0.0
    %3046 = vmatprep.mubr.f32.mxu0 0.0
    %3047 = vmatmul.mubr.f32.gmra.mrb[0].mxu0 %v1923
    %v3048 = vpop.f32.mrb[0].mxu0
    %v3049 = vadd.f32 0.0, %v3048
    %v3050 = vpop.f32.mrb[0].mxu0
    %3051 = vmatprep.mubr.f32.mxu0 0.0
    %3052 = vmatmul.mubr.f32.gmra.mrb[0].mxu0 %v1926
    %v3053 = vpop.f32.mrb[0].mxu0
    %v3054 = vadd.f32 0.0, %v3053
    %v3055 = vpop.f32.mrb[0].mxu0
    %3056 = vmatprep.mubr.f32.mxu0 0.0
    %3057 = vmatmul.mubr.f32.gmra.mrb[0].mxu0 %v1929
    %v3058 = vpop.f32.mrb[0].mxu0
    %v3059 = vadd.f32 0.0, %v3058
    %v3060 = vpop.f32.mrb[0].mxu0
    %3061 = vmatprep.mubr.f32.mxu0 0.0
    %3062 = vmatmul.mubr.f32.gmra.mrb[0].mxu0 %v1932
    %v3063 = vpop.f32.mrb[0].mxu0
    %v3064 = vadd.f32 0.0, %v3063
    %v3065 = vpop.f32.mrb[0].mxu0
    %3066 = vdwg.mxu0
    %3067 = vmatprep.subr.mxu0 0.0
    %3068 = vmatpush1.msra.mxu0 %v3049
    %3069 = vmatprep.subr.mxu0 0.0
    %3070 = vmatpush1.msra.mxu0 %v3054
    %3071 = vmatprep.subr.mxu0 0.0
    %3072 = vmatpush1.msra.mxu0 %v3059
    %3073 = vmatprep.subr.mxu0 0.0
    %3074 = vmatpush1.msra.mxu0 %v3064
    %3075 = vmatprep.subr.mxu0 0.0
    %3076 = vmatpush1.msra.mxu0 0.0
    %3077 = vmatprep.subr.mxu0 0.0
    %3078 = vmatpush1.msra.mxu0 0.0
    %3079 = vmatprep.subr.mxu0 0.0
    %3080 = vmatpush1.msra.mxu0 0.0
    %3081 = vmatprep.subr.mxu0 0.0
    %3082 = vmatpush1.msra.mxu0 0.0
    %3083 = vmatprep.subr.mxu0 0.0
    %3084 = vmatpush1.msra.mxu0 0.0
    %3085 = vmatprep.subr.mxu0 0.0
    %3086 = vmatpush1.msra.mxu0 0.0
    %3087 = vmatprep.subr.mxu0 0.0
    %3088 = vmatpush1.msra.mxu0 0.0
    %3089 = vmatprep.subr.mxu0 0.0
    %3090 = vmatpush1.msra.mxu0 0.0
    %3091 = vmatprep.subr.mxu0 0.0
    %3092 = vmatpush1.msra.mxu0 0.0
    %3093 = vmatprep.subr.mxu0 0.0
    %3094 = vmatpush1.msra.mxu0 0.0
    %3095 = vmatprep.subr.mxu0 0.0
    %3096 = vmatpush1.msra.mxu0 0.0
    %3097 = vmatprep.subr.mxu0 0.0
    %3098 = vmatpush1.msra.mxu0 0.0
    %3099 = vmatprep.subr.mxu0 0.0
    %3100 = vmatpush1.msra.mxu0 0.0
    %3101 = vmatprep.subr.mxu0 0.0
    %3102 = vmatpush1.msra.mxu0 0.0
    %3103 = vmatprep.subr.mxu0 0.0
    %3104 = vmatpush1.msra.mxu0 0.0
    %3105 = vmatprep.subr.mxu0 0.0
    %3106 = vmatpush1.msra.mxu0 0.0
    %3107 = vmatprep.subr.mxu0 0.0
    %3108 = vmatpush1.msra.mxu0 0.0
    %3109 = vmatprep.subr.mxu0 0.0
    %3110 = vmatpush1.msra.mxu0 0.0
    %3111 = vmatprep.subr.mxu0 0.0
    %3112 = vmatpush1.msra.mxu0 0.0
    %3113 = vmatprep.subr.mxu0 0.0
    %3114 = vmatpush1.msra.mxu0 0.0
    %3115 = vmatprep.subr.mxu0 0.0
    %3116 = vmatpush1.msra.mxu0 0.0
    %3117 = vmatprep.subr.mxu0 0.0
    %3118 = vmatpush1.msra.mxu0 0.0
    %3119 = vmatprep.subr.mxu0 0.0
    %3120 = vmatpush1.msra.mxu0 0.0
    %3121 = vmatprep.subr.mxu0 0.0
    %3122 = vmatpush1.msra.mxu0 0.0
    %3123 = vmatprep.subr.mxu0 0.0
    %3124 = vmatpush1.msra.mxu0 0.0
    %3125 = vmatprep.subr.mxu0 0.0
    %3126 = vmatpush1.msra.mxu0 0.0
    %3127 = vmatprep.subr.mxu0 0.0
    %3128 = vmatpush1.msra.mxu0 0.0
    %3129 = vmatprep.subr.mxu0 0.0
    %3130 = vmatpush1.msra.mxu0 0.0
    %3131 = vmatprep.mubr.f32.mxu0 0.0
    %3132 = vmatmul.mubr.f32.gmra.mrb[0].mxu0 %v1419
    %v3133 = vpop.f32.mrb[0].mxu0
    %v3134 = vadd.f32 0.0, %v3133
    %v3135 = vpop.f32.mrb[0].mxu0
    %3136 = vmatprep.mubr.f32.mxu0 0.0
    %3137 = vmatmul.mubr.f32.gmra.mrb[0].mxu0 %v1422
    %v3138 = vpop.f32.mrb[0].mxu0
    %v3139 = vadd.f32 0.0, %v3138
    %v3140 = vpop.f32.mrb[0].mxu0
    %3141 = vmatprep.mubr.f32.mxu0 0.0
    %3142 = vmatmul.mubr.f32.gmra.mrb[0].mxu0 %v1425
    %v3143 = vpop.f32.mrb[0].mxu0
    %v3144 = vadd.f32 0.0, %v3143
    %v3145 = vpop.f32.mrb[0].mxu0
    %3146 = vmatprep.mubr.f32.mxu0 0.0
    %3147 = vmatmul.mubr.f32.gmra.mrb[0].mxu0 %v1428
    %v3148 = vpop.f32.mrb[0].mxu0
    %v3149 = vadd.f32 0.0, %v3148
    %v3150 = vpop.f32.mrb[0].mxu0
    %3151 = vdwg.mxu0
    %v3152 = vadd.f32 %v2976, %v3134
    %v3153 = vadd.f32 %v2977, %v3139
    %v3154 = vadd.f32 %v2978, %v3144
    %v3155 = vadd.f32 %v2979, %v3149
    %s3156 = scalar_lea.vmem %s6, 128
    %v3157 = vld [vmem:[%s3156] sm:$0xff]
    %3158 = vmatprep.subr.mxu0 0.0
    %3159 = vmatpush1.msra.mxu0 %v3157
    %3160 = vmatprep.subr.mxu0 0.0
    %3161 = vmatpush1.msra.mxu0 0.0
    %3162 = vmatprep.subr.mxu0 0.0
    %3163 = vmatpush1.msra.mxu0 0.0
    %3164 = vmatprep.subr.mxu0 0.0
    %3165 = vmatpush1.msra.mxu0 0.0
    %3166 = vmatprep.subr.mxu0 0.0
    %3167 = vmatpush1.msra.mxu0 0.0
    %3168 = vmatprep.subr.mxu0 0.0
    %3169 = vmatpush1.msra.mxu0 0.0
    %3170 = vmatprep.subr.mxu0 0.0
    %3171 = vmatpush1.msra.mxu0 0.0
    %3172 = vmatprep.subr.mxu0 0.0
    %3173 = vmatpush1.msra.mxu0 0.0
    %3174 = vmatprep.subr.mxu0 0.0
    %3175 = vmatpush1.msra.mxu0 0.0
    %3176 = vmatprep.subr.mxu0 0.0
    %3177 = vmatpush1.msra.mxu0 0.0
    %3178 = vmatprep.subr.mxu0 0.0
    %3179 = vmatpush1.msra.mxu0 0.0
    %3180 = vmatprep.subr.mxu0 0.0
    %3181 = vmatpush1.msra.mxu0 0.0
    %3182 = vmatprep.subr.mxu0 0.0
    %3183 = vmatpush1.msra.mxu0 0.0
    %3184 = vmatprep.subr.mxu0 0.0
    %3185 = vmatpush1.msra.mxu0 0.0
    %3186 = vmatprep.subr.mxu0 0.0
    %3187 = vmatpush1.msra.mxu0 0.0
    %3188 = vmatprep.subr.mxu0 0.0
    %3189 = vmatpush1.msra.mxu0 0.0
    %3190 = vmatprep.subr.mxu0 0.0
    %3191 = vmatpush1.msra.mxu0 0.0
    %3192 = vmatprep.subr.mxu0 0.0
    %3193 = vmatpush1.msra.mxu0 0.0
    %3194 = vmatprep.subr.mxu0 0.0
    %3195 = vmatpush1.msra.mxu0 0.0
    %3196 = vmatprep.subr.mxu0 0.0
    %3197 = vmatpush1.msra.mxu0 0.0
    %3198 = vmatprep.subr.mxu0 0.0
    %3199 = vmatpush1.msra.mxu0 0.0
    %3200 = vmatprep.subr.mxu0 0.0
    %3201 = vmatpush1.msra.mxu0 0.0
    %3202 = vmatprep.subr.mxu0 0.0
    %3203 = vmatpush1.msra.mxu0 0.0
    %3204 = vmatprep.subr.mxu0 0.0
    %3205 = vmatpush1.msra.mxu0 0.0
    %3206 = vmatprep.subr.mxu0 0.0
    %3207 = vmatpush1.msra.mxu0 0.0
    %3208 = vmatprep.subr.mxu0 0.0
    %3209 = vmatpush1.msra.mxu0 0.0
    %3210 = vmatprep.subr.mxu0 0.0
    %3211 = vmatpush1.msra.mxu0 0.0
    %3212 = vmatprep.subr.mxu0 0.0
    %3213 = vmatpush1.msra.mxu0 0.0
    %3214 = vmatprep.subr.mxu0 0.0
    %3215 = vmatpush1.msra.mxu0 0.0
    %3216 = vmatprep.subr.mxu0 0.0
    %3217 = vmatpush1.msra.mxu0 0.0
    %3218 = vmatprep.subr.mxu0 0.0
    %3219 = vmatpush1.msra.mxu0 0.0
    %3220 = vmatprep.subr.mxu0 0.0
    %3221 = vmatpush1.msra.mxu0 0.0
    %3222 = vmatprep.mubr.f32.mxu0 0.0
    %3223 = vmatmul.mubr.f32.gmra.mrb[0].mxu0 %v1923
    %v3224 = vpop.f32.mrb[0].mxu0
    %v3225 = vadd.f32 0.0, %v3224
    %v3226 = vpop.f32.mrb[0].mxu0
    %3227 = vmatprep.mubr.f32.mxu0 0.0
    %3228 = vmatmul.mubr.f32.gmra.mrb[0].mxu0 %v1926
    %v3229 = vpop.f32.mrb[0].mxu0
    %v3230 = vadd.f32 0.0, %v3229
    %v3231 = vpop.f32.mrb[0].mxu0
    %3232 = vmatprep.mubr.f32.mxu0 0.0
    %3233 = vmatmul.mubr.f32.gmra.mrb[0].mxu0 %v1929
    %v3234 = vpop.f32.mrb[0].mxu0
    %v3235 = vadd.f32 0.0, %v3234
    %v3236 = vpop.f32.mrb[0].mxu0
    %3237 = vmatprep.mubr.f32.mxu0 0.0
    %3238 = vmatmul.mubr.f32.gmra.mrb[0].mxu0 %v1932
    %v3239 = vpop.f32.mrb[0].mxu0
    %v3240 = vadd.f32 0.0, %v3239
    %v3241 = vpop.f32.mrb[0].mxu0
    %3242 = vdwg.mxu0
    %3243 = vmatprep.subr.mxu0 0.0
    %3244 = vmatpush1.msra.mxu0 %v3225
    %3245 = vmatprep.subr.mxu0 0.0
    %3246 = vmatpush1.msra.mxu0 %v3230
    %3247 = vmatprep.subr.mxu0 0.0
    %3248 = vmatpush1.msra.mxu0 %v3235
    %3249 = vmatprep.subr.mxu0 0.0
    %3250 = vmatpush1.msra.mxu0 %v3240
    %3251 = vmatprep.subr.mxu0 0.0
    %3252 = vmatpush1.msra.mxu0 0.0
    %3253 = vmatprep.subr.mxu0 0.0
    %3254 = vmatpush1.msra.mxu0 0.0
    %3255 = vmatprep.subr.mxu0 0.0
    %3256 = vmatpush1.msra.mxu0 0.0
    %3257 = vmatprep.subr.mxu0 0.0
    %3258 = vmatpush1.msra.mxu0 0.0
    %3259 = vmatprep.subr.mxu0 0.0
    %3260 = vmatpush1.msra.mxu0 0.0
    %3261 = vmatprep.subr.mxu0 0.0
    %3262 = vmatpush1.msra.mxu0 0.0
    %3263 = vmatprep.subr.mxu0 0.0
    %3264 = vmatpush1.msra.mxu0 0.0
    %3265 = vmatprep.subr.mxu0 0.0
    %3266 = vmatpush1.msra.mxu0 0.0
    %3267 = vmatprep.subr.mxu0 0.0
    %3268 = vmatpush1.msra.mxu0 0.0
    %3269 = vmatprep.subr.mxu0 0.0
    %3270 = vmatpush1.msra.mxu0 0.0
    %3271 = vmatprep.subr.mxu0 0.0
    %3272 = vmatpush1.msra.mxu0 0.0
    %3273 = vmatprep.subr.mxu0 0.0
    %3274 = vmatpush1.msra.mxu0 0.0
    %3275 = vmatprep.subr.mxu0 0.0
    %3276 = vmatpush1.msra.mxu0 0.0
    %3277 = vmatprep.subr.mxu0 0.0
    %3278 = vmatpush1.msra.mxu0 0.0
    %3279 = vmatprep.subr.mxu0 0.0
    %3280 = vmatpush1.msra.mxu0 0.0
    %3281 = vmatprep.subr.mxu0 0.0
    %3282 = vmatpush1.msra.mxu0 0.0
    %3283 = vmatprep.subr.mxu0 0.0
    %3284 = vmatpush1.msra.mxu0 0.0
    %3285 = vmatprep.subr.mxu0 0.0
    %3286 = vmatpush1.msra.mxu0 0.0
    %3287 = vmatprep.subr.mxu0 0.0
    %3288 = vmatpush1.msra.mxu0 0.0
    %3289 = vmatprep.subr.mxu0 0.0
    %3290 = vmatpush1.msra.mxu0 0.0
    %3291 = vmatprep.subr.mxu0 0.0
    %3292 = vmatpush1.msra.mxu0 0.0
    %3293 = vmatprep.subr.mxu0 0.0
    %3294 = vmatpush1.msra.mxu0 0.0
    %3295 = vmatprep.subr.mxu0 0.0
    %3296 = vmatpush1.msra.mxu0 0.0
    %3297 = vmatprep.subr.mxu0 0.0
    %3298 = vmatpush1.msra.mxu0 0.0
    %3299 = vmatprep.subr.mxu0 0.0
    %3300 = vmatpush1.msra.mxu0 0.0
    %3301 = vmatprep.subr.mxu0 0.0
    %3302 = vmatpush1.msra.mxu0 0.0
    %3303 = vmatprep.subr.mxu0 0.0
    %3304 = vmatpush1.msra.mxu0 0.0
    %3305 = vmatprep.subr.mxu0 0.0
    %3306 = vmatpush1.msra.mxu0 0.0
    %3307 = vmatprep.mubr.f32.mxu0 0.0
    %3308 = vmatmul.mubr.f32.gmra.mrb[0].mxu0 %v1612
    %v3309 = vpop.f32.mrb[0].mxu0
    %v3310 = vadd.f32 0.0, %v3309
    %v3311 = vpop.f32.mrb[0].mxu0
    %3312 = vmatprep.mubr.f32.mxu0 0.0
    %3313 = vmatmul.mubr.f32.gmra.mrb[0].mxu0 %v1615
    %v3314 = vpop.f32.mrb[0].mxu0
    %v3315 = vadd.f32 0.0, %v3314
    %v3316 = vpop.f32.mrb[0].mxu0
    %3317 = vmatprep.mubr.f32.mxu0 0.0
    %3318 = vmatmul.mubr.f32.gmra.mrb[0].mxu0 %v1618
    %v3319 = vpop.f32.mrb[0].mxu0
    %v3320 = vadd.f32 0.0, %v3319
    %v3321 = vpop.f32.mrb[0].mxu0
    %3322 = vmatprep.mubr.f32.mxu0 0.0
    %3323 = vmatmul.mubr.f32.gmra.mrb[0].mxu0 %v1621
    %v3324 = vpop.f32.mrb[0].mxu0
    %v3325 = vadd.f32 0.0, %v3324
    %v3326 = vpop.f32.mrb[0].mxu0
    %3327 = vdwg.mxu0
    %v3328 = vadd.f32 %v3152, %v3310
    %v3329 = vadd.f32 %v3153, %v3315
    %v3330 = vadd.f32 %v3154, %v3320
    %v3331 = vadd.f32 %v3155, %v3325
    %s3332 = scalar_lea.vmem %s6, 136
    %v3333 = vld [vmem:[%s3332] sm:$0xff]
    %3334 = vmatprep.subr.mxu0 0.0
    %3335 = vmatpush1.msra.mxu0 %v3333
    %3336 = vmatprep.subr.mxu0 0.0
    %3337 = vmatpush1.msra.mxu0 0.0
    %3338 = vmatprep.subr.mxu0 0.0
    %3339 = vmatpush1.msra.mxu0 0.0
    %3340 = vmatprep.subr.mxu0 0.0
    %3341 = vmatpush1.msra.mxu0 0.0
    %3342 = vmatprep.subr.mxu0 0.0
    %3343 = vmatpush1.msra.mxu0 0.0
    %3344 = vmatprep.subr.mxu0 0.0
    %3345 = vmatpush1.msra.mxu0 0.0
    %3346 = vmatprep.subr.mxu0 0.0
    %3347 = vmatpush1.msra.mxu0 0.0
    %3348 = vmatprep.subr.mxu0 0.0
    %3349 = vmatpush1.msra.mxu0 0.0
    %3350 = vmatprep.subr.mxu0 0.0
    %3351 = vmatpush1.msra.mxu0 0.0
    %3352 = vmatprep.subr.mxu0 0.0
    %3353 = vmatpush1.msra.mxu0 0.0
    %3354 = vmatprep.subr.mxu0 0.0
    %3355 = vmatpush1.msra.mxu0 0.0
    %3356 = vmatprep.subr.mxu0 0.0
    %3357 = vmatpush1.msra.mxu0 0.0
    %3358 = vmatprep.subr.mxu0 0.0
    %3359 = vmatpush1.msra.mxu0 0.0
    %3360 = vmatprep.subr.mxu0 0.0
    %3361 = vmatpush1.msra.mxu0 0.0
    %3362 = vmatprep.subr.mxu0 0.0
    %3363 = vmatpush1.msra.mxu0 0.0
    %3364 = vmatprep.subr.mxu0 0.0
    %3365 = vmatpush1.msra.mxu0 0.0
    %3366 = vmatprep.subr.mxu0 0.0
    %3367 = vmatpush1.msra.mxu0 0.0
    %3368 = vmatprep.subr.mxu0 0.0
    %3369 = vmatpush1.msra.mxu0 0.0
    %3370 = vmatprep.subr.mxu0 0.0
    %3371 = vmatpush1.msra.mxu0 0.0
    %3372 = vmatprep.subr.mxu0 0.0
    %3373 = vmatpush1.msra.mxu0 0.0
    %3374 = vmatprep.subr.mxu0 0.0
    %3375 = vmatpush1.msra.mxu0 0.0
    %3376 = vmatprep.subr.mxu0 0.0
    %3377 = vmatpush1.msra.mxu0 0.0
    %3378 = vmatprep.subr.mxu0 0.0
    %3379 = vmatpush1.msra.mxu0 0.0
    %3380 = vmatprep.subr.mxu0 0.0
    %3381 = vmatpush1.msra.mxu0 0.0
    %3382 = vmatprep.subr.mxu0 0.0
    %3383 = vmatpush1.msra.mxu0 0.0
    %3384 = vmatprep.subr.mxu0 0.0
    %3385 = vmatpush1.msra.mxu0 0.0
    %3386 = vmatprep.subr.mxu0 0.0
    %3387 = vmatpush1.msra.mxu0 0.0
    %3388 = vmatprep.subr.mxu0 0.0
    %3389 = vmatpush1.msra.mxu0 0.0
    %3390 = vmatprep.subr.mxu0 0.0
    %3391 = vmatpush1.msra.mxu0 0.0
    %3392 = vmatprep.subr.mxu0 0.0
    %3393 = vmatpush1.msra.mxu0 0.0
    %3394 = vmatprep.subr.mxu0 0.0
    %3395 = vmatpush1.msra.mxu0 0.0
    %3396 = vmatprep.subr.mxu0 0.0
    %3397 = vmatpush1.msra.mxu0 0.0
    %3398 = vmatprep.mubr.f32.mxu0 0.0
    %3399 = vmatmul.mubr.f32.gmra.mrb[0].mxu0 %v1923
    %v3400 = vpop.f32.mrb[0].mxu0
    %v3401 = vadd.f32 0.0, %v3400
    %v3402 = vpop.f32.mrb[0].mxu0
    %3403 = vmatprep.mubr.f32.mxu0 0.0
    %3404 = vmatmul.mubr.f32.gmra.mrb[0].mxu0 %v1926
    %v3405 = vpop.f32.mrb[0].mxu0
    %v3406 = vadd.f32 0.0, %v3405
    %v3407 = vpop.f32.mrb[0].mxu0
    %3408 = vmatprep.mubr.f32.mxu0 0.0
    %3409 = vmatmul.mubr.f32.gmra.mrb[0].mxu0 %v1929
    %v3410 = vpop.f32.mrb[0].mxu0
    %v3411 = vadd.f32 0.0, %v3410
    %v3412 = vpop.f32.mrb[0].mxu0
    %3413 = vmatprep.mubr.f32.mxu0 0.0
    %3414 = vmatmul.mubr.f32.gmra.mrb[0].mxu0 %v1932
    %v3415 = vpop.f32.mrb[0].mxu0
    %v3416 = vadd.f32 0.0, %v3415
    %v3417 = vpop.f32.mrb[0].mxu0
    %3418 = vdwg.mxu0
    %3419 = vmatprep.subr.mxu0 0.0
    %3420 = vmatpush1.msra.mxu0 %v3401
    %3421 = vmatprep.subr.mxu0 0.0
    %3422 = vmatpush1.msra.mxu0 %v3406
    %3423 = vmatprep.subr.mxu0 0.0
    %3424 = vmatpush1.msra.mxu0 %v3411
    %3425 = vmatprep.subr.mxu0 0.0
    %3426 = vmatpush1.msra.mxu0 %v3416
    %3427 = vmatprep.subr.mxu0 0.0
    %3428 = vmatpush1.msra.mxu0 0.0
    %3429 = vmatprep.subr.mxu0 0.0
    %3430 = vmatpush1.msra.mxu0 0.0
    %3431 = vmatprep.subr.mxu0 0.0
    %3432 = vmatpush1.msra.mxu0 0.0
    %3433 = vmatprep.subr.mxu0 0.0
    %3434 = vmatpush1.msra.mxu0 0.0
    %3435 = vmatprep.subr.mxu0 0.0
    %3436 = vmatpush1.msra.mxu0 0.0
    %3437 = vmatprep.subr.mxu0 0.0
    %3438 = vmatpush1.msra.mxu0 0.0
    %3439 = vmatprep.subr.mxu0 0.0
    %3440 = vmatpush1.msra.mxu0 0.0
    %3441 = vmatprep.subr.mxu0 0.0
    %3442 = vmatpush1.msra.mxu0 0.0
    %3443 = vmatprep.subr.mxu0 0.0
    %3444 = vmatpush1.msra.mxu0 0.0
    %3445 = vmatprep.subr.mxu0 0.0
    %3446 = vmatpush1.msra.mxu0 0.0
    %3447 = vmatprep.subr.mxu0 0.0
    %3448 = vmatpush1.msra.mxu0 0.0
    %3449 = vmatprep.subr.mxu0 0.0
    %3450 = vmatpush1.msra.mxu0 0.0
    %3451 = vmatprep.subr.mxu0 0.0
    %3452 = vmatpush1.msra.mxu0 0.0
    %3453 = vmatprep.subr.mxu0 0.0
    %3454 = vmatpush1.msra.mxu0 0.0
    %3455 = vmatprep.subr.mxu0 0.0
    %3456 = vmatpush1.msra.mxu0 0.0
    %3457 = vmatprep.subr.mxu0 0.0
    %3458 = vmatpush1.msra.mxu0 0.0
    %3459 = vmatprep.subr.mxu0 0.0
    %3460 = vmatpush1.msra.mxu0 0.0
    %3461 = vmatprep.subr.mxu0 0.0
    %3462 = vmatpush1.msra.mxu0 0.0
    %3463 = vmatprep.subr.mxu0 0.0
    %3464 = vmatpush1.msra.mxu0 0.0
    %3465 = vmatprep.subr.mxu0 0.0
    %3466 = vmatpush1.msra.mxu0 0.0
    %3467 = vmatprep.subr.mxu0 0.0
    %3468 = vmatpush1.msra.mxu0 0.0
    %3469 = vmatprep.subr.mxu0 0.0
    %3470 = vmatpush1.msra.mxu0 0.0
    %3471 = vmatprep.subr.mxu0 0.0
    %3472 = vmatpush1.msra.mxu0 0.0
    %3473 = vmatprep.subr.mxu0 0.0
    %3474 = vmatpush1.msra.mxu0 0.0
    %3475 = vmatprep.subr.mxu0 0.0
    %3476 = vmatpush1.msra.mxu0 0.0
    %3477 = vmatprep.subr.mxu0 0.0
    %3478 = vmatpush1.msra.mxu0 0.0
    %3479 = vmatprep.subr.mxu0 0.0
    %3480 = vmatpush1.msra.mxu0 0.0
    %3481 = vmatprep.subr.mxu0 0.0
    %3482 = vmatpush1.msra.mxu0 0.0
    %3483 = vmatprep.mubr.f32.mxu0 0.0
    %3484 = vmatmul.mubr.f32.gmra.mrb[0].mxu0 %v1805
    %v3485 = vpop.f32.mrb[0].mxu0
    %v3486 = vadd.f32 0.0, %v3485
    %v3487 = vpop.f32.mrb[0].mxu0
    %3488 = vmatprep.mubr.f32.mxu0 0.0
    %3489 = vmatmul.mubr.f32.gmra.mrb[0].mxu0 %v1808
    %v3490 = vpop.f32.mrb[0].mxu0
    %v3491 = vadd.f32 0.0, %v3490
    %v3492 = vpop.f32.mrb[0].mxu0
    %3493 = vmatprep.mubr.f32.mxu0 0.0
    %3494 = vmatmul.mubr.f32.gmra.mrb[0].mxu0 %v1811
    %v3495 = vpop.f32.mrb[0].mxu0
    %v3496 = vadd.f32 0.0, %v3495
    %v3497 = vpop.f32.mrb[0].mxu0
    %3498 = vmatprep.mubr.f32.mxu0 0.0
    %3499 = vmatmul.mubr.f32.gmra.mrb[0].mxu0 %v1814
    %v3500 = vpop.f32.mrb[0].mxu0
    %v3501 = vadd.f32 0.0, %v3500
    %v3502 = vpop.f32.mrb[0].mxu0
    %3503 = vdwg.mxu0
    %v3504 = vadd.f32 %v3328, %v3486
    %v3505 = vadd.f32 %v3329, %v3491
    %v3506 = vadd.f32 %v3330, %v3496
    %v3507 = vadd.f32 %v3331, %v3501
    %s3508 = scalar_lea.vmem %s7, 1
    %v3509 = vld [vmem:[%s3508] sm:$0x1]
    %v3511 = vlaneseq
    %v3512 = vshrl.u32 %v3511, 7
    %v3513 = vsub.s32 0, %v3512
    %v3514 = vrot.slane %v3509, %v3513
    %v3516 = vadd.f32 %v3504, %v3514
    %v3517 = vadd.f32 %v3505, %v3514
    %v3518 = vadd.f32 %v3506, %v3514
    %v3519 = vadd.f32 %v3507, %v3514
    %v3520 = vmax.f32 %v3516, 0.0
    %v3521 = vmax.f32 %v3517, 0.0
    %v3522 = vmax.f32 %v3518, 0.0
    %v3523 = vmax.f32 %v3519, 0.0
    %s3524 = scalar_lea.vmem %s6, 144
    %v3525 = vld [vmem:[%s3524] sm:$0xff]
    %v3527 = vsel %vm165, %v3520, 0
    %v3530 = vsel %vm165, %v3521, 0
    %v3533 = vsel %vm165, %v3522, 0
    %v3536 = vsel %vm165, %v3523, 0
    %3538 = vmatprep.subr.mxu0 0.0
    %3539 = vmatpush1.msra.mxu0 %v3525
    %3540 = vmatprep.subr.mxu0 0.0
    %3541 = vmatpush1.msra.mxu0 0.0
    %3542 = vmatprep.subr.mxu0 0.0
    %3543 = vmatpush1.msra.mxu0 0.0
    %3544 = vmatprep.subr.mxu0 0.0
    %3545 = vmatpush1.msra.mxu0 0.0
    %3546 = vmatprep.subr.mxu0 0.0
    %3547 = vmatpush1.msra.mxu0 0.0
    %3548 = vmatprep.subr.mxu0 0.0
    %3549 = vmatpush1.msra.mxu0 0.0
    %3550 = vmatprep.subr.mxu0 0.0
    %3551 = vmatpush1.msra.mxu0 0.0
    %3552 = vmatprep.subr.mxu0 0.0
    %3553 = vmatpush1.msra.mxu0 0.0
    %3554 = vmatprep.subr.mxu0 0.0
    %3555 = vmatpush1.msra.mxu0 0.0
    %3556 = vmatprep.subr.mxu0 0.0
    %3557 = vmatpush1.msra.mxu0 0.0
    %3558 = vmatprep.subr.mxu0 0.0
    %3559 = vmatpush1.msra.mxu0 0.0
    %3560 = vmatprep.subr.mxu0 0.0
    %3561 = vmatpush1.msra.mxu0 0.0
    %3562 = vmatprep.subr.mxu0 0.0
    %3563 = vmatpush1.msra.mxu0 0.0
    %3564 = vmatprep.subr.mxu0 0.0
    %3565 = vmatpush1.msra.mxu0 0.0
    %3566 = vmatprep.subr.mxu0 0.0
    %3567 = vmatpush1.msra.mxu0 0.0
    %3568 = vmatprep.subr.mxu0 0.0
    %3569 = vmatpush1.msra.mxu0 0.0
    %3570 = vmatprep.subr.mxu0 0.0
    %3571 = vmatpush1.msra.mxu0 0.0
    %3572 = vmatprep.subr.mxu0 0.0
    %3573 = vmatpush1.msra.mxu0 0.0
    %3574 = vmatprep.subr.mxu0 0.0
    %3575 = vmatpush1.msra.mxu0 0.0
    %3576 = vmatprep.subr.mxu0 0.0
    %3577 = vmatpush1.msra.mxu0 0.0
    %3578 = vmatprep.subr.mxu0 0.0
    %3579 = vmatpush1.msra.mxu0 0.0
    %3580 = vmatprep.subr.mxu0 0.0
    %3581 = vmatpush1.msra.mxu0 0.0
    %3582 = vmatprep.subr.mxu0 0.0
    %3583 = vmatpush1.msra.mxu0 0.0
    %3584 = vmatprep.subr.mxu0 0.0
    %3585 = vmatpush1.msra.mxu0 0.0
    %3586 = vmatprep.subr.mxu0 0.0
    %3587 = vmatpush1.msra.mxu0 0.0
    %3588 = vmatprep.subr.mxu0 0.0
    %3589 = vmatpush1.msra.mxu0 0.0
    %3590 = vmatprep.subr.mxu0 0.0
    %3591 = vmatpush1.msra.mxu0 0.0
    %3592 = vmatprep.subr.mxu0 0.0
    %3593 = vmatpush1.msra.mxu0 0.0
    %3594 = vmatprep.subr.mxu0 0.0
    %3595 = vmatpush1.msra.mxu0 0.0
    %3596 = vmatprep.subr.mxu0 0.0
    %3597 = vmatpush1.msra.mxu0 0.0
    %3598 = vmatprep.subr.mxu0 0.0
    %3599 = vmatpush1.msra.mxu0 0.0
    %3600 = vmatprep.subr.mxu0 0.0
    %3601 = vmatpush1.msra.mxu0 0.0
    %3602 = vmatprep.mubr.f32.mxu0 0.0
    %3603 = vmatmul.mubr.f32.gmra.mrb[0].mxu0 %v3527
    %v3604 = vpop.f32.mrb[0].mxu0
    %v3605 = vadd.f32 0.0, %v3604
    %v3606 = vpop.f32.mrb[0].mxu0
    %3607 = vmatprep.mubr.f32.mxu0 0.0
    %3608 = vmatmul.mubr.f32.gmra.mrb[0].mxu0 %v3530
    %v3609 = vpop.f32.mrb[0].mxu0
    %v3610 = vadd.f32 0.0, %v3609
    %v3611 = vpop.f32.mrb[0].mxu0
    %3612 = vmatprep.mubr.f32.mxu0 0.0
    %3613 = vmatmul.mubr.f32.gmra.mrb[0].mxu0 %v3533
    %v3614 = vpop.f32.mrb[0].mxu0
    %v3615 = vadd.f32 0.0, %v3614
    %v3616 = vpop.f32.mrb[0].mxu0
    %3617 = vmatprep.mubr.f32.mxu0 0.0
    %3618 = vmatmul.mubr.f32.gmra.mrb[0].mxu0 %v3536
    %v3619 = vpop.f32.mrb[0].mxu0
    %v3620 = vadd.f32 0.0, %v3619
    %v3621 = vpop.f32.mrb[0].mxu0
    %3622 = vdwg.mxu0
    %s3623 = scalar_lea.vmem %s6, 152
    %v3624 = vld [vmem:[%s3623] sm:$0xff]
    %3625 = vmatprep.subr.mxu0 0.0
    %3626 = vmatpush1.msra.mxu0 %v3624
    %3627 = vmatprep.subr.mxu0 0.0
    %3628 = vmatpush1.msra.mxu0 0.0
    %3629 = vmatprep.subr.mxu0 0.0
    %3630 = vmatpush1.msra.mxu0 0.0
    %3631 = vmatprep.subr.mxu0 0.0
    %3632 = vmatpush1.msra.mxu0 0.0
    %3633 = vmatprep.subr.mxu0 0.0
    %3634 = vmatpush1.msra.mxu0 0.0
    %3635 = vmatprep.subr.mxu0 0.0
    %3636 = vmatpush1.msra.mxu0 0.0
    %3637 = vmatprep.subr.mxu0 0.0
    %3638 = vmatpush1.msra.mxu0 0.0
    %3639 = vmatprep.subr.mxu0 0.0
    %3640 = vmatpush1.msra.mxu0 0.0
    %3641 = vmatprep.subr.mxu0 0.0
    %3642 = vmatpush1.msra.mxu0 0.0
    %3643 = vmatprep.subr.mxu0 0.0
    %3644 = vmatpush1.msra.mxu0 0.0
    %3645 = vmatprep.subr.mxu0 0.0
    %3646 = vmatpush1.msra.mxu0 0.0
    %3647 = vmatprep.subr.mxu0 0.0
    %3648 = vmatpush1.msra.mxu0 0.0
    %3649 = vmatprep.subr.mxu0 0.0
    %3650 = vmatpush1.msra.mxu0 0.0
    %3651 = vmatprep.subr.mxu0 0.0
    %3652 = vmatpush1.msra.mxu0 0.0
    %3653 = vmatprep.subr.mxu0 0.0
    %3654 = vmatpush1.msra.mxu0 0.0
    %3655 = vmatprep.subr.mxu0 0.0
    %3656 = vmatpush1.msra.mxu0 0.0
    %3657 = vmatprep.subr.mxu0 0.0
    %3658 = vmatpush1.msra.mxu0 0.0
    %3659 = vmatprep.subr.mxu0 0.0
    %3660 = vmatpush1.msra.mxu0 0.0
    %3661 = vmatprep.subr.mxu0 0.0
    %3662 = vmatpush1.msra.mxu0 0.0
    %3663 = vmatprep.subr.mxu0 0.0
    %3664 = vmatpush1.msra.mxu0 0.0
    %3665 = vmatprep.subr.mxu0 0.0
    %3666 = vmatpush1.msra.mxu0 0.0
    %3667 = vmatprep.subr.mxu0 0.0
    %3668 = vmatpush1.msra.mxu0 0.0
    %3669 = vmatprep.subr.mxu0 0.0
    %3670 = vmatpush1.msra.mxu0 0.0
    %3671 = vmatprep.subr.mxu0 0.0
    %3672 = vmatpush1.msra.mxu0 0.0
    %3673 = vmatprep.subr.mxu0 0.0
    %3674 = vmatpush1.msra.mxu0 0.0
    %3675 = vmatprep.subr.mxu0 0.0
    %3676 = vmatpush1.msra.mxu0 0.0
    %3677 = vmatprep.subr.mxu0 0.0
    %3678 = vmatpush1.msra.mxu0 0.0
    %3679 = vmatprep.subr.mxu0 0.0
    %3680 = vmatpush1.msra.mxu0 0.0
    %3681 = vmatprep.subr.mxu0 0.0
    %3682 = vmatpush1.msra.mxu0 0.0
    %3683 = vmatprep.subr.mxu0 0.0
    %3684 = vmatpush1.msra.mxu0 0.0
    %3685 = vmatprep.subr.mxu0 0.0
    %3686 = vmatpush1.msra.mxu0 0.0
    %3687 = vmatprep.subr.mxu0 0.0
    %3688 = vmatpush1.msra.mxu0 0.0
    %3689 = vmatprep.mubr.f32.mxu0 0.0
    %3690 = vmatmul.mubr.f32.gmra.mrb[0].mxu0 %v3527
    %v3691 = vpop.f32.mrb[0].mxu0
    %v3692 = vadd.f32 0.0, %v3691
    %v3693 = vpop.f32.mrb[0].mxu0
    %3694 = vmatprep.mubr.f32.mxu0 0.0
    %3695 = vmatmul.mubr.f32.gmra.mrb[0].mxu0 %v3530
    %v3696 = vpop.f32.mrb[0].mxu0
    %v3697 = vadd.f32 0.0, %v3696
    %v3698 = vpop.f32.mrb[0].mxu0
    %3699 = vmatprep.mubr.f32.mxu0 0.0
    %3700 = vmatmul.mubr.f32.gmra.mrb[0].mxu0 %v3533
    %v3701 = vpop.f32.mrb[0].mxu0
    %v3702 = vadd.f32 0.0, %v3701
    %v3703 = vpop.f32.mrb[0].mxu0
    %3704 = vmatprep.mubr.f32.mxu0 0.0
    %3705 = vmatmul.mubr.f32.gmra.mrb[0].mxu0 %v3536
    %v3706 = vpop.f32.mrb[0].mxu0
    %v3707 = vadd.f32 0.0, %v3706
    %v3708 = vpop.f32.mrb[0].mxu0
    %3709 = vdwg.mxu0
    %3710 = vmatprep.subr.mxu0 0.0
    %3711 = vmatpush1.msra.mxu0 %v3692
    %3712 = vmatprep.subr.mxu0 0.0
    %3713 = vmatpush1.msra.mxu0 %v3697
    %3714 = vmatprep.subr.mxu0 0.0
    %3715 = vmatpush1.msra.mxu0 %v3702
    %3716 = vmatprep.subr.mxu0 0.0
    %3717 = vmatpush1.msra.mxu0 %v3707
    %3718 = vmatprep.subr.mxu0 0.0
    %3719 = vmatpush1.msra.mxu0 0.0
    %3720 = vmatprep.subr.mxu0 0.0
    %3721 = vmatpush1.msra.mxu0 0.0
    %3722 = vmatprep.subr.mxu0 0.0
    %3723 = vmatpush1.msra.mxu0 0.0
    %3724 = vmatprep.subr.mxu0 0.0
    %3725 = vmatpush1.msra.mxu0 0.0
    %3726 = vmatprep.subr.mxu0 0.0
    %3727 = vmatpush1.msra.mxu0 0.0
    %3728 = vmatprep.subr.mxu0 0.0
    %3729 = vmatpush1.msra.mxu0 0.0
    %3730 = vmatprep.subr.mxu0 0.0
    %3731 = vmatpush1.msra.mxu0 0.0
    %3732 = vmatprep.subr.mxu0 0.0
    %3733 = vmatpush1.msra.mxu0 0.0
    %3734 = vmatprep.subr.mxu0 0.0
    %3735 = vmatpush1.msra.mxu0 0.0
    %3736 = vmatprep.subr.mxu0 0.0
    %3737 = vmatpush1.msra.mxu0 0.0
    %3738 = vmatprep.subr.mxu0 0.0
    %3739 = vmatpush1.msra.mxu0 0.0
    %3740 = vmatprep.subr.mxu0 0.0
    %3741 = vmatpush1.msra.mxu0 0.0
    %3742 = vmatprep.subr.mxu0 0.0
    %3743 = vmatpush1.msra.mxu0 0.0
    %3744 = vmatprep.subr.mxu0 0.0
    %3745 = vmatpush1.msra.mxu0 0.0
    %3746 = vmatprep.subr.mxu0 0.0
    %3747 = vmatpush1.msra.mxu0 0.0
    %3748 = vmatprep.subr.mxu0 0.0
    %3749 = vmatpush1.msra.mxu0 0.0
    %3750 = vmatprep.subr.mxu0 0.0
    %3751 = vmatpush1.msra.mxu0 0.0
    %3752 = vmatprep.subr.mxu0 0.0
    %3753 = vmatpush1.msra.mxu0 0.0
    %3754 = vmatprep.subr.mxu0 0.0
    %3755 = vmatpush1.msra.mxu0 0.0
    %3756 = vmatprep.subr.mxu0 0.0
    %3757 = vmatpush1.msra.mxu0 0.0
    %3758 = vmatprep.subr.mxu0 0.0
    %3759 = vmatpush1.msra.mxu0 0.0
    %3760 = vmatprep.subr.mxu0 0.0
    %3761 = vmatpush1.msra.mxu0 0.0
    %3762 = vmatprep.subr.mxu0 0.0
    %3763 = vmatpush1.msra.mxu0 0.0
    %3764 = vmatprep.subr.mxu0 0.0
    %3765 = vmatpush1.msra.mxu0 0.0
    %3766 = vmatprep.subr.mxu0 0.0
    %3767 = vmatpush1.msra.mxu0 0.0
    %3768 = vmatprep.subr.mxu0 0.0
    %3769 = vmatpush1.msra.mxu0 0.0
    %3770 = vmatprep.subr.mxu0 0.0
    %3771 = vmatpush1.msra.mxu0 0.0
    %3772 = vmatprep.subr.mxu0 0.0
    %3773 = vmatpush1.msra.mxu0 0.0
    %3774 = vmatprep.mubr.f32.mxu0 0.0
    %3775 = vmatmul.mubr.f32.gmra.mrb[0].mxu0 %v361
    %v3776 = vpop.f32.mrb[0].mxu0
    %v3777 = vadd.f32 0.0, %v3776
    %v3778 = vpop.f32.mrb[0].mxu0
    %3779 = vmatprep.mubr.f32.mxu0 0.0
    %3780 = vmatmul.mubr.f32.gmra.mrb[0].mxu0 %v364
    %v3781 = vpop.f32.mrb[0].mxu0
    %v3782 = vadd.f32 0.0, %v3781
    %v3783 = vpop.f32.mrb[0].mxu0
    %3784 = vmatprep.mubr.f32.mxu0 0.0
    %3785 = vmatmul.mubr.f32.gmra.mrb[0].mxu0 %v367
    %v3786 = vpop.f32.mrb[0].mxu0
    %v3787 = vadd.f32 0.0, %v3786
    %v3788 = vpop.f32.mrb[0].mxu0
    %3789 = vmatprep.mubr.f32.mxu0 0.0
    %3790 = vmatmul.mubr.f32.gmra.mrb[0].mxu0 %v370
    %v3791 = vpop.f32.mrb[0].mxu0
    %v3792 = vadd.f32 0.0, %v3791
    %v3793 = vpop.f32.mrb[0].mxu0
    %3794 = vdwg.mxu0
    %3795 = vmatprep.subr.mxu0 0.0
    %3796 = vmatpush1.msra.mxu0 %v3605
    %3797 = vmatprep.subr.mxu0 0.0
    %3798 = vmatpush1.msra.mxu0 %v3610
    %3799 = vmatprep.subr.mxu0 0.0
    %3800 = vmatpush1.msra.mxu0 %v3615
    %3801 = vmatprep.subr.mxu0 0.0
    %3802 = vmatpush1.msra.mxu0 %v3620
    %3803 = vmatprep.subr.mxu0 0.0
    %3804 = vmatpush1.msra.mxu0 0.0
    %3805 = vmatprep.subr.mxu0 0.0
    %3806 = vmatpush1.msra.mxu0 0.0
    %3807 = vmatprep.subr.mxu0 0.0
    %3808 = vmatpush1.msra.mxu0 0.0
    %3809 = vmatprep.subr.mxu0 0.0
    %3810 = vmatpush1.msra.mxu0 0.0
    %3811 = vmatprep.subr.mxu0 0.0
    %3812 = vmatpush1.msra.mxu0 0.0
    %3813 = vmatprep.subr.mxu0 0.0
    %3814 = vmatpush1.msra.mxu0 0.0
    %3815 = vmatprep.subr.mxu0 0.0
    %3816 = vmatpush1.msra.mxu0 0.0
    %3817 = vmatprep.subr.mxu0 0.0
    %3818 = vmatpush1.msra.mxu0 0.0
    %3819 = vmatprep.subr.mxu0 0.0
    %3820 = vmatpush1.msra.mxu0 0.0
    %3821 = vmatprep.subr.mxu0 0.0
    %3822 = vmatpush1.msra.mxu0 0.0
    %3823 = vmatprep.subr.mxu0 0.0
    %3824 = vmatpush1.msra.mxu0 0.0
    %3825 = vmatprep.subr.mxu0 0.0
    %3826 = vmatpush1.msra.mxu0 0.0
    %3827 = vmatprep.subr.mxu0 0.0
    %3828 = vmatpush1.msra.mxu0 0.0
    %3829 = vmatprep.subr.mxu0 0.0
    %3830 = vmatpush1.msra.mxu0 0.0
    %3831 = vmatprep.subr.mxu0 0.0
    %3832 = vmatpush1.msra.mxu0 0.0
    %3833 = vmatprep.subr.mxu0 0.0
    %3834 = vmatpush1.msra.mxu0 0.0
    %3835 = vmatprep.subr.mxu0 0.0
    %3836 = vmatpush1.msra.mxu0 0.0
    %3837 = vmatprep.subr.mxu0 0.0
    %3838 = vmatpush1.msra.mxu0 0.0
    %3839 = vmatprep.subr.mxu0 0.0
    %3840 = vmatpush1.msra.mxu0 0.0
    %3841 = vmatprep.subr.mxu0 0.0
    %3842 = vmatpush1.msra.mxu0 0.0
    %3843 = vmatprep.subr.mxu0 0.0
    %3844 = vmatpush1.msra.mxu0 0.0
    %3845 = vmatprep.subr.mxu0 0.0
    %3846 = vmatpush1.msra.mxu0 0.0
    %3847 = vmatprep.subr.mxu0 0.0
    %3848 = vmatpush1.msra.mxu0 0.0
    %3849 = vmatprep.subr.mxu0 0.0
    %3850 = vmatpush1.msra.mxu0 0.0
    %3851 = vmatprep.subr.mxu0 0.0
    %3852 = vmatpush1.msra.mxu0 0.0
    %3853 = vmatprep.subr.mxu0 0.0
    %3854 = vmatpush1.msra.mxu0 0.0
    %3855 = vmatprep.subr.mxu0 0.0
    %3856 = vmatpush1.msra.mxu0 0.0
    %3857 = vmatprep.subr.mxu0 0.0
    %3858 = vmatpush1.msra.mxu0 0.0
    %3859 = vmatprep.mubr.f32.mxu0 0.0
    %3860 = vmatmul.mubr.f32.gmra.mrb[0].mxu0 %v458
    %v3861 = vpop.f32.mrb[0].mxu0
    %v3862 = vadd.f32 %v3777, %v3861
    %v3863 = vpop.f32.mrb[0].mxu0
    %3864 = vmatprep.mubr.f32.mxu0 0.0
    %3865 = vmatmul.mubr.f32.gmra.mrb[0].mxu0 %v461
    %v3866 = vpop.f32.mrb[0].mxu0
    %v3867 = vadd.f32 %v3782, %v3866
    %v3868 = vpop.f32.mrb[0].mxu0
    %3869 = vmatprep.mubr.f32.mxu0 0.0
    %3870 = vmatmul.mubr.f32.gmra.mrb[0].mxu0 %v464
    %v3871 = vpop.f32.mrb[0].mxu0
    %v3872 = vadd.f32 %v3787, %v3871
    %v3873 = vpop.f32.mrb[0].mxu0
    %3874 = vmatprep.mubr.f32.mxu0 0.0
    %3875 = vmatmul.mubr.f32.gmra.mrb[0].mxu0 %v467
    %v3876 = vpop.f32.mrb[0].mxu0
    %v3877 = vadd.f32 %v3792, %v3876
    %v3878 = vpop.f32.mrb[0].mxu0
    %3879 = vdwg.mxu0
    %s3880 = scalar_lea.vmem %s6, 160
    %v3881 = vld [vmem:[%s3880] sm:$0xff]
    %3882 = vmatprep.subr.mxu0 0.0
    %3883 = vmatpush1.msra.mxu0 %v3881
    %3884 = vmatprep.subr.mxu0 0.0
    %3885 = vmatpush1.msra.mxu0 0.0
    %3886 = vmatprep.subr.mxu0 0.0
    %3887 = vmatpush1.msra.mxu0 0.0
    %3888 = vmatprep.subr.mxu0 0.0
    %3889 = vmatpush1.msra.mxu0 0.0
    %3890 = vmatprep.subr.mxu0 0.0
    %3891 = vmatpush1.msra.mxu0 0.0
    %3892 = vmatprep.subr.mxu0 0.0
    %3893 = vmatpush1.msra.mxu0 0.0
    %3894 = vmatprep.subr.mxu0 0.0
    %3895 = vmatpush1.msra.mxu0 0.0
    %3896 = vmatprep.subr.mxu0 0.0
    %3897 = vmatpush1.msra.mxu0 0.0
    %3898 = vmatprep.subr.mxu0 0.0
    %3899 = vmatpush1.msra.mxu0 0.0
    %3900 = vmatprep.subr.mxu0 0.0
    %3901 = vmatpush1.msra.mxu0 0.0
    %3902 = vmatprep.subr.mxu0 0.0
    %3903 = vmatpush1.msra.mxu0 0.0
    %3904 = vmatprep.subr.mxu0 0.0
    %3905 = vmatpush1.msra.mxu0 0.0
    %3906 = vmatprep.subr.mxu0 0.0
    %3907 = vmatpush1.msra.mxu0 0.0
    %3908 = vmatprep.subr.mxu0 0.0
    %3909 = vmatpush1.msra.mxu0 0.0
    %3910 = vmatprep.subr.mxu0 0.0
    %3911 = vmatpush1.msra.mxu0 0.0
    %3912 = vmatprep.subr.mxu0 0.0
    %3913 = vmatpush1.msra.mxu0 0.0
    %3914 = vmatprep.subr.mxu0 0.0
    %3915 = vmatpush1.msra.mxu0 0.0
    %3916 = vmatprep.subr.mxu0 0.0
    %3917 = vmatpush1.msra.mxu0 0.0
    %3918 = vmatprep.subr.mxu0 0.0
    %3919 = vmatpush1.msra.mxu0 0.0
    %3920 = vmatprep.subr.mxu0 0.0
    %3921 = vmatpush1.msra.mxu0 0.0
    %3922 = vmatprep.subr.mxu0 0.0
    %3923 = vmatpush1.msra.mxu0 0.0
    %3924 = vmatprep.subr.mxu0 0.0
    %3925 = vmatpush1.msra.mxu0 0.0
    %3926 = vmatprep.subr.mxu0 0.0
    %3927 = vmatpush1.msra.mxu0 0.0
    %3928 = vmatprep.subr.mxu0 0.0
    %3929 = vmatpush1.msra.mxu0 0.0
    %3930 = vmatprep.subr.mxu0 0.0
    %3931 = vmatpush1.msra.mxu0 0.0
    %3932 = vmatprep.subr.mxu0 0.0
    %3933 = vmatpush1.msra.mxu0 0.0
    %3934 = vmatprep.subr.mxu0 0.0
    %3935 = vmatpush1.msra.mxu0 0.0
    %3936 = vmatprep.subr.mxu0 0.0
    %3937 = vmatpush1.msra.mxu0 0.0
    %3938 = vmatprep.subr.mxu0 0.0
    %3939 = vmatpush1.msra.mxu0 0.0
    %3940 = vmatprep.subr.mxu0 0.0
    %3941 = vmatpush1.msra.mxu0 0.0
    %3942 = vmatprep.subr.mxu0 0.0
    %3943 = vmatpush1.msra.mxu0 0.0
    %3944 = vmatprep.subr.mxu0 0.0
    %3945 = vmatpush1.msra.mxu0 0.0
    %3946 = vmatprep.mubr.f32.mxu0 0.0
    %3947 = vmatmul.mubr.f32.gmra.mrb[0].mxu0 %v3527
    %v3948 = vpop.f32.mrb[0].mxu0
    %v3949 = vadd.f32 0.0, %v3948
    %v3950 = vpop.f32.mrb[0].mxu0
    %3951 = vmatprep.mubr.f32.mxu0 0.0
    %3952 = vmatmul.mubr.f32.gmra.mrb[0].mxu0 %v3530
    %v3953 = vpop.f32.mrb[0].mxu0
    %v3954 = vadd.f32 0.0, %v3953
    %v3955 = vpop.f32.mrb[0].mxu0
    %3956 = vmatprep.mubr.f32.mxu0 0.0
    %3957 = vmatmul.mubr.f32.gmra.mrb[0].mxu0 %v3533
    %v3958 = vpop.f32.mrb[0].mxu0
    %v3959 = vadd.f32 0.0, %v3958
    %v3960 = vpop.f32.mrb[0].mxu0
    %3961 = vmatprep.mubr.f32.mxu0 0.0
    %3962 = vmatmul.mubr.f32.gmra.mrb[0].mxu0 %v3536
    %v3963 = vpop.f32.mrb[0].mxu0
    %v3964 = vadd.f32 0.0, %v3963
    %v3965 = vpop.f32.mrb[0].mxu0
    %3966 = vdwg.mxu0
    %3967 = vmatprep.subr.mxu0 0.0
    %3968 = vmatpush1.msra.mxu0 %v3949
    %3969 = vmatprep.subr.mxu0 0.0
    %3970 = vmatpush1.msra.mxu0 %v3954
    %3971 = vmatprep.subr.mxu0 0.0
    %3972 = vmatpush1.msra.mxu0 %v3959
    %3973 = vmatprep.subr.mxu0 0.0
    %3974 = vmatpush1.msra.mxu0 %v3964
    %3975 = vmatprep.subr.mxu0 0.0
    %3976 = vmatpush1.msra.mxu0 0.0
    %3977 = vmatprep.subr.mxu0 0.0
    %3978 = vmatpush1.msra.mxu0 0.0
    %3979 = vmatprep.subr.mxu0 0.0
    %3980 = vmatpush1.msra.mxu0 0.0
    %3981 = vmatprep.subr.mxu0 0.0
    %3982 = vmatpush1.msra.mxu0 0.0
    %3983 = vmatprep.subr.mxu0 0.0
    %3984 = vmatpush1.msra.mxu0 0.0
    %3985 = vmatprep.subr.mxu0 0.0
    %3986 = vmatpush1.msra.mxu0 0.0
    %3987 = vmatprep.subr.mxu0 0.0
    %3988 = vmatpush1.msra.mxu0 0.0
    %3989 = vmatprep.subr.mxu0 0.0
    %3990 = vmatpush1.msra.mxu0 0.0
    %3991 = vmatprep.subr.mxu0 0.0
    %3992 = vmatpush1.msra.mxu0 0.0
    %3993 = vmatprep.subr.mxu0 0.0
    %3994 = vmatpush1.msra.mxu0 0.0
    %3995 = vmatprep.subr.mxu0 0.0
    %3996 = vmatpush1.msra.mxu0 0.0
    %3997 = vmatprep.subr.mxu0 0.0
    %3998 = vmatpush1.msra.mxu0 0.0
    %3999 = vmatprep.subr.mxu0 0.0
    %4000 = vmatpush1.msra.mxu0 0.0
    %4001 = vmatprep.subr.mxu0 0.0
    %4002 = vmatpush1.msra.mxu0 0.0
    %4003 = vmatprep.subr.mxu0 0.0
    %4004 = vmatpush1.msra.mxu0 0.0
    %4005 = vmatprep.subr.mxu0 0.0
    %4006 = vmatpush1.msra.mxu0 0.0
    %4007 = vmatprep.subr.mxu0 0.0
    %4008 = vmatpush1.msra.mxu0 0.0
    %4009 = vmatprep.subr.mxu0 0.0
    %4010 = vmatpush1.msra.mxu0 0.0
    %4011 = vmatprep.subr.mxu0 0.0
    %4012 = vmatpush1.msra.mxu0 0.0
    %4013 = vmatprep.subr.mxu0 0.0
    %4014 = vmatpush1.msra.mxu0 0.0
    %4015 = vmatprep.subr.mxu0 0.0
    %4016 = vmatpush1.msra.mxu0 0.0
    %4017 = vmatprep.subr.mxu0 0.0
    %4018 = vmatpush1.msra.mxu0 0.0
    %4019 = vmatprep.subr.mxu0 0.0
    %4020 = vmatpush1.msra.mxu0 0.0
    %4021 = vmatprep.subr.mxu0 0.0
    %4022 = vmatpush1.msra.mxu0 0.0
    %4023 = vmatprep.subr.mxu0 0.0
    %4024 = vmatpush1.msra.mxu0 0.0
    %4025 = vmatprep.subr.mxu0 0.0
    %4026 = vmatpush1.msra.mxu0 0.0
    %4027 = vmatprep.subr.mxu0 0.0
    %4028 = vmatpush1.msra.mxu0 0.0
    %4029 = vmatprep.subr.mxu0 0.0
    %4030 = vmatpush1.msra.mxu0 0.0
    %4031 = vmatprep.mubr.f32.mxu0 0.0
    %4032 = vmatmul.mubr.f32.gmra.mrb[0].mxu0 %v647
    %v4033 = vpop.f32.mrb[0].mxu0
    %v4034 = vadd.f32 0.0, %v4033
    %v4035 = vpop.f32.mrb[0].mxu0
    %4036 = vmatprep.mubr.f32.mxu0 0.0
    %4037 = vmatmul.mubr.f32.gmra.mrb[0].mxu0 %v650
    %v4038 = vpop.f32.mrb[0].mxu0
    %v4039 = vadd.f32 0.0, %v4038
    %v4040 = vpop.f32.mrb[0].mxu0
    %4041 = vmatprep.mubr.f32.mxu0 0.0
    %4042 = vmatmul.mubr.f32.gmra.mrb[0].mxu0 %v653
    %v4043 = vpop.f32.mrb[0].mxu0
    %v4044 = vadd.f32 0.0, %v4043
    %v4045 = vpop.f32.mrb[0].mxu0
    %4046 = vmatprep.mubr.f32.mxu0 0.0
    %4047 = vmatmul.mubr.f32.gmra.mrb[0].mxu0 %v656
    %v4048 = vpop.f32.mrb[0].mxu0
    %v4049 = vadd.f32 0.0, %v4048
    %v4050 = vpop.f32.mrb[0].mxu0
    %4051 = vdwg.mxu0
    %v4052 = vadd.f32 %v3862, %v4034
    %v4053 = vadd.f32 %v3867, %v4039
    %v4054 = vadd.f32 %v3872, %v4044
    %v4055 = vadd.f32 %v3877, %v4049
    %s4056 = scalar_lea.vmem %s6, 168
    %v4057 = vld [vmem:[%s4056] sm:$0xff]
    %4058 = vmatprep.subr.mxu0 0.0
    %4059 = vmatpush1.msra.mxu0 %v4057
    %4060 = vmatprep.subr.mxu0 0.0
    %4061 = vmatpush1.msra.mxu0 0.0
    %4062 = vmatprep.subr.mxu0 0.0
    %4063 = vmatpush1.msra.mxu0 0.0
    %4064 = vmatprep.subr.mxu0 0.0
    %4065 = vmatpush1.msra.mxu0 0.0
    %4066 = vmatprep.subr.mxu0 0.0
    %4067 = vmatpush1.msra.mxu0 0.0
    %4068 = vmatprep.subr.mxu0 0.0
    %4069 = vmatpush1.msra.mxu0 0.0
    %4070 = vmatprep.subr.mxu0 0.0
    %4071 = vmatpush1.msra.mxu0 0.0
    %4072 = vmatprep.subr.mxu0 0.0
    %4073 = vmatpush1.msra.mxu0 0.0
    %4074 = vmatprep.subr.mxu0 0.0
    %4075 = vmatpush1.msra.mxu0 0.0
    %4076 = vmatprep.subr.mxu0 0.0
    %4077 = vmatpush1.msra.mxu0 0.0
    %4078 = vmatprep.subr.mxu0 0.0
    %4079 = vmatpush1.msra.mxu0 0.0
    %4080 = vmatprep.subr.mxu0 0.0
    %4081 = vmatpush1.msra.mxu0 0.0
    %4082 = vmatprep.subr.mxu0 0.0
    %4083 = vmatpush1.msra.mxu0 0.0
    %4084 = vmatprep.subr.mxu0 0.0
    %4085 = vmatpush1.msra.mxu0 0.0
    %4086 = vmatprep.subr.mxu0 0.0
    %4087 = vmatpush1.msra.mxu0 0.0
    %4088 = vmatprep.subr.mxu0 0.0
    %4089 = vmatpush1.msra.mxu0 0.0
    %4090 = vmatprep.subr.mxu0 0.0
    %4091 = vmatpush1.msra.mxu0 0.0
    %4092 = vmatprep.subr.mxu0 0.0
    %4093 = vmatpush1.msra.mxu0 0.0
    %4094 = vmatprep.subr.mxu0 0.0
    %4095 = vmatpush1.msra.mxu0 0.0
    %4096 = vmatprep.subr.mxu0 0.0
    %4097 = vmatpush1.msra.mxu0 0.0
    %4098 = vmatprep.subr.mxu0 0.0
    %4099 = vmatpush1.msra.mxu0 0.0
    %4100 = vmatprep.subr.mxu0 0.0
    %4101 = vmatpush1.msra.mxu0 0.0
    %4102 = vmatprep.subr.mxu0 0.0
    %4103 = vmatpush1.msra.mxu0 0.0
    %4104 = vmatprep.subr.mxu0 0.0
    %4105 = vmatpush1.msra.mxu0 0.0
    %4106 = vmatprep.subr.mxu0 0.0
    %4107 = vmatpush1.msra.mxu0 0.0
    %4108 = vmatprep.subr.mxu0 0.0
    %4109 = vmatpush1.msra.mxu0 0.0
    %4110 = vmatprep.subr.mxu0 0.0
    %4111 = vmatpush1.msra.mxu0 0.0
    %4112 = vmatprep.subr.mxu0 0.0
    %4113 = vmatpush1.msra.mxu0 0.0
    %4114 = vmatprep.subr.mxu0 0.0
    %4115 = vmatpush1.msra.mxu0 0.0
    %4116 = vmatprep.subr.mxu0 0.0
    %4117 = vmatpush1.msra.mxu0 0.0
    %4118 = vmatprep.subr.mxu0 0.0
    %4119 = vmatpush1.msra.mxu0 0.0
    %4120 = vmatprep.subr.mxu0 0.0
    %4121 = vmatpush1.msra.mxu0 0.0
    %4122 = vmatprep.mubr.f32.mxu0 0.0
    %4123 = vmatmul.mubr.f32.gmra.mrb[0].mxu0 %v3527
    %v4124 = vpop.f32.mrb[0].mxu0
    %v4125 = vadd.f32 0.0, %v4124
    %v4126 = vpop.f32.mrb[0].mxu0
    %4127 = vmatprep.mubr.f32.mxu0 0.0
    %4128 = vmatmul.mubr.f32.gmra.mrb[0].mxu0 %v3530
    %v4129 = vpop.f32.mrb[0].mxu0
    %v4130 = vadd.f32 0.0, %v4129
    %v4131 = vpop.f32.mrb[0].mxu0
    %4132 = vmatprep.mubr.f32.mxu0 0.0
    %4133 = vmatmul.mubr.f32.gmra.mrb[0].mxu0 %v3533
    %v4134 = vpop.f32.mrb[0].mxu0
    %v4135 = vadd.f32 0.0, %v4134
    %v4136 = vpop.f32.mrb[0].mxu0
    %4137 = vmatprep.mubr.f32.mxu0 0.0
    %4138 = vmatmul.mubr.f32.gmra.mrb[0].mxu0 %v3536
    %v4139 = vpop.f32.mrb[0].mxu0
    %v4140 = vadd.f32 0.0, %v4139
    %v4141 = vpop.f32.mrb[0].mxu0
    %4142 = vdwg.mxu0
    %4143 = vmatprep.subr.mxu0 0.0
    %4144 = vmatpush1.msra.mxu0 %v4125
    %4145 = vmatprep.subr.mxu0 0.0
    %4146 = vmatpush1.msra.mxu0 %v4130
    %4147 = vmatprep.subr.mxu0 0.0
    %4148 = vmatpush1.msra.mxu0 %v4135
    %4149 = vmatprep.subr.mxu0 0.0
    %4150 = vmatpush1.msra.mxu0 %v4140
    %4151 = vmatprep.subr.mxu0 0.0
    %4152 = vmatpush1.msra.mxu0 0.0
    %4153 = vmatprep.subr.mxu0 0.0
    %4154 = vmatpush1.msra.mxu0 0.0
    %4155 = vmatprep.subr.mxu0 0.0
    %4156 = vmatpush1.msra.mxu0 0.0
    %4157 = vmatprep.subr.mxu0 0.0
    %4158 = vmatpush1.msra.mxu0 0.0
    %4159 = vmatprep.subr.mxu0 0.0
    %4160 = vmatpush1.msra.mxu0 0.0
    %4161 = vmatprep.subr.mxu0 0.0
    %4162 = vmatpush1.msra.mxu0 0.0
    %4163 = vmatprep.subr.mxu0 0.0
    %4164 = vmatpush1.msra.mxu0 0.0
    %4165 = vmatprep.subr.mxu0 0.0
    %4166 = vmatpush1.msra.mxu0 0.0
    %4167 = vmatprep.subr.mxu0 0.0
    %4168 = vmatpush1.msra.mxu0 0.0
    %4169 = vmatprep.subr.mxu0 0.0
    %4170 = vmatpush1.msra.mxu0 0.0
    %4171 = vmatprep.subr.mxu0 0.0
    %4172 = vmatpush1.msra.mxu0 0.0
    %4173 = vmatprep.subr.mxu0 0.0
    %4174 = vmatpush1.msra.mxu0 0.0
    %4175 = vmatprep.subr.mxu0 0.0
    %4176 = vmatpush1.msra.mxu0 0.0
    %4177 = vmatprep.subr.mxu0 0.0
    %4178 = vmatpush1.msra.mxu0 0.0
    %4179 = vmatprep.subr.mxu0 0.0
    %4180 = vmatpush1.msra.mxu0 0.0
    %4181 = vmatprep.subr.mxu0 0.0
    %4182 = vmatpush1.msra.mxu0 0.0
    %4183 = vmatprep.subr.mxu0 0.0
    %4184 = vmatpush1.msra.mxu0 0.0
    %4185 = vmatprep.subr.mxu0 0.0
    %4186 = vmatpush1.msra.mxu0 0.0
    %4187 = vmatprep.subr.mxu0 0.0
    %4188 = vmatpush1.msra.mxu0 0.0
    %4189 = vmatprep.subr.mxu0 0.0
    %4190 = vmatpush1.msra.mxu0 0.0
    %4191 = vmatprep.subr.mxu0 0.0
    %4192 = vmatpush1.msra.mxu0 0.0
    %4193 = vmatprep.subr.mxu0 0.0
    %4194 = vmatpush1.msra.mxu0 0.0
    %4195 = vmatprep.subr.mxu0 0.0
    %4196 = vmatpush1.msra.mxu0 0.0
    %4197 = vmatprep.subr.mxu0 0.0
    %4198 = vmatpush1.msra.mxu0 0.0
    %4199 = vmatprep.subr.mxu0 0.0
    %4200 = vmatpush1.msra.mxu0 0.0
    %4201 = vmatprep.subr.mxu0 0.0
    %4202 = vmatpush1.msra.mxu0 0.0
    %4203 = vmatprep.subr.mxu0 0.0
    %4204 = vmatpush1.msra.mxu0 0.0
    %4205 = vmatprep.subr.mxu0 0.0
    %4206 = vmatpush1.msra.mxu0 0.0
    %4207 = vmatprep.mubr.f32.mxu0 0.0
    %4208 = vmatmul.mubr.f32.gmra.mrb[0].mxu0 %v840
    %v4209 = vpop.f32.mrb[0].mxu0
    %v4210 = vadd.f32 0.0, %v4209
    %v4211 = vpop.f32.mrb[0].mxu0
    %4212 = vmatprep.mubr.f32.mxu0 0.0
    %4213 = vmatmul.mubr.f32.gmra.mrb[0].mxu0 %v843
    %v4214 = vpop.f32.mrb[0].mxu0
    %v4215 = vadd.f32 0.0, %v4214
    %v4216 = vpop.f32.mrb[0].mxu0
    %4217 = vmatprep.mubr.f32.mxu0 0.0
    %4218 = vmatmul.mubr.f32.gmra.mrb[0].mxu0 %v846
    %v4219 = vpop.f32.mrb[0].mxu0
    %v4220 = vadd.f32 0.0, %v4219
    %v4221 = vpop.f32.mrb[0].mxu0
    %4222 = vmatprep.mubr.f32.mxu0 0.0
    %4223 = vmatmul.mubr.f32.gmra.mrb[0].mxu0 %v849
    %v4224 = vpop.f32.mrb[0].mxu0
    %v4225 = vadd.f32 0.0, %v4224
    %v4226 = vpop.f32.mrb[0].mxu0
    %4227 = vdwg.mxu0
    %v4228 = vadd.f32 %v4052, %v4210
    %v4229 = vadd.f32 %v4053, %v4215
    %v4230 = vadd.f32 %v4054, %v4220
    %v4231 = vadd.f32 %v4055, %v4225
    %s4232 = scalar_lea.vmem %s6, 176
    %v4233 = vld [vmem:[%s4232] sm:$0xff]
    %4234 = vmatprep.subr.mxu0 0.0
    %4235 = vmatpush1.msra.mxu0 %v4233
    %4236 = vmatprep.subr.mxu0 0.0
    %4237 = vmatpush1.msra.mxu0 0.0
    %4238 = vmatprep.subr.mxu0 0.0
    %4239 = vmatpush1.msra.mxu0 0.0
    %4240 = vmatprep.subr.mxu0 0.0
    %4241 = vmatpush1.msra.mxu0 0.0
    %4242 = vmatprep.subr.mxu0 0.0
    %4243 = vmatpush1.msra.mxu0 0.0
    %4244 = vmatprep.subr.mxu0 0.0
    %4245 = vmatpush1.msra.mxu0 0.0
    %4246 = vmatprep.subr.mxu0 0.0
    %4247 = vmatpush1.msra.mxu0 0.0
    %4248 = vmatprep.subr.mxu0 0.0
    %4249 = vmatpush1.msra.mxu0 0.0
    %4250 = vmatprep.subr.mxu0 0.0
    %4251 = vmatpush1.msra.mxu0 0.0
    %4252 = vmatprep.subr.mxu0 0.0
    %4253 = vmatpush1.msra.mxu0 0.0
    %4254 = vmatprep.subr.mxu0 0.0
    %4255 = vmatpush1.msra.mxu0 0.0
    %4256 = vmatprep.subr.mxu0 0.0
    %4257 = vmatpush1.msra.mxu0 0.0
    %4258 = vmatprep.subr.mxu0 0.0
    %4259 = vmatpush1.msra.mxu0 0.0
    %4260 = vmatprep.subr.mxu0 0.0
    %4261 = vmatpush1.msra.mxu0 0.0
    %4262 = vmatprep.subr.mxu0 0.0
    %4263 = vmatpush1.msra.mxu0 0.0
    %4264 = vmatprep.subr.mxu0 0.0
    %4265 = vmatpush1.msra.mxu0 0.0
    %4266 = vmatprep.subr.mxu0 0.0
    %4267 = vmatpush1.msra.mxu0 0.0
    %4268 = vmatprep.subr.mxu0 0.0
    %4269 = vmatpush1.msra.mxu0 0.0
    %4270 = vmatprep.subr.mxu0 0.0
    %4271 = vmatpush1.msra.mxu0 0.0
    %4272 = vmatprep.subr.mxu0 0.0
    %4273 = vmatpush1.msra.mxu0 0.0
    %4274 = vmatprep.subr.mxu0 0.0
    %4275 = vmatpush1.msra.mxu0 0.0
    %4276 = vmatprep.subr.mxu0 0.0
    %4277 = vmatpush1.msra.mxu0 0.0
    %4278 = vmatprep.subr.mxu0 0.0
    %4279 = vmatpush1.msra.mxu0 0.0
    %4280 = vmatprep.subr.mxu0 0.0
    %4281 = vmatpush1.msra.mxu0 0.0
    %4282 = vmatprep.subr.mxu0 0.0
    %4283 = vmatpush1.msra.mxu0 0.0
    %4284 = vmatprep.subr.mxu0 0.0
    %4285 = vmatpush1.msra.mxu0 0.0
    %4286 = vmatprep.subr.mxu0 0.0
    %4287 = vmatpush1.msra.mxu0 0.0
    %4288 = vmatprep.subr.mxu0 0.0
    %4289 = vmatpush1.msra.mxu0 0.0
    %4290 = vmatprep.subr.mxu0 0.0
    %4291 = vmatpush1.msra.mxu0 0.0
    %4292 = vmatprep.subr.mxu0 0.0
    %4293 = vmatpush1.msra.mxu0 0.0
    %4294 = vmatprep.subr.mxu0 0.0
    %4295 = vmatpush1.msra.mxu0 0.0
    %4296 = vmatprep.subr.mxu0 0.0
    %4297 = vmatpush1.msra.mxu0 0.0
    %4298 = vmatprep.mubr.f32.mxu0 0.0
    %4299 = vmatmul.mubr.f32.gmra.mrb[0].mxu0 %v3527
    %v4300 = vpop.f32.mrb[0].mxu0
    %v4301 = vadd.f32 0.0, %v4300
    %v4302 = vpop.f32.mrb[0].mxu0
    %4303 = vmatprep.mubr.f32.mxu0 0.0
    %4304 = vmatmul.mubr.f32.gmra.mrb[0].mxu0 %v3530
    %v4305 = vpop.f32.mrb[0].mxu0
    %v4306 = vadd.f32 0.0, %v4305
    %v4307 = vpop.f32.mrb[0].mxu0
    %4308 = vmatprep.mubr.f32.mxu0 0.0
    %4309 = vmatmul.mubr.f32.gmra.mrb[0].mxu0 %v3533
    %v4310 = vpop.f32.mrb[0].mxu0
    %v4311 = vadd.f32 0.0, %v4310
    %v4312 = vpop.f32.mrb[0].mxu0
    %4313 = vmatprep.mubr.f32.mxu0 0.0
    %4314 = vmatmul.mubr.f32.gmra.mrb[0].mxu0 %v3536
    %v4315 = vpop.f32.mrb[0].mxu0
    %v4316 = vadd.f32 0.0, %v4315
    %v4317 = vpop.f32.mrb[0].mxu0
    %4318 = vdwg.mxu0
    %4319 = vmatprep.subr.mxu0 0.0
    %4320 = vmatpush1.msra.mxu0 %v4301
    %4321 = vmatprep.subr.mxu0 0.0
    %4322 = vmatpush1.msra.mxu0 %v4306
    %4323 = vmatprep.subr.mxu0 0.0
    %4324 = vmatpush1.msra.mxu0 %v4311
    %4325 = vmatprep.subr.mxu0 0.0
    %4326 = vmatpush1.msra.mxu0 %v4316
    %4327 = vmatprep.subr.mxu0 0.0
    %4328 = vmatpush1.msra.mxu0 0.0
    %4329 = vmatprep.subr.mxu0 0.0
    %4330 = vmatpush1.msra.mxu0 0.0
    %4331 = vmatprep.subr.mxu0 0.0
    %4332 = vmatpush1.msra.mxu0 0.0
    %4333 = vmatprep.subr.mxu0 0.0
    %4334 = vmatpush1.msra.mxu0 0.0
    %4335 = vmatprep.subr.mxu0 0.0
    %4336 = vmatpush1.msra.mxu0 0.0
    %4337 = vmatprep.subr.mxu0 0.0
    %4338 = vmatpush1.msra.mxu0 0.0
    %4339 = vmatprep.subr.mxu0 0.0
    %4340 = vmatpush1.msra.mxu0 0.0
    %4341 = vmatprep.subr.mxu0 0.0
    %4342 = vmatpush1.msra.mxu0 0.0
    %4343 = vmatprep.subr.mxu0 0.0
    %4344 = vmatpush1.msra.mxu0 0.0
    %4345 = vmatprep.subr.mxu0 0.0
    %4346 = vmatpush1.msra.mxu0 0.0
    %4347 = vmatprep.subr.mxu0 0.0
    %4348 = vmatpush1.msra.mxu0 0.0
    %4349 = vmatprep.subr.mxu0 0.0
    %4350 = vmatpush1.msra.mxu0 0.0
    %4351 = vmatprep.subr.mxu0 0.0
    %4352 = vmatpush1.msra.mxu0 0.0
    %4353 = vmatprep.subr.mxu0 0.0
    %4354 = vmatpush1.msra.mxu0 0.0
    %4355 = vmatprep.subr.mxu0 0.0
    %4356 = vmatpush1.msra.mxu0 0.0
    %4357 = vmatprep.subr.mxu0 0.0
    %4358 = vmatpush1.msra.mxu0 0.0
    %4359 = vmatprep.subr.mxu0 0.0
    %4360 = vmatpush1.msra.mxu0 0.0
    %4361 = vmatprep.subr.mxu0 0.0
    %4362 = vmatpush1.msra.mxu0 0.0
    %4363 = vmatprep.subr.mxu0 0.0
    %4364 = vmatpush1.msra.mxu0 0.0
    %4365 = vmatprep.subr.mxu0 0.0
    %4366 = vmatpush1.msra.mxu0 0.0
    %4367 = vmatprep.subr.mxu0 0.0
    %4368 = vmatpush1.msra.mxu0 0.0
    %4369 = vmatprep.subr.mxu0 0.0
    %4370 = vmatpush1.msra.mxu0 0.0
    %4371 = vmatprep.subr.mxu0 0.0
    %4372 = vmatpush1.msra.mxu0 0.0
    %4373 = vmatprep.subr.mxu0 0.0
    %4374 = vmatpush1.msra.mxu0 0.0
    %4375 = vmatprep.subr.mxu0 0.0
    %4376 = vmatpush1.msra.mxu0 0.0
    %4377 = vmatprep.subr.mxu0 0.0
    %4378 = vmatpush1.msra.mxu0 0.0
    %4379 = vmatprep.subr.mxu0 0.0
    %4380 = vmatpush1.msra.mxu0 0.0
    %4381 = vmatprep.subr.mxu0 0.0
    %4382 = vmatpush1.msra.mxu0 0.0
    %4383 = vmatprep.mubr.f32.mxu0 0.0
    %4384 = vmatmul.mubr.f32.gmra.mrb[0].mxu0 %v1033
    %v4385 = vpop.f32.mrb[0].mxu0
    %v4386 = vadd.f32 0.0, %v4385
    %v4387 = vpop.f32.mrb[0].mxu0
    %4388 = vmatprep.mubr.f32.mxu0 0.0
    %4389 = vmatmul.mubr.f32.gmra.mrb[0].mxu0 %v1036
    %v4390 = vpop.f32.mrb[0].mxu0
    %v4391 = vadd.f32 0.0, %v4390
    %v4392 = vpop.f32.mrb[0].mxu0
    %4393 = vmatprep.mubr.f32.mxu0 0.0
    %4394 = vmatmul.mubr.f32.gmra.mrb[0].mxu0 %v1039
    %v4395 = vpop.f32.mrb[0].mxu0
    %v4396 = vadd.f32 0.0, %v4395
    %v4397 = vpop.f32.mrb[0].mxu0
    %4398 = vmatprep.mubr.f32.mxu0 0.0
    %4399 = vmatmul.mubr.f32.gmra.mrb[0].mxu0 %v1042
    %v4400 = vpop.f32.mrb[0].mxu0
    %v4401 = vadd.f32 0.0, %v4400
    %v4402 = vpop.f32.mrb[0].mxu0
    %4403 = vdwg.mxu0
    %v4404 = vadd.f32 %v4228, %v4386
    %v4405 = vadd.f32 %v4229, %v4391
    %v4406 = vadd.f32 %v4230, %v4396
    %v4407 = vadd.f32 %v4231, %v4401
    %s4408 = scalar_lea.vmem %s6, 184
    %v4409 = vld [vmem:[%s4408] sm:$0xff]
    %4410 = vmatprep.subr.mxu0 0.0
    %4411 = vmatpush1.msra.mxu0 %v4409
    %4412 = vmatprep.subr.mxu0 0.0
    %4413 = vmatpush1.msra.mxu0 0.0
    %4414 = vmatprep.subr.mxu0 0.0
    %4415 = vmatpush1.msra.mxu0 0.0
    %4416 = vmatprep.subr.mxu0 0.0
    %4417 = vmatpush1.msra.mxu0 0.0
    %4418 = vmatprep.subr.mxu0 0.0
    %4419 = vmatpush1.msra.mxu0 0.0
    %4420 = vmatprep.subr.mxu0 0.0
    %4421 = vmatpush1.msra.mxu0 0.0
    %4422 = vmatprep.subr.mxu0 0.0
    %4423 = vmatpush1.msra.mxu0 0.0
    %4424 = vmatprep.subr.mxu0 0.0
    %4425 = vmatpush1.msra.mxu0 0.0
    %4426 = vmatprep.subr.mxu0 0.0
    %4427 = vmatpush1.msra.mxu0 0.0
    %4428 = vmatprep.subr.mxu0 0.0
    %4429 = vmatpush1.msra.mxu0 0.0
    %4430 = vmatprep.subr.mxu0 0.0
    %4431 = vmatpush1.msra.mxu0 0.0
    %4432 = vmatprep.subr.mxu0 0.0
    %4433 = vmatpush1.msra.mxu0 0.0
    %4434 = vmatprep.subr.mxu0 0.0
    %4435 = vmatpush1.msra.mxu0 0.0
    %4436 = vmatprep.subr.mxu0 0.0
    %4437 = vmatpush1.msra.mxu0 0.0
    %4438 = vmatprep.subr.mxu0 0.0
    %4439 = vmatpush1.msra.mxu0 0.0
    %4440 = vmatprep.subr.mxu0 0.0
    %4441 = vmatpush1.msra.mxu0 0.0
    %4442 = vmatprep.subr.mxu0 0.0
    %4443 = vmatpush1.msra.mxu0 0.0
    %4444 = vmatprep.subr.mxu0 0.0
    %4445 = vmatpush1.msra.mxu0 0.0
    %4446 = vmatprep.subr.mxu0 0.0
    %4447 = vmatpush1.msra.mxu0 0.0
    %4448 = vmatprep.subr.mxu0 0.0
    %4449 = vmatpush1.msra.mxu0 0.0
    %4450 = vmatprep.subr.mxu0 0.0
    %4451 = vmatpush1.msra.mxu0 0.0
    %4452 = vmatprep.subr.mxu0 0.0
    %4453 = vmatpush1.msra.mxu0 0.0
    %4454 = vmatprep.subr.mxu0 0.0
    %4455 = vmatpush1.msra.mxu0 0.0
    %4456 = vmatprep.subr.mxu0 0.0
    %4457 = vmatpush1.msra.mxu0 0.0
    %4458 = vmatprep.subr.mxu0 0.0
    %4459 = vmatpush1.msra.mxu0 0.0
    %4460 = vmatprep.subr.mxu0 0.0
    %4461 = vmatpush1.msra.mxu0 0.0
    %4462 = vmatprep.subr.mxu0 0.0
    %4463 = vmatpush1.msra.mxu0 0.0
    %4464 = vmatprep.subr.mxu0 0.0
    %4465 = vmatpush1.msra.mxu0 0.0
    %4466 = vmatprep.subr.mxu0 0.0
    %4467 = vmatpush1.msra.mxu0 0.0
    %4468 = vmatprep.subr.mxu0 0.0
    %4469 = vmatpush1.msra.mxu0 0.0
    %4470 = vmatprep.subr.mxu0 0.0
    %4471 = vmatpush1.msra.mxu0 0.0
    %4472 = vmatprep.subr.mxu0 0.0
    %4473 = vmatpush1.msra.mxu0 0.0
    %4474 = vmatprep.mubr.f32.mxu0 0.0
    %4475 = vmatmul.mubr.f32.gmra.mrb[0].mxu0 %v3527
    %v4476 = vpop.f32.mrb[0].mxu0
    %v4477 = vadd.f32 0.0, %v4476
    %v4478 = vpop.f32.mrb[0].mxu0
    %4479 = vmatprep.mubr.f32.mxu0 0.0
    %4480 = vmatmul.mubr.f32.gmra.mrb[0].mxu0 %v3530
    %v4481 = vpop.f32.mrb[0].mxu0
    %v4482 = vadd.f32 0.0, %v4481
    %v4483 = vpop.f32.mrb[0].mxu0
    %4484 = vmatprep.mubr.f32.mxu0 0.0
    %4485 = vmatmul.mubr.f32.gmra.mrb[0].mxu0 %v3533
    %v4486 = vpop.f32.mrb[0].mxu0
    %v4487 = vadd.f32 0.0, %v4486
    %v4488 = vpop.f32.mrb[0].mxu0
    %4489 = vmatprep.mubr.f32.mxu0 0.0
    %4490 = vmatmul.mubr.f32.gmra.mrb[0].mxu0 %v3536
    %v4491 = vpop.f32.mrb[0].mxu0
    %v4492 = vadd.f32 0.0, %v4491
    %v4493 = vpop.f32.mrb[0].mxu0
    %4494 = vdwg.mxu0
    %4495 = vmatprep.subr.mxu0 0.0
    %4496 = vmatpush1.msra.mxu0 %v4477
    %4497 = vmatprep.subr.mxu0 0.0
    %4498 = vmatpush1.msra.mxu0 %v4482
    %4499 = vmatprep.subr.mxu0 0.0
    %4500 = vmatpush1.msra.mxu0 %v4487
    %4501 = vmatprep.subr.mxu0 0.0
    %4502 = vmatpush1.msra.mxu0 %v4492
    %4503 = vmatprep.subr.mxu0 0.0
    %4504 = vmatpush1.msra.mxu0 0.0
    %4505 = vmatprep.subr.mxu0 0.0
    %4506 = vmatpush1.msra.mxu0 0.0
    %4507 = vmatprep.subr.mxu0 0.0
    %4508 = vmatpush1.msra.mxu0 0.0
    %4509 = vmatprep.subr.mxu0 0.0
    %4510 = vmatpush1.msra.mxu0 0.0
    %4511 = vmatprep.subr.mxu0 0.0
    %4512 = vmatpush1.msra.mxu0 0.0
    %4513 = vmatprep.subr.mxu0 0.0
    %4514 = vmatpush1.msra.mxu0 0.0
    %4515 = vmatprep.subr.mxu0 0.0
    %4516 = vmatpush1.msra.mxu0 0.0
    %4517 = vmatprep.subr.mxu0 0.0
    %4518 = vmatpush1.msra.mxu0 0.0
    %4519 = vmatprep.subr.mxu0 0.0
    %4520 = vmatpush1.msra.mxu0 0.0
    %4521 = vmatprep.subr.mxu0 0.0
    %4522 = vmatpush1.msra.mxu0 0.0
    %4523 = vmatprep.subr.mxu0 0.0
    %4524 = vmatpush1.msra.mxu0 0.0
    %4525 = vmatprep.subr.mxu0 0.0
    %4526 = vmatpush1.msra.mxu0 0.0
    %4527 = vmatprep.subr.mxu0 0.0
    %4528 = vmatpush1.msra.mxu0 0.0
    %4529 = vmatprep.subr.mxu0 0.0
    %4530 = vmatpush1.msra.mxu0 0.0
    %4531 = vmatprep.subr.mxu0 0.0
    %4532 = vmatpush1.msra.mxu0 0.0
    %4533 = vmatprep.subr.mxu0 0.0
    %4534 = vmatpush1.msra.mxu0 0.0
    %4535 = vmatprep.subr.mxu0 0.0
    %4536 = vmatpush1.msra.mxu0 0.0
    %4537 = vmatprep.subr.mxu0 0.0
    %4538 = vmatpush1.msra.mxu0 0.0
    %4539 = vmatprep.subr.mxu0 0.0
    %4540 = vmatpush1.msra.mxu0 0.0
    %4541 = vmatprep.subr.mxu0 0.0
    %4542 = vmatpush1.msra.mxu0 0.0
    %4543 = vmatprep.subr.mxu0 0.0
    %4544 = vmatpush1.msra.mxu0 0.0
    %4545 = vmatprep.subr.mxu0 0.0
    %4546 = vmatpush1.msra.mxu0 0.0
    %4547 = vmatprep.subr.mxu0 0.0
    %4548 = vmatpush1.msra.mxu0 0.0
    %4549 = vmatprep.subr.mxu0 0.0
    %4550 = vmatpush1.msra.mxu0 0.0
    %4551 = vmatprep.subr.mxu0 0.0
    %4552 = vmatpush1.msra.mxu0 0.0
    %4553 = vmatprep.subr.mxu0 0.0
    %4554 = vmatpush1.msra.mxu0 0.0
    %4555 = vmatprep.subr.mxu0 0.0
    %4556 = vmatpush1.msra.mxu0 0.0
    %4557 = vmatprep.subr.mxu0 0.0
    %4558 = vmatpush1.msra.mxu0 0.0
    %4559 = vmatprep.mubr.f32.mxu0 0.0
    %4560 = vmatmul.mubr.f32.gmra.mrb[0].mxu0 %v1226
    %v4561 = vpop.f32.mrb[0].mxu0
    %v4562 = vadd.f32 0.0, %v4561
    %v4563 = vpop.f32.mrb[0].mxu0
    %4564 = vmatprep.mubr.f32.mxu0 0.0
    %4565 = vmatmul.mubr.f32.gmra.mrb[0].mxu0 %v1229
    %v4566 = vpop.f32.mrb[0].mxu0
    %v4567 = vadd.f32 0.0, %v4566
    %v4568 = vpop.f32.mrb[0].mxu0
    %4569 = vmatprep.mubr.f32.mxu0 0.0
    %4570 = vmatmul.mubr.f32.gmra.mrb[0].mxu0 %v1232
    %v4571 = vpop.f32.mrb[0].mxu0
    %v4572 = vadd.f32 0.0, %v4571
    %v4573 = vpop.f32.mrb[0].mxu0
    %4574 = vmatprep.mubr.f32.mxu0 0.0
    %4575 = vmatmul.mubr.f32.gmra.mrb[0].mxu0 %v1235
    %v4576 = vpop.f32.mrb[0].mxu0
    %v4577 = vadd.f32 0.0, %v4576
    %v4578 = vpop.f32.mrb[0].mxu0
    %4579 = vdwg.mxu0
    %v4580 = vadd.f32 %v4404, %v4562
    %v4581 = vadd.f32 %v4405, %v4567
    %v4582 = vadd.f32 %v4406, %v4572
    %v4583 = vadd.f32 %v4407, %v4577
    %s4584 = scalar_lea.vmem %s6, 192
    %v4585 = vld [vmem:[%s4584] sm:$0xff]
    %4586 = vmatprep.subr.mxu0 0.0
    %4587 = vmatpush1.msra.mxu0 %v4585
    %4588 = vmatprep.subr.mxu0 0.0
    %4589 = vmatpush1.msra.mxu0 0.0
    %4590 = vmatprep.subr.mxu0 0.0
    %4591 = vmatpush1.msra.mxu0 0.0
    %4592 = vmatprep.subr.mxu0 0.0
    %4593 = vmatpush1.msra.mxu0 0.0
    %4594 = vmatprep.subr.mxu0 0.0
    %4595 = vmatpush1.msra.mxu0 0.0
    %4596 = vmatprep.subr.mxu0 0.0
    %4597 = vmatpush1.msra.mxu0 0.0
    %4598 = vmatprep.subr.mxu0 0.0
    %4599 = vmatpush1.msra.mxu0 0.0
    %4600 = vmatprep.subr.mxu0 0.0
    %4601 = vmatpush1.msra.mxu0 0.0
    %4602 = vmatprep.subr.mxu0 0.0
    %4603 = vmatpush1.msra.mxu0 0.0
    %4604 = vmatprep.subr.mxu0 0.0
    %4605 = vmatpush1.msra.mxu0 0.0
    %4606 = vmatprep.subr.mxu0 0.0
    %4607 = vmatpush1.msra.mxu0 0.0
    %4608 = vmatprep.subr.mxu0 0.0
    %4609 = vmatpush1.msra.mxu0 0.0
    %4610 = vmatprep.subr.mxu0 0.0
    %4611 = vmatpush1.msra.mxu0 0.0
    %4612 = vmatprep.subr.mxu0 0.0
    %4613 = vmatpush1.msra.mxu0 0.0
    %4614 = vmatprep.subr.mxu0 0.0
    %4615 = vmatpush1.msra.mxu0 0.0
    %4616 = vmatprep.subr.mxu0 0.0
    %4617 = vmatpush1.msra.mxu0 0.0
    %4618 = vmatprep.subr.mxu0 0.0
    %4619 = vmatpush1.msra.mxu0 0.0
    %4620 = vmatprep.subr.mxu0 0.0
    %4621 = vmatpush1.msra.mxu0 0.0
    %4622 = vmatprep.subr.mxu0 0.0
    %4623 = vmatpush1.msra.mxu0 0.0
    %4624 = vmatprep.subr.mxu0 0.0
    %4625 = vmatpush1.msra.mxu0 0.0
    %4626 = vmatprep.subr.mxu0 0.0
    %4627 = vmatpush1.msra.mxu0 0.0
    %4628 = vmatprep.subr.mxu0 0.0
    %4629 = vmatpush1.msra.mxu0 0.0
    %4630 = vmatprep.subr.mxu0 0.0
    %4631 = vmatpush1.msra.mxu0 0.0
    %4632 = vmatprep.subr.mxu0 0.0
    %4633 = vmatpush1.msra.mxu0 0.0
    %4634 = vmatprep.subr.mxu0 0.0
    %4635 = vmatpush1.msra.mxu0 0.0
    %4636 = vmatprep.subr.mxu0 0.0
    %4637 = vmatpush1.msra.mxu0 0.0
    %4638 = vmatprep.subr.mxu0 0.0
    %4639 = vmatpush1.msra.mxu0 0.0
    %4640 = vmatprep.subr.mxu0 0.0
    %4641 = vmatpush1.msra.mxu0 0.0
    %4642 = vmatprep.subr.mxu0 0.0
    %4643 = vmatpush1.msra.mxu0 0.0
    %4644 = vmatprep.subr.mxu0 0.0
    %4645 = vmatpush1.msra.mxu0 0.0
    %4646 = vmatprep.subr.mxu0 0.0
    %4647 = vmatpush1.msra.mxu0 0.0
    %4648 = vmatprep.subr.mxu0 0.0
    %4649 = vmatpush1.msra.mxu0 0.0
    %4650 = vmatprep.mubr.f32.mxu0 0.0
    %4651 = vmatmul.mubr.f32.gmra.mrb[0].mxu0 %v3527
    %v4652 = vpop.f32.mrb[0].mxu0
    %v4653 = vadd.f32 0.0, %v4652
    %v4654 = vpop.f32.mrb[0].mxu0
    %4655 = vmatprep.mubr.f32.mxu0 0.0
    %4656 = vmatmul.mubr.f32.gmra.mrb[0].mxu0 %v3530
    %v4657 = vpop.f32.mrb[0].mxu0
    %v4658 = vadd.f32 0.0, %v4657
    %v4659 = vpop.f32.mrb[0].mxu0
    %4660 = vmatprep.mubr.f32.mxu0 0.0
    %4661 = vmatmul.mubr.f32.gmra.mrb[0].mxu0 %v3533
    %v4662 = vpop.f32.mrb[0].mxu0
    %v4663 = vadd.f32 0.0, %v4662
    %v4664 = vpop.f32.mrb[0].mxu0
    %4665 = vmatprep.mubr.f32.mxu0 0.0
    %4666 = vmatmul.mubr.f32.gmra.mrb[0].mxu0 %v3536
    %v4667 = vpop.f32.mrb[0].mxu0
    %v4668 = vadd.f32 0.0, %v4667
    %v4669 = vpop.f32.mrb[0].mxu0
    %4670 = vdwg.mxu0
    %4671 = vmatprep.subr.mxu0 0.0
    %4672 = vmatpush1.msra.mxu0 %v4653
    %4673 = vmatprep.subr.mxu0 0.0
    %4674 = vmatpush1.msra.mxu0 %v4658
    %4675 = vmatprep.subr.mxu0 0.0
    %4676 = vmatpush1.msra.mxu0 %v4663
    %4677 = vmatprep.subr.mxu0 0.0
    %4678 = vmatpush1.msra.mxu0 %v4668
    %4679 = vmatprep.subr.mxu0 0.0
    %4680 = vmatpush1.msra.mxu0 0.0
    %4681 = vmatprep.subr.mxu0 0.0
    %4682 = vmatpush1.msra.mxu0 0.0
    %4683 = vmatprep.subr.mxu0 0.0
    %4684 = vmatpush1.msra.mxu0 0.0
    %4685 = vmatprep.subr.mxu0 0.0
    %4686 = vmatpush1.msra.mxu0 0.0
    %4687 = vmatprep.subr.mxu0 0.0
    %4688 = vmatpush1.msra.mxu0 0.0
    %4689 = vmatprep.subr.mxu0 0.0
    %4690 = vmatpush1.msra.mxu0 0.0
    %4691 = vmatprep.subr.mxu0 0.0
    %4692 = vmatpush1.msra.mxu0 0.0
    %4693 = vmatprep.subr.mxu0 0.0
    %4694 = vmatpush1.msra.mxu0 0.0
    %4695 = vmatprep.subr.mxu0 0.0
    %4696 = vmatpush1.msra.mxu0 0.0
    %4697 = vmatprep.subr.mxu0 0.0
    %4698 = vmatpush1.msra.mxu0 0.0
    %4699 = vmatprep.subr.mxu0 0.0
    %4700 = vmatpush1.msra.mxu0 0.0
    %4701 = vmatprep.subr.mxu0 0.0
    %4702 = vmatpush1.msra.mxu0 0.0
    %4703 = vmatprep.subr.mxu0 0.0
    %4704 = vmatpush1.msra.mxu0 0.0
    %4705 = vmatprep.subr.mxu0 0.0
    %4706 = vmatpush1.msra.mxu0 0.0
    %4707 = vmatprep.subr.mxu0 0.0
    %4708 = vmatpush1.msra.mxu0 0.0
    %4709 = vmatprep.subr.mxu0 0.0
    %4710 = vmatpush1.msra.mxu0 0.0
    %4711 = vmatprep.subr.mxu0 0.0
    %4712 = vmatpush1.msra.mxu0 0.0
    %4713 = vmatprep.subr.mxu0 0.0
    %4714 = vmatpush1.msra.mxu0 0.0
    %4715 = vmatprep.subr.mxu0 0.0
    %4716 = vmatpush1.msra.mxu0 0.0
    %4717 = vmatprep.subr.mxu0 0.0
    %4718 = vmatpush1.msra.mxu0 0.0
    %4719 = vmatprep.subr.mxu0 0.0
    %4720 = vmatpush1.msra.mxu0 0.0
    %4721 = vmatprep.subr.mxu0 0.0
    %4722 = vmatpush1.msra.mxu0 0.0
    %4723 = vmatprep.subr.mxu0 0.0
    %4724 = vmatpush1.msra.mxu0 0.0
    %4725 = vmatprep.subr.mxu0 0.0
    %4726 = vmatpush1.msra.mxu0 0.0
    %4727 = vmatprep.subr.mxu0 0.0
    %4728 = vmatpush1.msra.mxu0 0.0
    %4729 = vmatprep.subr.mxu0 0.0
    %4730 = vmatpush1.msra.mxu0 0.0
    %4731 = vmatprep.subr.mxu0 0.0
    %4732 = vmatpush1.msra.mxu0 0.0
    %4733 = vmatprep.subr.mxu0 0.0
    %4734 = vmatpush1.msra.mxu0 0.0
    %4735 = vmatprep.mubr.f32.mxu0 0.0
    %4736 = vmatmul.mubr.f32.gmra.mrb[0].mxu0 %v1419
    %v4737 = vpop.f32.mrb[0].mxu0
    %v4738 = vadd.f32 0.0, %v4737
    %v4739 = vpop.f32.mrb[0].mxu0
    %4740 = vmatprep.mubr.f32.mxu0 0.0
    %4741 = vmatmul.mubr.f32.gmra.mrb[0].mxu0 %v1422
    %v4742 = vpop.f32.mrb[0].mxu0
    %v4743 = vadd.f32 0.0, %v4742
    %v4744 = vpop.f32.mrb[0].mxu0
    %4745 = vmatprep.mubr.f32.mxu0 0.0
    %4746 = vmatmul.mubr.f32.gmra.mrb[0].mxu0 %v1425
    %v4747 = vpop.f32.mrb[0].mxu0
    %v4748 = vadd.f32 0.0, %v4747
    %v4749 = vpop.f32.mrb[0].mxu0
    %4750 = vmatprep.mubr.f32.mxu0 0.0
    %4751 = vmatmul.mubr.f32.gmra.mrb[0].mxu0 %v1428
    %v4752 = vpop.f32.mrb[0].mxu0
    %v4753 = vadd.f32 0.0, %v4752
    %v4754 = vpop.f32.mrb[0].mxu0
    %4755 = vdwg.mxu0
    %v4756 = vadd.f32 %v4580, %v4738
    %v4757 = vadd.f32 %v4581, %v4743
    %v4758 = vadd.f32 %v4582, %v4748
    %v4759 = vadd.f32 %v4583, %v4753
    %s4760 = scalar_lea.vmem %s6, 200
    %v4761 = vld [vmem:[%s4760] sm:$0xff]
    %4762 = vmatprep.subr.mxu0 0.0
    %4763 = vmatpush1.msra.mxu0 %v4761
    %4764 = vmatprep.subr.mxu0 0.0
    %4765 = vmatpush1.msra.mxu0 0.0
    %4766 = vmatprep.subr.mxu0 0.0
    %4767 = vmatpush1.msra.mxu0 0.0
    %4768 = vmatprep.subr.mxu0 0.0
    %4769 = vmatpush1.msra.mxu0 0.0
    %4770 = vmatprep.subr.mxu0 0.0
    %4771 = vmatpush1.msra.mxu0 0.0
    %4772 = vmatprep.subr.mxu0 0.0
    %4773 = vmatpush1.msra.mxu0 0.0
    %4774 = vmatprep.subr.mxu0 0.0
    %4775 = vmatpush1.msra.mxu0 0.0
    %4776 = vmatprep.subr.mxu0 0.0
    %4777 = vmatpush1.msra.mxu0 0.0
    %4778 = vmatprep.subr.mxu0 0.0
    %4779 = vmatpush1.msra.mxu0 0.0
    %4780 = vmatprep.subr.mxu0 0.0
    %4781 = vmatpush1.msra.mxu0 0.0
    %4782 = vmatprep.subr.mxu0 0.0
    %4783 = vmatpush1.msra.mxu0 0.0
    %4784 = vmatprep.subr.mxu0 0.0
    %4785 = vmatpush1.msra.mxu0 0.0
    %4786 = vmatprep.subr.mxu0 0.0
    %4787 = vmatpush1.msra.mxu0 0.0
    %4788 = vmatprep.subr.mxu0 0.0
    %4789 = vmatpush1.msra.mxu0 0.0
    %4790 = vmatprep.subr.mxu0 0.0
    %4791 = vmatpush1.msra.mxu0 0.0
    %4792 = vmatprep.subr.mxu0 0.0
    %4793 = vmatpush1.msra.mxu0 0.0
    %4794 = vmatprep.subr.mxu0 0.0
    %4795 = vmatpush1.msra.mxu0 0.0
    %4796 = vmatprep.subr.mxu0 0.0
    %4797 = vmatpush1.msra.mxu0 0.0
    %4798 = vmatprep.subr.mxu0 0.0
    %4799 = vmatpush1.msra.mxu0 0.0
    %4800 = vmatprep.subr.mxu0 0.0
    %4801 = vmatpush1.msra.mxu0 0.0
    %4802 = vmatprep.subr.mxu0 0.0
    %4803 = vmatpush1.msra.mxu0 0.0
    %4804 = vmatprep.subr.mxu0 0.0
    %4805 = vmatpush1.msra.mxu0 0.0
    %4806 = vmatprep.subr.mxu0 0.0
    %4807 = vmatpush1.msra.mxu0 0.0
    %4808 = vmatprep.subr.mxu0 0.0
    %4809 = vmatpush1.msra.mxu0 0.0
    %4810 = vmatprep.subr.mxu0 0.0
    %4811 = vmatpush1.msra.mxu0 0.0
    %4812 = vmatprep.subr.mxu0 0.0
    %4813 = vmatpush1.msra.mxu0 0.0
    %4814 = vmatprep.subr.mxu0 0.0
    %4815 = vmatpush1.msra.mxu0 0.0
    %4816 = vmatprep.subr.mxu0 0.0
    %4817 = vmatpush1.msra.mxu0 0.0
    %4818 = vmatprep.subr.mxu0 0.0
    %4819 = vmatpush1.msra.mxu0 0.0
    %4820 = vmatprep.subr.mxu0 0.0
    %4821 = vmatpush1.msra.mxu0 0.0
    %4822 = vmatprep.subr.mxu0 0.0
    %4823 = vmatpush1.msra.mxu0 0.0
    %4824 = vmatprep.subr.mxu0 0.0
    %4825 = vmatpush1.msra.mxu0 0.0
    %4826 = vmatprep.mubr.f32.mxu0 0.0
    %4827 = vmatmul.mubr.f32.gmra.mrb[0].mxu0 %v3527
    %v4828 = vpop.f32.mrb[0].mxu0
    %v4829 = vadd.f32 0.0, %v4828
    %v4830 = vpop.f32.mrb[0].mxu0
    %4831 = vmatprep.mubr.f32.mxu0 0.0
    %4832 = vmatmul.mubr.f32.gmra.mrb[0].mxu0 %v3530
    %v4833 = vpop.f32.mrb[0].mxu0
    %v4834 = vadd.f32 0.0, %v4833
    %v4835 = vpop.f32.mrb[0].mxu0
    %4836 = vmatprep.mubr.f32.mxu0 0.0
    %4837 = vmatmul.mubr.f32.gmra.mrb[0].mxu0 %v3533
    %v4838 = vpop.f32.mrb[0].mxu0
    %v4839 = vadd.f32 0.0, %v4838
    %v4840 = vpop.f32.mrb[0].mxu0
    %4841 = vmatprep.mubr.f32.mxu0 0.0
    %4842 = vmatmul.mubr.f32.gmra.mrb[0].mxu0 %v3536
    %v4843 = vpop.f32.mrb[0].mxu0
    %v4844 = vadd.f32 0.0, %v4843
    %v4845 = vpop.f32.mrb[0].mxu0
    %4846 = vdwg.mxu0
    %4847 = vmatprep.subr.mxu0 0.0
    %4848 = vmatpush1.msra.mxu0 %v4829
    %4849 = vmatprep.subr.mxu0 0.0
    %4850 = vmatpush1.msra.mxu0 %v4834
    %4851 = vmatprep.subr.mxu0 0.0
    %4852 = vmatpush1.msra.mxu0 %v4839
    %4853 = vmatprep.subr.mxu0 0.0
    %4854 = vmatpush1.msra.mxu0 %v4844
    %4855 = vmatprep.subr.mxu0 0.0
    %4856 = vmatpush1.msra.mxu0 0.0
    %4857 = vmatprep.subr.mxu0 0.0
    %4858 = vmatpush1.msra.mxu0 0.0
    %4859 = vmatprep.subr.mxu0 0.0
    %4860 = vmatpush1.msra.mxu0 0.0
    %4861 = vmatprep.subr.mxu0 0.0
    %4862 = vmatpush1.msra.mxu0 0.0
    %4863 = vmatprep.subr.mxu0 0.0
    %4864 = vmatpush1.msra.mxu0 0.0
    %4865 = vmatprep.subr.mxu0 0.0
    %4866 = vmatpush1.msra.mxu0 0.0
    %4867 = vmatprep.subr.mxu0 0.0
    %4868 = vmatpush1.msra.mxu0 0.0
    %4869 = vmatprep.subr.mxu0 0.0
    %4870 = vmatpush1.msra.mxu0 0.0
    %4871 = vmatprep.subr.mxu0 0.0
    %4872 = vmatpush1.msra.mxu0 0.0
    %4873 = vmatprep.subr.mxu0 0.0
    %4874 = vmatpush1.msra.mxu0 0.0
    %4875 = vmatprep.subr.mxu0 0.0
    %4876 = vmatpush1.msra.mxu0 0.0
    %4877 = vmatprep.subr.mxu0 0.0
    %4878 = vmatpush1.msra.mxu0 0.0
    %4879 = vmatprep.subr.mxu0 0.0
    %4880 = vmatpush1.msra.mxu0 0.0
    %4881 = vmatprep.subr.mxu0 0.0
    %4882 = vmatpush1.msra.mxu0 0.0
    %4883 = vmatprep.subr.mxu0 0.0
    %4884 = vmatpush1.msra.mxu0 0.0
    %4885 = vmatprep.subr.mxu0 0.0
    %4886 = vmatpush1.msra.mxu0 0.0
    %4887 = vmatprep.subr.mxu0 0.0
    %4888 = vmatpush1.msra.mxu0 0.0
    %4889 = vmatprep.subr.mxu0 0.0
    %4890 = vmatpush1.msra.mxu0 0.0
    %4891 = vmatprep.subr.mxu0 0.0
    %4892 = vmatpush1.msra.mxu0 0.0
    %4893 = vmatprep.subr.mxu0 0.0
    %4894 = vmatpush1.msra.mxu0 0.0
    %4895 = vmatprep.subr.mxu0 0.0
    %4896 = vmatpush1.msra.mxu0 0.0
    %4897 = vmatprep.subr.mxu0 0.0
    %4898 = vmatpush1.msra.mxu0 0.0
    %4899 = vmatprep.subr.mxu0 0.0
    %4900 = vmatpush1.msra.mxu0 0.0
    %4901 = vmatprep.subr.mxu0 0.0
    %4902 = vmatpush1.msra.mxu0 0.0
    %4903 = vmatprep.subr.mxu0 0.0
    %4904 = vmatpush1.msra.mxu0 0.0
    %4905 = vmatprep.subr.mxu0 0.0
    %4906 = vmatpush1.msra.mxu0 0.0
    %4907 = vmatprep.subr.mxu0 0.0
    %4908 = vmatpush1.msra.mxu0 0.0
    %4909 = vmatprep.subr.mxu0 0.0
    %4910 = vmatpush1.msra.mxu0 0.0
    %4911 = vmatprep.mubr.f32.mxu0 0.0
    %4912 = vmatmul.mubr.f32.gmra.mrb[0].mxu0 %v1612
    %v4913 = vpop.f32.mrb[0].mxu0
    %v4914 = vadd.f32 0.0, %v4913
    %v4915 = vpop.f32.mrb[0].mxu0
    %4916 = vmatprep.mubr.f32.mxu0 0.0
    %4917 = vmatmul.mubr.f32.gmra.mrb[0].mxu0 %v1615
    %v4918 = vpop.f32.mrb[0].mxu0
    %v4919 = vadd.f32 0.0, %v4918
    %v4920 = vpop.f32.mrb[0].mxu0
    %4921 = vmatprep.mubr.f32.mxu0 0.0
    %4922 = vmatmul.mubr.f32.gmra.mrb[0].mxu0 %v1618
    %v4923 = vpop.f32.mrb[0].mxu0
    %v4924 = vadd.f32 0.0, %v4923
    %v4925 = vpop.f32.mrb[0].mxu0
    %4926 = vmatprep.mubr.f32.mxu0 0.0
    %4927 = vmatmul.mubr.f32.gmra.mrb[0].mxu0 %v1621
    %v4928 = vpop.f32.mrb[0].mxu0
    %v4929 = vadd.f32 0.0, %v4928
    %v4930 = vpop.f32.mrb[0].mxu0
    %4931 = vdwg.mxu0
    %v4932 = vadd.f32 %v4756, %v4914
    %v4933 = vadd.f32 %v4757, %v4919
    %v4934 = vadd.f32 %v4758, %v4924
    %v4935 = vadd.f32 %v4759, %v4929
    %s4936 = scalar_lea.vmem %s6, 208
    %v4937 = vld [vmem:[%s4936] sm:$0xff]
    %4938 = vmatprep.subr.mxu0 0.0
    %4939 = vmatpush1.msra.mxu0 %v4937
    %4940 = vmatprep.subr.mxu0 0.0
    %4941 = vmatpush1.msra.mxu0 0.0
    %4942 = vmatprep.subr.mxu0 0.0
    %4943 = vmatpush1.msra.mxu0 0.0
    %4944 = vmatprep.subr.mxu0 0.0
    %4945 = vmatpush1.msra.mxu0 0.0
    %4946 = vmatprep.subr.mxu0 0.0
    %4947 = vmatpush1.msra.mxu0 0.0
    %4948 = vmatprep.subr.mxu0 0.0
    %4949 = vmatpush1.msra.mxu0 0.0
    %4950 = vmatprep.subr.mxu0 0.0
    %4951 = vmatpush1.msra.mxu0 0.0
    %4952 = vmatprep.subr.mxu0 0.0
    %4953 = vmatpush1.msra.mxu0 0.0
    %4954 = vmatprep.subr.mxu0 0.0
    %4955 = vmatpush1.msra.mxu0 0.0
    %4956 = vmatprep.subr.mxu0 0.0
    %4957 = vmatpush1.msra.mxu0 0.0
    %4958 = vmatprep.subr.mxu0 0.0
    %4959 = vmatpush1.msra.mxu0 0.0
    %4960 = vmatprep.subr.mxu0 0.0
    %4961 = vmatpush1.msra.mxu0 0.0
    %4962 = vmatprep.subr.mxu0 0.0
    %4963 = vmatpush1.msra.mxu0 0.0
    %4964 = vmatprep.subr.mxu0 0.0
    %4965 = vmatpush1.msra.mxu0 0.0
    %4966 = vmatprep.subr.mxu0 0.0
    %4967 = vmatpush1.msra.mxu0 0.0
    %4968 = vmatprep.subr.mxu0 0.0
    %4969 = vmatpush1.msra.mxu0 0.0
    %4970 = vmatprep.subr.mxu0 0.0
    %4971 = vmatpush1.msra.mxu0 0.0
    %4972 = vmatprep.subr.mxu0 0.0
    %4973 = vmatpush1.msra.mxu0 0.0
    %4974 = vmatprep.subr.mxu0 0.0
    %4975 = vmatpush1.msra.mxu0 0.0
    %4976 = vmatprep.subr.mxu0 0.0
    %4977 = vmatpush1.msra.mxu0 0.0
    %4978 = vmatprep.subr.mxu0 0.0
    %4979 = vmatpush1.msra.mxu0 0.0
    %4980 = vmatprep.subr.mxu0 0.0
    %4981 = vmatpush1.msra.mxu0 0.0
    %4982 = vmatprep.subr.mxu0 0.0
    %4983 = vmatpush1.msra.mxu0 0.0
    %4984 = vmatprep.subr.mxu0 0.0
    %4985 = vmatpush1.msra.mxu0 0.0
    %4986 = vmatprep.subr.mxu0 0.0
    %4987 = vmatpush1.msra.mxu0 0.0
    %4988 = vmatprep.subr.mxu0 0.0
    %4989 = vmatpush1.msra.mxu0 0.0
    %4990 = vmatprep.subr.mxu0 0.0
    %4991 = vmatpush1.msra.mxu0 0.0
    %4992 = vmatprep.subr.mxu0 0.0
    %4993 = vmatpush1.msra.mxu0 0.0
    %4994 = vmatprep.subr.mxu0 0.0
    %4995 = vmatpush1.msra.mxu0 0.0
    %4996 = vmatprep.subr.mxu0 0.0
    %4997 = vmatpush1.msra.mxu0 0.0
    %4998 = vmatprep.subr.mxu0 0.0
    %4999 = vmatpush1.msra.mxu0 0.0
    %5000 = vmatprep.subr.mxu0 0.0
    %5001 = vmatpush1.msra.mxu0 0.0
    %5002 = vmatprep.mubr.f32.mxu0 0.0
    %5003 = vmatmul.mubr.f32.gmra.mrb[0].mxu0 %v3527
    %v5004 = vpop.f32.mrb[0].mxu0
    %v5005 = vadd.f32 0.0, %v5004
    %v5006 = vpop.f32.mrb[0].mxu0
    %5007 = vmatprep.mubr.f32.mxu0 0.0
    %5008 = vmatmul.mubr.f32.gmra.mrb[0].mxu0 %v3530
    %v5009 = vpop.f32.mrb[0].mxu0
    %v5010 = vadd.f32 0.0, %v5009
    %v5011 = vpop.f32.mrb[0].mxu0
    %5012 = vmatprep.mubr.f32.mxu0 0.0
    %5013 = vmatmul.mubr.f32.gmra.mrb[0].mxu0 %v3533
    %v5014 = vpop.f32.mrb[0].mxu0
    %v5015 = vadd.f32 0.0, %v5014
    %v5016 = vpop.f32.mrb[0].mxu0
    %5017 = vmatprep.mubr.f32.mxu0 0.0
    %5018 = vmatmul.mubr.f32.gmra.mrb[0].mxu0 %v3536
    %v5019 = vpop.f32.mrb[0].mxu0
    %v5020 = vadd.f32 0.0, %v5019
    %v5021 = vpop.f32.mrb[0].mxu0
    %5022 = vdwg.mxu0
    %5023 = vmatprep.subr.mxu0 0.0
    %5024 = vmatpush1.msra.mxu0 %v5005
    %5025 = vmatprep.subr.mxu0 0.0
    %5026 = vmatpush1.msra.mxu0 %v5010
    %5027 = vmatprep.subr.mxu0 0.0
    %5028 = vmatpush1.msra.mxu0 %v5015
    %5029 = vmatprep.subr.mxu0 0.0
    %5030 = vmatpush1.msra.mxu0 %v5020
    %5031 = vmatprep.subr.mxu0 0.0
    %5032 = vmatpush1.msra.mxu0 0.0
    %5033 = vmatprep.subr.mxu0 0.0
    %5034 = vmatpush1.msra.mxu0 0.0
    %5035 = vmatprep.subr.mxu0 0.0
    %5036 = vmatpush1.msra.mxu0 0.0
    %5037 = vmatprep.subr.mxu0 0.0
    %5038 = vmatpush1.msra.mxu0 0.0
    %5039 = vmatprep.subr.mxu0 0.0
    %5040 = vmatpush1.msra.mxu0 0.0
    %5041 = vmatprep.subr.mxu0 0.0
    %5042 = vmatpush1.msra.mxu0 0.0
    %5043 = vmatprep.subr.mxu0 0.0
    %5044 = vmatpush1.msra.mxu0 0.0
    %5045 = vmatprep.subr.mxu0 0.0
    %5046 = vmatpush1.msra.mxu0 0.0
    %5047 = vmatprep.subr.mxu0 0.0
    %5048 = vmatpush1.msra.mxu0 0.0
    %5049 = vmatprep.subr.mxu0 0.0
    %5050 = vmatpush1.msra.mxu0 0.0
    %5051 = vmatprep.subr.mxu0 0.0
    %5052 = vmatpush1.msra.mxu0 0.0
    %5053 = vmatprep.subr.mxu0 0.0
    %5054 = vmatpush1.msra.mxu0 0.0
    %5055 = vmatprep.subr.mxu0 0.0
    %5056 = vmatpush1.msra.mxu0 0.0
    %5057 = vmatprep.subr.mxu0 0.0
    %5058 = vmatpush1.msra.mxu0 0.0
    %5059 = vmatprep.subr.mxu0 0.0
    %5060 = vmatpush1.msra.mxu0 0.0
    %5061 = vmatprep.subr.mxu0 0.0
    %5062 = vmatpush1.msra.mxu0 0.0
    %5063 = vmatprep.subr.mxu0 0.0
    %5064 = vmatpush1.msra.mxu0 0.0
    %5065 = vmatprep.subr.mxu0 0.0
    %5066 = vmatpush1.msra.mxu0 0.0
    %5067 = vmatprep.subr.mxu0 0.0
    %5068 = vmatpush1.msra.mxu0 0.0
    %5069 = vmatprep.subr.mxu0 0.0
    %5070 = vmatpush1.msra.mxu0 0.0
    %5071 = vmatprep.subr.mxu0 0.0
    %5072 = vmatpush1.msra.mxu0 0.0
    %5073 = vmatprep.subr.mxu0 0.0
    %5074 = vmatpush1.msra.mxu0 0.0
    %5075 = vmatprep.subr.mxu0 0.0
    %5076 = vmatpush1.msra.mxu0 0.0
    %5077 = vmatprep.subr.mxu0 0.0
    %5078 = vmatpush1.msra.mxu0 0.0
    %5079 = vmatprep.subr.mxu0 0.0
    %5080 = vmatpush1.msra.mxu0 0.0
    %5081 = vmatprep.subr.mxu0 0.0
    %5082 = vmatpush1.msra.mxu0 0.0
    %5083 = vmatprep.subr.mxu0 0.0
    %5084 = vmatpush1.msra.mxu0 0.0
    %5085 = vmatprep.subr.mxu0 0.0
    %5086 = vmatpush1.msra.mxu0 0.0
    %5087 = vmatprep.mubr.f32.mxu0 0.0
    %5088 = vmatmul.mubr.f32.gmra.mrb[0].mxu0 %v1805
    %v5089 = vpop.f32.mrb[0].mxu0
    %v5090 = vadd.f32 0.0, %v5089
    %v5091 = vpop.f32.mrb[0].mxu0
    %5092 = vmatprep.mubr.f32.mxu0 0.0
    %5093 = vmatmul.mubr.f32.gmra.mrb[0].mxu0 %v1808
    %v5094 = vpop.f32.mrb[0].mxu0
    %v5095 = vadd.f32 0.0, %v5094
    %v5096 = vpop.f32.mrb[0].mxu0
    %5097 = vmatprep.mubr.f32.mxu0 0.0
    %5098 = vmatmul.mubr.f32.gmra.mrb[0].mxu0 %v1811
    %v5099 = vpop.f32.mrb[0].mxu0
    %v5100 = vadd.f32 0.0, %v5099
    %v5101 = vpop.f32.mrb[0].mxu0
    %5102 = vmatprep.mubr.f32.mxu0 0.0
    %5103 = vmatmul.mubr.f32.gmra.mrb[0].mxu0 %v1814
    %v5104 = vpop.f32.mrb[0].mxu0
    %v5105 = vadd.f32 0.0, %v5104
    %v5106 = vpop.f32.mrb[0].mxu0
    %5107 = vdwg.mxu0
    %v5108 = vadd.f32 %v4932, %v5090
    %v5109 = vadd.f32 %v4933, %v5095
    %v5110 = vadd.f32 %v4934, %v5100
    %v5111 = vadd.f32 %v4935, %v5105
    %s5112 = scalar_lea.vmem %s7, 2
    %v5113 = vld [vmem:[%s5112] sm:$0x1]
    %v5115 = vlaneseq
    %v5116 = vshrl.u32 %v5115, 7
    %v5117 = vsub.s32 0, %v5116
    %v5118 = vrot.slane %v5113, %v5117
    %v5120 = vadd.f32 %v5108, %v5118
    %v5121 = vadd.f32 %v5109, %v5118
    %v5122 = vadd.f32 %v5110, %v5118
    %v5123 = vadd.f32 %v5111, %v5118
    %v5124 = vmax.f32 %v5120, 0.0
    %v5125 = vmax.f32 %v5121, 0.0
    %v5126 = vmax.f32 %v5122, 0.0
    %v5127 = vmax.f32 %v5123, 0.0
    %s5128 = scalar_lea.vmem %s6, 216
    %v5129 = vld [vmem:[%s5128] sm:$0xff]
    %v5131 = vsel %vm165, %v5124, 0
    %v5134 = vsel %vm165, %v5125, 0
    %v5137 = vsel %vm165, %v5126, 0
    %v5140 = vsel %vm165, %v5127, 0
    %5142 = vmatprep.subr.mxu0 0.0
    %5143 = vmatpush1.msra.mxu0 %v5129
    %5144 = vmatprep.subr.mxu0 0.0
    %5145 = vmatpush1.msra.mxu0 0.0
    %5146 = vmatprep.subr.mxu0 0.0
    %5147 = vmatpush1.msra.mxu0 0.0
    %5148 = vmatprep.subr.mxu0 0.0
    %5149 = vmatpush1.msra.mxu0 0.0
    %5150 = vmatprep.subr.mxu0 0.0
    %5151 = vmatpush1.msra.mxu0 0.0
    %5152 = vmatprep.subr.mxu0 0.0
    %5153 = vmatpush1.msra.mxu0 0.0
    %5154 = vmatprep.subr.mxu0 0.0
    %5155 = vmatpush1.msra.mxu0 0.0
    %5156 = vmatprep.subr.mxu0 0.0
    %5157 = vmatpush1.msra.mxu0 0.0
    %5158 = vmatprep.subr.mxu0 0.0
    %5159 = vmatpush1.msra.mxu0 0.0
    %5160 = vmatprep.subr.mxu0 0.0
    %5161 = vmatpush1.msra.mxu0 0.0
    %5162 = vmatprep.subr.mxu0 0.0
    %5163 = vmatpush1.msra.mxu0 0.0
    %5164 = vmatprep.subr.mxu0 0.0
    %5165 = vmatpush1.msra.mxu0 0.0
    %5166 = vmatprep.subr.mxu0 0.0
    %5167 = vmatpush1.msra.mxu0 0.0
    %5168 = vmatprep.subr.mxu0 0.0
    %5169 = vmatpush1.msra.mxu0 0.0
    %5170 = vmatprep.subr.mxu0 0.0
    %5171 = vmatpush1.msra.mxu0 0.0
    %5172 = vmatprep.subr.mxu0 0.0
    %5173 = vmatpush1.msra.mxu0 0.0
    %5174 = vmatprep.subr.mxu0 0.0
    %5175 = vmatpush1.msra.mxu0 0.0
    %5176 = vmatprep.subr.mxu0 0.0
    %5177 = vmatpush1.msra.mxu0 0.0
    %5178 = vmatprep.subr.mxu0 0.0
    %5179 = vmatpush1.msra.mxu0 0.0
    %5180 = vmatprep.subr.mxu0 0.0
    %5181 = vmatpush1.msra.mxu0 0.0
    %5182 = vmatprep.subr.mxu0 0.0
    %5183 = vmatpush1.msra.mxu0 0.0
    %5184 = vmatprep.subr.mxu0 0.0
    %5185 = vmatpush1.msra.mxu0 0.0
    %5186 = vmatprep.subr.mxu0 0.0
    %5187 = vmatpush1.msra.mxu0 0.0
    %5188 = vmatprep.subr.mxu0 0.0
    %5189 = vmatpush1.msra.mxu0 0.0
    %5190 = vmatprep.subr.mxu0 0.0
    %5191 = vmatpush1.msra.mxu0 0.0
    %5192 = vmatprep.subr.mxu0 0.0
    %5193 = vmatpush1.msra.mxu0 0.0
    %5194 = vmatprep.subr.mxu0 0.0
    %5195 = vmatpush1.msra.mxu0 0.0
    %5196 = vmatprep.subr.mxu0 0.0
    %5197 = vmatpush1.msra.mxu0 0.0
    %5198 = vmatprep.subr.mxu0 0.0
    %5199 = vmatpush1.msra.mxu0 0.0
    %5200 = vmatprep.subr.mxu0 0.0
    %5201 = vmatpush1.msra.mxu0 0.0
    %5202 = vmatprep.subr.mxu0 0.0
    %5203 = vmatpush1.msra.mxu0 0.0
    %5204 = vmatprep.subr.mxu0 0.0
    %5205 = vmatpush1.msra.mxu0 0.0
    %5206 = vmatprep.mubr.f32.mxu0 0.0
    %5207 = vmatmul.mubr.f32.gmra.mrb[0].mxu0 %v5131
    %v5208 = vpop.f32.mrb[0].mxu0
    %v5209 = vadd.f32 0.0, %v5208
    %v5210 = vpop.f32.mrb[0].mxu0
    %5211 = vmatprep.mubr.f32.mxu0 0.0
    %5212 = vmatmul.mubr.f32.gmra.mrb[0].mxu0 %v5134
    %v5213 = vpop.f32.mrb[0].mxu0
    %v5214 = vadd.f32 0.0, %v5213
    %v5215 = vpop.f32.mrb[0].mxu0
    %5216 = vmatprep.mubr.f32.mxu0 0.0
    %5217 = vmatmul.mubr.f32.gmra.mrb[0].mxu0 %v5137
    %v5218 = vpop.f32.mrb[0].mxu0
    %v5219 = vadd.f32 0.0, %v5218
    %v5220 = vpop.f32.mrb[0].mxu0
    %5221 = vmatprep.mubr.f32.mxu0 0.0
    %5222 = vmatmul.mubr.f32.gmra.mrb[0].mxu0 %v5140
    %v5223 = vpop.f32.mrb[0].mxu0
    %v5224 = vadd.f32 0.0, %v5223
    %v5225 = vpop.f32.mrb[0].mxu0
    %5226 = vdwg.mxu0
    %s5227 = scalar_lea.vmem %s6, 224
    %v5228 = vld [vmem:[%s5227] sm:$0xff]
    %5229 = vmatprep.subr.mxu0 0.0
    %5230 = vmatpush1.msra.mxu0 %v5228
    %5231 = vmatprep.subr.mxu0 0.0
    %5232 = vmatpush1.msra.mxu0 0.0
    %5233 = vmatprep.subr.mxu0 0.0
    %5234 = vmatpush1.msra.mxu0 0.0
    %5235 = vmatprep.subr.mxu0 0.0
    %5236 = vmatpush1.msra.mxu0 0.0
    %5237 = vmatprep.subr.mxu0 0.0
    %5238 = vmatpush1.msra.mxu0 0.0
    %5239 = vmatprep.subr.mxu0 0.0
    %5240 = vmatpush1.msra.mxu0 0.0
    %5241 = vmatprep.subr.mxu0 0.0
    %5242 = vmatpush1.msra.mxu0 0.0
    %5243 = vmatprep.subr.mxu0 0.0
    %5244 = vmatpush1.msra.mxu0 0.0
    %5245 = vmatprep.subr.mxu0 0.0
    %5246 = vmatpush1.msra.mxu0 0.0
    %5247 = vmatprep.subr.mxu0 0.0
    %5248 = vmatpush1.msra.mxu0 0.0
    %5249 = vmatprep.subr.mxu0 0.0
    %5250 = vmatpush1.msra.mxu0 0.0
    %5251 = vmatprep.subr.mxu0 0.0
    %5252 = vmatpush1.msra.mxu0 0.0
    %5253 = vmatprep.subr.mxu0 0.0
    %5254 = vmatpush1.msra.mxu0 0.0
    %5255 = vmatprep.subr.mxu0 0.0
    %5256 = vmatpush1.msra.mxu0 0.0
    %5257 = vmatprep.subr.mxu0 0.0
    %5258 = vmatpush1.msra.mxu0 0.0
    %5259 = vmatprep.subr.mxu0 0.0
    %5260 = vmatpush1.msra.mxu0 0.0
    %5261 = vmatprep.subr.mxu0 0.0
    %5262 = vmatpush1.msra.mxu0 0.0
    %5263 = vmatprep.subr.mxu0 0.0
    %5264 = vmatpush1.msra.mxu0 0.0
    %5265 = vmatprep.subr.mxu0 0.0
    %5266 = vmatpush1.msra.mxu0 0.0
    %5267 = vmatprep.subr.mxu0 0.0
    %5268 = vmatpush1.msra.mxu0 0.0
    %5269 = vmatprep.subr.mxu0 0.0
    %5270 = vmatpush1.msra.mxu0 0.0
    %5271 = vmatprep.subr.mxu0 0.0
    %5272 = vmatpush1.msra.mxu0 0.0
    %5273 = vmatprep.subr.mxu0 0.0
    %5274 = vmatpush1.msra.mxu0 0.0
    %5275 = vmatprep.subr.mxu0 0.0
    %5276 = vmatpush1.msra.mxu0 0.0
    %5277 = vmatprep.subr.mxu0 0.0
    %5278 = vmatpush1.msra.mxu0 0.0
    %5279 = vmatprep.subr.mxu0 0.0
    %5280 = vmatpush1.msra.mxu0 0.0
    %5281 = vmatprep.subr.mxu0 0.0
    %5282 = vmatpush1.msra.mxu0 0.0
    %5283 = vmatprep.subr.mxu0 0.0
    %5284 = vmatpush1.msra.mxu0 0.0
    %5285 = vmatprep.subr.mxu0 0.0
    %5286 = vmatpush1.msra.mxu0 0.0
    %5287 = vmatprep.subr.mxu0 0.0
    %5288 = vmatpush1.msra.mxu0 0.0
    %5289 = vmatprep.subr.mxu0 0.0
    %5290 = vmatpush1.msra.mxu0 0.0
    %5291 = vmatprep.subr.mxu0 0.0
    %5292 = vmatpush1.msra.mxu0 0.0
    %5293 = vmatprep.mubr.f32.mxu0 0.0
    %5294 = vmatmul.mubr.f32.gmra.mrb[0].mxu0 %v5131
    %v5295 = vpop.f32.mrb[0].mxu0
    %v5296 = vadd.f32 0.0, %v5295
    %v5297 = vpop.f32.mrb[0].mxu0
    %5298 = vmatprep.mubr.f32.mxu0 0.0
    %5299 = vmatmul.mubr.f32.gmra.mrb[0].mxu0 %v5134
    %v5300 = vpop.f32.mrb[0].mxu0
    %v5301 = vadd.f32 0.0, %v5300
    %v5302 = vpop.f32.mrb[0].mxu0
    %5303 = vmatprep.mubr.f32.mxu0 0.0
    %5304 = vmatmul.mubr.f32.gmra.mrb[0].mxu0 %v5137
    %v5305 = vpop.f32.mrb[0].mxu0
    %v5306 = vadd.f32 0.0, %v5305
    %v5307 = vpop.f32.mrb[0].mxu0
    %5308 = vmatprep.mubr.f32.mxu0 0.0
    %5309 = vmatmul.mubr.f32.gmra.mrb[0].mxu0 %v5140
    %v5310 = vpop.f32.mrb[0].mxu0
    %v5311 = vadd.f32 0.0, %v5310
    %v5312 = vpop.f32.mrb[0].mxu0
    %5313 = vdwg.mxu0
    %5314 = vmatprep.subr.mxu0 0.0
    %5315 = vmatpush1.msra.mxu0 %v5296
    %5316 = vmatprep.subr.mxu0 0.0
    %5317 = vmatpush1.msra.mxu0 %v5301
    %5318 = vmatprep.subr.mxu0 0.0
    %5319 = vmatpush1.msra.mxu0 %v5306
    %5320 = vmatprep.subr.mxu0 0.0
    %5321 = vmatpush1.msra.mxu0 %v5311
    %5322 = vmatprep.subr.mxu0 0.0
    %5323 = vmatpush1.msra.mxu0 0.0
    %5324 = vmatprep.subr.mxu0 0.0
    %5325 = vmatpush1.msra.mxu0 0.0
    %5326 = vmatprep.subr.mxu0 0.0
    %5327 = vmatpush1.msra.mxu0 0.0
    %5328 = vmatprep.subr.mxu0 0.0
    %5329 = vmatpush1.msra.mxu0 0.0
    %5330 = vmatprep.subr.mxu0 0.0
    %5331 = vmatpush1.msra.mxu0 0.0
    %5332 = vmatprep.subr.mxu0 0.0
    %5333 = vmatpush1.msra.mxu0 0.0
    %5334 = vmatprep.subr.mxu0 0.0
    %5335 = vmatpush1.msra.mxu0 0.0
    %5336 = vmatprep.subr.mxu0 0.0
    %5337 = vmatpush1.msra.mxu0 0.0
    %5338 = vmatprep.subr.mxu0 0.0
    %5339 = vmatpush1.msra.mxu0 0.0
    %5340 = vmatprep.subr.mxu0 0.0
    %5341 = vmatpush1.msra.mxu0 0.0
    %5342 = vmatprep.subr.mxu0 0.0
    %5343 = vmatpush1.msra.mxu0 0.0
    %5344 = vmatprep.subr.mxu0 0.0
    %5345 = vmatpush1.msra.mxu0 0.0
    %5346 = vmatprep.subr.mxu0 0.0
    %5347 = vmatpush1.msra.mxu0 0.0
    %5348 = vmatprep.subr.mxu0 0.0
    %5349 = vmatpush1.msra.mxu0 0.0
    %5350 = vmatprep.subr.mxu0 0.0
    %5351 = vmatpush1.msra.mxu0 0.0
    %5352 = vmatprep.subr.mxu0 0.0
    %5353 = vmatpush1.msra.mxu0 0.0
    %5354 = vmatprep.subr.mxu0 0.0
    %5355 = vmatpush1.msra.mxu0 0.0
    %5356 = vmatprep.subr.mxu0 0.0
    %5357 = vmatpush1.msra.mxu0 0.0
    %5358 = vmatprep.subr.mxu0 0.0
    %5359 = vmatpush1.msra.mxu0 0.0
    %5360 = vmatprep.subr.mxu0 0.0
    %5361 = vmatpush1.msra.mxu0 0.0
    %5362 = vmatprep.subr.mxu0 0.0
    %5363 = vmatpush1.msra.mxu0 0.0
    %5364 = vmatprep.subr.mxu0 0.0
    %5365 = vmatpush1.msra.mxu0 0.0
    %5366 = vmatprep.subr.mxu0 0.0
    %5367 = vmatpush1.msra.mxu0 0.0
    %5368 = vmatprep.subr.mxu0 0.0
    %5369 = vmatpush1.msra.mxu0 0.0
    %5370 = vmatprep.subr.mxu0 0.0
    %5371 = vmatpush1.msra.mxu0 0.0
    %5372 = vmatprep.subr.mxu0 0.0
    %5373 = vmatpush1.msra.mxu0 0.0
    %5374 = vmatprep.subr.mxu0 0.0
    %5375 = vmatpush1.msra.mxu0 0.0
    %5376 = vmatprep.subr.mxu0 0.0
    %5377 = vmatpush1.msra.mxu0 0.0
    %5378 = vmatprep.mubr.f32.mxu0 0.0
    %5379 = vmatmul.mubr.f32.gmra.mrb[0].mxu0 %v361
    %v5380 = vpop.f32.mrb[0].mxu0
    %v5381 = vadd.f32 0.0, %v5380
    %v5382 = vpop.f32.mrb[0].mxu0
    %5383 = vmatprep.mubr.f32.mxu0 0.0
    %5384 = vmatmul.mubr.f32.gmra.mrb[0].mxu0 %v364
    %v5385 = vpop.f32.mrb[0].mxu0
    %v5386 = vadd.f32 0.0, %v5385
    %v5387 = vpop.f32.mrb[0].mxu0
    %5388 = vmatprep.mubr.f32.mxu0 0.0
    %5389 = vmatmul.mubr.f32.gmra.mrb[0].mxu0 %v367
    %v5390 = vpop.f32.mrb[0].mxu0
    %v5391 = vadd.f32 0.0, %v5390
    %v5392 = vpop.f32.mrb[0].mxu0
    %5393 = vmatprep.mubr.f32.mxu0 0.0
    %5394 = vmatmul.mubr.f32.gmra.mrb[0].mxu0 %v370
    %v5395 = vpop.f32.mrb[0].mxu0
    %v5396 = vadd.f32 0.0, %v5395
    %v5397 = vpop.f32.mrb[0].mxu0
    %5398 = vdwg.mxu0
    %5399 = vmatprep.subr.mxu0 0.0
    %5400 = vmatpush1.msra.mxu0 %v5209
    %5401 = vmatprep.subr.mxu0 0.0
    %5402 = vmatpush1.msra.mxu0 %v5214
    %5403 = vmatprep.subr.mxu0 0.0
    %5404 = vmatpush1.msra.mxu0 %v5219
    %5405 = vmatprep.subr.mxu0 0.0
    %5406 = vmatpush1.msra.mxu0 %v5224
    %5407 = vmatprep.subr.mxu0 0.0
    %5408 = vmatpush1.msra.mxu0 0.0
    %5409 = vmatprep.subr.mxu0 0.0
    %5410 = vmatpush1.msra.mxu0 0.0
    %5411 = vmatprep.subr.mxu0 0.0
    %5412 = vmatpush1.msra.mxu0 0.0
    %5413 = vmatprep.subr.mxu0 0.0
    %5414 = vmatpush1.msra.mxu0 0.0
    %5415 = vmatprep.subr.mxu0 0.0
    %5416 = vmatpush1.msra.mxu0 0.0
    %5417 = vmatprep.subr.mxu0 0.0
    %5418 = vmatpush1.msra.mxu0 0.0
    %5419 = vmatprep.subr.mxu0 0.0
    %5420 = vmatpush1.msra.mxu0 0.0
    %5421 = vmatprep.subr.mxu0 0.0
    %5422 = vmatpush1.msra.mxu0 0.0
    %5423 = vmatprep.subr.mxu0 0.0
    %5424 = vmatpush1.msra.mxu0 0.0
    %5425 = vmatprep.subr.mxu0 0.0
    %5426 = vmatpush1.msra.mxu0 0.0
    %5427 = vmatprep.subr.mxu0 0.0
    %5428 = vmatpush1.msra.mxu0 0.0
    %5429 = vmatprep.subr.mxu0 0.0
    %5430 = vmatpush1.msra.mxu0 0.0
    %5431 = vmatprep.subr.mxu0 0.0
    %5432 = vmatpush1.msra.mxu0 0.0
    %5433 = vmatprep.subr.mxu0 0.0
    %5434 = vmatpush1.msra.mxu0 0.0
    %5435 = vmatprep.subr.mxu0 0.0
    %5436 = vmatpush1.msra.mxu0 0.0
    %5437 = vmatprep.subr.mxu0 0.0
    %5438 = vmatpush1.msra.mxu0 0.0
    %5439 = vmatprep.subr.mxu0 0.0
    %5440 = vmatpush1.msra.mxu0 0.0
    %5441 = vmatprep.subr.mxu0 0.0
    %5442 = vmatpush1.msra.mxu0 0.0
    %5443 = vmatprep.subr.mxu0 0.0
    %5444 = vmatpush1.msra.mxu0 0.0
    %5445 = vmatprep.subr.mxu0 0.0
    %5446 = vmatpush1.msra.mxu0 0.0
    %5447 = vmatprep.subr.mxu0 0.0
    %5448 = vmatpush1.msra.mxu0 0.0
    %5449 = vmatprep.subr.mxu0 0.0
    %5450 = vmatpush1.msra.mxu0 0.0
    %5451 = vmatprep.subr.mxu0 0.0
    %5452 = vmatpush1.msra.mxu0 0.0
    %5453 = vmatprep.subr.mxu0 0.0
    %5454 = vmatpush1.msra.mxu0 0.0
    %5455 = vmatprep.subr.mxu0 0.0
    %5456 = vmatpush1.msra.mxu0 0.0
    %5457 = vmatprep.subr.mxu0 0.0
    %5458 = vmatpush1.msra.mxu0 0.0
    %5459 = vmatprep.subr.mxu0 0.0
    %5460 = vmatpush1.msra.mxu0 0.0
    %5461 = vmatprep.subr.mxu0 0.0
    %5462 = vmatpush1.msra.mxu0 0.0
    %5463 = vmatprep.mubr.f32.mxu0 0.0
    %5464 = vmatmul.mubr.f32.gmra.mrb[0].mxu0 %v458
    %v5465 = vpop.f32.mrb[0].mxu0
    %v5466 = vadd.f32 %v5381, %v5465
    %v5467 = vpop.f32.mrb[0].mxu0
    %5468 = vmatprep.mubr.f32.mxu0 0.0
    %5469 = vmatmul.mubr.f32.gmra.mrb[0].mxu0 %v461
    %v5470 = vpop.f32.mrb[0].mxu0
    %v5471 = vadd.f32 %v5386, %v5470
    %v5472 = vpop.f32.mrb[0].mxu0
    %5473 = vmatprep.mubr.f32.mxu0 0.0
    %5474 = vmatmul.mubr.f32.gmra.mrb[0].mxu0 %v464
    %v5475 = vpop.f32.mrb[0].mxu0
    %v5476 = vadd.f32 %v5391, %v5475
    %v5477 = vpop.f32.mrb[0].mxu0
    %5478 = vmatprep.mubr.f32.mxu0 0.0
    %5479 = vmatmul.mubr.f32.gmra.mrb[0].mxu0 %v467
    %v5480 = vpop.f32.mrb[0].mxu0
    %v5481 = vadd.f32 %v5396, %v5480
    %v5482 = vpop.f32.mrb[0].mxu0
    %5483 = vdwg.mxu0
    %s5484 = scalar_lea.vmem %s6, 232
    %v5485 = vld [vmem:[%s5484] sm:$0xff]
    %5486 = vmatprep.subr.mxu0 0.0
    %5487 = vmatpush1.msra.mxu0 %v5485
    %5488 = vmatprep.subr.mxu0 0.0
    %5489 = vmatpush1.msra.mxu0 0.0
    %5490 = vmatprep.subr.mxu0 0.0
    %5491 = vmatpush1.msra.mxu0 0.0
    %5492 = vmatprep.subr.mxu0 0.0
    %5493 = vmatpush1.msra.mxu0 0.0
    %5494 = vmatprep.subr.mxu0 0.0
    %5495 = vmatpush1.msra.mxu0 0.0
    %5496 = vmatprep.subr.mxu0 0.0
    %5497 = vmatpush1.msra.mxu0 0.0
    %5498 = vmatprep.subr.mxu0 0.0
    %5499 = vmatpush1.msra.mxu0 0.0
    %5500 = vmatprep.subr.mxu0 0.0
    %5501 = vmatpush1.msra.mxu0 0.0
    %5502 = vmatprep.subr.mxu0 0.0
    %5503 = vmatpush1.msra.mxu0 0.0
    %5504 = vmatprep.subr.mxu0 0.0
    %5505 = vmatpush1.msra.mxu0 0.0
    %5506 = vmatprep.subr.mxu0 0.0
    %5507 = vmatpush1.msra.mxu0 0.0
    %5508 = vmatprep.subr.mxu0 0.0
    %5509 = vmatpush1.msra.mxu0 0.0
    %5510 = vmatprep.subr.mxu0 0.0
    %5511 = vmatpush1.msra.mxu0 0.0
    %5512 = vmatprep.subr.mxu0 0.0
    %5513 = vmatpush1.msra.mxu0 0.0
    %5514 = vmatprep.subr.mxu0 0.0
    %5515 = vmatpush1.msra.mxu0 0.0
    %5516 = vmatprep.subr.mxu0 0.0
    %5517 = vmatpush1.msra.mxu0 0.0
    %5518 = vmatprep.subr.mxu0 0.0
    %5519 = vmatpush1.msra.mxu0 0.0
    %5520 = vmatprep.subr.mxu0 0.0
    %5521 = vmatpush1.msra.mxu0 0.0
    %5522 = vmatprep.subr.mxu0 0.0
    %5523 = vmatpush1.msra.mxu0 0.0
    %5524 = vmatprep.subr.mxu0 0.0
    %5525 = vmatpush1.msra.mxu0 0.0
    %5526 = vmatprep.subr.mxu0 0.0
    %5527 = vmatpush1.msra.mxu0 0.0
    %5528 = vmatprep.subr.mxu0 0.0
    %5529 = vmatpush1.msra.mxu0 0.0
    %5530 = vmatprep.subr.mxu0 0.0
    %5531 = vmatpush1.msra.mxu0 0.0
    %5532 = vmatprep.subr.mxu0 0.0
    %5533 = vmatpush1.msra.mxu0 0.0
    %5534 = vmatprep.subr.mxu0 0.0
    %5535 = vmatpush1.msra.mxu0 0.0
    %5536 = vmatprep.subr.mxu0 0.0
    %5537 = vmatpush1.msra.mxu0 0.0
    %5538 = vmatprep.subr.mxu0 0.0
    %5539 = vmatpush1.msra.mxu0 0.0
    %5540 = vmatprep.subr.mxu0 0.0
    %5541 = vmatpush1.msra.mxu0 0.0
    %5542 = vmatprep.subr.mxu0 0.0
    %5543 = vmatpush1.msra.mxu0 0.0
    %5544 = vmatprep.subr.mxu0 0.0
    %5545 = vmatpush1.msra.mxu0 0.0
    %5546 = vmatprep.subr.mxu0 0.0
    %5547 = vmatpush1.msra.mxu0 0.0
    %5548 = vmatprep.subr.mxu0 0.0
    %5549 = vmatpush1.msra.mxu0 0.0
    %5550 = vmatprep.mubr.f32.mxu0 0.0
    %5551 = vmatmul.mubr.f32.gmra.mrb[0].mxu0 %v5131
    %v5552 = vpop.f32.mrb[0].mxu0
    %v5553 = vadd.f32 0.0, %v5552
    %v5554 = vpop.f32.mrb[0].mxu0
    %5555 = vmatprep.mubr.f32.mxu0 0.0
    %5556 = vmatmul.mubr.f32.gmra.mrb[0].mxu0 %v5134
    %v5557 = vpop.f32.mrb[0].mxu0
    %v5558 = vadd.f32 0.0, %v5557
    %v5559 = vpop.f32.mrb[0].mxu0
    %5560 = vmatprep.mubr.f32.mxu0 0.0
    %5561 = vmatmul.mubr.f32.gmra.mrb[0].mxu0 %v5137
    %v5562 = vpop.f32.mrb[0].mxu0
    %v5563 = vadd.f32 0.0, %v5562
    %v5564 = vpop.f32.mrb[0].mxu0
    %5565 = vmatprep.mubr.f32.mxu0 0.0
    %5566 = vmatmul.mubr.f32.gmra.mrb[0].mxu0 %v5140
    %v5567 = vpop.f32.mrb[0].mxu0
    %v5568 = vadd.f32 0.0, %v5567
    %v5569 = vpop.f32.mrb[0].mxu0
    %5570 = vdwg.mxu0
    %5571 = vmatprep.subr.mxu0 0.0
    %5572 = vmatpush1.msra.mxu0 %v5553
    %5573 = vmatprep.subr.mxu0 0.0
    %5574 = vmatpush1.msra.mxu0 %v5558
    %5575 = vmatprep.subr.mxu0 0.0
    %5576 = vmatpush1.msra.mxu0 %v5563
    %5577 = vmatprep.subr.mxu0 0.0
    %5578 = vmatpush1.msra.mxu0 %v5568
    %5579 = vmatprep.subr.mxu0 0.0
    %5580 = vmatpush1.msra.mxu0 0.0
    %5581 = vmatprep.subr.mxu0 0.0
    %5582 = vmatpush1.msra.mxu0 0.0
    %5583 = vmatprep.subr.mxu0 0.0
    %5584 = vmatpush1.msra.mxu0 0.0
    %5585 = vmatprep.subr.mxu0 0.0
    %5586 = vmatpush1.msra.mxu0 0.0
    %5587 = vmatprep.subr.mxu0 0.0
    %5588 = vmatpush1.msra.mxu0 0.0
    %5589 = vmatprep.subr.mxu0 0.0
    %5590 = vmatpush1.msra.mxu0 0.0
    %5591 = vmatprep.subr.mxu0 0.0
    %5592 = vmatpush1.msra.mxu0 0.0
    %5593 = vmatprep.subr.mxu0 0.0
    %5594 = vmatpush1.msra.mxu0 0.0
    %5595 = vmatprep.subr.mxu0 0.0
    %5596 = vmatpush1.msra.mxu0 0.0
    %5597 = vmatprep.subr.mxu0 0.0
    %5598 = vmatpush1.msra.mxu0 0.0
    %5599 = vmatprep.subr.mxu0 0.0
    %5600 = vmatpush1.msra.mxu0 0.0
    %5601 = vmatprep.subr.mxu0 0.0
    %5602 = vmatpush1.msra.mxu0 0.0
    %5603 = vmatprep.subr.mxu0 0.0
    %5604 = vmatpush1.msra.mxu0 0.0
    %5605 = vmatprep.subr.mxu0 0.0
    %5606 = vmatpush1.msra.mxu0 0.0
    %5607 = vmatprep.subr.mxu0 0.0
    %5608 = vmatpush1.msra.mxu0 0.0
    %5609 = vmatprep.subr.mxu0 0.0
    %5610 = vmatpush1.msra.mxu0 0.0
    %5611 = vmatprep.subr.mxu0 0.0
    %5612 = vmatpush1.msra.mxu0 0.0
    %5613 = vmatprep.subr.mxu0 0.0
    %5614 = vmatpush1.msra.mxu0 0.0
    %5615 = vmatprep.subr.mxu0 0.0
    %5616 = vmatpush1.msra.mxu0 0.0
    %5617 = vmatprep.subr.mxu0 0.0
    %5618 = vmatpush1.msra.mxu0 0.0
    %5619 = vmatprep.subr.mxu0 0.0
    %5620 = vmatpush1.msra.mxu0 0.0
    %5621 = vmatprep.subr.mxu0 0.0
    %5622 = vmatpush1.msra.mxu0 0.0
    %5623 = vmatprep.subr.mxu0 0.0
    %5624 = vmatpush1.msra.mxu0 0.0
    %5625 = vmatprep.subr.mxu0 0.0
    %5626 = vmatpush1.msra.mxu0 0.0
    %5627 = vmatprep.subr.mxu0 0.0
    %5628 = vmatpush1.msra.mxu0 0.0
    %5629 = vmatprep.subr.mxu0 0.0
    %5630 = vmatpush1.msra.mxu0 0.0
    %5631 = vmatprep.subr.mxu0 0.0
    %5632 = vmatpush1.msra.mxu0 0.0
    %5633 = vmatprep.subr.mxu0 0.0
    %5634 = vmatpush1.msra.mxu0 0.0
    %5635 = vmatprep.mubr.f32.mxu0 0.0
    %5636 = vmatmul.mubr.f32.gmra.mrb[0].mxu0 %v647
    %v5637 = vpop.f32.mrb[0].mxu0
    %v5638 = vadd.f32 0.0, %v5637
    %v5639 = vpop.f32.mrb[0].mxu0
    %5640 = vmatprep.mubr.f32.mxu0 0.0
    %5641 = vmatmul.mubr.f32.gmra.mrb[0].mxu0 %v650
    %v5642 = vpop.f32.mrb[0].mxu0
    %v5643 = vadd.f32 0.0, %v5642
    %v5644 = vpop.f32.mrb[0].mxu0
    %5645 = vmatprep.mubr.f32.mxu0 0.0
    %5646 = vmatmul.mubr.f32.gmra.mrb[0].mxu0 %v653
    %v5647 = vpop.f32.mrb[0].mxu0
    %v5648 = vadd.f32 0.0, %v5647
    %v5649 = vpop.f32.mrb[0].mxu0
    %5650 = vmatprep.mubr.f32.mxu0 0.0
    %5651 = vmatmul.mubr.f32.gmra.mrb[0].mxu0 %v656
    %v5652 = vpop.f32.mrb[0].mxu0
    %v5653 = vadd.f32 0.0, %v5652
    %v5654 = vpop.f32.mrb[0].mxu0
    %5655 = vdwg.mxu0
    %v5656 = vadd.f32 %v5466, %v5638
    %v5657 = vadd.f32 %v5471, %v5643
    %v5658 = vadd.f32 %v5476, %v5648
    %v5659 = vadd.f32 %v5481, %v5653
    %s5660 = scalar_lea.vmem %s6, 240
    %v5661 = vld [vmem:[%s5660] sm:$0xff]
    %5662 = vmatprep.subr.mxu0 0.0
    %5663 = vmatpush1.msra.mxu0 %v5661
    %5664 = vmatprep.subr.mxu0 0.0
    %5665 = vmatpush1.msra.mxu0 0.0
    %5666 = vmatprep.subr.mxu0 0.0
    %5667 = vmatpush1.msra.mxu0 0.0
    %5668 = vmatprep.subr.mxu0 0.0
    %5669 = vmatpush1.msra.mxu0 0.0
    %5670 = vmatprep.subr.mxu0 0.0
    %5671 = vmatpush1.msra.mxu0 0.0
    %5672 = vmatprep.subr.mxu0 0.0
    %5673 = vmatpush1.msra.mxu0 0.0
    %5674 = vmatprep.subr.mxu0 0.0
    %5675 = vmatpush1.msra.mxu0 0.0
    %5676 = vmatprep.subr.mxu0 0.0
    %5677 = vmatpush1.msra.mxu0 0.0
    %5678 = vmatprep.subr.mxu0 0.0
    %5679 = vmatpush1.msra.mxu0 0.0
    %5680 = vmatprep.subr.mxu0 0.0
    %5681 = vmatpush1.msra.mxu0 0.0
    %5682 = vmatprep.subr.mxu0 0.0
    %5683 = vmatpush1.msra.mxu0 0.0
    %5684 = vmatprep.subr.mxu0 0.0
    %5685 = vmatpush1.msra.mxu0 0.0
    %5686 = vmatprep.subr.mxu0 0.0
    %5687 = vmatpush1.msra.mxu0 0.0
    %5688 = vmatprep.subr.mxu0 0.0
    %5689 = vmatpush1.msra.mxu0 0.0
    %5690 = vmatprep.subr.mxu0 0.0
    %5691 = vmatpush1.msra.mxu0 0.0
    %5692 = vmatprep.subr.mxu0 0.0
    %5693 = vmatpush1.msra.mxu0 0.0
    %5694 = vmatprep.subr.mxu0 0.0
    %5695 = vmatpush1.msra.mxu0 0.0
    %5696 = vmatprep.subr.mxu0 0.0
    %5697 = vmatpush1.msra.mxu0 0.0
    %5698 = vmatprep.subr.mxu0 0.0
    %5699 = vmatpush1.msra.mxu0 0.0
    %5700 = vmatprep.subr.mxu0 0.0
    %5701 = vmatpush1.msra.mxu0 0.0
    %5702 = vmatprep.subr.mxu0 0.0
    %5703 = vmatpush1.msra.mxu0 0.0
    %5704 = vmatprep.subr.mxu0 0.0
    %5705 = vmatpush1.msra.mxu0 0.0
    %5706 = vmatprep.subr.mxu0 0.0
    %5707 = vmatpush1.msra.mxu0 0.0
    %5708 = vmatprep.subr.mxu0 0.0
    %5709 = vmatpush1.msra.mxu0 0.0
    %5710 = vmatprep.subr.mxu0 0.0
    %5711 = vmatpush1.msra.mxu0 0.0
    %5712 = vmatprep.subr.mxu0 0.0
    %5713 = vmatpush1.msra.mxu0 0.0
    %5714 = vmatprep.subr.mxu0 0.0
    %5715 = vmatpush1.msra.mxu0 0.0
    %5716 = vmatprep.subr.mxu0 0.0
    %5717 = vmatpush1.msra.mxu0 0.0
    %5718 = vmatprep.subr.mxu0 0.0
    %5719 = vmatpush1.msra.mxu0 0.0
    %5720 = vmatprep.subr.mxu0 0.0
    %5721 = vmatpush1.msra.mxu0 0.0
    %5722 = vmatprep.subr.mxu0 0.0
    %5723 = vmatpush1.msra.mxu0 0.0
    %5724 = vmatprep.subr.mxu0 0.0
    %5725 = vmatpush1.msra.mxu0 0.0
    %5726 = vmatprep.mubr.f32.mxu0 0.0
    %5727 = vmatmul.mubr.f32.gmra.mrb[0].mxu0 %v5131
    %v5728 = vpop.f32.mrb[0].mxu0
    %v5729 = vadd.f32 0.0, %v5728
    %v5730 = vpop.f32.mrb[0].mxu0
    %5731 = vmatprep.mubr.f32.mxu0 0.0
    %5732 = vmatmul.mubr.f32.gmra.mrb[0].mxu0 %v5134
    %v5733 = vpop.f32.mrb[0].mxu0
    %v5734 = vadd.f32 0.0, %v5733
    %v5735 = vpop.f32.mrb[0].mxu0
    %5736 = vmatprep.mubr.f32.mxu0 0.0
    %5737 = vmatmul.mubr.f32.gmra.mrb[0].mxu0 %v5137
    %v5738 = vpop.f32.mrb[0].mxu0
    %v5739 = vadd.f32 0.0, %v5738
    %v5740 = vpop.f32.mrb[0].mxu0
    %5741 = vmatprep.mubr.f32.mxu0 0.0
    %5742 = vmatmul.mubr.f32.gmra.mrb[0].mxu0 %v5140
    %v5743 = vpop.f32.mrb[0].mxu0
    %v5744 = vadd.f32 0.0, %v5743
    %v5745 = vpop.f32.mrb[0].mxu0
    %5746 = vdwg.mxu0
    %5747 = vmatprep.subr.mxu0 0.0
    %5748 = vmatpush1.msra.mxu0 %v5729
    %5749 = vmatprep.subr.mxu0 0.0
    %5750 = vmatpush1.msra.mxu0 %v5734
    %5751 = vmatprep.subr.mxu0 0.0
    %5752 = vmatpush1.msra.mxu0 %v5739
    %5753 = vmatprep.subr.mxu0 0.0
    %5754 = vmatpush1.msra.mxu0 %v5744
    %5755 = vmatprep.subr.mxu0 0.0
    %5756 = vmatpush1.msra.mxu0 0.0
    %5757 = vmatprep.subr.mxu0 0.0
    %5758 = vmatpush1.msra.mxu0 0.0
    %5759 = vmatprep.subr.mxu0 0.0
    %5760 = vmatpush1.msra.mxu0 0.0
    %5761 = vmatprep.subr.mxu0 0.0
    %5762 = vmatpush1.msra.mxu0 0.0
    %5763 = vmatprep.subr.mxu0 0.0
    %5764 = vmatpush1.msra.mxu0 0.0
    %5765 = vmatprep.subr.mxu0 0.0
    %5766 = vmatpush1.msra.mxu0 0.0
    %5767 = vmatprep.subr.mxu0 0.0
    %5768 = vmatpush1.msra.mxu0 0.0
    %5769 = vmatprep.subr.mxu0 0.0
    %5770 = vmatpush1.msra.mxu0 0.0
    %5771 = vmatprep.subr.mxu0 0.0
    %5772 = vmatpush1.msra.mxu0 0.0
    %5773 = vmatprep.subr.mxu0 0.0
    %5774 = vmatpush1.msra.mxu0 0.0
    %5775 = vmatprep.subr.mxu0 0.0
    %5776 = vmatpush1.msra.mxu0 0.0
    %5777 = vmatprep.subr.mxu0 0.0
    %5778 = vmatpush1.msra.mxu0 0.0
    %5779 = vmatprep.subr.mxu0 0.0
    %5780 = vmatpush1.msra.mxu0 0.0
    %5781 = vmatprep.subr.mxu0 0.0
    %5782 = vmatpush1.msra.mxu0 0.0
    %5783 = vmatprep.subr.mxu0 0.0
    %5784 = vmatpush1.msra.mxu0 0.0
    %5785 = vmatprep.subr.mxu0 0.0
    %5786 = vmatpush1.msra.mxu0 0.0
    %5787 = vmatprep.subr.mxu0 0.0
    %5788 = vmatpush1.msra.mxu0 0.0
    %5789 = vmatprep.subr.mxu0 0.0
    %5790 = vmatpush1.msra.mxu0 0.0
    %5791 = vmatprep.subr.mxu0 0.0
    %5792 = vmatpush1.msra.mxu0 0.0
    %5793 = vmatprep.subr.mxu0 0.0
    %5794 = vmatpush1.msra.mxu0 0.0
    %5795 = vmatprep.subr.mxu0 0.0
    %5796 = vmatpush1.msra.mxu0 0.0
    %5797 = vmatprep.subr.mxu0 0.0
    %5798 = vmatpush1.msra.mxu0 0.0
    %5799 = vmatprep.subr.mxu0 0.0
    %5800 = vmatpush1.msra.mxu0 0.0
    %5801 = vmatprep.subr.mxu0 0.0
    %5802 = vmatpush1.msra.mxu0 0.0
    %5803 = vmatprep.subr.mxu0 0.0
    %5804 = vmatpush1.msra.mxu0 0.0
    %5805 = vmatprep.subr.mxu0 0.0
    %5806 = vmatpush1.msra.mxu0 0.0
    %5807 = vmatprep.subr.mxu0 0.0
    %5808 = vmatpush1.msra.mxu0 0.0
    %5809 = vmatprep.subr.mxu0 0.0
    %5810 = vmatpush1.msra.mxu0 0.0
    %5811 = vmatprep.mubr.f32.mxu0 0.0
    %5812 = vmatmul.mubr.f32.gmra.mrb[0].mxu0 %v840
    %v5813 = vpop.f32.mrb[0].mxu0
    %v5814 = vadd.f32 0.0, %v5813
    %v5815 = vpop.f32.mrb[0].mxu0
    %5816 = vmatprep.mubr.f32.mxu0 0.0
    %5817 = vmatmul.mubr.f32.gmra.mrb[0].mxu0 %v843
    %v5818 = vpop.f32.mrb[0].mxu0
    %v5819 = vadd.f32 0.0, %v5818
    %v5820 = vpop.f32.mrb[0].mxu0
    %5821 = vmatprep.mubr.f32.mxu0 0.0
    %5822 = vmatmul.mubr.f32.gmra.mrb[0].mxu0 %v846
    %v5823 = vpop.f32.mrb[0].mxu0
    %v5824 = vadd.f32 0.0, %v5823
    %v5825 = vpop.f32.mrb[0].mxu0
    %5826 = vmatprep.mubr.f32.mxu0 0.0
    %5827 = vmatmul.mubr.f32.gmra.mrb[0].mxu0 %v849
    %v5828 = vpop.f32.mrb[0].mxu0
    %v5829 = vadd.f32 0.0, %v5828
    %v5830 = vpop.f32.mrb[0].mxu0
    %5831 = vdwg.mxu0
    %v5832 = vadd.f32 %v5656, %v5814
    %v5833 = vadd.f32 %v5657, %v5819
    %v5834 = vadd.f32 %v5658, %v5824
    %v5835 = vadd.f32 %v5659, %v5829
    %s5836 = scalar_lea.vmem %s6, 248
    %v5837 = vld [vmem:[%s5836] sm:$0xff]
    %5838 = vmatprep.subr.mxu0 0.0
    %5839 = vmatpush1.msra.mxu0 %v5837
    %5840 = vmatprep.subr.mxu0 0.0
    %5841 = vmatpush1.msra.mxu0 0.0
    %5842 = vmatprep.subr.mxu0 0.0
    %5843 = vmatpush1.msra.mxu0 0.0
    %5844 = vmatprep.subr.mxu0 0.0
    %5845 = vmatpush1.msra.mxu0 0.0
    %5846 = vmatprep.subr.mxu0 0.0
    %5847 = vmatpush1.msra.mxu0 0.0
    %5848 = vmatprep.subr.mxu0 0.0
    %5849 = vmatpush1.msra.mxu0 0.0
    %5850 = vmatprep.subr.mxu0 0.0
    %5851 = vmatpush1.msra.mxu0 0.0
    %5852 = vmatprep.subr.mxu0 0.0
    %5853 = vmatpush1.msra.mxu0 0.0
    %5854 = vmatprep.subr.mxu0 0.0
    %5855 = vmatpush1.msra.mxu0 0.0
    %5856 = vmatprep.subr.mxu0 0.0
    %5857 = vmatpush1.msra.mxu0 0.0
    %5858 = vmatprep.subr.mxu0 0.0
    %5859 = vmatpush1.msra.mxu0 0.0
    %5860 = vmatprep.subr.mxu0 0.0
    %5861 = vmatpush1.msra.mxu0 0.0
    %5862 = vmatprep.subr.mxu0 0.0
    %5863 = vmatpush1.msra.mxu0 0.0
    %5864 = vmatprep.subr.mxu0 0.0
    %5865 = vmatpush1.msra.mxu0 0.0
    %5866 = vmatprep.subr.mxu0 0.0
    %5867 = vmatpush1.msra.mxu0 0.0
    %5868 = vmatprep.subr.mxu0 0.0
    %5869 = vmatpush1.msra.mxu0 0.0
    %5870 = vmatprep.subr.mxu0 0.0
    %5871 = vmatpush1.msra.mxu0 0.0
    %5872 = vmatprep.subr.mxu0 0.0
    %5873 = vmatpush1.msra.mxu0 0.0
    %5874 = vmatprep.subr.mxu0 0.0
    %5875 = vmatpush1.msra.mxu0 0.0
    %5876 = vmatprep.subr.mxu0 0.0
    %5877 = vmatpush1.msra.mxu0 0.0
    %5878 = vmatprep.subr.mxu0 0.0
    %5879 = vmatpush1.msra.mxu0 0.0
    %5880 = vmatprep.subr.mxu0 0.0
    %5881 = vmatpush1.msra.mxu0 0.0
    %5882 = vmatprep.subr.mxu0 0.0
    %5883 = vmatpush1.msra.mxu0 0.0
    %5884 = vmatprep.subr.mxu0 0.0
    %5885 = vmatpush1.msra.mxu0 0.0
    %5886 = vmatprep.subr.mxu0 0.0
    %5887 = vmatpush1.msra.mxu0 0.0
    %5888 = vmatprep.subr.mxu0 0.0
    %5889 = vmatpush1.msra.mxu0 0.0
    %5890 = vmatprep.subr.mxu0 0.0
    %5891 = vmatpush1.msra.mxu0 0.0
    %5892 = vmatprep.subr.mxu0 0.0
    %5893 = vmatpush1.msra.mxu0 0.0
    %5894 = vmatprep.subr.mxu0 0.0
    %5895 = vmatpush1.msra.mxu0 0.0
    %5896 = vmatprep.subr.mxu0 0.0
    %5897 = vmatpush1.msra.mxu0 0.0
    %5898 = vmatprep.subr.mxu0 0.0
    %5899 = vmatpush1.msra.mxu0 0.0
    %5900 = vmatprep.subr.mxu0 0.0
    %5901 = vmatpush1.msra.mxu0 0.0
    %5902 = vmatprep.mubr.f32.mxu0 0.0
    %5903 = vmatmul.mubr.f32.gmra.mrb[0].mxu0 %v5131
    %v5904 = vpop.f32.mrb[0].mxu0
    %v5905 = vadd.f32 0.0, %v5904
    %v5906 = vpop.f32.mrb[0].mxu0
    %5907 = vmatprep.mubr.f32.mxu0 0.0
    %5908 = vmatmul.mubr.f32.gmra.mrb[0].mxu0 %v5134
    %v5909 = vpop.f32.mrb[0].mxu0
    %v5910 = vadd.f32 0.0, %v5909
    %v5911 = vpop.f32.mrb[0].mxu0
    %5912 = vmatprep.mubr.f32.mxu0 0.0
    %5913 = vmatmul.mubr.f32.gmra.mrb[0].mxu0 %v5137
    %v5914 = vpop.f32.mrb[0].mxu0
    %v5915 = vadd.f32 0.0, %v5914
    %v5916 = vpop.f32.mrb[0].mxu0
    %5917 = vmatprep.mubr.f32.mxu0 0.0
    %5918 = vmatmul.mubr.f32.gmra.mrb[0].mxu0 %v5140
    %v5919 = vpop.f32.mrb[0].mxu0
    %v5920 = vadd.f32 0.0, %v5919
    %v5921 = vpop.f32.mrb[0].mxu0
    %5922 = vdwg.mxu0
    %5923 = vmatprep.subr.mxu0 0.0
    %5924 = vmatpush1.msra.mxu0 %v5905
    %5925 = vmatprep.subr.mxu0 0.0
    %5926 = vmatpush1.msra.mxu0 %v5910
    %5927 = vmatprep.subr.mxu0 0.0
    %5928 = vmatpush1.msra.mxu0 %v5915
    %5929 = vmatprep.subr.mxu0 0.0
    %5930 = vmatpush1.msra.mxu0 %v5920
    %5931 = vmatprep.subr.mxu0 0.0
    %5932 = vmatpush1.msra.mxu0 0.0
    %5933 = vmatprep.subr.mxu0 0.0
    %5934 = vmatpush1.msra.mxu0 0.0
    %5935 = vmatprep.subr.mxu0 0.0
    %5936 = vmatpush1.msra.mxu0 0.0
    %5937 = vmatprep.subr.mxu0 0.0
    %5938 = vmatpush1.msra.mxu0 0.0
    %5939 = vmatprep.subr.mxu0 0.0
    %5940 = vmatpush1.msra.mxu0 0.0
    %5941 = vmatprep.subr.mxu0 0.0
    %5942 = vmatpush1.msra.mxu0 0.0
    %5943 = vmatprep.subr.mxu0 0.0
    %5944 = vmatpush1.msra.mxu0 0.0
    %5945 = vmatprep.subr.mxu0 0.0
    %5946 = vmatpush1.msra.mxu0 0.0
    %5947 = vmatprep.subr.mxu0 0.0
    %5948 = vmatpush1.msra.mxu0 0.0
    %5949 = vmatprep.subr.mxu0 0.0
    %5950 = vmatpush1.msra.mxu0 0.0
    %5951 = vmatprep.subr.mxu0 0.0
    %5952 = vmatpush1.msra.mxu0 0.0
    %5953 = vmatprep.subr.mxu0 0.0
    %5954 = vmatpush1.msra.mxu0 0.0
    %5955 = vmatprep.subr.mxu0 0.0
    %5956 = vmatpush1.msra.mxu0 0.0
    %5957 = vmatprep.subr.mxu0 0.0
    %5958 = vmatpush1.msra.mxu0 0.0
    %5959 = vmatprep.subr.mxu0 0.0
    %5960 = vmatpush1.msra.mxu0 0.0
    %5961 = vmatprep.subr.mxu0 0.0
    %5962 = vmatpush1.msra.mxu0 0.0
    %5963 = vmatprep.subr.mxu0 0.0
    %5964 = vmatpush1.msra.mxu0 0.0
    %5965 = vmatprep.subr.mxu0 0.0
    %5966 = vmatpush1.msra.mxu0 0.0
    %5967 = vmatprep.subr.mxu0 0.0
    %5968 = vmatpush1.msra.mxu0 0.0
    %5969 = vmatprep.subr.mxu0 0.0
    %5970 = vmatpush1.msra.mxu0 0.0
    %5971 = vmatprep.subr.mxu0 0.0
    %5972 = vmatpush1.msra.mxu0 0.0
    %5973 = vmatprep.subr.mxu0 0.0
    %5974 = vmatpush1.msra.mxu0 0.0
    %5975 = vmatprep.subr.mxu0 0.0
    %5976 = vmatpush1.msra.mxu0 0.0
    %5977 = vmatprep.subr.mxu0 0.0
    %5978 = vmatpush1.msra.mxu0 0.0
    %5979 = vmatprep.subr.mxu0 0.0
    %5980 = vmatpush1.msra.mxu0 0.0
    %5981 = vmatprep.subr.mxu0 0.0
    %5982 = vmatpush1.msra.mxu0 0.0
    %5983 = vmatprep.subr.mxu0 0.0
    %5984 = vmatpush1.msra.mxu0 0.0
    %5985 = vmatprep.subr.mxu0 0.0
    %5986 = vmatpush1.msra.mxu0 0.0
    %5987 = vmatprep.mubr.f32.mxu0 0.0
    %5988 = vmatmul.mubr.f32.gmra.mrb[0].mxu0 %v1033
    %v5989 = vpop.f32.mrb[0].mxu0
    %v5990 = vadd.f32 0.0, %v5989
    %v5991 = vpop.f32.mrb[0].mxu0
    %5992 = vmatprep.mubr.f32.mxu0 0.0
    %5993 = vmatmul.mubr.f32.gmra.mrb[0].mxu0 %v1036
    %v5994 = vpop.f32.mrb[0].mxu0
    %v5995 = vadd.f32 0.0, %v5994
    %v5996 = vpop.f32.mrb[0].mxu0
    %5997 = vmatprep.mubr.f32.mxu0 0.0
    %5998 = vmatmul.mubr.f32.gmra.mrb[0].mxu0 %v1039
    %v5999 = vpop.f32.mrb[0].mxu0
    %v6000 = vadd.f32 0.0, %v5999
    %v6001 = vpop.f32.mrb[0].mxu0
    %6002 = vmatprep.mubr.f32.mxu0 0.0
    %6003 = vmatmul.mubr.f32.gmra.mrb[0].mxu0 %v1042
    %v6004 = vpop.f32.mrb[0].mxu0
    %v6005 = vadd.f32 0.0, %v6004
    %v6006 = vpop.f32.mrb[0].mxu0
    %6007 = vdwg.mxu0
    %v6008 = vadd.f32 %v5832, %v5990
    %v6009 = vadd.f32 %v5833, %v5995
    %v6010 = vadd.f32 %v5834, %v6000
    %v6011 = vadd.f32 %v5835, %v6005
    %s6012 = scalar_lea.vmem %s6, 256
    %v6013 = vld [vmem:[%s6012] sm:$0xff]
    %6014 = vmatprep.subr.mxu0 0.0
    %6015 = vmatpush1.msra.mxu0 %v6013
    %6016 = vmatprep.subr.mxu0 0.0
    %6017 = vmatpush1.msra.mxu0 0.0
    %6018 = vmatprep.subr.mxu0 0.0
    %6019 = vmatpush1.msra.mxu0 0.0
    %6020 = vmatprep.subr.mxu0 0.0
    %6021 = vmatpush1.msra.mxu0 0.0
    %6022 = vmatprep.subr.mxu0 0.0
    %6023 = vmatpush1.msra.mxu0 0.0
    %6024 = vmatprep.subr.mxu0 0.0
    %6025 = vmatpush1.msra.mxu0 0.0
    %6026 = vmatprep.subr.mxu0 0.0
    %6027 = vmatpush1.msra.mxu0 0.0
    %6028 = vmatprep.subr.mxu0 0.0
    %6029 = vmatpush1.msra.mxu0 0.0
    %6030 = vmatprep.subr.mxu0 0.0
    %6031 = vmatpush1.msra.mxu0 0.0
    %6032 = vmatprep.subr.mxu0 0.0
    %6033 = vmatpush1.msra.mxu0 0.0
    %6034 = vmatprep.subr.mxu0 0.0
    %6035 = vmatpush1.msra.mxu0 0.0
    %6036 = vmatprep.subr.mxu0 0.0
    %6037 = vmatpush1.msra.mxu0 0.0
    %6038 = vmatprep.subr.mxu0 0.0
    %6039 = vmatpush1.msra.mxu0 0.0
    %6040 = vmatprep.subr.mxu0 0.0
    %6041 = vmatpush1.msra.mxu0 0.0
    %6042 = vmatprep.subr.mxu0 0.0
    %6043 = vmatpush1.msra.mxu0 0.0
    %6044 = vmatprep.subr.mxu0 0.0
    %6045 = vmatpush1.msra.mxu0 0.0
    %6046 = vmatprep.subr.mxu0 0.0
    %6047 = vmatpush1.msra.mxu0 0.0
    %6048 = vmatprep.subr.mxu0 0.0
    %6049 = vmatpush1.msra.mxu0 0.0
    %6050 = vmatprep.subr.mxu0 0.0
    %6051 = vmatpush1.msra.mxu0 0.0
    %6052 = vmatprep.subr.mxu0 0.0
    %6053 = vmatpush1.msra.mxu0 0.0
    %6054 = vmatprep.subr.mxu0 0.0
    %6055 = vmatpush1.msra.mxu0 0.0
    %6056 = vmatprep.subr.mxu0 0.0
    %6057 = vmatpush1.msra.mxu0 0.0
    %6058 = vmatprep.subr.mxu0 0.0
    %6059 = vmatpush1.msra.mxu0 0.0
    %6060 = vmatprep.subr.mxu0 0.0
    %6061 = vmatpush1.msra.mxu0 0.0
    %6062 = vmatprep.subr.mxu0 0.0
    %6063 = vmatpush1.msra.mxu0 0.0
    %6064 = vmatprep.subr.mxu0 0.0
    %6065 = vmatpush1.msra.mxu0 0.0
    %6066 = vmatprep.subr.mxu0 0.0
    %6067 = vmatpush1.msra.mxu0 0.0
    %6068 = vmatprep.subr.mxu0 0.0
    %6069 = vmatpush1.msra.mxu0 0.0
    %6070 = vmatprep.subr.mxu0 0.0
    %6071 = vmatpush1.msra.mxu0 0.0
    %6072 = vmatprep.subr.mxu0 0.0
    %6073 = vmatpush1.msra.mxu0 0.0
    %6074 = vmatprep.subr.mxu0 0.0
    %6075 = vmatpush1.msra.mxu0 0.0
    %6076 = vmatprep.subr.mxu0 0.0
    %6077 = vmatpush1.msra.mxu0 0.0
    %6078 = vmatprep.mubr.f32.mxu0 0.0
    %6079 = vmatmul.mubr.f32.gmra.mrb[0].mxu0 %v5131
    %v6080 = vpop.f32.mrb[0].mxu0
    %v6081 = vadd.f32 0.0, %v6080
    %v6082 = vpop.f32.mrb[0].mxu0
    %6083 = vmatprep.mubr.f32.mxu0 0.0
    %6084 = vmatmul.mubr.f32.gmra.mrb[0].mxu0 %v5134
    %v6085 = vpop.f32.mrb[0].mxu0
    %v6086 = vadd.f32 0.0, %v6085
    %v6087 = vpop.f32.mrb[0].mxu0
    %6088 = vmatprep.mubr.f32.mxu0 0.0
    %6089 = vmatmul.mubr.f32.gmra.mrb[0].mxu0 %v5137
    %v6090 = vpop.f32.mrb[0].mxu0
    %v6091 = vadd.f32 0.0, %v6090
    %v6092 = vpop.f32.mrb[0].mxu0
    %6093 = vmatprep.mubr.f32.mxu0 0.0
    %6094 = vmatmul.mubr.f32.gmra.mrb[0].mxu0 %v5140
    %v6095 = vpop.f32.mrb[0].mxu0
    %v6096 = vadd.f32 0.0, %v6095
    %v6097 = vpop.f32.mrb[0].mxu0
    %6098 = vdwg.mxu0
    %6099 = vmatprep.subr.mxu0 0.0
    %6100 = vmatpush1.msra.mxu0 %v6081
    %6101 = vmatprep.subr.mxu0 0.0
    %6102 = vmatpush1.msra.mxu0 %v6086
    %6103 = vmatprep.subr.mxu0 0.0
    %6104 = vmatpush1.msra.mxu0 %v6091
    %6105 = vmatprep.subr.mxu0 0.0
    %6106 = vmatpush1.msra.mxu0 %v6096
    %6107 = vmatprep.subr.mxu0 0.0
    %6108 = vmatpush1.msra.mxu0 0.0
    %6109 = vmatprep.subr.mxu0 0.0
    %6110 = vmatpush1.msra.mxu0 0.0
    %6111 = vmatprep.subr.mxu0 0.0
    %6112 = vmatpush1.msra.mxu0 0.0
    %6113 = vmatprep.subr.mxu0 0.0
    %6114 = vmatpush1.msra.mxu0 0.0
    %6115 = vmatprep.subr.mxu0 0.0
    %6116 = vmatpush1.msra.mxu0 0.0
    %6117 = vmatprep.subr.mxu0 0.0
    %6118 = vmatpush1.msra.mxu0 0.0
    %6119 = vmatprep.subr.mxu0 0.0
    %6120 = vmatpush1.msra.mxu0 0.0
    %6121 = vmatprep.subr.mxu0 0.0
    %6122 = vmatpush1.msra.mxu0 0.0
    %6123 = vmatprep.subr.mxu0 0.0
    %6124 = vmatpush1.msra.mxu0 0.0
    %6125 = vmatprep.subr.mxu0 0.0
    %6126 = vmatpush1.msra.mxu0 0.0
    %6127 = vmatprep.subr.mxu0 0.0
    %6128 = vmatpush1.msra.mxu0 0.0
    %6129 = vmatprep.subr.mxu0 0.0
    %6130 = vmatpush1.msra.mxu0 0.0
    %6131 = vmatprep.subr.mxu0 0.0
    %6132 = vmatpush1.msra.mxu0 0.0
    %6133 = vmatprep.subr.mxu0 0.0
    %6134 = vmatpush1.msra.mxu0 0.0
    %6135 = vmatprep.subr.mxu0 0.0
    %6136 = vmatpush1.msra.mxu0 0.0
    %6137 = vmatprep.subr.mxu0 0.0
    %6138 = vmatpush1.msra.mxu0 0.0
    %6139 = vmatprep.subr.mxu0 0.0
    %6140 = vmatpush1.msra.mxu0 0.0
    %6141 = vmatprep.subr.mxu0 0.0
    %6142 = vmatpush1.msra.mxu0 0.0
    %6143 = vmatprep.subr.mxu0 0.0
    %6144 = vmatpush1.msra.mxu0 0.0
    %6145 = vmatprep.subr.mxu0 0.0
    %6146 = vmatpush1.msra.mxu0 0.0
    %6147 = vmatprep.subr.mxu0 0.0
    %6148 = vmatpush1.msra.mxu0 0.0
    %6149 = vmatprep.subr.mxu0 0.0
    %6150 = vmatpush1.msra.mxu0 0.0
    %6151 = vmatprep.subr.mxu0 0.0
    %6152 = vmatpush1.msra.mxu0 0.0
    %6153 = vmatprep.subr.mxu0 0.0
    %6154 = vmatpush1.msra.mxu0 0.0
    %6155 = vmatprep.subr.mxu0 0.0
    %6156 = vmatpush1.msra.mxu0 0.0
    %6157 = vmatprep.subr.mxu0 0.0
    %6158 = vmatpush1.msra.mxu0 0.0
    %6159 = vmatprep.subr.mxu0 0.0
    %6160 = vmatpush1.msra.mxu0 0.0
    %6161 = vmatprep.subr.mxu0 0.0
    %6162 = vmatpush1.msra.mxu0 0.0
    %6163 = vmatprep.mubr.f32.mxu0 0.0
    %6164 = vmatmul.mubr.f32.gmra.mrb[0].mxu0 %v1226
    %v6165 = vpop.f32.mrb[0].mxu0
    %v6166 = vadd.f32 0.0, %v6165
    %v6167 = vpop.f32.mrb[0].mxu0
    %6168 = vmatprep.mubr.f32.mxu0 0.0
    %6169 = vmatmul.mubr.f32.gmra.mrb[0].mxu0 %v1229
    %v6170 = vpop.f32.mrb[0].mxu0
    %v6171 = vadd.f32 0.0, %v6170
    %v6172 = vpop.f32.mrb[0].mxu0
    %6173 = vmatprep.mubr.f32.mxu0 0.0
    %6174 = vmatmul.mubr.f32.gmra.mrb[0].mxu0 %v1232
    %v6175 = vpop.f32.mrb[0].mxu0
    %v6176 = vadd.f32 0.0, %v6175
    %v6177 = vpop.f32.mrb[0].mxu0
    %6178 = vmatprep.mubr.f32.mxu0 0.0
    %6179 = vmatmul.mubr.f32.gmra.mrb[0].mxu0 %v1235
    %v6180 = vpop.f32.mrb[0].mxu0
    %v6181 = vadd.f32 0.0, %v6180
    %v6182 = vpop.f32.mrb[0].mxu0
    %6183 = vdwg.mxu0
    %v6184 = vadd.f32 %v6008, %v6166
    %v6185 = vadd.f32 %v6009, %v6171
    %v6186 = vadd.f32 %v6010, %v6176
    %v6187 = vadd.f32 %v6011, %v6181
    %s6188 = scalar_lea.vmem %s6, 264
    %v6189 = vld [vmem:[%s6188] sm:$0xff]
    %6190 = vmatprep.subr.mxu0 0.0
    %6191 = vmatpush1.msra.mxu0 %v6189
    %6192 = vmatprep.subr.mxu0 0.0
    %6193 = vmatpush1.msra.mxu0 0.0
    %6194 = vmatprep.subr.mxu0 0.0
    %6195 = vmatpush1.msra.mxu0 0.0
    %6196 = vmatprep.subr.mxu0 0.0
    %6197 = vmatpush1.msra.mxu0 0.0
    %6198 = vmatprep.subr.mxu0 0.0
    %6199 = vmatpush1.msra.mxu0 0.0
    %6200 = vmatprep.subr.mxu0 0.0
    %6201 = vmatpush1.msra.mxu0 0.0
    %6202 = vmatprep.subr.mxu0 0.0
    %6203 = vmatpush1.msra.mxu0 0.0
    %6204 = vmatprep.subr.mxu0 0.0
    %6205 = vmatpush1.msra.mxu0 0.0
    %6206 = vmatprep.subr.mxu0 0.0
    %6207 = vmatpush1.msra.mxu0 0.0
    %6208 = vmatprep.subr.mxu0 0.0
    %6209 = vmatpush1.msra.mxu0 0.0
    %6210 = vmatprep.subr.mxu0 0.0
    %6211 = vmatpush1.msra.mxu0 0.0
    %6212 = vmatprep.subr.mxu0 0.0
    %6213 = vmatpush1.msra.mxu0 0.0
    %6214 = vmatprep.subr.mxu0 0.0
    %6215 = vmatpush1.msra.mxu0 0.0
    %6216 = vmatprep.subr.mxu0 0.0
    %6217 = vmatpush1.msra.mxu0 0.0
    %6218 = vmatprep.subr.mxu0 0.0
    %6219 = vmatpush1.msra.mxu0 0.0
    %6220 = vmatprep.subr.mxu0 0.0
    %6221 = vmatpush1.msra.mxu0 0.0
    %6222 = vmatprep.subr.mxu0 0.0
    %6223 = vmatpush1.msra.mxu0 0.0
    %6224 = vmatprep.subr.mxu0 0.0
    %6225 = vmatpush1.msra.mxu0 0.0
    %6226 = vmatprep.subr.mxu0 0.0
    %6227 = vmatpush1.msra.mxu0 0.0
    %6228 = vmatprep.subr.mxu0 0.0
    %6229 = vmatpush1.msra.mxu0 0.0
    %6230 = vmatprep.subr.mxu0 0.0
    %6231 = vmatpush1.msra.mxu0 0.0
    %6232 = vmatprep.subr.mxu0 0.0
    %6233 = vmatpush1.msra.mxu0 0.0
    %6234 = vmatprep.subr.mxu0 0.0
    %6235 = vmatpush1.msra.mxu0 0.0
    %6236 = vmatprep.subr.mxu0 0.0
    %6237 = vmatpush1.msra.mxu0 0.0
    %6238 = vmatprep.subr.mxu0 0.0
    %6239 = vmatpush1.msra.mxu0 0.0
    %6240 = vmatprep.subr.mxu0 0.0
    %6241 = vmatpush1.msra.mxu0 0.0
    %6242 = vmatprep.subr.mxu0 0.0
    %6243 = vmatpush1.msra.mxu0 0.0
    %6244 = vmatprep.subr.mxu0 0.0
    %6245 = vmatpush1.msra.mxu0 0.0
    %6246 = vmatprep.subr.mxu0 0.0
    %6247 = vmatpush1.msra.mxu0 0.0
    %6248 = vmatprep.subr.mxu0 0.0
    %6249 = vmatpush1.msra.mxu0 0.0
    %6250 = vmatprep.subr.mxu0 0.0
    %6251 = vmatpush1.msra.mxu0 0.0
    %6252 = vmatprep.subr.mxu0 0.0
    %6253 = vmatpush1.msra.mxu0 0.0
    %6254 = vmatprep.mubr.f32.mxu0 0.0
    %6255 = vmatmul.mubr.f32.gmra.mrb[0].mxu0 %v5131
    %v6256 = vpop.f32.mrb[0].mxu0
    %v6257 = vadd.f32 0.0, %v6256
    %v6258 = vpop.f32.mrb[0].mxu0
    %6259 = vmatprep.mubr.f32.mxu0 0.0
    %6260 = vmatmul.mubr.f32.gmra.mrb[0].mxu0 %v5134
    %v6261 = vpop.f32.mrb[0].mxu0
    %v6262 = vadd.f32 0.0, %v6261
    %v6263 = vpop.f32.mrb[0].mxu0
    %6264 = vmatprep.mubr.f32.mxu0 0.0
    %6265 = vmatmul.mubr.f32.gmra.mrb[0].mxu0 %v5137
    %v6266 = vpop.f32.mrb[0].mxu0
    %v6267 = vadd.f32 0.0, %v6266
    %v6268 = vpop.f32.mrb[0].mxu0
    %6269 = vmatprep.mubr.f32.mxu0 0.0
    %6270 = vmatmul.mubr.f32.gmra.mrb[0].mxu0 %v5140
    %v6271 = vpop.f32.mrb[0].mxu0
    %v6272 = vadd.f32 0.0, %v6271
    %v6273 = vpop.f32.mrb[0].mxu0
    %6274 = vdwg.mxu0
    %6275 = vmatprep.subr.mxu0 0.0
    %6276 = vmatpush1.msra.mxu0 %v6257
    %6277 = vmatprep.subr.mxu0 0.0
    %6278 = vmatpush1.msra.mxu0 %v6262
    %6279 = vmatprep.subr.mxu0 0.0
    %6280 = vmatpush1.msra.mxu0 %v6267
    %6281 = vmatprep.subr.mxu0 0.0
    %6282 = vmatpush1.msra.mxu0 %v6272
    %6283 = vmatprep.subr.mxu0 0.0
    %6284 = vmatpush1.msra.mxu0 0.0
    %6285 = vmatprep.subr.mxu0 0.0
    %6286 = vmatpush1.msra.mxu0 0.0
    %6287 = vmatprep.subr.mxu0 0.0
    %6288 = vmatpush1.msra.mxu0 0.0
    %6289 = vmatprep.subr.mxu0 0.0
    %6290 = vmatpush1.msra.mxu0 0.0
    %6291 = vmatprep.subr.mxu0 0.0
    %6292 = vmatpush1.msra.mxu0 0.0
    %6293 = vmatprep.subr.mxu0 0.0
    %6294 = vmatpush1.msra.mxu0 0.0
    %6295 = vmatprep.subr.mxu0 0.0
    %6296 = vmatpush1.msra.mxu0 0.0
    %6297 = vmatprep.subr.mxu0 0.0
    %6298 = vmatpush1.msra.mxu0 0.0
    %6299 = vmatprep.subr.mxu0 0.0
    %6300 = vmatpush1.msra.mxu0 0.0
    %6301 = vmatprep.subr.mxu0 0.0
    %6302 = vmatpush1.msra.mxu0 0.0
    %6303 = vmatprep.subr.mxu0 0.0
    %6304 = vmatpush1.msra.mxu0 0.0
    %6305 = vmatprep.subr.mxu0 0.0
    %6306 = vmatpush1.msra.mxu0 0.0
    %6307 = vmatprep.subr.mxu0 0.0
    %6308 = vmatpush1.msra.mxu0 0.0
    %6309 = vmatprep.subr.mxu0 0.0
    %6310 = vmatpush1.msra.mxu0 0.0
    %6311 = vmatprep.subr.mxu0 0.0
    %6312 = vmatpush1.msra.mxu0 0.0
    %6313 = vmatprep.subr.mxu0 0.0
    %6314 = vmatpush1.msra.mxu0 0.0
    %6315 = vmatprep.subr.mxu0 0.0
    %6316 = vmatpush1.msra.mxu0 0.0
    %6317 = vmatprep.subr.mxu0 0.0
    %6318 = vmatpush1.msra.mxu0 0.0
    %6319 = vmatprep.subr.mxu0 0.0
    %6320 = vmatpush1.msra.mxu0 0.0
    %6321 = vmatprep.subr.mxu0 0.0
    %6322 = vmatpush1.msra.mxu0 0.0
    %6323 = vmatprep.subr.mxu0 0.0
    %6324 = vmatpush1.msra.mxu0 0.0
    %6325 = vmatprep.subr.mxu0 0.0
    %6326 = vmatpush1.msra.mxu0 0.0
    %6327 = vmatprep.subr.mxu0 0.0
    %6328 = vmatpush1.msra.mxu0 0.0
    %6329 = vmatprep.subr.mxu0 0.0
    %6330 = vmatpush1.msra.mxu0 0.0
    %6331 = vmatprep.subr.mxu0 0.0
    %6332 = vmatpush1.msra.mxu0 0.0
    %6333 = vmatprep.subr.mxu0 0.0
    %6334 = vmatpush1.msra.mxu0 0.0
    %6335 = vmatprep.subr.mxu0 0.0
    %6336 = vmatpush1.msra.mxu0 0.0
    %6337 = vmatprep.subr.mxu0 0.0
    %6338 = vmatpush1.msra.mxu0 0.0
    %6339 = vmatprep.mubr.f32.mxu0 0.0
    %6340 = vmatmul.mubr.f32.gmra.mrb[0].mxu0 %v1419
    %v6341 = vpop.f32.mrb[0].mxu0
    %v6342 = vadd.f32 0.0, %v6341
    %v6343 = vpop.f32.mrb[0].mxu0
    %6344 = vmatprep.mubr.f32.mxu0 0.0
    %6345 = vmatmul.mubr.f32.gmra.mrb[0].mxu0 %v1422
    %v6346 = vpop.f32.mrb[0].mxu0
    %v6347 = vadd.f32 0.0, %v6346
    %v6348 = vpop.f32.mrb[0].mxu0
    %6349 = vmatprep.mubr.f32.mxu0 0.0
    %6350 = vmatmul.mubr.f32.gmra.mrb[0].mxu0 %v1425
    %v6351 = vpop.f32.mrb[0].mxu0
    %v6352 = vadd.f32 0.0, %v6351
    %v6353 = vpop.f32.mrb[0].mxu0
    %6354 = vmatprep.mubr.f32.mxu0 0.0
    %6355 = vmatmul.mubr.f32.gmra.mrb[0].mxu0 %v1428
    %v6356 = vpop.f32.mrb[0].mxu0
    %v6357 = vadd.f32 0.0, %v6356
    %v6358 = vpop.f32.mrb[0].mxu0
    %6359 = vdwg.mxu0
    %v6360 = vadd.f32 %v6184, %v6342
    %v6361 = vadd.f32 %v6185, %v6347
    %v6362 = vadd.f32 %v6186, %v6352
    %v6363 = vadd.f32 %v6187, %v6357
    %s6364 = scalar_lea.vmem %s6, 272
    %v6365 = vld [vmem:[%s6364] sm:$0xff]
    %6366 = vmatprep.subr.mxu0 0.0
    %6367 = vmatpush1.msra.mxu0 %v6365
    %6368 = vmatprep.subr.mxu0 0.0
    %6369 = vmatpush1.msra.mxu0 0.0
    %6370 = vmatprep.subr.mxu0 0.0
    %6371 = vmatpush1.msra.mxu0 0.0
    %6372 = vmatprep.subr.mxu0 0.0
    %6373 = vmatpush1.msra.mxu0 0.0
    %6374 = vmatprep.subr.mxu0 0.0
    %6375 = vmatpush1.msra.mxu0 0.0
    %6376 = vmatprep.subr.mxu0 0.0
    %6377 = vmatpush1.msra.mxu0 0.0
    %6378 = vmatprep.subr.mxu0 0.0
    %6379 = vmatpush1.msra.mxu0 0.0
    %6380 = vmatprep.subr.mxu0 0.0
    %6381 = vmatpush1.msra.mxu0 0.0
    %6382 = vmatprep.subr.mxu0 0.0
    %6383 = vmatpush1.msra.mxu0 0.0
    %6384 = vmatprep.subr.mxu0 0.0
    %6385 = vmatpush1.msra.mxu0 0.0
    %6386 = vmatprep.subr.mxu0 0.0
    %6387 = vmatpush1.msra.mxu0 0.0
    %6388 = vmatprep.subr.mxu0 0.0
    %6389 = vmatpush1.msra.mxu0 0.0
    %6390 = vmatprep.subr.mxu0 0.0
    %6391 = vmatpush1.msra.mxu0 0.0
    %6392 = vmatprep.subr.mxu0 0.0
    %6393 = vmatpush1.msra.mxu0 0.0
    %6394 = vmatprep.subr.mxu0 0.0
    %6395 = vmatpush1.msra.mxu0 0.0
    %6396 = vmatprep.subr.mxu0 0.0
    %6397 = vmatpush1.msra.mxu0 0.0
    %6398 = vmatprep.subr.mxu0 0.0
    %6399 = vmatpush1.msra.mxu0 0.0
    %6400 = vmatprep.subr.mxu0 0.0
    %6401 = vmatpush1.msra.mxu0 0.0
    %6402 = vmatprep.subr.mxu0 0.0
    %6403 = vmatpush1.msra.mxu0 0.0
    %6404 = vmatprep.subr.mxu0 0.0
    %6405 = vmatpush1.msra.mxu0 0.0
    %6406 = vmatprep.subr.mxu0 0.0
    %6407 = vmatpush1.msra.mxu0 0.0
    %6408 = vmatprep.subr.mxu0 0.0
    %6409 = vmatpush1.msra.mxu0 0.0
    %6410 = vmatprep.subr.mxu0 0.0
    %6411 = vmatpush1.msra.mxu0 0.0
    %6412 = vmatprep.subr.mxu0 0.0
    %6413 = vmatpush1.msra.mxu0 0.0
    %6414 = vmatprep.subr.mxu0 0.0
    %6415 = vmatpush1.msra.mxu0 0.0
    %6416 = vmatprep.subr.mxu0 0.0
    %6417 = vmatpush1.msra.mxu0 0.0
    %6418 = vmatprep.subr.mxu0 0.0
    %6419 = vmatpush1.msra.mxu0 0.0
    %6420 = vmatprep.subr.mxu0 0.0
    %6421 = vmatpush1.msra.mxu0 0.0
    %6422 = vmatprep.subr.mxu0 0.0
    %6423 = vmatpush1.msra.mxu0 0.0
    %6424 = vmatprep.subr.mxu0 0.0
    %6425 = vmatpush1.msra.mxu0 0.0
    %6426 = vmatprep.subr.mxu0 0.0
    %6427 = vmatpush1.msra.mxu0 0.0
    %6428 = vmatprep.subr.mxu0 0.0
    %6429 = vmatpush1.msra.mxu0 0.0
    %6430 = vmatprep.mubr.f32.mxu0 0.0
    %6431 = vmatmul.mubr.f32.gmra.mrb[0].mxu0 %v5131
    %v6432 = vpop.f32.mrb[0].mxu0
    %v6433 = vadd.f32 0.0, %v6432
    %v6434 = vpop.f32.mrb[0].mxu0
    %6435 = vmatprep.mubr.f32.mxu0 0.0
    %6436 = vmatmul.mubr.f32.gmra.mrb[0].mxu0 %v5134
    %v6437 = vpop.f32.mrb[0].mxu0
    %v6438 = vadd.f32 0.0, %v6437
    %v6439 = vpop.f32.mrb[0].mxu0
    %6440 = vmatprep.mubr.f32.mxu0 0.0
    %6441 = vmatmul.mubr.f32.gmra.mrb[0].mxu0 %v5137
    %v6442 = vpop.f32.mrb[0].mxu0
    %v6443 = vadd.f32 0.0, %v6442
    %v6444 = vpop.f32.mrb[0].mxu0
    %6445 = vmatprep.mubr.f32.mxu0 0.0
    %6446 = vmatmul.mubr.f32.gmra.mrb[0].mxu0 %v5140
    %v6447 = vpop.f32.mrb[0].mxu0
    %v6448 = vadd.f32 0.0, %v6447
    %v6449 = vpop.f32.mrb[0].mxu0
    %6450 = vdwg.mxu0
    %6451 = vmatprep.subr.mxu0 0.0
    %6452 = vmatpush1.msra.mxu0 %v6433
    %6453 = vmatprep.subr.mxu0 0.0
    %6454 = vmatpush1.msra.mxu0 %v6438
    %6455 = vmatprep.subr.mxu0 0.0
    %6456 = vmatpush1.msra.mxu0 %v6443
    %6457 = vmatprep.subr.mxu0 0.0
    %6458 = vmatpush1.msra.mxu0 %v6448
    %6459 = vmatprep.subr.mxu0 0.0
    %6460 = vmatpush1.msra.mxu0 0.0
    %6461 = vmatprep.subr.mxu0 0.0
    %6462 = vmatpush1.msra.mxu0 0.0
    %6463 = vmatprep.subr.mxu0 0.0
    %6464 = vmatpush1.msra.mxu0 0.0
    %6465 = vmatprep.subr.mxu0 0.0
    %6466 = vmatpush1.msra.mxu0 0.0
    %6467 = vmatprep.subr.mxu0 0.0
    %6468 = vmatpush1.msra.mxu0 0.0
    %6469 = vmatprep.subr.mxu0 0.0
    %6470 = vmatpush1.msra.mxu0 0.0
    %6471 = vmatprep.subr.mxu0 0.0
    %6472 = vmatpush1.msra.mxu0 0.0
    %6473 = vmatprep.subr.mxu0 0.0
    %6474 = vmatpush1.msra.mxu0 0.0
    %6475 = vmatprep.subr.mxu0 0.0
    %6476 = vmatpush1.msra.mxu0 0.0
    %6477 = vmatprep.subr.mxu0 0.0
    %6478 = vmatpush1.msra.mxu0 0.0
    %6479 = vmatprep.subr.mxu0 0.0
    %6480 = vmatpush1.msra.mxu0 0.0
    %6481 = vmatprep.subr.mxu0 0.0
    %6482 = vmatpush1.msra.mxu0 0.0
    %6483 = vmatprep.subr.mxu0 0.0
    %6484 = vmatpush1.msra.mxu0 0.0
    %6485 = vmatprep.subr.mxu0 0.0
    %6486 = vmatpush1.msra.mxu0 0.0
    %6487 = vmatprep.subr.mxu0 0.0
    %6488 = vmatpush1.msra.mxu0 0.0
    %6489 = vmatprep.subr.mxu0 0.0
    %6490 = vmatpush1.msra.mxu0 0.0
    %6491 = vmatprep.subr.mxu0 0.0
    %6492 = vmatpush1.msra.mxu0 0.0
    %6493 = vmatprep.subr.mxu0 0.0
    %6494 = vmatpush1.msra.mxu0 0.0
    %6495 = vmatprep.subr.mxu0 0.0
    %6496 = vmatpush1.msra.mxu0 0.0
    %6497 = vmatprep.subr.mxu0 0.0
    %6498 = vmatpush1.msra.mxu0 0.0
    %6499 = vmatprep.subr.mxu0 0.0
    %6500 = vmatpush1.msra.mxu0 0.0
    %6501 = vmatprep.subr.mxu0 0.0
    %6502 = vmatpush1.msra.mxu0 0.0
    %6503 = vmatprep.subr.mxu0 0.0
    %6504 = vmatpush1.msra.mxu0 0.0
    %6505 = vmatprep.subr.mxu0 0.0
    %6506 = vmatpush1.msra.mxu0 0.0
    %6507 = vmatprep.subr.mxu0 0.0
    %6508 = vmatpush1.msra.mxu0 0.0
    %6509 = vmatprep.subr.mxu0 0.0
    %6510 = vmatpush1.msra.mxu0 0.0
    %6511 = vmatprep.subr.mxu0 0.0
    %6512 = vmatpush1.msra.mxu0 0.0
    %6513 = vmatprep.subr.mxu0 0.0
    %6514 = vmatpush1.msra.mxu0 0.0
    %6515 = vmatprep.mubr.f32.mxu0 0.0
    %6516 = vmatmul.mubr.f32.gmra.mrb[0].mxu0 %v1612
    %v6517 = vpop.f32.mrb[0].mxu0
    %v6518 = vadd.f32 0.0, %v6517
    %v6519 = vpop.f32.mrb[0].mxu0
    %6520 = vmatprep.mubr.f32.mxu0 0.0
    %6521 = vmatmul.mubr.f32.gmra.mrb[0].mxu0 %v1615
    %v6522 = vpop.f32.mrb[0].mxu0
    %v6523 = vadd.f32 0.0, %v6522
    %v6524 = vpop.f32.mrb[0].mxu0
    %6525 = vmatprep.mubr.f32.mxu0 0.0
    %6526 = vmatmul.mubr.f32.gmra.mrb[0].mxu0 %v1618
    %v6527 = vpop.f32.mrb[0].mxu0
    %v6528 = vadd.f32 0.0, %v6527
    %v6529 = vpop.f32.mrb[0].mxu0
    %6530 = vmatprep.mubr.f32.mxu0 0.0
    %6531 = vmatmul.mubr.f32.gmra.mrb[0].mxu0 %v1621
    %v6532 = vpop.f32.mrb[0].mxu0
    %v6533 = vadd.f32 0.0, %v6532
    %v6534 = vpop.f32.mrb[0].mxu0
    %6535 = vdwg.mxu0
    %v6536 = vadd.f32 %v6360, %v6518
    %v6537 = vadd.f32 %v6361, %v6523
    %v6538 = vadd.f32 %v6362, %v6528
    %v6539 = vadd.f32 %v6363, %v6533
    %s6540 = scalar_lea.vmem %s6, 280
    %v6541 = vld [vmem:[%s6540] sm:$0xff]
    %6542 = vmatprep.subr.mxu0 0.0
    %6543 = vmatpush1.msra.mxu0 %v6541
    %6544 = vmatprep.subr.mxu0 0.0
    %6545 = vmatpush1.msra.mxu0 0.0
    %6546 = vmatprep.subr.mxu0 0.0
    %6547 = vmatpush1.msra.mxu0 0.0
    %6548 = vmatprep.subr.mxu0 0.0
    %6549 = vmatpush1.msra.mxu0 0.0
    %6550 = vmatprep.subr.mxu0 0.0
    %6551 = vmatpush1.msra.mxu0 0.0
    %6552 = vmatprep.subr.mxu0 0.0
    %6553 = vmatpush1.msra.mxu0 0.0
    %6554 = vmatprep.subr.mxu0 0.0
    %6555 = vmatpush1.msra.mxu0 0.0
    %6556 = vmatprep.subr.mxu0 0.0
    %6557 = vmatpush1.msra.mxu0 0.0
    %6558 = vmatprep.subr.mxu0 0.0
    %6559 = vmatpush1.msra.mxu0 0.0
    %6560 = vmatprep.subr.mxu0 0.0
    %6561 = vmatpush1.msra.mxu0 0.0
    %6562 = vmatprep.subr.mxu0 0.0
    %6563 = vmatpush1.msra.mxu0 0.0
    %6564 = vmatprep.subr.mxu0 0.0
    %6565 = vmatpush1.msra.mxu0 0.0
    %6566 = vmatprep.subr.mxu0 0.0
    %6567 = vmatpush1.msra.mxu0 0.0
    %6568 = vmatprep.subr.mxu0 0.0
    %6569 = vmatpush1.msra.mxu0 0.0
    %6570 = vmatprep.subr.mxu0 0.0
    %6571 = vmatpush1.msra.mxu0 0.0
    %6572 = vmatprep.subr.mxu0 0.0
    %6573 = vmatpush1.msra.mxu0 0.0
    %6574 = vmatprep.subr.mxu0 0.0
    %6575 = vmatpush1.msra.mxu0 0.0
    %6576 = vmatprep.subr.mxu0 0.0
    %6577 = vmatpush1.msra.mxu0 0.0
    %6578 = vmatprep.subr.mxu0 0.0
    %6579 = vmatpush1.msra.mxu0 0.0
    %6580 = vmatprep.subr.mxu0 0.0
    %6581 = vmatpush1.msra.mxu0 0.0
    %6582 = vmatprep.subr.mxu0 0.0
    %6583 = vmatpush1.msra.mxu0 0.0
    %6584 = vmatprep.subr.mxu0 0.0
    %6585 = vmatpush1.msra.mxu0 0.0
    %6586 = vmatprep.subr.mxu0 0.0
    %6587 = vmatpush1.msra.mxu0 0.0
    %6588 = vmatprep.subr.mxu0 0.0
    %6589 = vmatpush1.msra.mxu0 0.0
    %6590 = vmatprep.subr.mxu0 0.0
    %6591 = vmatpush1.msra.mxu0 0.0
    %6592 = vmatprep.subr.mxu0 0.0
    %6593 = vmatpush1.msra.mxu0 0.0
    %6594 = vmatprep.subr.mxu0 0.0
    %6595 = vmatpush1.msra.mxu0 0.0
    %6596 = vmatprep.subr.mxu0 0.0
    %6597 = vmatpush1.msra.mxu0 0.0
    %6598 = vmatprep.subr.mxu0 0.0
    %6599 = vmatpush1.msra.mxu0 0.0
    %6600 = vmatprep.subr.mxu0 0.0
    %6601 = vmatpush1.msra.mxu0 0.0
    %6602 = vmatprep.subr.mxu0 0.0
    %6603 = vmatpush1.msra.mxu0 0.0
    %6604 = vmatprep.subr.mxu0 0.0
    %6605 = vmatpush1.msra.mxu0 0.0
    %6606 = vmatprep.mubr.f32.mxu0 0.0
    %6607 = vmatmul.mubr.f32.gmra.mrb[0].mxu0 %v5131
    %v6608 = vpop.f32.mrb[0].mxu0
    %v6609 = vadd.f32 0.0, %v6608
    %v6610 = vpop.f32.mrb[0].mxu0
    %6611 = vmatprep.mubr.f32.mxu0 0.0
    %6612 = vmatmul.mubr.f32.gmra.mrb[0].mxu0 %v5134
    %v6613 = vpop.f32.mrb[0].mxu0
    %v6614 = vadd.f32 0.0, %v6613
    %v6615 = vpop.f32.mrb[0].mxu0
    %6616 = vmatprep.mubr.f32.mxu0 0.0
    %6617 = vmatmul.mubr.f32.gmra.mrb[0].mxu0 %v5137
    %v6618 = vpop.f32.mrb[0].mxu0
    %v6619 = vadd.f32 0.0, %v6618
    %v6620 = vpop.f32.mrb[0].mxu0
    %6621 = vmatprep.mubr.f32.mxu0 0.0
    %6622 = vmatmul.mubr.f32.gmra.mrb[0].mxu0 %v5140
    %v6623 = vpop.f32.mrb[0].mxu0
    %v6624 = vadd.f32 0.0, %v6623
    %v6625 = vpop.f32.mrb[0].mxu0
    %6626 = vdwg.mxu0
    %6627 = vmatprep.subr.mxu0 0.0
    %6628 = vmatpush1.msra.mxu0 %v6609
    %6629 = vmatprep.subr.mxu0 0.0
    %6630 = vmatpush1.msra.mxu0 %v6614
    %6631 = vmatprep.subr.mxu0 0.0
    %6632 = vmatpush1.msra.mxu0 %v6619
    %6633 = vmatprep.subr.mxu0 0.0
    %6634 = vmatpush1.msra.mxu0 %v6624
    %6635 = vmatprep.subr.mxu0 0.0
    %6636 = vmatpush1.msra.mxu0 0.0
    %6637 = vmatprep.subr.mxu0 0.0
    %6638 = vmatpush1.msra.mxu0 0.0
    %6639 = vmatprep.subr.mxu0 0.0
    %6640 = vmatpush1.msra.mxu0 0.0
    %6641 = vmatprep.subr.mxu0 0.0
    %6642 = vmatpush1.msra.mxu0 0.0
    %6643 = vmatprep.subr.mxu0 0.0
    %6644 = vmatpush1.msra.mxu0 0.0
    %6645 = vmatprep.subr.mxu0 0.0
    %6646 = vmatpush1.msra.mxu0 0.0
    %6647 = vmatprep.subr.mxu0 0.0
    %6648 = vmatpush1.msra.mxu0 0.0
    %6649 = vmatprep.subr.mxu0 0.0
    %6650 = vmatpush1.msra.mxu0 0.0
    %6651 = vmatprep.subr.mxu0 0.0
    %6652 = vmatpush1.msra.mxu0 0.0
    %6653 = vmatprep.subr.mxu0 0.0
    %6654 = vmatpush1.msra.mxu0 0.0
    %6655 = vmatprep.subr.mxu0 0.0
    %6656 = vmatpush1.msra.mxu0 0.0
    %6657 = vmatprep.subr.mxu0 0.0
    %6658 = vmatpush1.msra.mxu0 0.0
    %6659 = vmatprep.subr.mxu0 0.0
    %6660 = vmatpush1.msra.mxu0 0.0
    %6661 = vmatprep.subr.mxu0 0.0
    %6662 = vmatpush1.msra.mxu0 0.0
    %6663 = vmatprep.subr.mxu0 0.0
    %6664 = vmatpush1.msra.mxu0 0.0
    %6665 = vmatprep.subr.mxu0 0.0
    %6666 = vmatpush1.msra.mxu0 0.0
    %6667 = vmatprep.subr.mxu0 0.0
    %6668 = vmatpush1.msra.mxu0 0.0
    %6669 = vmatprep.subr.mxu0 0.0
    %6670 = vmatpush1.msra.mxu0 0.0
    %6671 = vmatprep.subr.mxu0 0.0
    %6672 = vmatpush1.msra.mxu0 0.0
    %6673 = vmatprep.subr.mxu0 0.0
    %6674 = vmatpush1.msra.mxu0 0.0
    %6675 = vmatprep.subr.mxu0 0.0
    %6676 = vmatpush1.msra.mxu0 0.0
    %6677 = vmatprep.subr.mxu0 0.0
    %6678 = vmatpush1.msra.mxu0 0.0
    %6679 = vmatprep.subr.mxu0 0.0
    %6680 = vmatpush1.msra.mxu0 0.0
    %6681 = vmatprep.subr.mxu0 0.0
    %6682 = vmatpush1.msra.mxu0 0.0
    %6683 = vmatprep.subr.mxu0 0.0
    %6684 = vmatpush1.msra.mxu0 0.0
    %6685 = vmatprep.subr.mxu0 0.0
    %6686 = vmatpush1.msra.mxu0 0.0
    %6687 = vmatprep.subr.mxu0 0.0
    %6688 = vmatpush1.msra.mxu0 0.0
    %6689 = vmatprep.subr.mxu0 0.0
    %6690 = vmatpush1.msra.mxu0 0.0
    %6691 = vmatprep.mubr.f32.mxu0 0.0
    %6692 = vmatmul.mubr.f32.gmra.mrb[0].mxu0 %v1805
    %v6693 = vpop.f32.mrb[0].mxu0
    %v6694 = vadd.f32 0.0, %v6693
    %v6695 = vpop.f32.mrb[0].mxu0
    %6696 = vmatprep.mubr.f32.mxu0 0.0
    %6697 = vmatmul.mubr.f32.gmra.mrb[0].mxu0 %v1808
    %v6698 = vpop.f32.mrb[0].mxu0
    %v6699 = vadd.f32 0.0, %v6698
    %v6700 = vpop.f32.mrb[0].mxu0
    %6701 = vmatprep.mubr.f32.mxu0 0.0
    %6702 = vmatmul.mubr.f32.gmra.mrb[0].mxu0 %v1811
    %v6703 = vpop.f32.mrb[0].mxu0
    %v6704 = vadd.f32 0.0, %v6703
    %v6705 = vpop.f32.mrb[0].mxu0
    %6706 = vmatprep.mubr.f32.mxu0 0.0
    %6707 = vmatmul.mubr.f32.gmra.mrb[0].mxu0 %v1814
    %v6708 = vpop.f32.mrb[0].mxu0
    %v6709 = vadd.f32 0.0, %v6708
    %v6710 = vpop.f32.mrb[0].mxu0
    %6711 = vdwg.mxu0
    %v6712 = vadd.f32 %v6536, %v6694
    %v6713 = vadd.f32 %v6537, %v6699
    %v6714 = vadd.f32 %v6538, %v6704
    %v6715 = vadd.f32 %v6539, %v6709
    %s6716 = scalar_lea.vmem %s7, 3
    %v6717 = vld [vmem:[%s6716] sm:$0x1]
    %v6719 = vlaneseq
    %v6720 = vshrl.u32 %v6719, 7
    %v6721 = vsub.s32 0, %v6720
    %v6722 = vrot.slane %v6717, %v6721
    %v6724 = vadd.f32 %v6712, %v6722
    %v6725 = vadd.f32 %v6713, %v6722
    %v6726 = vadd.f32 %v6714, %v6722
    %v6727 = vadd.f32 %v6715, %v6722
    %v6728 = vmax.f32 %v6724, 0.0
    %v6729 = vmax.f32 %v6725, 0.0
    %v6730 = vmax.f32 %v6726, 0.0
    %v6731 = vmax.f32 %v6727, 0.0
    %v6732 = vmul.f32 %v160, %v160
    %v6733 = vmul.f32 %v161, %v161
    %v6734 = vmul.f32 %v162, %v162
    %v6735 = vmul.f32 %v163, %v163
    %v6736 = vsel %vm165, %v6732, 0.0
    %6737 = vadd.xlane.f32.xlu0 %v6736
    %v6738 = vpop.xlane.xlu0 %6737
    %v6739 = vsel %vm165, %v6733, 0.0
    %6740 = vadd.xlane.f32.xlu0 %v6739
    %v6741 = vpop.xlane.xlu0 %6740
    %v6742 = vsel %vm165, %v6734, 0.0
    %6743 = vadd.xlane.f32.xlu0 %v6742
    %v6744 = vpop.xlane.xlu0 %6743
    %v6745 = vsel %vm165, %v6735, 0.0
    %6746 = vadd.xlane.f32.xlu0 %v6745
    %v6747 = vpop.xlane.xlu0 %6746
    %v6748 = vrcp.pop 8.0
    %v6749 = vmul.f32 %v6738, %v6748
    %v6750 = vmul.f32 %v6741, %v6748
    %v6751 = vmul.f32 %v6744, %v6748
    %v6752 = vmul.f32 %v6747, %v6748
    %v6753 = vld [vmem:[%s2] sm:$0xff]
    %v6754 = vld [vmem:[%s2 + $0x8] sm:$0xff]
    %v6755 = vld [vmem:[%s2 + $0x10] sm:$0xff]
    %v6756 = vld [vmem:[%s2 + $0x18] sm:$0xff]
    %v6757 = vmul.f32 %v6749, %v6749
    %v6758 = vmul.f32 %v6750, %v6750
    %v6759 = vmul.f32 %v6751, %v6751
    %v6760 = vmul.f32 %v6752, %v6752
    %v6762 = vsel %vm359, %v6753, 0
    %v6765 = vsel %vm359, %v6754, 0
    %v6768 = vsel %vm359, %v6755, 0
    %v6771 = vsel %vm359, %v6756, 0
    %6773 = vmatprep.subr.mxu0 0.0
    %6774 = vmatpush1.msra.mxu0 %v6757
    %6775 = vmatprep.subr.mxu0 0.0
    %6776 = vmatpush1.msra.mxu0 %v6758
    %6777 = vmatprep.subr.mxu0 0.0
    %6778 = vmatpush1.msra.mxu0 %v6759
    %6779 = vmatprep.subr.mxu0 0.0
    %6780 = vmatpush1.msra.mxu0 %v6760
    %6781 = vmatprep.subr.mxu0 0.0
    %6782 = vmatpush1.msra.mxu0 0.0
    %6783 = vmatprep.subr.mxu0 0.0
    %6784 = vmatpush1.msra.mxu0 0.0
    %6785 = vmatprep.subr.mxu0 0.0
    %6786 = vmatpush1.msra.mxu0 0.0
    %6787 = vmatprep.subr.mxu0 0.0
    %6788 = vmatpush1.msra.mxu0 0.0
    %6789 = vmatprep.subr.mxu0 0.0
    %6790 = vmatpush1.msra.mxu0 0.0
    %6791 = vmatprep.subr.mxu0 0.0
    %6792 = vmatpush1.msra.mxu0 0.0
    %6793 = vmatprep.subr.mxu0 0.0
    %6794 = vmatpush1.msra.mxu0 0.0
    %6795 = vmatprep.subr.mxu0 0.0
    %6796 = vmatpush1.msra.mxu0 0.0
    %6797 = vmatprep.subr.mxu0 0.0
    %6798 = vmatpush1.msra.mxu0 0.0
    %6799 = vmatprep.subr.mxu0 0.0
    %6800 = vmatpush1.msra.mxu0 0.0
    %6801 = vmatprep.subr.mxu0 0.0
    %6802 = vmatpush1.msra.mxu0 0.0
    %6803 = vmatprep.subr.mxu0 0.0
    %6804 = vmatpush1.msra.mxu0 0.0
    %6805 = vmatprep.subr.mxu0 0.0
    %6806 = vmatpush1.msra.mxu0 0.0
    %6807 = vmatprep.subr.mxu0 0.0
    %6808 = vmatpush1.msra.mxu0 0.0
    %6809 = vmatprep.subr.mxu0 0.0
    %6810 = vmatpush1.msra.mxu0 0.0
    %6811 = vmatprep.subr.mxu0 0.0
    %6812 = vmatpush1.msra.mxu0 0.0
    %6813 = vmatprep.subr.mxu0 0.0
    %6814 = vmatpush1.msra.mxu0 0.0
    %6815 = vmatprep.subr.mxu0 0.0
    %6816 = vmatpush1.msra.mxu0 0.0
    %6817 = vmatprep.subr.mxu0 0.0
    %6818 = vmatpush1.msra.mxu0 0.0
    %6819 = vmatprep.subr.mxu0 0.0
    %6820 = vmatpush1.msra.mxu0 0.0
    %6821 = vmatprep.subr.mxu0 0.0
    %6822 = vmatpush1.msra.mxu0 0.0
    %6823 = vmatprep.subr.mxu0 0.0
    %6824 = vmatpush1.msra.mxu0 0.0
    %6825 = vmatprep.subr.mxu0 0.0
    %6826 = vmatpush1.msra.mxu0 0.0
    %6827 = vmatprep.subr.mxu0 0.0
    %6828 = vmatpush1.msra.mxu0 0.0
    %6829 = vmatprep.subr.mxu0 0.0
    %6830 = vmatpush1.msra.mxu0 0.0
    %6831 = vmatprep.subr.mxu0 0.0
    %6832 = vmatpush1.msra.mxu0 0.0
    %6833 = vmatprep.subr.mxu0 0.0
    %6834 = vmatpush1.msra.mxu0 0.0
    %6835 = vmatprep.subr.mxu0 0.0
    %6836 = vmatpush1.msra.mxu0 0.0
    %6837 = vmatprep.mubr.f32.mxu0 0.0
    %6838 = vmatmul.mubr.f32.gmra.mrb[0].mxu0 %v6762
    %v6839 = vpop.f32.mrb[0].mxu0
    %v6840 = vadd.f32 0.0, %v6839
    %v6841 = vpop.f32.mrb[0].mxu0
    %6842 = vmatprep.mubr.f32.mxu0 0.0
    %6843 = vmatmul.mubr.f32.gmra.mrb[0].mxu0 %v6765
    %v6844 = vpop.f32.mrb[0].mxu0
    %v6845 = vadd.f32 0.0, %v6844
    %v6846 = vpop.f32.mrb[0].mxu0
    %6847 = vmatprep.mubr.f32.mxu0 0.0
    %6848 = vmatmul.mubr.f32.gmra.mrb[0].mxu0 %v6768
    %v6849 = vpop.f32.mrb[0].mxu0
    %v6850 = vadd.f32 0.0, %v6849
    %v6851 = vpop.f32.mrb[0].mxu0
    %6852 = vmatprep.mubr.f32.mxu0 0.0
    %6853 = vmatmul.mubr.f32.gmra.mrb[0].mxu0 %v6771
    %v6854 = vpop.f32.mrb[0].mxu0
    %v6855 = vadd.f32 0.0, %v6854
    %v6856 = vpop.f32.mrb[0].mxu0
    %6857 = vdwg.mxu0
    %v6858 = vmax.f32 %v6840, 1e-24
    %v6859 = vmax.f32 %v6845, 1e-24
    %v6860 = vmax.f32 %v6850, 1e-24
    %v6861 = vmax.f32 %v6855, 1e-24
    %v6862 = vrsqrt.pop %v6858
    %v6863 = vrsqrt.pop %v6859
    %v6864 = vrsqrt.pop %v6860
    %v6865 = vrsqrt.pop %v6861
    %v6866 = vmul.f32 %v6749, %v6862
    %v6867 = vmul.f32 %v6750, %v6863
    %v6868 = vmul.f32 %v6751, %v6864
    %v6869 = vmul.f32 %v6752, %v6865
    %v6870 = vmul.f32 %v5124, %v5124
    %v6871 = vmul.f32 %v5125, %v5125
    %v6872 = vmul.f32 %v5126, %v5126
    %v6873 = vmul.f32 %v5127, %v5127
    %v6874 = vsel %vm165, %v6870, 0.0
    %6875 = vadd.xlane.f32.xlu0 %v6874
    %v6876 = vpop.xlane.xlu0 %6875
    %v6877 = vsel %vm165, %v6871, 0.0
    %6878 = vadd.xlane.f32.xlu0 %v6877
    %v6879 = vpop.xlane.xlu0 %6878
    %v6880 = vsel %vm165, %v6872, 0.0
    %6881 = vadd.xlane.f32.xlu0 %v6880
    %v6882 = vpop.xlane.xlu0 %6881
    %v6883 = vsel %vm165, %v6873, 0.0
    %6884 = vadd.xlane.f32.xlu0 %v6883
    %v6885 = vpop.xlane.xlu0 %6884
    %v6886 = vmul.f32 %v6876, %v6748
    %v6887 = vmul.f32 %v6879, %v6748
    %v6888 = vmul.f32 %v6882, %v6748
    %v6889 = vmul.f32 %v6885, %v6748
    %v6890 = vmul.f32 %v6886, %v6886
    %v6891 = vmul.f32 %v6887, %v6887
    %v6892 = vmul.f32 %v6888, %v6888
    %v6893 = vmul.f32 %v6889, %v6889
    %6894 = vmatprep.subr.mxu0 0.0
    %6895 = vmatpush1.msra.mxu0 %v6890
    %6896 = vmatprep.subr.mxu0 0.0
    %6897 = vmatpush1.msra.mxu0 %v6891
    %6898 = vmatprep.subr.mxu0 0.0
    %6899 = vmatpush1.msra.mxu0 %v6892
    %6900 = vmatprep.subr.mxu0 0.0
    %6901 = vmatpush1.msra.mxu0 %v6893
    %6902 = vmatprep.subr.mxu0 0.0
    %6903 = vmatpush1.msra.mxu0 0.0
    %6904 = vmatprep.subr.mxu0 0.0
    %6905 = vmatpush1.msra.mxu0 0.0
    %6906 = vmatprep.subr.mxu0 0.0
    %6907 = vmatpush1.msra.mxu0 0.0
    %6908 = vmatprep.subr.mxu0 0.0
    %6909 = vmatpush1.msra.mxu0 0.0
    %6910 = vmatprep.subr.mxu0 0.0
    %6911 = vmatpush1.msra.mxu0 0.0
    %6912 = vmatprep.subr.mxu0 0.0
    %6913 = vmatpush1.msra.mxu0 0.0
    %6914 = vmatprep.subr.mxu0 0.0
    %6915 = vmatpush1.msra.mxu0 0.0
    %6916 = vmatprep.subr.mxu0 0.0
    %6917 = vmatpush1.msra.mxu0 0.0
    %6918 = vmatprep.subr.mxu0 0.0
    %6919 = vmatpush1.msra.mxu0 0.0
    %6920 = vmatprep.subr.mxu0 0.0
    %6921 = vmatpush1.msra.mxu0 0.0
    %6922 = vmatprep.subr.mxu0 0.0
    %6923 = vmatpush1.msra.mxu0 0.0
    %6924 = vmatprep.subr.mxu0 0.0
    %6925 = vmatpush1.msra.mxu0 0.0
    %6926 = vmatprep.subr.mxu0 0.0
    %6927 = vmatpush1.msra.mxu0 0.0
    %6928 = vmatprep.subr.mxu0 0.0
    %6929 = vmatpush1.msra.mxu0 0.0
    %6930 = vmatprep.subr.mxu0 0.0
    %6931 = vmatpush1.msra.mxu0 0.0
    %6932 = vmatprep.subr.mxu0 0.0
    %6933 = vmatpush1.msra.mxu0 0.0
    %6934 = vmatprep.subr.mxu0 0.0
    %6935 = vmatpush1.msra.mxu0 0.0
    %6936 = vmatprep.subr.mxu0 0.0
    %6937 = vmatpush1.msra.mxu0 0.0
    %6938 = vmatprep.subr.mxu0 0.0
    %6939 = vmatpush1.msra.mxu0 0.0
    %6940 = vmatprep.subr.mxu0 0.0
    %6941 = vmatpush1.msra.mxu0 0.0
    %6942 = vmatprep.subr.mxu0 0.0
    %6943 = vmatpush1.msra.mxu0 0.0
    %6944 = vmatprep.subr.mxu0 0.0
    %6945 = vmatpush1.msra.mxu0 0.0
    %6946 = vmatprep.subr.mxu0 0.0
    %6947 = vmatpush1.msra.mxu0 0.0
    %6948 = vmatprep.subr.mxu0 0.0
    %6949 = vmatpush1.msra.mxu0 0.0
    %6950 = vmatprep.subr.mxu0 0.0
    %6951 = vmatpush1.msra.mxu0 0.0
    %6952 = vmatprep.subr.mxu0 0.0
    %6953 = vmatpush1.msra.mxu0 0.0
    %6954 = vmatprep.subr.mxu0 0.0
    %6955 = vmatpush1.msra.mxu0 0.0
    %6956 = vmatprep.subr.mxu0 0.0
    %6957 = vmatpush1.msra.mxu0 0.0
    %6958 = vmatprep.mubr.f32.mxu0 0.0
    %6959 = vmatmul.mubr.f32.gmra.mrb[0].mxu0 %v6762
    %v6960 = vpop.f32.mrb[0].mxu0
    %v6961 = vadd.f32 0.0, %v6960
    %v6962 = vpop.f32.mrb[0].mxu0
    %6963 = vmatprep.mubr.f32.mxu0 0.0
    %6964 = vmatmul.mubr.f32.gmra.mrb[0].mxu0 %v6765
    %v6965 = vpop.f32.mrb[0].mxu0
    %v6966 = vadd.f32 0.0, %v6965
    %v6967 = vpop.f32.mrb[0].mxu0
    %6968 = vmatprep.mubr.f32.mxu0 0.0
    %6969 = vmatmul.mubr.f32.gmra.mrb[0].mxu0 %v6768
    %v6970 = vpop.f32.mrb[0].mxu0
    %v6971 = vadd.f32 0.0, %v6970
    %v6972 = vpop.f32.mrb[0].mxu0
    %6973 = vmatprep.mubr.f32.mxu0 0.0
    %6974 = vmatmul.mubr.f32.gmra.mrb[0].mxu0 %v6771
    %v6975 = vpop.f32.mrb[0].mxu0
    %v6976 = vadd.f32 0.0, %v6975
    %v6977 = vpop.f32.mrb[0].mxu0
    %6978 = vdwg.mxu0
    %v6979 = vmax.f32 %v6961, 1e-24
    %v6980 = vmax.f32 %v6966, 1e-24
    %v6981 = vmax.f32 %v6971, 1e-24
    %v6982 = vmax.f32 %v6976, 1e-24
    %v6983 = vrsqrt.pop %v6979
    %v6984 = vrsqrt.pop %v6980
    %v6985 = vrsqrt.pop %v6981
    %v6986 = vrsqrt.pop %v6982
    %v6987 = vmul.f32 %v6886, %v6983
    %v6988 = vmul.f32 %v6887, %v6984
    %v6989 = vmul.f32 %v6888, %v6985
    %v6990 = vmul.f32 %v6889, %v6986
    %v6991 = vmul.f32 %v6728, %v6728
    %v6992 = vmul.f32 %v6729, %v6729
    %v6993 = vmul.f32 %v6730, %v6730
    %v6994 = vmul.f32 %v6731, %v6731
    %v6995 = vsel %vm165, %v6991, 0.0
    %6996 = vadd.xlane.f32.xlu0 %v6995
    %v6997 = vpop.xlane.xlu0 %6996
    %v6998 = vsel %vm165, %v6992, 0.0
    %6999 = vadd.xlane.f32.xlu0 %v6998
    %v7000 = vpop.xlane.xlu0 %6999
    %v7001 = vsel %vm165, %v6993, 0.0
    %7002 = vadd.xlane.f32.xlu0 %v7001
    %v7003 = vpop.xlane.xlu0 %7002
    %v7004 = vsel %vm165, %v6994, 0.0
    %7005 = vadd.xlane.f32.xlu0 %v7004
    %v7006 = vpop.xlane.xlu0 %7005
    %v7007 = vmul.f32 %v6997, %v6748
    %v7008 = vmul.f32 %v7000, %v6748
    %v7009 = vmul.f32 %v7003, %v6748
    %v7010 = vmul.f32 %v7006, %v6748
    %v7011 = vmul.f32 %v7007, %v7007
    %v7012 = vmul.f32 %v7008, %v7008
    %v7013 = vmul.f32 %v7009, %v7009
    %v7014 = vmul.f32 %v7010, %v7010
    %7015 = vmatprep.subr.mxu0 0.0
    %7016 = vmatpush1.msra.mxu0 %v7011
    %7017 = vmatprep.subr.mxu0 0.0
    %7018 = vmatpush1.msra.mxu0 %v7012
    %7019 = vmatprep.subr.mxu0 0.0
    %7020 = vmatpush1.msra.mxu0 %v7013
    %7021 = vmatprep.subr.mxu0 0.0
    %7022 = vmatpush1.msra.mxu0 %v7014
    %7023 = vmatprep.subr.mxu0 0.0
    %7024 = vmatpush1.msra.mxu0 0.0
    %7025 = vmatprep.subr.mxu0 0.0
    %7026 = vmatpush1.msra.mxu0 0.0
    %7027 = vmatprep.subr.mxu0 0.0
    %7028 = vmatpush1.msra.mxu0 0.0
    %7029 = vmatprep.subr.mxu0 0.0
    %7030 = vmatpush1.msra.mxu0 0.0
    %7031 = vmatprep.subr.mxu0 0.0
    %7032 = vmatpush1.msra.mxu0 0.0
    %7033 = vmatprep.subr.mxu0 0.0
    %7034 = vmatpush1.msra.mxu0 0.0
    %7035 = vmatprep.subr.mxu0 0.0
    %7036 = vmatpush1.msra.mxu0 0.0
    %7037 = vmatprep.subr.mxu0 0.0
    %7038 = vmatpush1.msra.mxu0 0.0
    %7039 = vmatprep.subr.mxu0 0.0
    %7040 = vmatpush1.msra.mxu0 0.0
    %7041 = vmatprep.subr.mxu0 0.0
    %7042 = vmatpush1.msra.mxu0 0.0
    %7043 = vmatprep.subr.mxu0 0.0
    %7044 = vmatpush1.msra.mxu0 0.0
    %7045 = vmatprep.subr.mxu0 0.0
    %7046 = vmatpush1.msra.mxu0 0.0
    %7047 = vmatprep.subr.mxu0 0.0
    %7048 = vmatpush1.msra.mxu0 0.0
    %7049 = vmatprep.subr.mxu0 0.0
    %7050 = vmatpush1.msra.mxu0 0.0
    %7051 = vmatprep.subr.mxu0 0.0
    %7052 = vmatpush1.msra.mxu0 0.0
    %7053 = vmatprep.subr.mxu0 0.0
    %7054 = vmatpush1.msra.mxu0 0.0
    %7055 = vmatprep.subr.mxu0 0.0
    %7056 = vmatpush1.msra.mxu0 0.0
    %7057 = vmatprep.subr.mxu0 0.0
    %7058 = vmatpush1.msra.mxu0 0.0
    %7059 = vmatprep.subr.mxu0 0.0
    %7060 = vmatpush1.msra.mxu0 0.0
    %7061 = vmatprep.subr.mxu0 0.0
    %7062 = vmatpush1.msra.mxu0 0.0
    %7063 = vmatprep.subr.mxu0 0.0
    %7064 = vmatpush1.msra.mxu0 0.0
    %7065 = vmatprep.subr.mxu0 0.0
    %7066 = vmatpush1.msra.mxu0 0.0
    %7067 = vmatprep.subr.mxu0 0.0
    %7068 = vmatpush1.msra.mxu0 0.0
    %7069 = vmatprep.subr.mxu0 0.0
    %7070 = vmatpush1.msra.mxu0 0.0
    %7071 = vmatprep.subr.mxu0 0.0
    %7072 = vmatpush1.msra.mxu0 0.0
    %7073 = vmatprep.subr.mxu0 0.0
    %7074 = vmatpush1.msra.mxu0 0.0
    %7075 = vmatprep.subr.mxu0 0.0
    %7076 = vmatpush1.msra.mxu0 0.0
    %7077 = vmatprep.subr.mxu0 0.0
    %7078 = vmatpush1.msra.mxu0 0.0
    %7079 = vmatprep.mubr.f32.mxu0 0.0
    %7080 = vmatmul.mubr.f32.gmra.mrb[0].mxu0 %v6762
    %v7081 = vpop.f32.mrb[0].mxu0
    %v7082 = vadd.f32 0.0, %v7081
    %v7083 = vpop.f32.mrb[0].mxu0
    %7084 = vmatprep.mubr.f32.mxu0 0.0
    %7085 = vmatmul.mubr.f32.gmra.mrb[0].mxu0 %v6765
    %v7086 = vpop.f32.mrb[0].mxu0
    %v7087 = vadd.f32 0.0, %v7086
    %v7088 = vpop.f32.mrb[0].mxu0
    %7089 = vmatprep.mubr.f32.mxu0 0.0
    %7090 = vmatmul.mubr.f32.gmra.mrb[0].mxu0 %v6768
    %v7091 = vpop.f32.mrb[0].mxu0
    %v7092 = vadd.f32 0.0, %v7091
    %v7093 = vpop.f32.mrb[0].mxu0
    %7094 = vmatprep.mubr.f32.mxu0 0.0
    %7095 = vmatmul.mubr.f32.gmra.mrb[0].mxu0 %v6771
    %v7096 = vpop.f32.mrb[0].mxu0
    %v7097 = vadd.f32 0.0, %v7096
    %v7098 = vpop.f32.mrb[0].mxu0
    %7099 = vdwg.mxu0
    %v7100 = vmax.f32 %v7082, 1e-24
    %v7101 = vmax.f32 %v7087, 1e-24
    %v7102 = vmax.f32 %v7092, 1e-24
    %v7103 = vmax.f32 %v7097, 1e-24
    %v7104 = vrsqrt.pop %v7100
    %v7105 = vrsqrt.pop %v7101
    %v7106 = vrsqrt.pop %v7102
    %v7107 = vrsqrt.pop %v7103
    %v7108 = vmul.f32 %v7007, %v7104
    %v7109 = vmul.f32 %v7008, %v7105
    %v7110 = vmul.f32 %v7009, %v7106
    %v7111 = vmul.f32 %v7010, %v7107
    %v7112 = vadd.f32 %v6866, %v6987
    %v7113 = vadd.f32 %v6867, %v6988
    %v7114 = vadd.f32 %v6868, %v6989
    %v7115 = vadd.f32 %v6869, %v6990
    %v7116 = vadd.f32 %v7112, %v7108
    %v7117 = vadd.f32 %v7113, %v7109
    %v7118 = vadd.f32 %v7114, %v7110
    %v7119 = vadd.f32 %v7115, %v7111
    %v7120 = vadd.f32 %v160, %v5124
    %v7121 = vadd.f32 %v161, %v5125
    %v7122 = vadd.f32 %v162, %v5126
    %v7123 = vadd.f32 %v163, %v5127
    %v7124 = vadd.f32 %v7120, %v6728
    %v7125 = vadd.f32 %v7121, %v6729
    %v7126 = vadd.f32 %v7122, %v6730
    %v7127 = vadd.f32 %v7123, %v6731
    %v7128 = vmul.f32 %v7124, %v7116
    %v7129 = vmul.f32 %v7125, %v7117
    %v7130 = vmul.f32 %v7126, %v7118
    %v7131 = vmul.f32 %v7127, %v7119
    %v7132 = vld [vmem:[%s3] sm:$0x3]
    %v7134 = vsel %vm359, %v7132, 0
    %7136 = vmatprep.subr.mxu0 0.0
    %7137 = vmatpush1.msra.mxu0 %v7128
    %7138 = vmatprep.subr.mxu0 0.0
    %7139 = vmatpush1.msra.mxu0 %v7129
    %7140 = vmatprep.subr.mxu0 0.0
    %7141 = vmatpush1.msra.mxu0 %v7130
    %7142 = vmatprep.subr.mxu0 0.0
    %7143 = vmatpush1.msra.mxu0 %v7131
    %7144 = vmatprep.subr.mxu0 0.0
    %7145 = vmatpush1.msra.mxu0 0.0
    %7146 = vmatprep.subr.mxu0 0.0
    %7147 = vmatpush1.msra.mxu0 0.0
    %7148 = vmatprep.subr.mxu0 0.0
    %7149 = vmatpush1.msra.mxu0 0.0
    %7150 = vmatprep.subr.mxu0 0.0
    %7151 = vmatpush1.msra.mxu0 0.0
    %7152 = vmatprep.subr.mxu0 0.0
    %7153 = vmatpush1.msra.mxu0 0.0
    %7154 = vmatprep.subr.mxu0 0.0
    %7155 = vmatpush1.msra.mxu0 0.0
    %7156 = vmatprep.subr.mxu0 0.0
    %7157 = vmatpush1.msra.mxu0 0.0
    %7158 = vmatprep.subr.mxu0 0.0
    %7159 = vmatpush1.msra.mxu0 0.0
    %7160 = vmatprep.subr.mxu0 0.0
    %7161 = vmatpush1.msra.mxu0 0.0
    %7162 = vmatprep.subr.mxu0 0.0
    %7163 = vmatpush1.msra.mxu0 0.0
    %7164 = vmatprep.subr.mxu0 0.0
    %7165 = vmatpush1.msra.mxu0 0.0
    %7166 = vmatprep.subr.mxu0 0.0
    %7167 = vmatpush1.msra.mxu0 0.0
    %7168 = vmatprep.subr.mxu0 0.0
    %7169 = vmatpush1.msra.mxu0 0.0
    %7170 = vmatprep.subr.mxu0 0.0
    %7171 = vmatpush1.msra.mxu0 0.0
    %7172 = vmatprep.subr.mxu0 0.0
    %7173 = vmatpush1.msra.mxu0 0.0
    %7174 = vmatprep.subr.mxu0 0.0
    %7175 = vmatpush1.msra.mxu0 0.0
    %7176 = vmatprep.subr.mxu0 0.0
    %7177 = vmatpush1.msra.mxu0 0.0
    %7178 = vmatprep.subr.mxu0 0.0
    %7179 = vmatpush1.msra.mxu0 0.0
    %7180 = vmatprep.subr.mxu0 0.0
    %7181 = vmatpush1.msra.mxu0 0.0
    %7182 = vmatprep.subr.mxu0 0.0
    %7183 = vmatpush1.msra.mxu0 0.0
    %7184 = vmatprep.subr.mxu0 0.0
    %7185 = vmatpush1.msra.mxu0 0.0
    %7186 = vmatprep.subr.mxu0 0.0
    %7187 = vmatpush1.msra.mxu0 0.0
    %7188 = vmatprep.subr.mxu0 0.0
    %7189 = vmatpush1.msra.mxu0 0.0
    %7190 = vmatprep.subr.mxu0 0.0
    %7191 = vmatpush1.msra.mxu0 0.0
    %7192 = vmatprep.subr.mxu0 0.0
    %7193 = vmatpush1.msra.mxu0 0.0
    %7194 = vmatprep.subr.mxu0 0.0
    %7195 = vmatpush1.msra.mxu0 0.0
    %7196 = vmatprep.subr.mxu0 0.0
    %7197 = vmatpush1.msra.mxu0 0.0
    %7198 = vmatprep.subr.mxu0 0.0
    %7199 = vmatpush1.msra.mxu0 0.0
    %7200 = vmatprep.mubr.f32.mxu0 0.0
    %7201 = vmatmul.mubr.f32.gmra.mrb[0].mxu0 %v7134
    %v7202 = vpop.f32.mrb[0].mxu0
    %v7203 = vadd.f32 0.0, %v7202
    %v7204 = vpop.f32.mrb[0].mxu0
    %7205 = vdwg.mxu0
    %v7206 = vld [vmem:[%s8] sm:$0xff]
    %v7207 = vld [vmem:[%s9] sm:$0x1]
    %v7209 = vlaneseq
    %v7210 = vshrl.u32 %v7209, 7
    %v7211 = vsub.s32 0, %v7210
    %v7212 = vrot.slane %v7207, %v7211
    %v7215 = vsel %vm165, %v7203, 0
    %7217 = vmatprep.subr.mxu0 0.0
    %7218 = vmatpush1.msra.mxu0 %v7206
    %7219 = vmatprep.subr.mxu0 0.0
    %7220 = vmatpush1.msra.mxu0 0.0
    %7221 = vmatprep.subr.mxu0 0.0
    %7222 = vmatpush1.msra.mxu0 0.0
    %7223 = vmatprep.subr.mxu0 0.0
    %7224 = vmatpush1.msra.mxu0 0.0
    %7225 = vmatprep.subr.mxu0 0.0
    %7226 = vmatpush1.msra.mxu0 0.0
    %7227 = vmatprep.subr.mxu0 0.0
    %7228 = vmatpush1.msra.mxu0 0.0
    %7229 = vmatprep.subr.mxu0 0.0
    %7230 = vmatpush1.msra.mxu0 0.0
    %7231 = vmatprep.subr.mxu0 0.0
    %7232 = vmatpush1.msra.mxu0 0.0
    %7233 = vmatprep.subr.mxu0 0.0
    %7234 = vmatpush1.msra.mxu0 0.0
    %7235 = vmatprep.subr.mxu0 0.0
    %7236 = vmatpush1.msra.mxu0 0.0
    %7237 = vmatprep.subr.mxu0 0.0
    %7238 = vmatpush1.msra.mxu0 0.0
    %7239 = vmatprep.subr.mxu0 0.0
    %7240 = vmatpush1.msra.mxu0 0.0
    %7241 = vmatprep.subr.mxu0 0.0
    %7242 = vmatpush1.msra.mxu0 0.0
    %7243 = vmatprep.subr.mxu0 0.0
    %7244 = vmatpush1.msra.mxu0 0.0
    %7245 = vmatprep.subr.mxu0 0.0
    %7246 = vmatpush1.msra.mxu0 0.0
    %7247 = vmatprep.subr.mxu0 0.0
    %7248 = vmatpush1.msra.mxu0 0.0
    %7249 = vmatprep.subr.mxu0 0.0
    %7250 = vmatpush1.msra.mxu0 0.0
    %7251 = vmatprep.subr.mxu0 0.0
    %7252 = vmatpush1.msra.mxu0 0.0
    %7253 = vmatprep.subr.mxu0 0.0
    %7254 = vmatpush1.msra.mxu0 0.0
    %7255 = vmatprep.subr.mxu0 0.0
    %7256 = vmatpush1.msra.mxu0 0.0
    %7257 = vmatprep.subr.mxu0 0.0
    %7258 = vmatpush1.msra.mxu0 0.0
    %7259 = vmatprep.subr.mxu0 0.0
    %7260 = vmatpush1.msra.mxu0 0.0
    %7261 = vmatprep.subr.mxu0 0.0
    %7262 = vmatpush1.msra.mxu0 0.0
    %7263 = vmatprep.subr.mxu0 0.0
    %7264 = vmatpush1.msra.mxu0 0.0
    %7265 = vmatprep.subr.mxu0 0.0
    %7266 = vmatpush1.msra.mxu0 0.0
    %7267 = vmatprep.subr.mxu0 0.0
    %7268 = vmatpush1.msra.mxu0 0.0
    %7269 = vmatprep.subr.mxu0 0.0
    %7270 = vmatpush1.msra.mxu0 0.0
    %7271 = vmatprep.subr.mxu0 0.0
    %7272 = vmatpush1.msra.mxu0 0.0
    %7273 = vmatprep.subr.mxu0 0.0
    %7274 = vmatpush1.msra.mxu0 0.0
    %7275 = vmatprep.subr.mxu0 0.0
    %7276 = vmatpush1.msra.mxu0 0.0
    %7277 = vmatprep.subr.mxu0 0.0
    %7278 = vmatpush1.msra.mxu0 0.0
    %7279 = vmatprep.subr.mxu0 0.0
    %7280 = vmatpush1.msra.mxu0 0.0
    %7281 = vmatprep.mubr.f32.mxu0 0.0
    %7282 = vmatmul.mubr.f32.gmra.mrb[0].mxu0 %v7215
    %v7283 = vpop.f32.mrb[0].mxu0
    %v7284 = vadd.f32 %v7212, %v7283
    %v7285 = vpop.f32.mrb[0].mxu0
    %7286 = vdwg.mxu0
    %vm7287 = vcmask 123904
    %7288 = vst.msk [vmem:[#allocation2] sm:$0x3] %vm7287, %v7284
    %vm7289 = vcmask 7168
    %7290 = vst.msk [vmem:[%s11] sm:$0xff] %vm7289, %v6866
    %7291 = vst.msk [vmem:[%s11 + $0x8] sm:$0xff] %vm7289, %v6867
    %7292 = vst.msk [vmem:[%s11 + $0x10] sm:$0xff] %vm7289, %v6868
    %7293 = vst.msk [vmem:[%s11 + $0x18] sm:$0xff] %vm7289, %v6869
    %7294 = vst.msk [vmem:[%s12] sm:$0xff] %vm7289, %v6987
    %7295 = vst.msk [vmem:[%s12 + $0x8] sm:$0xff] %vm7289, %v6988
    %7296 = vst.msk [vmem:[%s12 + $0x10] sm:$0xff] %vm7289, %v6989
    %7297 = vst.msk [vmem:[%s12 + $0x18] sm:$0xff] %vm7289, %v6990
    %7298 = vst.msk [vmem:[%s13] sm:$0xff] %vm7289, %v7108
    %7299 = vst.msk [vmem:[%s13 + $0x8] sm:$0xff] %vm7289, %v7109
    %7300 = vst.msk [vmem:[%s13 + $0x10] sm:$0xff] %vm7289, %v7110
    %7301 = vst.msk [vmem:[%s13 + $0x18] sm:$0xff] %vm7289, %v7111
    %vm7302 = vcmask 58368
    %7303 = vst.msk [vmem:[#allocation4] sm:$0x3] %vm7302, %v7203
    // Predicated region
    $region42: #{drn1_forward.9} parent=1 // pred_check
      _
    $region43: #{drn1_forward.9} parent=1 // pred_check_branch
      %7305 = sbr.rel (0) target = $region45
    $region44: #{drn1_forward.9} parent=1 // pred_region
      %s7307 = ssub.s32 32, 32
      %7308 = vsyncadd [#allocation3], %s7307
      %s7310 = sshll.u32 [#allocation2], 4
      %s7311 = int_to_ptr.vmem [resolvable:$true] %s7310
      %7313 = dma.vmem_to_hbm [thread:$0]  %s7311, 32, %s10, [#allocation3]
    $region45: #{drn1_forward.9} parent=1 // pred_fallthru
      _
    // Predicated region
    $region46: #{drn1_forward.9} parent=1 // pred_check
      _
    $region47: #{drn1_forward.9} parent=1 // pred_check_branch
      %7315 = sbr.rel (0) target = $region49
    $region48: #{drn1_forward.9} parent=1 // pred_region
      _
    $region49: #{drn1_forward.9} parent=1 // pred_fallthru
      _
    // Predicated region
    $region50: #{drn1_forward.9} parent=1 // pred_check
      _
    $region51: #{drn1_forward.9} parent=1 // pred_check_branch
      %7317 = sbr.rel (0) target = $region53
    $region52: #{drn1_forward.9} parent=1 // pred_region
      _
    $region53: #{drn1_forward.9} parent=1 // pred_fallthru
      _
    // Predicated region
    $region54: #{drn1_forward.9} parent=1 // pred_check
      _
    $region55: #{drn1_forward.9} parent=1 // pred_check_branch
      %7319 = sbr.rel (0) target = $region57
    $region56: #{drn1_forward.9} parent=1 // pred_region
      _
    $region57: #{drn1_forward.9} parent=1 // pred_fallthru
      _
    // Predicated region
    $region58: #{drn1_forward.9} parent=1 // pred_check
      _
    $region59: #{drn1_forward.9} parent=1 // pred_check_branch
      %7321 = sbr.rel (0) target = $region61
    $region60: #{drn1_forward.9} parent=1 // pred_region
      %s7323 = ssub.s32 32, 32
      %7324 = vsyncadd [#allocation5], %s7323
      %s7326 = sshll.u32 [#allocation4], 4
      %s7327 = int_to_ptr.vmem [resolvable:$true] %s7326
      %7329 = dma.vmem_to_hbm [thread:$0]  %s7327, 32, %s14, [#allocation5]
    $region61: #{drn1_forward.9} parent=1 // pred_fallthru
      _
    // Predicated region
    $region62: #{drn1_forward.9} parent=1 // pred_check
      _
    $region63: #{drn1_forward.9} parent=1 // pred_check_branch
      %7331 = sbr.rel (0) target = $region65
    $region64: #{drn1_forward.9} parent=1 // pred_region
      %7332 = dma.done [#allocation3], 32
    $region65: #{drn1_forward.9} parent=1 // pred_fallthru
      _
    // Predicated region
    $region66: #{drn1_forward.9} parent=1 // pred_check
      _
    $region67: #{drn1_forward.9} parent=1 // pred_check_branch
      %7334 = sbr.rel (0) target = $region69
    $region68: #{drn1_forward.9} parent=1 // pred_region
      _
    $region69: #{drn1_forward.9} parent=1 // pred_fallthru
      _
    // Predicated region
    $region70: #{drn1_forward.9} parent=1 // pred_check
      _
    $region71: #{drn1_forward.9} parent=1 // pred_check_branch
      %7336 = sbr.rel (0) target = $region73
    $region72: #{drn1_forward.9} parent=1 // pred_region
      _
    $region73: #{drn1_forward.9} parent=1 // pred_fallthru
      _
    // Predicated region
    $region74: #{drn1_forward.9} parent=1 // pred_check
      _
    $region75: #{drn1_forward.9} parent=1 // pred_check_branch
      %7338 = sbr.rel (0) target = $region77
    $region76: #{drn1_forward.9} parent=1 // pred_region
      _
    $region77: #{drn1_forward.9} parent=1 // pred_fallthru
      _
    // Predicated region
    $region78: #{drn1_forward.9} parent=1 // pred_check
      _
    $region79: #{drn1_forward.9} parent=1 // pred_check_branch
      %7340 = sbr.rel (0) target = $region81
    $region80: #{drn1_forward.9} parent=1 // pred_region
      %7341 = dma.done [#allocation5], 32
    $region81: #{drn1_forward.9} parent=1 // pred_fallthru
      _
    %7342 = vsyncpa [#allocation3], 1
    %7343 = vsyncpa [#allocation5], 1

</llo_original>
